<compile_context>
chip_gen: v7x
topology: tpu7x:2x2x1
jax: 0.10.0
libtpu: 0.0.40
codegen_flags: <defaults>
</compile_context>

<pallas_src>
import math
import functools

import jax
import jax.numpy as jnp
from jax.experimental import pallas as pl
from jax.experimental.pallas import tpu as pltpu


# ----------------------------------------------------------------------------
# In-kernel building block (operates on VMEM values, length-last layout)
# ----------------------------------------------------------------------------
def _conv_bn_relu_pool(x, w, gamma, beta, sel, *,
                       cin, ksize, stride, t_out, pool, eps):
    """One M5Block on in-VMEM values.

    x     : (B, cin*stride, L_in // stride)  phase-decomposed input
            x[b, ci*stride + p, u] == input[b, ci, u*stride + p]
    w     : (cout, cin*ksize)                conv weight (PyTorch layout, flat)
    gamma, beta : (cout, 1)                  BN affine params
    sel   : (u, p_out)                       0/1 pool-downsample matrix (input)
    returns (B, cout, p_out)
    """
    B = x.shape[0]
    cout = w.shape[0]
    u, p_out = sel.shape

    # ---- Conv1d as shifted VPU MACs (length on lanes => shifts are cheap) ---
    acc = None
    for ci in range(cin):
        for k in range(ksize):
            row = ci * stride + (k % stride)          # static sublane pick
            sh = k // stride                          # static lane shift
            xs = x[:, row:row + 1, sh:sh + t_out]               # (B, 1, T)
            wc = w[:, ci * ksize + k: ci * ksize + k + 1]       # (cout, 1)
            term = wc * xs                                      # (B, cout, T)
            acc = term if acc is None else acc + term

    # ---- BatchNorm1d (training-mode batch stats) fused with ReLU ------------
    # The PyTorch conv bias cancels exactly under the batch-mean subtraction,
    # so stats are taken on `acc` and the whole epilogue is one multiply-add.
    n = float(B * t_out)
    s1 = jnp.sum(jnp.sum(acc, axis=2, keepdims=True), axis=0, keepdims=True)
    s2 = jnp.sum(jnp.sum(acc * acc, axis=2, keepdims=True),
                 axis=0, keepdims=True)               # (1, cout, 1)
    mean = s1 / n
    var = jnp.maximum(s2 / n - mean * mean, 0.0)      # biased variance
    scale = gamma * jax.lax.rsqrt(var + eps)          # (1, cout, 1)
    shift = beta - mean * scale                       # (1, cout, 1)
    yr = jnp.maximum(acc * scale + shift, 0.0)        # BN + ReLU, single pass

    # ---- MaxPool1d(pool): shifted window max + 2-D selection-matmul ---------
    m = yr[:, :, 0:u]
    for r in range(1, pool):
        m = jnp.maximum(m, yr[:, :, r:r + u])         # (B, cout, u)
    m2 = m.reshape(B * cout, u)                       # layout-preserving merge
    pooled = jnp.dot(m2, sel, preferred_element_type=jnp.float32)
    return pooled.reshape(B, cout, p_out)             # (B, cout, p_out)


def _make_fused_kernel(block_dims, eps):
    """Whole-network kernel: 4 x (conv+BN+ReLU+pool) + avgpool + fc + logsoftmax."""

    def kernel(*refs):
        x_ref = refs[0]
        out_ref = refs[-1]
        prefs = refs[1:-1]

        h = x_ref[...]                                # (B, Cin0*stride, L/stride)
        i = 0
        for bd in block_dims:
            w = prefs[i][...]
            gamma = prefs[i + 1][...]
            beta = prefs[i + 2][...]
            sel = prefs[i + 3][...]
            i += 4
            h = _conv_bn_relu_pool(h, w, gamma, beta, sel, eps=eps, **bd)

        fcw = prefs[i][...]                           # (C_last, n_output)
        fcb = prefs[i + 1][...]                       # (1, n_output)

        # adaptive_avg_pool1d(1) + permute + Linear + log_softmax
        xm = jnp.mean(h, axis=2)                      # (B, C_last)
        z = jnp.dot(xm, fcw, preferred_element_type=jnp.float32) + fcb
        zs = z - jnp.max(z, axis=-1, keepdims=True)
        out_ref[...] = zs - jnp.log(jnp.sum(jnp.exp(zs), axis=-1, keepdims=True))

    return kernel


# ----------------------------------------------------------------------------
# Wrapper: tiny XLA-side prep (phase decomposition, constant pool matrices,
# parameter reshapes) + single pallas_call
# ----------------------------------------------------------------------------
def _full_spec(shape):
    nd = len(shape)
    return pl.BlockSpec(shape, lambda i, _nd=nd: (0,) * _nd)


def m5_forward(params, x_ncl, stride, eps=1e-5, pool=4):
    """x_ncl: (B, n_input, L) -> (B, 1, n_output) log-probabilities."""
    B, cin0, L = x_ncl.shape
    assert L % stride == 0, "L must be divisible by the first-conv stride"
    lp = L // stride

    # Phase-decompose the raw input for the strided first conv (tiny glue):
    #   x_ph[b, ci*stride + p, u] = x[b, ci, u*stride + p]
    x_ph = (x_ncl.reshape(B, cin0, lp, stride)
                 .transpose(0, 1, 3, 2)
                 .reshape(B, cin0 * stride, lp)).astype(jnp.float32)

    strides = [stride, 1, 1, 1]
    args = [x_ph]
    block_dims = []
    t_in, cin = L, cin0
    for blk, s in zip(params["blocks"], strides):
        cout, cin_w, k = blk["W"].shape
        assert cin_w == cin
        t_out = (t_in - k) // s + 1
        p_out = t_out // pool
        u = t_out - (pool - 1)
        assert p_out >= 1, "input length too small for this network"
        # Compile-time 0/1 pool-downsample matrix, built outside the kernel.
        sel = (jnp.arange(u, dtype=jnp.int32)[:, None] ==
               jnp.arange(p_out, dtype=jnp.int32)[None, :] * pool
               ).astype(jnp.float32)                  # (u, p_out)
        block_dims.append(dict(cin=cin, ksize=k, stride=s,
                               t_out=t_out, pool=pool))
        # NOTE: blk["b"] (conv bias) is intentionally NOT passed — it cancels
        # exactly under training-mode BatchNorm (see kernel comment).
        args += [blk["W"].reshape(cout, cin * k).astype(jnp.float32),
                 blk["gamma"].reshape(cout, 1),
                 blk["beta"].reshape(cout, 1),
                 sel]
        t_in, cin = p_out, cout

    n_out = params["fc_w"].shape[0]
    args += [params["fc_w"].T, params["fc_b"].reshape(1, n_out)]

    out = pl.pallas_call(
        _make_fused_kernel(tuple(block_dims), eps),
        out_shape=jax.ShapeDtypeStruct((B, n_out), jnp.float32),
        grid=(1,),
        in_specs=[_full_spec(a.shape) for a in args],
        out_specs=_full_spec((B, n_out)),
        compiler_params=pltpu.CompilerParams(dimension_semantics=("arbitrary",)),
    )(*args)

    return out[:, None, :]                            # (B, 1, n_output)


# ----------------------------------------------------------------------------
# Parameter init (deterministic, PyTorch-default-style shapes/ranges)
# ----------------------------------------------------------------------------
def init_params(key, n_input, n_output, n_channel, conv_kernel_sizes):
    specs = [
        (n_input, n_channel, conv_kernel_sizes[0]),
        (n_channel, n_channel, conv_kernel_sizes[1]),
        (n_channel, 2 * n_channel, conv_kernel_sizes[2]),
        (2 * n_channel, 2 * n_channel, conv_kernel_sizes[3]),
    ]
    params = {"blocks": []}
    for cin, cout, k in specs:
        key, kw, kb = jax.random.split(key, 3)
        bound = 1.0 / math.sqrt(cin * k)
        W = jax.random.uniform(kw, (cout, cin, k), jnp.float32, -bound, bound)
        b = jax.random.uniform(kb, (cout,), jnp.float32, -bound, bound)
        params["blocks"].append({
            "W": W, "b": b,   # bias kept for PyTorch param parity; unused (cancels under BN)
            "gamma": jnp.ones((cout,), jnp.float32),
            "beta": jnp.zeros((cout,), jnp.float32),
        })
    key, kw, kb = jax.random.split(key, 3)
    bound = 1.0 / math.sqrt(2 * n_channel)
    params["fc_w"] = jax.random.uniform(kw, (n_output, 2 * n_channel),
                                        jnp.float32, -bound, bound)
    params["fc_b"] = jax.random.uniform(kb, (n_output,), jnp.float32,
                                        -bound, bound)
    return params


# ----------------------------------------------------------------------------
if __name__ == "__main__":
    # M5Modular(n_input=1, n_output=10, stride=4, n_channel=8,
    #           conv_kernel_sizes=[8, 3, 3, 3]) on a small waveform input.
    B = 2
    n_input, n_output, stride, n_channel = 1, 10, 4, 8
    conv_kernel_sizes = [8, 3, 3, 3]
    L = 4096

    key = jax.random.PRNGKey(0)
    kx, kp = jax.random.split(key)
    x = jax.random.normal(kx, (B, n_input, L), jnp.float32)   # NCL, like PyTorch
    params = init_params(kp, n_input, n_output, n_channel, conv_kernel_sizes)

    fwd = jax.jit(functools.partial(m5_forward, stride=stride))
    out = jax.block_until_ready(fwd(params, x))

    assert out.shape == (B, 1, n_output), out.shape
    # log_softmax sanity: probabilities sum to 1
    probs = jnp.exp(out).sum(axis=-1)
    assert bool(jnp.allclose(probs, 1.0, atol=1e-4)), probs
    print("KERNEL_OK")
</pallas_src>

<mosaic_0001>
module attributes {stable_mosaic.version = 11 : i64} {
  func.func @kernel(%arg0: i32, %arg1: memref<2x4x1024xf32, #tpu.memory_space<vmem>>, %arg2: memref<8x8xf32, #tpu.memory_space<vmem>>, %arg3: memref<8x1xf32, #tpu.memory_space<vmem>>, %arg4: memref<8x1xf32, #tpu.memory_space<vmem>>, %arg5: memref<1020x255xf32, #tpu.memory_space<vmem>>, %arg6: memref<8x24xf32, #tpu.memory_space<vmem>>, %arg7: memref<8x1xf32, #tpu.memory_space<vmem>>, %arg8: memref<8x1xf32, #tpu.memory_space<vmem>>, %arg9: memref<250x63xf32, #tpu.memory_space<vmem>>, %arg10: memref<16x24xf32, #tpu.memory_space<vmem>>, %arg11: memref<16x1xf32, #tpu.memory_space<vmem>>, %arg12: memref<16x1xf32, #tpu.memory_space<vmem>>, %arg13: memref<58x15xf32, #tpu.memory_space<vmem>>, %arg14: memref<16x48xf32, #tpu.memory_space<vmem>>, %arg15: memref<16x1xf32, #tpu.memory_space<vmem>>, %arg16: memref<16x1xf32, #tpu.memory_space<vmem>>, %arg17: memref<10x3xf32, #tpu.memory_space<vmem>>, %arg18: memref<16x10xf32, #tpu.memory_space<vmem>>, %arg19: memref<1x10xf32, #tpu.memory_space<vmem>>, %arg20: memref<2x10xf32, #tpu.memory_space<vmem>>) attributes {dimension_semantics = [#tpu.dimension_semantics<arbitrary>], iteration_bounds = array<i64: 1>, scalar_prefetch = 0 : i64, scratch_operands = 0 : i64, tpu.core_type = #tpu.core_type<tc>, window_params = [{pipeline_mode = #tpu.pipeline_mode<synchronous>, transform_indices = @transform_0, window_bounds = array<i64: 2, 4, 1024>}, {pipeline_mode = #tpu.pipeline_mode<synchronous>, transform_indices = @transform_1, window_bounds = array<i64: 8, 8>}, {pipeline_mode = #tpu.pipeline_mode<synchronous>, transform_indices = @transform_2, window_bounds = array<i64: 8, 1>}, {pipeline_mode = #tpu.pipeline_mode<synchronous>, transform_indices = @transform_3, window_bounds = array<i64: 8, 1>}, {pipeline_mode = #tpu.pipeline_mode<synchronous>, transform_indices = @transform_4, window_bounds = array<i64: 1020, 255>}, {pipeline_mode = #tpu.pipeline_mode<synchronous>, transform_indices = @transform_5, window_bounds = array<i64: 8, 24>}, {pipeline_mode = #tpu.pipeline_mode<synchronous>, transform_indices = @transform_6, window_bounds = array<i64: 8, 1>}, {pipeline_mode = #tpu.pipeline_mode<synchronous>, transform_indices = @transform_7, window_bounds = array<i64: 8, 1>}, {pipeline_mode = #tpu.pipeline_mode<synchronous>, transform_indices = @transform_8, window_bounds = array<i64: 250, 63>}, {pipeline_mode = #tpu.pipeline_mode<synchronous>, transform_indices = @transform_9, window_bounds = array<i64: 16, 24>}, {pipeline_mode = #tpu.pipeline_mode<synchronous>, transform_indices = @transform_10, window_bounds = array<i64: 16, 1>}, {pipeline_mode = #tpu.pipeline_mode<synchronous>, transform_indices = @transform_11, window_bounds = array<i64: 16, 1>}, {pipeline_mode = #tpu.pipeline_mode<synchronous>, transform_indices = @transform_12, window_bounds = array<i64: 58, 15>}, {pipeline_mode = #tpu.pipeline_mode<synchronous>, transform_indices = @transform_13, window_bounds = array<i64: 16, 48>}, {pipeline_mode = #tpu.pipeline_mode<synchronous>, transform_indices = @transform_14, window_bounds = array<i64: 16, 1>}, {pipeline_mode = #tpu.pipeline_mode<synchronous>, transform_indices = @transform_15, window_bounds = array<i64: 16, 1>}, {pipeline_mode = #tpu.pipeline_mode<synchronous>, transform_indices = @transform_16, window_bounds = array<i64: 10, 3>}, {pipeline_mode = #tpu.pipeline_mode<synchronous>, transform_indices = @transform_17, window_bounds = array<i64: 16, 10>}, {pipeline_mode = #tpu.pipeline_mode<synchronous>, transform_indices = @transform_18, window_bounds = array<i64: 1, 10>}, {pipeline_mode = #tpu.pipeline_mode<synchronous>, transform_indices = @transform_19, window_bounds = array<i64: 2, 10>}]} {
    %c0 = arith.constant 0 : index
    %c0_0 = arith.constant 0 : index
    %c0_1 = arith.constant 0 : index
    %0 = vector.load %arg1[%c0, %c0_0, %c0_1] : memref<2x4x1024xf32, #tpu.memory_space<vmem>>, vector<2x4x1024xf32>
    %c0_2 = arith.constant 0 : index
    %c0_3 = arith.constant 0 : index
    %1 = vector.load %arg2[%c0_2, %c0_3] : memref<8x8xf32, #tpu.memory_space<vmem>>, vector<8x8xf32>
    %c0_4 = arith.constant 0 : index
    %c0_5 = arith.constant 0 : index
    %2 = vector.load %arg3[%c0_4, %c0_5] : memref<8x1xf32, #tpu.memory_space<vmem>>, vector<8x1xf32>
    %c0_6 = arith.constant 0 : index
    %c0_7 = arith.constant 0 : index
    %3 = vector.load %arg4[%c0_6, %c0_7] : memref<8x1xf32, #tpu.memory_space<vmem>>, vector<8x1xf32>
    %c0_8 = arith.constant 0 : index
    %c0_9 = arith.constant 0 : index
    %4 = vector.load %arg5[%c0_8, %c0_9] : memref<1020x255xf32, #tpu.memory_space<vmem>>, vector<1020x255xf32>
    %5 = vector.extract_strided_slice %0 {offsets = [0, 0, 0], sizes = [2, 1, 1023], strides = [1, 1, 1]} : vector<2x4x1024xf32> to vector<2x1x1023xf32>
    %6 = vector.extract_strided_slice %1 {offsets = [0, 0], sizes = [8, 1], strides = [1, 1]} : vector<8x8xf32> to vector<8x1xf32>
    %7 = vector.shape_cast %6 : vector<8x1xf32> to vector<1x8x1xf32>
    %8 = vector.broadcast %7 : vector<1x8x1xf32> to vector<2x8x1023xf32>
    %9 = vector.broadcast %5 : vector<2x1x1023xf32> to vector<2x8x1023xf32>
    %10 = arith.mulf %8, %9 : vector<2x8x1023xf32>
    %11 = vector.extract_strided_slice %0 {offsets = [0, 1, 0], sizes = [2, 1, 1023], strides = [1, 1, 1]} : vector<2x4x1024xf32> to vector<2x1x1023xf32>
    %12 = vector.extract_strided_slice %1 {offsets = [0, 1], sizes = [8, 1], strides = [1, 1]} : vector<8x8xf32> to vector<8x1xf32>
    %13 = vector.shape_cast %12 : vector<8x1xf32> to vector<1x8x1xf32>
    %14 = vector.broadcast %13 : vector<1x8x1xf32> to vector<2x8x1023xf32>
    %15 = vector.broadcast %11 : vector<2x1x1023xf32> to vector<2x8x1023xf32>
    %16 = arith.mulf %14, %15 : vector<2x8x1023xf32>
    %17 = arith.addf %10, %16 : vector<2x8x1023xf32>
    %18 = vector.extract_strided_slice %0 {offsets = [0, 2, 0], sizes = [2, 1, 1023], strides = [1, 1, 1]} : vector<2x4x1024xf32> to vector<2x1x1023xf32>
    %19 = vector.extract_strided_slice %1 {offsets = [0, 2], sizes = [8, 1], strides = [1, 1]} : vector<8x8xf32> to vector<8x1xf32>
    %20 = vector.shape_cast %19 : vector<8x1xf32> to vector<1x8x1xf32>
    %21 = vector.broadcast %20 : vector<1x8x1xf32> to vector<2x8x1023xf32>
    %22 = vector.broadcast %18 : vector<2x1x1023xf32> to vector<2x8x1023xf32>
    %23 = arith.mulf %21, %22 : vector<2x8x1023xf32>
    %24 = arith.addf %17, %23 : vector<2x8x1023xf32>
    %25 = vector.extract_strided_slice %0 {offsets = [0, 3, 0], sizes = [2, 1, 1023], strides = [1, 1, 1]} : vector<2x4x1024xf32> to vector<2x1x1023xf32>
    %26 = vector.extract_strided_slice %1 {offsets = [0, 3], sizes = [8, 1], strides = [1, 1]} : vector<8x8xf32> to vector<8x1xf32>
    %27 = vector.shape_cast %26 : vector<8x1xf32> to vector<1x8x1xf32>
    %28 = vector.broadcast %27 : vector<1x8x1xf32> to vector<2x8x1023xf32>
    %29 = vector.broadcast %25 : vector<2x1x1023xf32> to vector<2x8x1023xf32>
    %30 = arith.mulf %28, %29 : vector<2x8x1023xf32>
    %31 = arith.addf %24, %30 : vector<2x8x1023xf32>
    %32 = vector.extract_strided_slice %0 {offsets = [0, 0, 1], sizes = [2, 1, 1023], strides = [1, 1, 1]} : vector<2x4x1024xf32> to vector<2x1x1023xf32>
    %33 = vector.extract_strided_slice %1 {offsets = [0, 4], sizes = [8, 1], strides = [1, 1]} : vector<8x8xf32> to vector<8x1xf32>
    %34 = vector.shape_cast %33 : vector<8x1xf32> to vector<1x8x1xf32>
    %35 = vector.broadcast %34 : vector<1x8x1xf32> to vector<2x8x1023xf32>
    %36 = vector.broadcast %32 : vector<2x1x1023xf32> to vector<2x8x1023xf32>
    %37 = arith.mulf %35, %36 : vector<2x8x1023xf32>
    %38 = arith.addf %31, %37 : vector<2x8x1023xf32>
    %39 = vector.extract_strided_slice %0 {offsets = [0, 1, 1], sizes = [2, 1, 1023], strides = [1, 1, 1]} : vector<2x4x1024xf32> to vector<2x1x1023xf32>
    %40 = vector.extract_strided_slice %1 {offsets = [0, 5], sizes = [8, 1], strides = [1, 1]} : vector<8x8xf32> to vector<8x1xf32>
    %41 = vector.shape_cast %40 : vector<8x1xf32> to vector<1x8x1xf32>
    %42 = vector.broadcast %41 : vector<1x8x1xf32> to vector<2x8x1023xf32>
    %43 = vector.broadcast %39 : vector<2x1x1023xf32> to vector<2x8x1023xf32>
    %44 = arith.mulf %42, %43 : vector<2x8x1023xf32>
    %45 = arith.addf %38, %44 : vector<2x8x1023xf32>
    %46 = vector.extract_strided_slice %0 {offsets = [0, 2, 1], sizes = [2, 1, 1023], strides = [1, 1, 1]} : vector<2x4x1024xf32> to vector<2x1x1023xf32>
    %47 = vector.extract_strided_slice %1 {offsets = [0, 6], sizes = [8, 1], strides = [1, 1]} : vector<8x8xf32> to vector<8x1xf32>
    %48 = vector.shape_cast %47 : vector<8x1xf32> to vector<1x8x1xf32>
    %49 = vector.broadcast %48 : vector<1x8x1xf32> to vector<2x8x1023xf32>
    %50 = vector.broadcast %46 : vector<2x1x1023xf32> to vector<2x8x1023xf32>
    %51 = arith.mulf %49, %50 : vector<2x8x1023xf32>
    %52 = arith.addf %45, %51 : vector<2x8x1023xf32>
    %53 = vector.extract_strided_slice %0 {offsets = [0, 3, 1], sizes = [2, 1, 1023], strides = [1, 1, 1]} : vector<2x4x1024xf32> to vector<2x1x1023xf32>
    %54 = vector.extract_strided_slice %1 {offsets = [0, 7], sizes = [8, 1], strides = [1, 1]} : vector<8x8xf32> to vector<8x1xf32>
    %55 = vector.shape_cast %54 : vector<8x1xf32> to vector<1x8x1xf32>
    %56 = vector.broadcast %55 : vector<1x8x1xf32> to vector<2x8x1023xf32>
    %57 = vector.broadcast %53 : vector<2x1x1023xf32> to vector<2x8x1023xf32>
    %58 = arith.mulf %56, %57 : vector<2x8x1023xf32>
    %59 = arith.addf %52, %58 : vector<2x8x1023xf32>
    %cst = arith.constant dense<0.000000e+00> : vector<2x8xf32>
    %60 = vector.multi_reduction <add>, %59, %cst [2] : vector<2x8x1023xf32> to vector<2x8xf32>
    %61 = vector.shape_cast %60 : vector<2x8xf32> to vector<2x8x1xf32>
    %cst_10 = arith.constant dense<0.000000e+00> : vector<8x1xf32>
    %62 = vector.multi_reduction <add>, %61, %cst_10 [0] : vector<2x8x1xf32> to vector<8x1xf32>
    %63 = vector.shape_cast %62 : vector<8x1xf32> to vector<1x8x1xf32>
    %64 = arith.mulf %59, %59 : vector<2x8x1023xf32>
    %cst_11 = arith.constant dense<0.000000e+00> : vector<2x8xf32>
    %65 = vector.multi_reduction <add>, %64, %cst_11 [2] : vector<2x8x1023xf32> to vector<2x8xf32>
    %66 = vector.shape_cast %65 : vector<2x8xf32> to vector<2x8x1xf32>
    %cst_12 = arith.constant dense<0.000000e+00> : vector<8x1xf32>
    %67 = vector.multi_reduction <add>, %66, %cst_12 [0] : vector<2x8x1xf32> to vector<8x1xf32>
    %68 = vector.shape_cast %67 : vector<8x1xf32> to vector<1x8x1xf32>
    %cst_13 = arith.constant 2.046000e+03 : f32
    %69 = vector.broadcast %cst_13 : f32 to vector<1x8x1xf32>
    %70 = arith.divf %63, %69 : vector<1x8x1xf32>
    %cst_14 = arith.constant 2.046000e+03 : f32
    %71 = vector.broadcast %cst_14 : f32 to vector<1x8x1xf32>
    %72 = arith.divf %68, %71 : vector<1x8x1xf32>
    %73 = arith.mulf %70, %70 : vector<1x8x1xf32>
    %74 = arith.subf %72, %73 : vector<1x8x1xf32>
    %cst_15 = arith.constant 0.000000e+00 : f32
    %75 = vector.broadcast %cst_15 : f32 to vector<1x8x1xf32>
    %76 = arith.maximumf %74, %75 : vector<1x8x1xf32>
    %cst_16 = arith.constant 9.99999974E-6 : f32
    %77 = vector.broadcast %cst_16 : f32 to vector<1x8x1xf32>
    %78 = arith.addf %76, %77 : vector<1x8x1xf32>
    %79 = math.rsqrt %78 : vector<1x8x1xf32>
    %80 = vector.shape_cast %2 : vector<8x1xf32> to vector<1x8x1xf32>
    %81 = arith.mulf %80, %79 : vector<1x8x1xf32>
    %82 = arith.mulf %70, %81 : vector<1x8x1xf32>
    %83 = vector.shape_cast %3 : vector<8x1xf32> to vector<1x8x1xf32>
    %84 = arith.subf %83, %82 : vector<1x8x1xf32>
    %85 = vector.broadcast %81 : vector<1x8x1xf32> to vector<2x8x1023xf32>
    %86 = arith.mulf %59, %85 : vector<2x8x1023xf32>
    %87 = vector.broadcast %84 : vector<1x8x1xf32> to vector<2x8x1023xf32>
    %88 = arith.addf %86, %87 : vector<2x8x1023xf32>
    %cst_17 = arith.constant 0.000000e+00 : f32
    %89 = vector.broadcast %cst_17 : f32 to vector<2x8x1023xf32>
    %90 = arith.maximumf %88, %89 : vector<2x8x1023xf32>
    %91 = vector.extract_strided_slice %90 {offsets = [0, 0, 0], sizes = [2, 8, 1020], strides = [1, 1, 1]} : vector<2x8x1023xf32> to vector<2x8x1020xf32>
    %92 = vector.extract_strided_slice %90 {offsets = [0, 0, 1], sizes = [2, 8, 1020], strides = [1, 1, 1]} : vector<2x8x1023xf32> to vector<2x8x1020xf32>
    %93 = arith.maximumf %91, %92 : vector<2x8x1020xf32>
    %94 = vector.extract_strided_slice %90 {offsets = [0, 0, 2], sizes = [2, 8, 1020], strides = [1, 1, 1]} : vector<2x8x1023xf32> to vector<2x8x1020xf32>
    %95 = arith.maximumf %93, %94 : vector<2x8x1020xf32>
    %96 = vector.extract_strided_slice %90 {offsets = [0, 0, 3], sizes = [2, 8, 1020], strides = [1, 1, 1]} : vector<2x8x1023xf32> to vector<2x8x1020xf32>
    %97 = arith.maximumf %95, %96 : vector<2x8x1020xf32>
    %98 = vector.shape_cast %97 : vector<2x8x1020xf32> to vector<16x1020xf32>
    %cst_18 = arith.constant dense<0.000000e+00> : vector<16x255xf32>
    %99 = tpu.matmul %98, %4, %cst_18 {dimension_numbers = #tpu.dot_dimension_numbers<[1], [0], [0], [1], [0, 0, 1, 1], [], []>} : vector<16x1020xf32>, vector<1020x255xf32>, vector<16x255xf32> -> vector<16x255xf32>
    %100 = vector.shape_cast %99 : vector<16x255xf32> to vector<2x8x255xf32>
    %c0_19 = arith.constant 0 : index
    %c0_20 = arith.constant 0 : index
    %101 = vector.load %arg6[%c0_19, %c0_20] : memref<8x24xf32, #tpu.memory_space<vmem>>, vector<8x24xf32>
    %c0_21 = arith.constant 0 : index
    %c0_22 = arith.constant 0 : index
    %102 = vector.load %arg7[%c0_21, %c0_22] : memref<8x1xf32, #tpu.memory_space<vmem>>, vector<8x1xf32>
    %c0_23 = arith.constant 0 : index
    %c0_24 = arith.constant 0 : index
    %103 = vector.load %arg8[%c0_23, %c0_24] : memref<8x1xf32, #tpu.memory_space<vmem>>, vector<8x1xf32>
    %c0_25 = arith.constant 0 : index
    %c0_26 = arith.constant 0 : index
    %104 = vector.load %arg9[%c0_25, %c0_26] : memref<250x63xf32, #tpu.memory_space<vmem>>, vector<250x63xf32>
    %105 = vector.extract_strided_slice %100 {offsets = [0, 0, 0], sizes = [2, 1, 253], strides = [1, 1, 1]} : vector<2x8x255xf32> to vector<2x1x253xf32>
    %106 = vector.extract_strided_slice %101 {offsets = [0, 0], sizes = [8, 1], strides = [1, 1]} : vector<8x24xf32> to vector<8x1xf32>
    %107 = vector.shape_cast %106 : vector<8x1xf32> to vector<1x8x1xf32>
    %108 = vector.broadcast %107 : vector<1x8x1xf32> to vector<2x8x253xf32>
    %109 = vector.broadcast %105 : vector<2x1x253xf32> to vector<2x8x253xf32>
    %110 = arith.mulf %108, %109 : vector<2x8x253xf32>
    %111 = vector.extract_strided_slice %100 {offsets = [0, 0, 1], sizes = [2, 1, 253], strides = [1, 1, 1]} : vector<2x8x255xf32> to vector<2x1x253xf32>
    %112 = vector.extract_strided_slice %101 {offsets = [0, 1], sizes = [8, 1], strides = [1, 1]} : vector<8x24xf32> to vector<8x1xf32>
    %113 = vector.shape_cast %112 : vector<8x1xf32> to vector<1x8x1xf32>
    %114 = vector.broadcast %113 : vector<1x8x1xf32> to vector<2x8x253xf32>
    %115 = vector.broadcast %111 : vector<2x1x253xf32> to vector<2x8x253xf32>
    %116 = arith.mulf %114, %115 : vector<2x8x253xf32>
    %117 = arith.addf %110, %116 : vector<2x8x253xf32>
    %118 = vector.extract_strided_slice %100 {offsets = [0, 0, 2], sizes = [2, 1, 253], strides = [1, 1, 1]} : vector<2x8x255xf32> to vector<2x1x253xf32>
    %119 = vector.extract_strided_slice %101 {offsets = [0, 2], sizes = [8, 1], strides = [1, 1]} : vector<8x24xf32> to vector<8x1xf32>
    %120 = vector.shape_cast %119 : vector<8x1xf32> to vector<1x8x1xf32>
    %121 = vector.broadcast %120 : vector<1x8x1xf32> to vector<2x8x253xf32>
    %122 = vector.broadcast %118 : vector<2x1x253xf32> to vector<2x8x253xf32>
    %123 = arith.mulf %121, %122 : vector<2x8x253xf32>
    %124 = arith.addf %117, %123 : vector<2x8x253xf32>
    %125 = vector.extract_strided_slice %100 {offsets = [0, 1, 0], sizes = [2, 1, 253], strides = [1, 1, 1]} : vector<2x8x255xf32> to vector<2x1x253xf32>
    %126 = vector.extract_strided_slice %101 {offsets = [0, 3], sizes = [8, 1], strides = [1, 1]} : vector<8x24xf32> to vector<8x1xf32>
    %127 = vector.shape_cast %126 : vector<8x1xf32> to vector<1x8x1xf32>
    %128 = vector.broadcast %127 : vector<1x8x1xf32> to vector<2x8x253xf32>
    %129 = vector.broadcast %125 : vector<2x1x253xf32> to vector<2x8x253xf32>
    %130 = arith.mulf %128, %129 : vector<2x8x253xf32>
    %131 = arith.addf %124, %130 : vector<2x8x253xf32>
    %132 = vector.extract_strided_slice %100 {offsets = [0, 1, 1], sizes = [2, 1, 253], strides = [1, 1, 1]} : vector<2x8x255xf32> to vector<2x1x253xf32>
    %133 = vector.extract_strided_slice %101 {offsets = [0, 4], sizes = [8, 1], strides = [1, 1]} : vector<8x24xf32> to vector<8x1xf32>
    %134 = vector.shape_cast %133 : vector<8x1xf32> to vector<1x8x1xf32>
    %135 = vector.broadcast %134 : vector<1x8x1xf32> to vector<2x8x253xf32>
    %136 = vector.broadcast %132 : vector<2x1x253xf32> to vector<2x8x253xf32>
    %137 = arith.mulf %135, %136 : vector<2x8x253xf32>
    %138 = arith.addf %131, %137 : vector<2x8x253xf32>
    %139 = vector.extract_strided_slice %100 {offsets = [0, 1, 2], sizes = [2, 1, 253], strides = [1, 1, 1]} : vector<2x8x255xf32> to vector<2x1x253xf32>
    %140 = vector.extract_strided_slice %101 {offsets = [0, 5], sizes = [8, 1], strides = [1, 1]} : vector<8x24xf32> to vector<8x1xf32>
    %141 = vector.shape_cast %140 : vector<8x1xf32> to vector<1x8x1xf32>
    %142 = vector.broadcast %141 : vector<1x8x1xf32> to vector<2x8x253xf32>
    %143 = vector.broadcast %139 : vector<2x1x253xf32> to vector<2x8x253xf32>
    %144 = arith.mulf %142, %143 : vector<2x8x253xf32>
    %145 = arith.addf %138, %144 : vector<2x8x253xf32>
    %146 = vector.extract_strided_slice %100 {offsets = [0, 2, 0], sizes = [2, 1, 253], strides = [1, 1, 1]} : vector<2x8x255xf32> to vector<2x1x253xf32>
    %147 = vector.extract_strided_slice %101 {offsets = [0, 6], sizes = [8, 1], strides = [1, 1]} : vector<8x24xf32> to vector<8x1xf32>
    %148 = vector.shape_cast %147 : vector<8x1xf32> to vector<1x8x1xf32>
    %149 = vector.broadcast %148 : vector<1x8x1xf32> to vector<2x8x253xf32>
    %150 = vector.broadcast %146 : vector<2x1x253xf32> to vector<2x8x253xf32>
    %151 = arith.mulf %149, %150 : vector<2x8x253xf32>
    %152 = arith.addf %145, %151 : vector<2x8x253xf32>
    %153 = vector.extract_strided_slice %100 {offsets = [0, 2, 1], sizes = [2, 1, 253], strides = [1, 1, 1]} : vector<2x8x255xf32> to vector<2x1x253xf32>
    %154 = vector.extract_strided_slice %101 {offsets = [0, 7], sizes = [8, 1], strides = [1, 1]} : vector<8x24xf32> to vector<8x1xf32>
    %155 = vector.shape_cast %154 : vector<8x1xf32> to vector<1x8x1xf32>
    %156 = vector.broadcast %155 : vector<1x8x1xf32> to vector<2x8x253xf32>
    %157 = vector.broadcast %153 : vector<2x1x253xf32> to vector<2x8x253xf32>
    %158 = arith.mulf %156, %157 : vector<2x8x253xf32>
    %159 = arith.addf %152, %158 : vector<2x8x253xf32>
    %160 = vector.extract_strided_slice %100 {offsets = [0, 2, 2], sizes = [2, 1, 253], strides = [1, 1, 1]} : vector<2x8x255xf32> to vector<2x1x253xf32>
    %161 = vector.extract_strided_slice %101 {offsets = [0, 8], sizes = [8, 1], strides = [1, 1]} : vector<8x24xf32> to vector<8x1xf32>
    %162 = vector.shape_cast %161 : vector<8x1xf32> to vector<1x8x1xf32>
    %163 = vector.broadcast %162 : vector<1x8x1xf32> to vector<2x8x253xf32>
    %164 = vector.broadcast %160 : vector<2x1x253xf32> to vector<2x8x253xf32>
    %165 = arith.mulf %163, %164 : vector<2x8x253xf32>
    %166 = arith.addf %159, %165 : vector<2x8x253xf32>
    %167 = vector.extract_strided_slice %100 {offsets = [0, 3, 0], sizes = [2, 1, 253], strides = [1, 1, 1]} : vector<2x8x255xf32> to vector<2x1x253xf32>
    %168 = vector.extract_strided_slice %101 {offsets = [0, 9], sizes = [8, 1], strides = [1, 1]} : vector<8x24xf32> to vector<8x1xf32>
    %169 = vector.shape_cast %168 : vector<8x1xf32> to vector<1x8x1xf32>
    %170 = vector.broadcast %169 : vector<1x8x1xf32> to vector<2x8x253xf32>
    %171 = vector.broadcast %167 : vector<2x1x253xf32> to vector<2x8x253xf32>
    %172 = arith.mulf %170, %171 : vector<2x8x253xf32>
    %173 = arith.addf %166, %172 : vector<2x8x253xf32>
    %174 = vector.extract_strided_slice %100 {offsets = [0, 3, 1], sizes = [2, 1, 253], strides = [1, 1, 1]} : vector<2x8x255xf32> to vector<2x1x253xf32>
    %175 = vector.extract_strided_slice %101 {offsets = [0, 10], sizes = [8, 1], strides = [1, 1]} : vector<8x24xf32> to vector<8x1xf32>
    %176 = vector.shape_cast %175 : vector<8x1xf32> to vector<1x8x1xf32>
    %177 = vector.broadcast %176 : vector<1x8x1xf32> to vector<2x8x253xf32>
    %178 = vector.broadcast %174 : vector<2x1x253xf32> to vector<2x8x253xf32>
    %179 = arith.mulf %177, %178 : vector<2x8x253xf32>
    %180 = arith.addf %173, %179 : vector<2x8x253xf32>
    %181 = vector.extract_strided_slice %100 {offsets = [0, 3, 2], sizes = [2, 1, 253], strides = [1, 1, 1]} : vector<2x8x255xf32> to vector<2x1x253xf32>
    %182 = vector.extract_strided_slice %101 {offsets = [0, 11], sizes = [8, 1], strides = [1, 1]} : vector<8x24xf32> to vector<8x1xf32>
    %183 = vector.shape_cast %182 : vector<8x1xf32> to vector<1x8x1xf32>
    %184 = vector.broadcast %183 : vector<1x8x1xf32> to vector<2x8x253xf32>
    %185 = vector.broadcast %181 : vector<2x1x253xf32> to vector<2x8x253xf32>
    %186 = arith.mulf %184, %185 : vector<2x8x253xf32>
    %187 = arith.addf %180, %186 : vector<2x8x253xf32>
    %188 = vector.extract_strided_slice %100 {offsets = [0, 4, 0], sizes = [2, 1, 253], strides = [1, 1, 1]} : vector<2x8x255xf32> to vector<2x1x253xf32>
    %189 = vector.extract_strided_slice %101 {offsets = [0, 12], sizes = [8, 1], strides = [1, 1]} : vector<8x24xf32> to vector<8x1xf32>
    %190 = vector.shape_cast %189 : vector<8x1xf32> to vector<1x8x1xf32>
    %191 = vector.broadcast %190 : vector<1x8x1xf32> to vector<2x8x253xf32>
    %192 = vector.broadcast %188 : vector<2x1x253xf32> to vector<2x8x253xf32>
    %193 = arith.mulf %191, %192 : vector<2x8x253xf32>
    %194 = arith.addf %187, %193 : vector<2x8x253xf32>
    %195 = vector.extract_strided_slice %100 {offsets = [0, 4, 1], sizes = [2, 1, 253], strides = [1, 1, 1]} : vector<2x8x255xf32> to vector<2x1x253xf32>
    %196 = vector.extract_strided_slice %101 {offsets = [0, 13], sizes = [8, 1], strides = [1, 1]} : vector<8x24xf32> to vector<8x1xf32>
    %197 = vector.shape_cast %196 : vector<8x1xf32> to vector<1x8x1xf32>
    %198 = vector.broadcast %197 : vector<1x8x1xf32> to vector<2x8x253xf32>
    %199 = vector.broadcast %195 : vector<2x1x253xf32> to vector<2x8x253xf32>
    %200 = arith.mulf %198, %199 : vector<2x8x253xf32>
    %201 = arith.addf %194, %200 : vector<2x8x253xf32>
    %202 = vector.extract_strided_slice %100 {offsets = [0, 4, 2], sizes = [2, 1, 253], strides = [1, 1, 1]} : vector<2x8x255xf32> to vector<2x1x253xf32>
    %203 = vector.extract_strided_slice %101 {offsets = [0, 14], sizes = [8, 1], strides = [1, 1]} : vector<8x24xf32> to vector<8x1xf32>
    %204 = vector.shape_cast %203 : vector<8x1xf32> to vector<1x8x1xf32>
    %205 = vector.broadcast %204 : vector<1x8x1xf32> to vector<2x8x253xf32>
    %206 = vector.broadcast %202 : vector<2x1x253xf32> to vector<2x8x253xf32>
    %207 = arith.mulf %205, %206 : vector<2x8x253xf32>
    %208 = arith.addf %201, %207 : vector<2x8x253xf32>
    %209 = vector.extract_strided_slice %100 {offsets = [0, 5, 0], sizes = [2, 1, 253], strides = [1, 1, 1]} : vector<2x8x255xf32> to vector<2x1x253xf32>
    %210 = vector.extract_strided_slice %101 {offsets = [0, 15], sizes = [8, 1], strides = [1, 1]} : vector<8x24xf32> to vector<8x1xf32>
    %211 = vector.shape_cast %210 : vector<8x1xf32> to vector<1x8x1xf32>
    %212 = vector.broadcast %211 : vector<1x8x1xf32> to vector<2x8x253xf32>
    %213 = vector.broadcast %209 : vector<2x1x253xf32> to vector<2x8x253xf32>
    %214 = arith.mulf %212, %213 : vector<2x8x253xf32>
    %215 = arith.addf %208, %214 : vector<2x8x253xf32>
    %216 = vector.extract_strided_slice %100 {offsets = [0, 5, 1], sizes = [2, 1, 253], strides = [1, 1, 1]} : vector<2x8x255xf32> to vector<2x1x253xf32>
    %217 = vector.extract_strided_slice %101 {offsets = [0, 16], sizes = [8, 1], strides = [1, 1]} : vector<8x24xf32> to vector<8x1xf32>
    %218 = vector.shape_cast %217 : vector<8x1xf32> to vector<1x8x1xf32>
    %219 = vector.broadcast %218 : vector<1x8x1xf32> to vector<2x8x253xf32>
    %220 = vector.broadcast %216 : vector<2x1x253xf32> to vector<2x8x253xf32>
    %221 = arith.mulf %219, %220 : vector<2x8x253xf32>
    %222 = arith.addf %215, %221 : vector<2x8x253xf32>
    %223 = vector.extract_strided_slice %100 {offsets = [0, 5, 2], sizes = [2, 1, 253], strides = [1, 1, 1]} : vector<2x8x255xf32> to vector<2x1x253xf32>
    %224 = vector.extract_strided_slice %101 {offsets = [0, 17], sizes = [8, 1], strides = [1, 1]} : vector<8x24xf32> to vector<8x1xf32>
    %225 = vector.shape_cast %224 : vector<8x1xf32> to vector<1x8x1xf32>
    %226 = vector.broadcast %225 : vector<1x8x1xf32> to vector<2x8x253xf32>
    %227 = vector.broadcast %223 : vector<2x1x253xf32> to vector<2x8x253xf32>
    %228 = arith.mulf %226, %227 : vector<2x8x253xf32>
    %229 = arith.addf %222, %228 : vector<2x8x253xf32>
    %230 = vector.extract_strided_slice %100 {offsets = [0, 6, 0], sizes = [2, 1, 253], strides = [1, 1, 1]} : vector<2x8x255xf32> to vector<2x1x253xf32>
    %231 = vector.extract_strided_slice %101 {offsets = [0, 18], sizes = [8, 1], strides = [1, 1]} : vector<8x24xf32> to vector<8x1xf32>
    %232 = vector.shape_cast %231 : vector<8x1xf32> to vector<1x8x1xf32>
    %233 = vector.broadcast %232 : vector<1x8x1xf32> to vector<2x8x253xf32>
    %234 = vector.broadcast %230 : vector<2x1x253xf32> to vector<2x8x253xf32>
    %235 = arith.mulf %233, %234 : vector<2x8x253xf32>
    %236 = arith.addf %229, %235 : vector<2x8x253xf32>
    %237 = vector.extract_strided_slice %100 {offsets = [0, 6, 1], sizes = [2, 1, 253], strides = [1, 1, 1]} : vector<2x8x255xf32> to vector<2x1x253xf32>
    %238 = vector.extract_strided_slice %101 {offsets = [0, 19], sizes = [8, 1], strides = [1, 1]} : vector<8x24xf32> to vector<8x1xf32>
    %239 = vector.shape_cast %238 : vector<8x1xf32> to vector<1x8x1xf32>
    %240 = vector.broadcast %239 : vector<1x8x1xf32> to vector<2x8x253xf32>
    %241 = vector.broadcast %237 : vector<2x1x253xf32> to vector<2x8x253xf32>
    %242 = arith.mulf %240, %241 : vector<2x8x253xf32>
    %243 = arith.addf %236, %242 : vector<2x8x253xf32>
    %244 = vector.extract_strided_slice %100 {offsets = [0, 6, 2], sizes = [2, 1, 253], strides = [1, 1, 1]} : vector<2x8x255xf32> to vector<2x1x253xf32>
    %245 = vector.extract_strided_slice %101 {offsets = [0, 20], sizes = [8, 1], strides = [1, 1]} : vector<8x24xf32> to vector<8x1xf32>
    %246 = vector.shape_cast %245 : vector<8x1xf32> to vector<1x8x1xf32>
    %247 = vector.broadcast %246 : vector<1x8x1xf32> to vector<2x8x253xf32>
    %248 = vector.broadcast %244 : vector<2x1x253xf32> to vector<2x8x253xf32>
    %249 = arith.mulf %247, %248 : vector<2x8x253xf32>
    %250 = arith.addf %243, %249 : vector<2x8x253xf32>
    %251 = vector.extract_strided_slice %100 {offsets = [0, 7, 0], sizes = [2, 1, 253], strides = [1, 1, 1]} : vector<2x8x255xf32> to vector<2x1x253xf32>
    %252 = vector.extract_strided_slice %101 {offsets = [0, 21], sizes = [8, 1], strides = [1, 1]} : vector<8x24xf32> to vector<8x1xf32>
    %253 = vector.shape_cast %252 : vector<8x1xf32> to vector<1x8x1xf32>
    %254 = vector.broadcast %253 : vector<1x8x1xf32> to vector<2x8x253xf32>
    %255 = vector.broadcast %251 : vector<2x1x253xf32> to vector<2x8x253xf32>
    %256 = arith.mulf %254, %255 : vector<2x8x253xf32>
    %257 = arith.addf %250, %256 : vector<2x8x253xf32>
    %258 = vector.extract_strided_slice %100 {offsets = [0, 7, 1], sizes = [2, 1, 253], strides = [1, 1, 1]} : vector<2x8x255xf32> to vector<2x1x253xf32>
    %259 = vector.extract_strided_slice %101 {offsets = [0, 22], sizes = [8, 1], strides = [1, 1]} : vector<8x24xf32> to vector<8x1xf32>
    %260 = vector.shape_cast %259 : vector<8x1xf32> to vector<1x8x1xf32>
    %261 = vector.broadcast %260 : vector<1x8x1xf32> to vector<2x8x253xf32>
    %262 = vector.broadcast %258 : vector<2x1x253xf32> to vector<2x8x253xf32>
    %263 = arith.mulf %261, %262 : vector<2x8x253xf32>
    %264 = arith.addf %257, %263 : vector<2x8x253xf32>
    %265 = vector.extract_strided_slice %100 {offsets = [0, 7, 2], sizes = [2, 1, 253], strides = [1, 1, 1]} : vector<2x8x255xf32> to vector<2x1x253xf32>
    %266 = vector.extract_strided_slice %101 {offsets = [0, 23], sizes = [8, 1], strides = [1, 1]} : vector<8x24xf32> to vector<8x1xf32>
    %267 = vector.shape_cast %266 : vector<8x1xf32> to vector<1x8x1xf32>
    %268 = vector.broadcast %267 : vector<1x8x1xf32> to vector<2x8x253xf32>
    %269 = vector.broadcast %265 : vector<2x1x253xf32> to vector<2x8x253xf32>
    %270 = arith.mulf %268, %269 : vector<2x8x253xf32>
    %271 = arith.addf %264, %270 : vector<2x8x253xf32>
    %cst_27 = arith.constant dense<0.000000e+00> : vector<2x8xf32>
    %272 = vector.multi_reduction <add>, %271, %cst_27 [2] : vector<2x8x253xf32> to vector<2x8xf32>
    %273 = vector.shape_cast %272 : vector<2x8xf32> to vector<2x8x1xf32>
    %cst_28 = arith.constant dense<0.000000e+00> : vector<8x1xf32>
    %274 = vector.multi_reduction <add>, %273, %cst_28 [0] : vector<2x8x1xf32> to vector<8x1xf32>
    %275 = vector.shape_cast %274 : vector<8x1xf32> to vector<1x8x1xf32>
    %276 = arith.mulf %271, %271 : vector<2x8x253xf32>
    %cst_29 = arith.constant dense<0.000000e+00> : vector<2x8xf32>
    %277 = vector.multi_reduction <add>, %276, %cst_29 [2] : vector<2x8x253xf32> to vector<2x8xf32>
    %278 = vector.shape_cast %277 : vector<2x8xf32> to vector<2x8x1xf32>
    %cst_30 = arith.constant dense<0.000000e+00> : vector<8x1xf32>
    %279 = vector.multi_reduction <add>, %278, %cst_30 [0] : vector<2x8x1xf32> to vector<8x1xf32>
    %280 = vector.shape_cast %279 : vector<8x1xf32> to vector<1x8x1xf32>
    %cst_31 = arith.constant 5.060000e+02 : f32
    %281 = vector.broadcast %cst_31 : f32 to vector<1x8x1xf32>
    %282 = arith.divf %275, %281 : vector<1x8x1xf32>
    %cst_32 = arith.constant 5.060000e+02 : f32
    %283 = vector.broadcast %cst_32 : f32 to vector<1x8x1xf32>
    %284 = arith.divf %280, %283 : vector<1x8x1xf32>
    %285 = arith.mulf %282, %282 : vector<1x8x1xf32>
    %286 = arith.subf %284, %285 : vector<1x8x1xf32>
    %cst_33 = arith.constant 0.000000e+00 : f32
    %287 = vector.broadcast %cst_33 : f32 to vector<1x8x1xf32>
    %288 = arith.maximumf %286, %287 : vector<1x8x1xf32>
    %cst_34 = arith.constant 9.99999974E-6 : f32
    %289 = vector.broadcast %cst_34 : f32 to vector<1x8x1xf32>
    %290 = arith.addf %288, %289 : vector<1x8x1xf32>
    %291 = math.rsqrt %290 : vector<1x8x1xf32>
    %292 = vector.shape_cast %102 : vector<8x1xf32> to vector<1x8x1xf32>
    %293 = arith.mulf %292, %291 : vector<1x8x1xf32>
    %294 = arith.mulf %282, %293 : vector<1x8x1xf32>
    %295 = vector.shape_cast %103 : vector<8x1xf32> to vector<1x8x1xf32>
    %296 = arith.subf %295, %294 : vector<1x8x1xf32>
    %297 = vector.broadcast %293 : vector<1x8x1xf32> to vector<2x8x253xf32>
    %298 = arith.mulf %271, %297 : vector<2x8x253xf32>
    %299 = vector.broadcast %296 : vector<1x8x1xf32> to vector<2x8x253xf32>
    %300 = arith.addf %298, %299 : vector<2x8x253xf32>
    %cst_35 = arith.constant 0.000000e+00 : f32
    %301 = vector.broadcast %cst_35 : f32 to vector<2x8x253xf32>
    %302 = arith.maximumf %300, %301 : vector<2x8x253xf32>
    %303 = vector.extract_strided_slice %302 {offsets = [0, 0, 0], sizes = [2, 8, 250], strides = [1, 1, 1]} : vector<2x8x253xf32> to vector<2x8x250xf32>
    %304 = vector.extract_strided_slice %302 {offsets = [0, 0, 1], sizes = [2, 8, 250], strides = [1, 1, 1]} : vector<2x8x253xf32> to vector<2x8x250xf32>
    %305 = arith.maximumf %303, %304 : vector<2x8x250xf32>
    %306 = vector.extract_strided_slice %302 {offsets = [0, 0, 2], sizes = [2, 8, 250], strides = [1, 1, 1]} : vector<2x8x253xf32> to vector<2x8x250xf32>
    %307 = arith.maximumf %305, %306 : vector<2x8x250xf32>
    %308 = vector.extract_strided_slice %302 {offsets = [0, 0, 3], sizes = [2, 8, 250], strides = [1, 1, 1]} : vector<2x8x253xf32> to vector<2x8x250xf32>
    %309 = arith.maximumf %307, %308 : vector<2x8x250xf32>
    %310 = vector.shape_cast %309 : vector<2x8x250xf32> to vector<16x250xf32>
    %cst_36 = arith.constant dense<0.000000e+00> : vector<16x63xf32>
    %311 = tpu.matmul %310, %104, %cst_36 {dimension_numbers = #tpu.dot_dimension_numbers<[1], [0], [0], [1], [0, 0, 1, 1], [], []>} : vector<16x250xf32>, vector<250x63xf32>, vector<16x63xf32> -> vector<16x63xf32>
    %312 = vector.shape_cast %311 : vector<16x63xf32> to vector<2x8x63xf32>
    %c0_37 = arith.constant 0 : index
    %c0_38 = arith.constant 0 : index
    %313 = vector.load %arg10[%c0_37, %c0_38] : memref<16x24xf32, #tpu.memory_space<vmem>>, vector<16x24xf32>
    %c0_39 = arith.constant 0 : index
    %c0_40 = arith.constant 0 : index
    %314 = vector.load %arg11[%c0_39, %c0_40] : memref<16x1xf32, #tpu.memory_space<vmem>>, vector<16x1xf32>
    %c0_41 = arith.constant 0 : index
    %c0_42 = arith.constant 0 : index
    %315 = vector.load %arg12[%c0_41, %c0_42] : memref<16x1xf32, #tpu.memory_space<vmem>>, vector<16x1xf32>
    %c0_43 = arith.constant 0 : index
    %c0_44 = arith.constant 0 : index
    %316 = vector.load %arg13[%c0_43, %c0_44] : memref<58x15xf32, #tpu.memory_space<vmem>>, vector<58x15xf32>
    %317 = vector.extract_strided_slice %312 {offsets = [0, 0, 0], sizes = [2, 1, 61], strides = [1, 1, 1]} : vector<2x8x63xf32> to vector<2x1x61xf32>
    %318 = vector.extract_strided_slice %313 {offsets = [0, 0], sizes = [16, 1], strides = [1, 1]} : vector<16x24xf32> to vector<16x1xf32>
    %319 = vector.shape_cast %318 : vector<16x1xf32> to vector<1x16x1xf32>
    %320 = vector.broadcast %319 : vector<1x16x1xf32> to vector<2x16x61xf32>
    %321 = vector.broadcast %317 : vector<2x1x61xf32> to vector<2x16x61xf32>
    %322 = arith.mulf %320, %321 : vector<2x16x61xf32>
    %323 = vector.extract_strided_slice %312 {offsets = [0, 0, 1], sizes = [2, 1, 61], strides = [1, 1, 1]} : vector<2x8x63xf32> to vector<2x1x61xf32>
    %324 = vector.extract_strided_slice %313 {offsets = [0, 1], sizes = [16, 1], strides = [1, 1]} : vector<16x24xf32> to vector<16x1xf32>
    %325 = vector.shape_cast %324 : vector<16x1xf32> to vector<1x16x1xf32>
    %326 = vector.broadcast %325 : vector<1x16x1xf32> to vector<2x16x61xf32>
    %327 = vector.broadcast %323 : vector<2x1x61xf32> to vector<2x16x61xf32>
    %328 = arith.mulf %326, %327 : vector<2x16x61xf32>
    %329 = arith.addf %322, %328 : vector<2x16x61xf32>
    %330 = vector.extract_strided_slice %312 {offsets = [0, 0, 2], sizes = [2, 1, 61], strides = [1, 1, 1]} : vector<2x8x63xf32> to vector<2x1x61xf32>
    %331 = vector.extract_strided_slice %313 {offsets = [0, 2], sizes = [16, 1], strides = [1, 1]} : vector<16x24xf32> to vector<16x1xf32>
    %332 = vector.shape_cast %331 : vector<16x1xf32> to vector<1x16x1xf32>
    %333 = vector.broadcast %332 : vector<1x16x1xf32> to vector<2x16x61xf32>
    %334 = vector.broadcast %330 : vector<2x1x61xf32> to vector<2x16x61xf32>
    %335 = arith.mulf %333, %334 : vector<2x16x61xf32>
    %336 = arith.addf %329, %335 : vector<2x16x61xf32>
    %337 = vector.extract_strided_slice %312 {offsets = [0, 1, 0], sizes = [2, 1, 61], strides = [1, 1, 1]} : vector<2x8x63xf32> to vector<2x1x61xf32>
    %338 = vector.extract_strided_slice %313 {offsets = [0, 3], sizes = [16, 1], strides = [1, 1]} : vector<16x24xf32> to vector<16x1xf32>
    %339 = vector.shape_cast %338 : vector<16x1xf32> to vector<1x16x1xf32>
    %340 = vector.broadcast %339 : vector<1x16x1xf32> to vector<2x16x61xf32>
    %341 = vector.broadcast %337 : vector<2x1x61xf32> to vector<2x16x61xf32>
    %342 = arith.mulf %340, %341 : vector<2x16x61xf32>
    %343 = arith.addf %336, %342 : vector<2x16x61xf32>
    %344 = vector.extract_strided_slice %312 {offsets = [0, 1, 1], sizes = [2, 1, 61], strides = [1, 1, 1]} : vector<2x8x63xf32> to vector<2x1x61xf32>
    %345 = vector.extract_strided_slice %313 {offsets = [0, 4], sizes = [16, 1], strides = [1, 1]} : vector<16x24xf32> to vector<16x1xf32>
    %346 = vector.shape_cast %345 : vector<16x1xf32> to vector<1x16x1xf32>
    %347 = vector.broadcast %346 : vector<1x16x1xf32> to vector<2x16x61xf32>
    %348 = vector.broadcast %344 : vector<2x1x61xf32> to vector<2x16x61xf32>
    %349 = arith.mulf %347, %348 : vector<2x16x61xf32>
    %350 = arith.addf %343, %349 : vector<2x16x61xf32>
    %351 = vector.extract_strided_slice %312 {offsets = [0, 1, 2], sizes = [2, 1, 61], strides = [1, 1, 1]} : vector<2x8x63xf32> to vector<2x1x61xf32>
    %352 = vector.extract_strided_slice %313 {offsets = [0, 5], sizes = [16, 1], strides = [1, 1]} : vector<16x24xf32> to vector<16x1xf32>
    %353 = vector.shape_cast %352 : vector<16x1xf32> to vector<1x16x1xf32>
    %354 = vector.broadcast %353 : vector<1x16x1xf32> to vector<2x16x61xf32>
    %355 = vector.broadcast %351 : vector<2x1x61xf32> to vector<2x16x61xf32>
    %356 = arith.mulf %354, %355 : vector<2x16x61xf32>
    %357 = arith.addf %350, %356 : vector<2x16x61xf32>
    %358 = vector.extract_strided_slice %312 {offsets = [0, 2, 0], sizes = [2, 1, 61], strides = [1, 1, 1]} : vector<2x8x63xf32> to vector<2x1x61xf32>
    %359 = vector.extract_strided_slice %313 {offsets = [0, 6], sizes = [16, 1], strides = [1, 1]} : vector<16x24xf32> to vector<16x1xf32>
    %360 = vector.shape_cast %359 : vector<16x1xf32> to vector<1x16x1xf32>
    %361 = vector.broadcast %360 : vector<1x16x1xf32> to vector<2x16x61xf32>
    %362 = vector.broadcast %358 : vector<2x1x61xf32> to vector<2x16x61xf32>
    %363 = arith.mulf %361, %362 : vector<2x16x61xf32>
    %364 = arith.addf %357, %363 : vector<2x16x61xf32>
    %365 = vector.extract_strided_slice %312 {offsets = [0, 2, 1], sizes = [2, 1, 61], strides = [1, 1, 1]} : vector<2x8x63xf32> to vector<2x1x61xf32>
    %366 = vector.extract_strided_slice %313 {offsets = [0, 7], sizes = [16, 1], strides = [1, 1]} : vector<16x24xf32> to vector<16x1xf32>
    %367 = vector.shape_cast %366 : vector<16x1xf32> to vector<1x16x1xf32>
    %368 = vector.broadcast %367 : vector<1x16x1xf32> to vector<2x16x61xf32>
    %369 = vector.broadcast %365 : vector<2x1x61xf32> to vector<2x16x61xf32>
    %370 = arith.mulf %368, %369 : vector<2x16x61xf32>
    %371 = arith.addf %364, %370 : vector<2x16x61xf32>
    %372 = vector.extract_strided_slice %312 {offsets = [0, 2, 2], sizes = [2, 1, 61], strides = [1, 1, 1]} : vector<2x8x63xf32> to vector<2x1x61xf32>
    %373 = vector.extract_strided_slice %313 {offsets = [0, 8], sizes = [16, 1], strides = [1, 1]} : vector<16x24xf32> to vector<16x1xf32>
    %374 = vector.shape_cast %373 : vector<16x1xf32> to vector<1x16x1xf32>
    %375 = vector.broadcast %374 : vector<1x16x1xf32> to vector<2x16x61xf32>
    %376 = vector.broadcast %372 : vector<2x1x61xf32> to vector<2x16x61xf32>
    %377 = arith.mulf %375, %376 : vector<2x16x61xf32>
    %378 = arith.addf %371, %377 : vector<2x16x61xf32>
    %379 = vector.extract_strided_slice %312 {offsets = [0, 3, 0], sizes = [2, 1, 61], strides = [1, 1, 1]} : vector<2x8x63xf32> to vector<2x1x61xf32>
    %380 = vector.extract_strided_slice %313 {offsets = [0, 9], sizes = [16, 1], strides = [1, 1]} : vector<16x24xf32> to vector<16x1xf32>
    %381 = vector.shape_cast %380 : vector<16x1xf32> to vector<1x16x1xf32>
    %382 = vector.broadcast %381 : vector<1x16x1xf32> to vector<2x16x61xf32>
    %383 = vector.broadcast %379 : vector<2x1x61xf32> to vector<2x16x61xf32>
    %384 = arith.mulf %382, %383 : vector<2x16x61xf32>
    %385 = arith.addf %378, %384 : vector<2x16x61xf32>
    %386 = vector.extract_strided_slice %312 {offsets = [0, 3, 1], sizes = [2, 1, 61], strides = [1, 1, 1]} : vector<2x8x63xf32> to vector<2x1x61xf32>
    %387 = vector.extract_strided_slice %313 {offsets = [0, 10], sizes = [16, 1], strides = [1, 1]} : vector<16x24xf32> to vector<16x1xf32>
    %388 = vector.shape_cast %387 : vector<16x1xf32> to vector<1x16x1xf32>
    %389 = vector.broadcast %388 : vector<1x16x1xf32> to vector<2x16x61xf32>
    %390 = vector.broadcast %386 : vector<2x1x61xf32> to vector<2x16x61xf32>
    %391 = arith.mulf %389, %390 : vector<2x16x61xf32>
    %392 = arith.addf %385, %391 : vector<2x16x61xf32>
    %393 = vector.extract_strided_slice %312 {offsets = [0, 3, 2], sizes = [2, 1, 61], strides = [1, 1, 1]} : vector<2x8x63xf32> to vector<2x1x61xf32>
    %394 = vector.extract_strided_slice %313 {offsets = [0, 11], sizes = [16, 1], strides = [1, 1]} : vector<16x24xf32> to vector<16x1xf32>
    %395 = vector.shape_cast %394 : vector<16x1xf32> to vector<1x16x1xf32>
    %396 = vector.broadcast %395 : vector<1x16x1xf32> to vector<2x16x61xf32>
    %397 = vector.broadcast %393 : vector<2x1x61xf32> to vector<2x16x61xf32>
    %398 = arith.mulf %396, %397 : vector<2x16x61xf32>
    %399 = arith.addf %392, %398 : vector<2x16x61xf32>
    %400 = vector.extract_strided_slice %312 {offsets = [0, 4, 0], sizes = [2, 1, 61], strides = [1, 1, 1]} : vector<2x8x63xf32> to vector<2x1x61xf32>
    %401 = vector.extract_strided_slice %313 {offsets = [0, 12], sizes = [16, 1], strides = [1, 1]} : vector<16x24xf32> to vector<16x1xf32>
    %402 = vector.shape_cast %401 : vector<16x1xf32> to vector<1x16x1xf32>
    %403 = vector.broadcast %402 : vector<1x16x1xf32> to vector<2x16x61xf32>
    %404 = vector.broadcast %400 : vector<2x1x61xf32> to vector<2x16x61xf32>
    %405 = arith.mulf %403, %404 : vector<2x16x61xf32>
    %406 = arith.addf %399, %405 : vector<2x16x61xf32>
    %407 = vector.extract_strided_slice %312 {offsets = [0, 4, 1], sizes = [2, 1, 61], strides = [1, 1, 1]} : vector<2x8x63xf32> to vector<2x1x61xf32>
    %408 = vector.extract_strided_slice %313 {offsets = [0, 13], sizes = [16, 1], strides = [1, 1]} : vector<16x24xf32> to vector<16x1xf32>
    %409 = vector.shape_cast %408 : vector<16x1xf32> to vector<1x16x1xf32>
    %410 = vector.broadcast %409 : vector<1x16x1xf32> to vector<2x16x61xf32>
    %411 = vector.broadcast %407 : vector<2x1x61xf32> to vector<2x16x61xf32>
    %412 = arith.mulf %410, %411 : vector<2x16x61xf32>
    %413 = arith.addf %406, %412 : vector<2x16x61xf32>
    %414 = vector.extract_strided_slice %312 {offsets = [0, 4, 2], sizes = [2, 1, 61], strides = [1, 1, 1]} : vector<2x8x63xf32> to vector<2x1x61xf32>
    %415 = vector.extract_strided_slice %313 {offsets = [0, 14], sizes = [16, 1], strides = [1, 1]} : vector<16x24xf32> to vector<16x1xf32>
    %416 = vector.shape_cast %415 : vector<16x1xf32> to vector<1x16x1xf32>
    %417 = vector.broadcast %416 : vector<1x16x1xf32> to vector<2x16x61xf32>
    %418 = vector.broadcast %414 : vector<2x1x61xf32> to vector<2x16x61xf32>
    %419 = arith.mulf %417, %418 : vector<2x16x61xf32>
    %420 = arith.addf %413, %419 : vector<2x16x61xf32>
    %421 = vector.extract_strided_slice %312 {offsets = [0, 5, 0], sizes = [2, 1, 61], strides = [1, 1, 1]} : vector<2x8x63xf32> to vector<2x1x61xf32>
    %422 = vector.extract_strided_slice %313 {offsets = [0, 15], sizes = [16, 1], strides = [1, 1]} : vector<16x24xf32> to vector<16x1xf32>
    %423 = vector.shape_cast %422 : vector<16x1xf32> to vector<1x16x1xf32>
    %424 = vector.broadcast %423 : vector<1x16x1xf32> to vector<2x16x61xf32>
    %425 = vector.broadcast %421 : vector<2x1x61xf32> to vector<2x16x61xf32>
    %426 = arith.mulf %424, %425 : vector<2x16x61xf32>
    %427 = arith.addf %420, %426 : vector<2x16x61xf32>
    %428 = vector.extract_strided_slice %312 {offsets = [0, 5, 1], sizes = [2, 1, 61], strides = [1, 1, 1]} : vector<2x8x63xf32> to vector<2x1x61xf32>
    %429 = vector.extract_strided_slice %313 {offsets = [0, 16], sizes = [16, 1], strides = [1, 1]} : vector<16x24xf32> to vector<16x1xf32>
    %430 = vector.shape_cast %429 : vector<16x1xf32> to vector<1x16x1xf32>
    %431 = vector.broadcast %430 : vector<1x16x1xf32> to vector<2x16x61xf32>
    %432 = vector.broadcast %428 : vector<2x1x61xf32> to vector<2x16x61xf32>
    %433 = arith.mulf %431, %432 : vector<2x16x61xf32>
    %434 = arith.addf %427, %433 : vector<2x16x61xf32>
    %435 = vector.extract_strided_slice %312 {offsets = [0, 5, 2], sizes = [2, 1, 61], strides = [1, 1, 1]} : vector<2x8x63xf32> to vector<2x1x61xf32>
    %436 = vector.extract_strided_slice %313 {offsets = [0, 17], sizes = [16, 1], strides = [1, 1]} : vector<16x24xf32> to vector<16x1xf32>
    %437 = vector.shape_cast %436 : vector<16x1xf32> to vector<1x16x1xf32>
    %438 = vector.broadcast %437 : vector<1x16x1xf32> to vector<2x16x61xf32>
    %439 = vector.broadcast %435 : vector<2x1x61xf32> to vector<2x16x61xf32>
    %440 = arith.mulf %438, %439 : vector<2x16x61xf32>
    %441 = arith.addf %434, %440 : vector<2x16x61xf32>
    %442 = vector.extract_strided_slice %312 {offsets = [0, 6, 0], sizes = [2, 1, 61], strides = [1, 1, 1]} : vector<2x8x63xf32> to vector<2x1x61xf32>
    %443 = vector.extract_strided_slice %313 {offsets = [0, 18], sizes = [16, 1], strides = [1, 1]} : vector<16x24xf32> to vector<16x1xf32>
    %444 = vector.shape_cast %443 : vector<16x1xf32> to vector<1x16x1xf32>
    %445 = vector.broadcast %444 : vector<1x16x1xf32> to vector<2x16x61xf32>
    %446 = vector.broadcast %442 : vector<2x1x61xf32> to vector<2x16x61xf32>
    %447 = arith.mulf %445, %446 : vector<2x16x61xf32>
    %448 = arith.addf %441, %447 : vector<2x16x61xf32>
    %449 = vector.extract_strided_slice %312 {offsets = [0, 6, 1], sizes = [2, 1, 61], strides = [1, 1, 1]} : vector<2x8x63xf32> to vector<2x1x61xf32>
    %450 = vector.extract_strided_slice %313 {offsets = [0, 19], sizes = [16, 1], strides = [1, 1]} : vector<16x24xf32> to vector<16x1xf32>
    %451 = vector.shape_cast %450 : vector<16x1xf32> to vector<1x16x1xf32>
    %452 = vector.broadcast %451 : vector<1x16x1xf32> to vector<2x16x61xf32>
    %453 = vector.broadcast %449 : vector<2x1x61xf32> to vector<2x16x61xf32>
    %454 = arith.mulf %452, %453 : vector<2x16x61xf32>
    %455 = arith.addf %448, %454 : vector<2x16x61xf32>
    %456 = vector.extract_strided_slice %312 {offsets = [0, 6, 2], sizes = [2, 1, 61], strides = [1, 1, 1]} : vector<2x8x63xf32> to vector<2x1x61xf32>
    %457 = vector.extract_strided_slice %313 {offsets = [0, 20], sizes = [16, 1], strides = [1, 1]} : vector<16x24xf32> to vector<16x1xf32>
    %458 = vector.shape_cast %457 : vector<16x1xf32> to vector<1x16x1xf32>
    %459 = vector.broadcast %458 : vector<1x16x1xf32> to vector<2x16x61xf32>
    %460 = vector.broadcast %456 : vector<2x1x61xf32> to vector<2x16x61xf32>
    %461 = arith.mulf %459, %460 : vector<2x16x61xf32>
    %462 = arith.addf %455, %461 : vector<2x16x61xf32>
    %463 = vector.extract_strided_slice %312 {offsets = [0, 7, 0], sizes = [2, 1, 61], strides = [1, 1, 1]} : vector<2x8x63xf32> to vector<2x1x61xf32>
    %464 = vector.extract_strided_slice %313 {offsets = [0, 21], sizes = [16, 1], strides = [1, 1]} : vector<16x24xf32> to vector<16x1xf32>
    %465 = vector.shape_cast %464 : vector<16x1xf32> to vector<1x16x1xf32>
    %466 = vector.broadcast %465 : vector<1x16x1xf32> to vector<2x16x61xf32>
    %467 = vector.broadcast %463 : vector<2x1x61xf32> to vector<2x16x61xf32>
    %468 = arith.mulf %466, %467 : vector<2x16x61xf32>
    %469 = arith.addf %462, %468 : vector<2x16x61xf32>
    %470 = vector.extract_strided_slice %312 {offsets = [0, 7, 1], sizes = [2, 1, 61], strides = [1, 1, 1]} : vector<2x8x63xf32> to vector<2x1x61xf32>
    %471 = vector.extract_strided_slice %313 {offsets = [0, 22], sizes = [16, 1], strides = [1, 1]} : vector<16x24xf32> to vector<16x1xf32>
    %472 = vector.shape_cast %471 : vector<16x1xf32> to vector<1x16x1xf32>
    %473 = vector.broadcast %472 : vector<1x16x1xf32> to vector<2x16x61xf32>
    %474 = vector.broadcast %470 : vector<2x1x61xf32> to vector<2x16x61xf32>
    %475 = arith.mulf %473, %474 : vector<2x16x61xf32>
    %476 = arith.addf %469, %475 : vector<2x16x61xf32>
    %477 = vector.extract_strided_slice %312 {offsets = [0, 7, 2], sizes = [2, 1, 61], strides = [1, 1, 1]} : vector<2x8x63xf32> to vector<2x1x61xf32>
    %478 = vector.extract_strided_slice %313 {offsets = [0, 23], sizes = [16, 1], strides = [1, 1]} : vector<16x24xf32> to vector<16x1xf32>
    %479 = vector.shape_cast %478 : vector<16x1xf32> to vector<1x16x1xf32>
    %480 = vector.broadcast %479 : vector<1x16x1xf32> to vector<2x16x61xf32>
    %481 = vector.broadcast %477 : vector<2x1x61xf32> to vector<2x16x61xf32>
    %482 = arith.mulf %480, %481 : vector<2x16x61xf32>
    %483 = arith.addf %476, %482 : vector<2x16x61xf32>
    %cst_45 = arith.constant dense<0.000000e+00> : vector<2x16xf32>
    %484 = vector.multi_reduction <add>, %483, %cst_45 [2] : vector<2x16x61xf32> to vector<2x16xf32>
    %485 = vector.shape_cast %484 : vector<2x16xf32> to vector<2x16x1xf32>
    %cst_46 = arith.constant dense<0.000000e+00> : vector<16x1xf32>
    %486 = vector.multi_reduction <add>, %485, %cst_46 [0] : vector<2x16x1xf32> to vector<16x1xf32>
    %487 = vector.shape_cast %486 : vector<16x1xf32> to vector<1x16x1xf32>
    %488 = arith.mulf %483, %483 : vector<2x16x61xf32>
    %cst_47 = arith.constant dense<0.000000e+00> : vector<2x16xf32>
    %489 = vector.multi_reduction <add>, %488, %cst_47 [2] : vector<2x16x61xf32> to vector<2x16xf32>
    %490 = vector.shape_cast %489 : vector<2x16xf32> to vector<2x16x1xf32>
    %cst_48 = arith.constant dense<0.000000e+00> : vector<16x1xf32>
    %491 = vector.multi_reduction <add>, %490, %cst_48 [0] : vector<2x16x1xf32> to vector<16x1xf32>
    %492 = vector.shape_cast %491 : vector<16x1xf32> to vector<1x16x1xf32>
    %cst_49 = arith.constant 1.220000e+02 : f32
    %493 = vector.broadcast %cst_49 : f32 to vector<1x16x1xf32>
    %494 = arith.divf %487, %493 : vector<1x16x1xf32>
    %cst_50 = arith.constant 1.220000e+02 : f32
    %495 = vector.broadcast %cst_50 : f32 to vector<1x16x1xf32>
    %496 = arith.divf %492, %495 : vector<1x16x1xf32>
    %497 = arith.mulf %494, %494 : vector<1x16x1xf32>
    %498 = arith.subf %496, %497 : vector<1x16x1xf32>
    %cst_51 = arith.constant 0.000000e+00 : f32
    %499 = vector.broadcast %cst_51 : f32 to vector<1x16x1xf32>
    %500 = arith.maximumf %498, %499 : vector<1x16x1xf32>
    %cst_52 = arith.constant 9.99999974E-6 : f32
    %501 = vector.broadcast %cst_52 : f32 to vector<1x16x1xf32>
    %502 = arith.addf %500, %501 : vector<1x16x1xf32>
    %503 = math.rsqrt %502 : vector<1x16x1xf32>
    %504 = vector.shape_cast %314 : vector<16x1xf32> to vector<1x16x1xf32>
    %505 = arith.mulf %504, %503 : vector<1x16x1xf32>
    %506 = arith.mulf %494, %505 : vector<1x16x1xf32>
    %507 = vector.shape_cast %315 : vector<16x1xf32> to vector<1x16x1xf32>
    %508 = arith.subf %507, %506 : vector<1x16x1xf32>
    %509 = vector.broadcast %505 : vector<1x16x1xf32> to vector<2x16x61xf32>
    %510 = arith.mulf %483, %509 : vector<2x16x61xf32>
    %511 = vector.broadcast %508 : vector<1x16x1xf32> to vector<2x16x61xf32>
    %512 = arith.addf %510, %511 : vector<2x16x61xf32>
    %cst_53 = arith.constant 0.000000e+00 : f32
    %513 = vector.broadcast %cst_53 : f32 to vector<2x16x61xf32>
    %514 = arith.maximumf %512, %513 : vector<2x16x61xf32>
    %515 = vector.extract_strided_slice %514 {offsets = [0, 0, 0], sizes = [2, 16, 58], strides = [1, 1, 1]} : vector<2x16x61xf32> to vector<2x16x58xf32>
    %516 = vector.extract_strided_slice %514 {offsets = [0, 0, 1], sizes = [2, 16, 58], strides = [1, 1, 1]} : vector<2x16x61xf32> to vector<2x16x58xf32>
    %517 = arith.maximumf %515, %516 : vector<2x16x58xf32>
    %518 = vector.extract_strided_slice %514 {offsets = [0, 0, 2], sizes = [2, 16, 58], strides = [1, 1, 1]} : vector<2x16x61xf32> to vector<2x16x58xf32>
    %519 = arith.maximumf %517, %518 : vector<2x16x58xf32>
    %520 = vector.extract_strided_slice %514 {offsets = [0, 0, 3], sizes = [2, 16, 58], strides = [1, 1, 1]} : vector<2x16x61xf32> to vector<2x16x58xf32>
    %521 = arith.maximumf %519, %520 : vector<2x16x58xf32>
    %522 = vector.shape_cast %521 : vector<2x16x58xf32> to vector<32x58xf32>
    %cst_54 = arith.constant dense<0.000000e+00> : vector<32x15xf32>
    %523 = tpu.matmul %522, %316, %cst_54 {dimension_numbers = #tpu.dot_dimension_numbers<[1], [0], [0], [1], [0, 0, 1, 1], [], []>} : vector<32x58xf32>, vector<58x15xf32>, vector<32x15xf32> -> vector<32x15xf32>
    %524 = vector.shape_cast %523 : vector<32x15xf32> to vector<2x16x15xf32>
    %c0_55 = arith.constant 0 : index
    %c0_56 = arith.constant 0 : index
    %525 = vector.load %arg14[%c0_55, %c0_56] : memref<16x48xf32, #tpu.memory_space<vmem>>, vector<16x48xf32>
    %c0_57 = arith.constant 0 : index
    %c0_58 = arith.constant 0 : index
    %526 = vector.load %arg15[%c0_57, %c0_58] : memref<16x1xf32, #tpu.memory_space<vmem>>, vector<16x1xf32>
    %c0_59 = arith.constant 0 : index
    %c0_60 = arith.constant 0 : index
    %527 = vector.load %arg16[%c0_59, %c0_60] : memref<16x1xf32, #tpu.memory_space<vmem>>, vector<16x1xf32>
    %c0_61 = arith.constant 0 : index
    %c0_62 = arith.constant 0 : index
    %528 = vector.load %arg17[%c0_61, %c0_62] : memref<10x3xf32, #tpu.memory_space<vmem>>, vector<10x3xf32>
    %529 = vector.extract_strided_slice %524 {offsets = [0, 0, 0], sizes = [2, 1, 13], strides = [1, 1, 1]} : vector<2x16x15xf32> to vector<2x1x13xf32>
    %530 = vector.extract_strided_slice %525 {offsets = [0, 0], sizes = [16, 1], strides = [1, 1]} : vector<16x48xf32> to vector<16x1xf32>
    %531 = vector.shape_cast %530 : vector<16x1xf32> to vector<1x16x1xf32>
    %532 = vector.broadcast %531 : vector<1x16x1xf32> to vector<2x16x13xf32>
    %533 = vector.broadcast %529 : vector<2x1x13xf32> to vector<2x16x13xf32>
    %534 = arith.mulf %532, %533 : vector<2x16x13xf32>
    %535 = vector.extract_strided_slice %524 {offsets = [0, 0, 1], sizes = [2, 1, 13], strides = [1, 1, 1]} : vector<2x16x15xf32> to vector<2x1x13xf32>
    %536 = vector.extract_strided_slice %525 {offsets = [0, 1], sizes = [16, 1], strides = [1, 1]} : vector<16x48xf32> to vector<16x1xf32>
    %537 = vector.shape_cast %536 : vector<16x1xf32> to vector<1x16x1xf32>
    %538 = vector.broadcast %537 : vector<1x16x1xf32> to vector<2x16x13xf32>
    %539 = vector.broadcast %535 : vector<2x1x13xf32> to vector<2x16x13xf32>
    %540 = arith.mulf %538, %539 : vector<2x16x13xf32>
    %541 = arith.addf %534, %540 : vector<2x16x13xf32>
    %542 = vector.extract_strided_slice %524 {offsets = [0, 0, 2], sizes = [2, 1, 13], strides = [1, 1, 1]} : vector<2x16x15xf32> to vector<2x1x13xf32>
    %543 = vector.extract_strided_slice %525 {offsets = [0, 2], sizes = [16, 1], strides = [1, 1]} : vector<16x48xf32> to vector<16x1xf32>
    %544 = vector.shape_cast %543 : vector<16x1xf32> to vector<1x16x1xf32>
    %545 = vector.broadcast %544 : vector<1x16x1xf32> to vector<2x16x13xf32>
    %546 = vector.broadcast %542 : vector<2x1x13xf32> to vector<2x16x13xf32>
    %547 = arith.mulf %545, %546 : vector<2x16x13xf32>
    %548 = arith.addf %541, %547 : vector<2x16x13xf32>
    %549 = vector.extract_strided_slice %524 {offsets = [0, 1, 0], sizes = [2, 1, 13], strides = [1, 1, 1]} : vector<2x16x15xf32> to vector<2x1x13xf32>
    %550 = vector.extract_strided_slice %525 {offsets = [0, 3], sizes = [16, 1], strides = [1, 1]} : vector<16x48xf32> to vector<16x1xf32>
    %551 = vector.shape_cast %550 : vector<16x1xf32> to vector<1x16x1xf32>
    %552 = vector.broadcast %551 : vector<1x16x1xf32> to vector<2x16x13xf32>
    %553 = vector.broadcast %549 : vector<2x1x13xf32> to vector<2x16x13xf32>
    %554 = arith.mulf %552, %553 : vector<2x16x13xf32>
    %555 = arith.addf %548, %554 : vector<2x16x13xf32>
    %556 = vector.extract_strided_slice %524 {offsets = [0, 1, 1], sizes = [2, 1, 13], strides = [1, 1, 1]} : vector<2x16x15xf32> to vector<2x1x13xf32>
    %557 = vector.extract_strided_slice %525 {offsets = [0, 4], sizes = [16, 1], strides = [1, 1]} : vector<16x48xf32> to vector<16x1xf32>
    %558 = vector.shape_cast %557 : vector<16x1xf32> to vector<1x16x1xf32>
    %559 = vector.broadcast %558 : vector<1x16x1xf32> to vector<2x16x13xf32>
    %560 = vector.broadcast %556 : vector<2x1x13xf32> to vector<2x16x13xf32>
    %561 = arith.mulf %559, %560 : vector<2x16x13xf32>
    %562 = arith.addf %555, %561 : vector<2x16x13xf32>
    %563 = vector.extract_strided_slice %524 {offsets = [0, 1, 2], sizes = [2, 1, 13], strides = [1, 1, 1]} : vector<2x16x15xf32> to vector<2x1x13xf32>
    %564 = vector.extract_strided_slice %525 {offsets = [0, 5], sizes = [16, 1], strides = [1, 1]} : vector<16x48xf32> to vector<16x1xf32>
    %565 = vector.shape_cast %564 : vector<16x1xf32> to vector<1x16x1xf32>
    %566 = vector.broadcast %565 : vector<1x16x1xf32> to vector<2x16x13xf32>
    %567 = vector.broadcast %563 : vector<2x1x13xf32> to vector<2x16x13xf32>
    %568 = arith.mulf %566, %567 : vector<2x16x13xf32>
    %569 = arith.addf %562, %568 : vector<2x16x13xf32>
    %570 = vector.extract_strided_slice %524 {offsets = [0, 2, 0], sizes = [2, 1, 13], strides = [1, 1, 1]} : vector<2x16x15xf32> to vector<2x1x13xf32>
    %571 = vector.extract_strided_slice %525 {offsets = [0, 6], sizes = [16, 1], strides = [1, 1]} : vector<16x48xf32> to vector<16x1xf32>
    %572 = vector.shape_cast %571 : vector<16x1xf32> to vector<1x16x1xf32>
    %573 = vector.broadcast %572 : vector<1x16x1xf32> to vector<2x16x13xf32>
    %574 = vector.broadcast %570 : vector<2x1x13xf32> to vector<2x16x13xf32>
    %575 = arith.mulf %573, %574 : vector<2x16x13xf32>
    %576 = arith.addf %569, %575 : vector<2x16x13xf32>
    %577 = vector.extract_strided_slice %524 {offsets = [0, 2, 1], sizes = [2, 1, 13], strides = [1, 1, 1]} : vector<2x16x15xf32> to vector<2x1x13xf32>
    %578 = vector.extract_strided_slice %525 {offsets = [0, 7], sizes = [16, 1], strides = [1, 1]} : vector<16x48xf32> to vector<16x1xf32>
    %579 = vector.shape_cast %578 : vector<16x1xf32> to vector<1x16x1xf32>
    %580 = vector.broadcast %579 : vector<1x16x1xf32> to vector<2x16x13xf32>
    %581 = vector.broadcast %577 : vector<2x1x13xf32> to vector<2x16x13xf32>
    %582 = arith.mulf %580, %581 : vector<2x16x13xf32>
    %583 = arith.addf %576, %582 : vector<2x16x13xf32>
    %584 = vector.extract_strided_slice %524 {offsets = [0, 2, 2], sizes = [2, 1, 13], strides = [1, 1, 1]} : vector<2x16x15xf32> to vector<2x1x13xf32>
    %585 = vector.extract_strided_slice %525 {offsets = [0, 8], sizes = [16, 1], strides = [1, 1]} : vector<16x48xf32> to vector<16x1xf32>
    %586 = vector.shape_cast %585 : vector<16x1xf32> to vector<1x16x1xf32>
    %587 = vector.broadcast %586 : vector<1x16x1xf32> to vector<2x16x13xf32>
    %588 = vector.broadcast %584 : vector<2x1x13xf32> to vector<2x16x13xf32>
    %589 = arith.mulf %587, %588 : vector<2x16x13xf32>
    %590 = arith.addf %583, %589 : vector<2x16x13xf32>
    %591 = vector.extract_strided_slice %524 {offsets = [0, 3, 0], sizes = [2, 1, 13], strides = [1, 1, 1]} : vector<2x16x15xf32> to vector<2x1x13xf32>
    %592 = vector.extract_strided_slice %525 {offsets = [0, 9], sizes = [16, 1], strides = [1, 1]} : vector<16x48xf32> to vector<16x1xf32>
    %593 = vector.shape_cast %592 : vector<16x1xf32> to vector<1x16x1xf32>
    %594 = vector.broadcast %593 : vector<1x16x1xf32> to vector<2x16x13xf32>
    %595 = vector.broadcast %591 : vector<2x1x13xf32> to vector<2x16x13xf32>
    %596 = arith.mulf %594, %595 : vector<2x16x13xf32>
    %597 = arith.addf %590, %596 : vector<2x16x13xf32>
    %598 = vector.extract_strided_slice %524 {offsets = [0, 3, 1], sizes = [2, 1, 13], strides = [1, 1, 1]} : vector<2x16x15xf32> to vector<2x1x13xf32>
    %599 = vector.extract_strided_slice %525 {offsets = [0, 10], sizes = [16, 1], strides = [1, 1]} : vector<16x48xf32> to vector<16x1xf32>
    %600 = vector.shape_cast %599 : vector<16x1xf32> to vector<1x16x1xf32>
    %601 = vector.broadcast %600 : vector<1x16x1xf32> to vector<2x16x13xf32>
    %602 = vector.broadcast %598 : vector<2x1x13xf32> to vector<2x16x13xf32>
    %603 = arith.mulf %601, %602 : vector<2x16x13xf32>
    %604 = arith.addf %597, %603 : vector<2x16x13xf32>
    %605 = vector.extract_strided_slice %524 {offsets = [0, 3, 2], sizes = [2, 1, 13], strides = [1, 1, 1]} : vector<2x16x15xf32> to vector<2x1x13xf32>
    %606 = vector.extract_strided_slice %525 {offsets = [0, 11], sizes = [16, 1], strides = [1, 1]} : vector<16x48xf32> to vector<16x1xf32>
    %607 = vector.shape_cast %606 : vector<16x1xf32> to vector<1x16x1xf32>
    %608 = vector.broadcast %607 : vector<1x16x1xf32> to vector<2x16x13xf32>
    %609 = vector.broadcast %605 : vector<2x1x13xf32> to vector<2x16x13xf32>
    %610 = arith.mulf %608, %609 : vector<2x16x13xf32>
    %611 = arith.addf %604, %610 : vector<2x16x13xf32>
    %612 = vector.extract_strided_slice %524 {offsets = [0, 4, 0], sizes = [2, 1, 13], strides = [1, 1, 1]} : vector<2x16x15xf32> to vector<2x1x13xf32>
    %613 = vector.extract_strided_slice %525 {offsets = [0, 12], sizes = [16, 1], strides = [1, 1]} : vector<16x48xf32> to vector<16x1xf32>
    %614 = vector.shape_cast %613 : vector<16x1xf32> to vector<1x16x1xf32>
    %615 = vector.broadcast %614 : vector<1x16x1xf32> to vector<2x16x13xf32>
    %616 = vector.broadcast %612 : vector<2x1x13xf32> to vector<2x16x13xf32>
    %617 = arith.mulf %615, %616 : vector<2x16x13xf32>
    %618 = arith.addf %611, %617 : vector<2x16x13xf32>
    %619 = vector.extract_strided_slice %524 {offsets = [0, 4, 1], sizes = [2, 1, 13], strides = [1, 1, 1]} : vector<2x16x15xf32> to vector<2x1x13xf32>
    %620 = vector.extract_strided_slice %525 {offsets = [0, 13], sizes = [16, 1], strides = [1, 1]} : vector<16x48xf32> to vector<16x1xf32>
    %621 = vector.shape_cast %620 : vector<16x1xf32> to vector<1x16x1xf32>
    %622 = vector.broadcast %621 : vector<1x16x1xf32> to vector<2x16x13xf32>
    %623 = vector.broadcast %619 : vector<2x1x13xf32> to vector<2x16x13xf32>
    %624 = arith.mulf %622, %623 : vector<2x16x13xf32>
    %625 = arith.addf %618, %624 : vector<2x16x13xf32>
    %626 = vector.extract_strided_slice %524 {offsets = [0, 4, 2], sizes = [2, 1, 13], strides = [1, 1, 1]} : vector<2x16x15xf32> to vector<2x1x13xf32>
    %627 = vector.extract_strided_slice %525 {offsets = [0, 14], sizes = [16, 1], strides = [1, 1]} : vector<16x48xf32> to vector<16x1xf32>
    %628 = vector.shape_cast %627 : vector<16x1xf32> to vector<1x16x1xf32>
    %629 = vector.broadcast %628 : vector<1x16x1xf32> to vector<2x16x13xf32>
    %630 = vector.broadcast %626 : vector<2x1x13xf32> to vector<2x16x13xf32>
    %631 = arith.mulf %629, %630 : vector<2x16x13xf32>
    %632 = arith.addf %625, %631 : vector<2x16x13xf32>
    %633 = vector.extract_strided_slice %524 {offsets = [0, 5, 0], sizes = [2, 1, 13], strides = [1, 1, 1]} : vector<2x16x15xf32> to vector<2x1x13xf32>
    %634 = vector.extract_strided_slice %525 {offsets = [0, 15], sizes = [16, 1], strides = [1, 1]} : vector<16x48xf32> to vector<16x1xf32>
    %635 = vector.shape_cast %634 : vector<16x1xf32> to vector<1x16x1xf32>
    %636 = vector.broadcast %635 : vector<1x16x1xf32> to vector<2x16x13xf32>
    %637 = vector.broadcast %633 : vector<2x1x13xf32> to vector<2x16x13xf32>
    %638 = arith.mulf %636, %637 : vector<2x16x13xf32>
    %639 = arith.addf %632, %638 : vector<2x16x13xf32>
    %640 = vector.extract_strided_slice %524 {offsets = [0, 5, 1], sizes = [2, 1, 13], strides = [1, 1, 1]} : vector<2x16x15xf32> to vector<2x1x13xf32>
    %641 = vector.extract_strided_slice %525 {offsets = [0, 16], sizes = [16, 1], strides = [1, 1]} : vector<16x48xf32> to vector<16x1xf32>
    %642 = vector.shape_cast %641 : vector<16x1xf32> to vector<1x16x1xf32>
    %643 = vector.broadcast %642 : vector<1x16x1xf32> to vector<2x16x13xf32>
    %644 = vector.broadcast %640 : vector<2x1x13xf32> to vector<2x16x13xf32>
    %645 = arith.mulf %643, %644 : vector<2x16x13xf32>
    %646 = arith.addf %639, %645 : vector<2x16x13xf32>
    %647 = vector.extract_strided_slice %524 {offsets = [0, 5, 2], sizes = [2, 1, 13], strides = [1, 1, 1]} : vector<2x16x15xf32> to vector<2x1x13xf32>
    %648 = vector.extract_strided_slice %525 {offsets = [0, 17], sizes = [16, 1], strides = [1, 1]} : vector<16x48xf32> to vector<16x1xf32>
    %649 = vector.shape_cast %648 : vector<16x1xf32> to vector<1x16x1xf32>
    %650 = vector.broadcast %649 : vector<1x16x1xf32> to vector<2x16x13xf32>
    %651 = vector.broadcast %647 : vector<2x1x13xf32> to vector<2x16x13xf32>
    %652 = arith.mulf %650, %651 : vector<2x16x13xf32>
    %653 = arith.addf %646, %652 : vector<2x16x13xf32>
    %654 = vector.extract_strided_slice %524 {offsets = [0, 6, 0], sizes = [2, 1, 13], strides = [1, 1, 1]} : vector<2x16x15xf32> to vector<2x1x13xf32>
    %655 = vector.extract_strided_slice %525 {offsets = [0, 18], sizes = [16, 1], strides = [1, 1]} : vector<16x48xf32> to vector<16x1xf32>
    %656 = vector.shape_cast %655 : vector<16x1xf32> to vector<1x16x1xf32>
    %657 = vector.broadcast %656 : vector<1x16x1xf32> to vector<2x16x13xf32>
    %658 = vector.broadcast %654 : vector<2x1x13xf32> to vector<2x16x13xf32>
    %659 = arith.mulf %657, %658 : vector<2x16x13xf32>
    %660 = arith.addf %653, %659 : vector<2x16x13xf32>
    %661 = vector.extract_strided_slice %524 {offsets = [0, 6, 1], sizes = [2, 1, 13], strides = [1, 1, 1]} : vector<2x16x15xf32> to vector<2x1x13xf32>
    %662 = vector.extract_strided_slice %525 {offsets = [0, 19], sizes = [16, 1], strides = [1, 1]} : vector<16x48xf32> to vector<16x1xf32>
    %663 = vector.shape_cast %662 : vector<16x1xf32> to vector<1x16x1xf32>
    %664 = vector.broadcast %663 : vector<1x16x1xf32> to vector<2x16x13xf32>
    %665 = vector.broadcast %661 : vector<2x1x13xf32> to vector<2x16x13xf32>
    %666 = arith.mulf %664, %665 : vector<2x16x13xf32>
    %667 = arith.addf %660, %666 : vector<2x16x13xf32>
    %668 = vector.extract_strided_slice %524 {offsets = [0, 6, 2], sizes = [2, 1, 13], strides = [1, 1, 1]} : vector<2x16x15xf32> to vector<2x1x13xf32>
    %669 = vector.extract_strided_slice %525 {offsets = [0, 20], sizes = [16, 1], strides = [1, 1]} : vector<16x48xf32> to vector<16x1xf32>
    %670 = vector.shape_cast %669 : vector<16x1xf32> to vector<1x16x1xf32>
    %671 = vector.broadcast %670 : vector<1x16x1xf32> to vector<2x16x13xf32>
    %672 = vector.broadcast %668 : vector<2x1x13xf32> to vector<2x16x13xf32>
    %673 = arith.mulf %671, %672 : vector<2x16x13xf32>
    %674 = arith.addf %667, %673 : vector<2x16x13xf32>
    %675 = vector.extract_strided_slice %524 {offsets = [0, 7, 0], sizes = [2, 1, 13], strides = [1, 1, 1]} : vector<2x16x15xf32> to vector<2x1x13xf32>
    %676 = vector.extract_strided_slice %525 {offsets = [0, 21], sizes = [16, 1], strides = [1, 1]} : vector<16x48xf32> to vector<16x1xf32>
    %677 = vector.shape_cast %676 : vector<16x1xf32> to vector<1x16x1xf32>
    %678 = vector.broadcast %677 : vector<1x16x1xf32> to vector<2x16x13xf32>
    %679 = vector.broadcast %675 : vector<2x1x13xf32> to vector<2x16x13xf32>
    %680 = arith.mulf %678, %679 : vector<2x16x13xf32>
    %681 = arith.addf %674, %680 : vector<2x16x13xf32>
    %682 = vector.extract_strided_slice %524 {offsets = [0, 7, 1], sizes = [2, 1, 13], strides = [1, 1, 1]} : vector<2x16x15xf32> to vector<2x1x13xf32>
    %683 = vector.extract_strided_slice %525 {offsets = [0, 22], sizes = [16, 1], strides = [1, 1]} : vector<16x48xf32> to vector<16x1xf32>
    %684 = vector.shape_cast %683 : vector<16x1xf32> to vector<1x16x1xf32>
    %685 = vector.broadcast %684 : vector<1x16x1xf32> to vector<2x16x13xf32>
    %686 = vector.broadcast %682 : vector<2x1x13xf32> to vector<2x16x13xf32>
    %687 = arith.mulf %685, %686 : vector<2x16x13xf32>
    %688 = arith.addf %681, %687 : vector<2x16x13xf32>
    %689 = vector.extract_strided_slice %524 {offsets = [0, 7, 2], sizes = [2, 1, 13], strides = [1, 1, 1]} : vector<2x16x15xf32> to vector<2x1x13xf32>
    %690 = vector.extract_strided_slice %525 {offsets = [0, 23], sizes = [16, 1], strides = [1, 1]} : vector<16x48xf32> to vector<16x1xf32>
    %691 = vector.shape_cast %690 : vector<16x1xf32> to vector<1x16x1xf32>
    %692 = vector.broadcast %691 : vector<1x16x1xf32> to vector<2x16x13xf32>
    %693 = vector.broadcast %689 : vector<2x1x13xf32> to vector<2x16x13xf32>
    %694 = arith.mulf %692, %693 : vector<2x16x13xf32>
    %695 = arith.addf %688, %694 : vector<2x16x13xf32>
    %696 = vector.extract_strided_slice %524 {offsets = [0, 8, 0], sizes = [2, 1, 13], strides = [1, 1, 1]} : vector<2x16x15xf32> to vector<2x1x13xf32>
    %697 = vector.extract_strided_slice %525 {offsets = [0, 24], sizes = [16, 1], strides = [1, 1]} : vector<16x48xf32> to vector<16x1xf32>
    %698 = vector.shape_cast %697 : vector<16x1xf32> to vector<1x16x1xf32>
    %699 = vector.broadcast %698 : vector<1x16x1xf32> to vector<2x16x13xf32>
    %700 = vector.broadcast %696 : vector<2x1x13xf32> to vector<2x16x13xf32>
    %701 = arith.mulf %699, %700 : vector<2x16x13xf32>
    %702 = arith.addf %695, %701 : vector<2x16x13xf32>
    %703 = vector.extract_strided_slice %524 {offsets = [0, 8, 1], sizes = [2, 1, 13], strides = [1, 1, 1]} : vector<2x16x15xf32> to vector<2x1x13xf32>
    %704 = vector.extract_strided_slice %525 {offsets = [0, 25], sizes = [16, 1], strides = [1, 1]} : vector<16x48xf32> to vector<16x1xf32>
    %705 = vector.shape_cast %704 : vector<16x1xf32> to vector<1x16x1xf32>
    %706 = vector.broadcast %705 : vector<1x16x1xf32> to vector<2x16x13xf32>
    %707 = vector.broadcast %703 : vector<2x1x13xf32> to vector<2x16x13xf32>
    %708 = arith.mulf %706, %707 : vector<2x16x13xf32>
    %709 = arith.addf %702, %708 : vector<2x16x13xf32>
    %710 = vector.extract_strided_slice %524 {offsets = [0, 8, 2], sizes = [2, 1, 13], strides = [1, 1, 1]} : vector<2x16x15xf32> to vector<2x1x13xf32>
    %711 = vector.extract_strided_slice %525 {offsets = [0, 26], sizes = [16, 1], strides = [1, 1]} : vector<16x48xf32> to vector<16x1xf32>
    %712 = vector.shape_cast %711 : vector<16x1xf32> to vector<1x16x1xf32>
    %713 = vector.broadcast %712 : vector<1x16x1xf32> to vector<2x16x13xf32>
    %714 = vector.broadcast %710 : vector<2x1x13xf32> to vector<2x16x13xf32>
    %715 = arith.mulf %713, %714 : vector<2x16x13xf32>
    %716 = arith.addf %709, %715 : vector<2x16x13xf32>
    %717 = vector.extract_strided_slice %524 {offsets = [0, 9, 0], sizes = [2, 1, 13], strides = [1, 1, 1]} : vector<2x16x15xf32> to vector<2x1x13xf32>
    %718 = vector.extract_strided_slice %525 {offsets = [0, 27], sizes = [16, 1], strides = [1, 1]} : vector<16x48xf32> to vector<16x1xf32>
    %719 = vector.shape_cast %718 : vector<16x1xf32> to vector<1x16x1xf32>
    %720 = vector.broadcast %719 : vector<1x16x1xf32> to vector<2x16x13xf32>
    %721 = vector.broadcast %717 : vector<2x1x13xf32> to vector<2x16x13xf32>
    %722 = arith.mulf %720, %721 : vector<2x16x13xf32>
    %723 = arith.addf %716, %722 : vector<2x16x13xf32>
    %724 = vector.extract_strided_slice %524 {offsets = [0, 9, 1], sizes = [2, 1, 13], strides = [1, 1, 1]} : vector<2x16x15xf32> to vector<2x1x13xf32>
    %725 = vector.extract_strided_slice %525 {offsets = [0, 28], sizes = [16, 1], strides = [1, 1]} : vector<16x48xf32> to vector<16x1xf32>
    %726 = vector.shape_cast %725 : vector<16x1xf32> to vector<1x16x1xf32>
    %727 = vector.broadcast %726 : vector<1x16x1xf32> to vector<2x16x13xf32>
    %728 = vector.broadcast %724 : vector<2x1x13xf32> to vector<2x16x13xf32>
    %729 = arith.mulf %727, %728 : vector<2x16x13xf32>
    %730 = arith.addf %723, %729 : vector<2x16x13xf32>
    %731 = vector.extract_strided_slice %524 {offsets = [0, 9, 2], sizes = [2, 1, 13], strides = [1, 1, 1]} : vector<2x16x15xf32> to vector<2x1x13xf32>
    %732 = vector.extract_strided_slice %525 {offsets = [0, 29], sizes = [16, 1], strides = [1, 1]} : vector<16x48xf32> to vector<16x1xf32>
    %733 = vector.shape_cast %732 : vector<16x1xf32> to vector<1x16x1xf32>
    %734 = vector.broadcast %733 : vector<1x16x1xf32> to vector<2x16x13xf32>
    %735 = vector.broadcast %731 : vector<2x1x13xf32> to vector<2x16x13xf32>
    %736 = arith.mulf %734, %735 : vector<2x16x13xf32>
    %737 = arith.addf %730, %736 : vector<2x16x13xf32>
    %738 = vector.extract_strided_slice %524 {offsets = [0, 10, 0], sizes = [2, 1, 13], strides = [1, 1, 1]} : vector<2x16x15xf32> to vector<2x1x13xf32>
    %739 = vector.extract_strided_slice %525 {offsets = [0, 30], sizes = [16, 1], strides = [1, 1]} : vector<16x48xf32> to vector<16x1xf32>
    %740 = vector.shape_cast %739 : vector<16x1xf32> to vector<1x16x1xf32>
    %741 = vector.broadcast %740 : vector<1x16x1xf32> to vector<2x16x13xf32>
    %742 = vector.broadcast %738 : vector<2x1x13xf32> to vector<2x16x13xf32>
    %743 = arith.mulf %741, %742 : vector<2x16x13xf32>
    %744 = arith.addf %737, %743 : vector<2x16x13xf32>
    %745 = vector.extract_strided_slice %524 {offsets = [0, 10, 1], sizes = [2, 1, 13], strides = [1, 1, 1]} : vector<2x16x15xf32> to vector<2x1x13xf32>
    %746 = vector.extract_strided_slice %525 {offsets = [0, 31], sizes = [16, 1], strides = [1, 1]} : vector<16x48xf32> to vector<16x1xf32>
    %747 = vector.shape_cast %746 : vector<16x1xf32> to vector<1x16x1xf32>
    %748 = vector.broadcast %747 : vector<1x16x1xf32> to vector<2x16x13xf32>
    %749 = vector.broadcast %745 : vector<2x1x13xf32> to vector<2x16x13xf32>
    %750 = arith.mulf %748, %749 : vector<2x16x13xf32>
    %751 = arith.addf %744, %750 : vector<2x16x13xf32>
    %752 = vector.extract_strided_slice %524 {offsets = [0, 10, 2], sizes = [2, 1, 13], strides = [1, 1, 1]} : vector<2x16x15xf32> to vector<2x1x13xf32>
    %753 = vector.extract_strided_slice %525 {offsets = [0, 32], sizes = [16, 1], strides = [1, 1]} : vector<16x48xf32> to vector<16x1xf32>
    %754 = vector.shape_cast %753 : vector<16x1xf32> to vector<1x16x1xf32>
    %755 = vector.broadcast %754 : vector<1x16x1xf32> to vector<2x16x13xf32>
    %756 = vector.broadcast %752 : vector<2x1x13xf32> to vector<2x16x13xf32>
    %757 = arith.mulf %755, %756 : vector<2x16x13xf32>
    %758 = arith.addf %751, %757 : vector<2x16x13xf32>
    %759 = vector.extract_strided_slice %524 {offsets = [0, 11, 0], sizes = [2, 1, 13], strides = [1, 1, 1]} : vector<2x16x15xf32> to vector<2x1x13xf32>
    %760 = vector.extract_strided_slice %525 {offsets = [0, 33], sizes = [16, 1], strides = [1, 1]} : vector<16x48xf32> to vector<16x1xf32>
    %761 = vector.shape_cast %760 : vector<16x1xf32> to vector<1x16x1xf32>
    %762 = vector.broadcast %761 : vector<1x16x1xf32> to vector<2x16x13xf32>
    %763 = vector.broadcast %759 : vector<2x1x13xf32> to vector<2x16x13xf32>
    %764 = arith.mulf %762, %763 : vector<2x16x13xf32>
    %765 = arith.addf %758, %764 : vector<2x16x13xf32>
    %766 = vector.extract_strided_slice %524 {offsets = [0, 11, 1], sizes = [2, 1, 13], strides = [1, 1, 1]} : vector<2x16x15xf32> to vector<2x1x13xf32>
    %767 = vector.extract_strided_slice %525 {offsets = [0, 34], sizes = [16, 1], strides = [1, 1]} : vector<16x48xf32> to vector<16x1xf32>
    %768 = vector.shape_cast %767 : vector<16x1xf32> to vector<1x16x1xf32>
    %769 = vector.broadcast %768 : vector<1x16x1xf32> to vector<2x16x13xf32>
    %770 = vector.broadcast %766 : vector<2x1x13xf32> to vector<2x16x13xf32>
    %771 = arith.mulf %769, %770 : vector<2x16x13xf32>
    %772 = arith.addf %765, %771 : vector<2x16x13xf32>
    %773 = vector.extract_strided_slice %524 {offsets = [0, 11, 2], sizes = [2, 1, 13], strides = [1, 1, 1]} : vector<2x16x15xf32> to vector<2x1x13xf32>
    %774 = vector.extract_strided_slice %525 {offsets = [0, 35], sizes = [16, 1], strides = [1, 1]} : vector<16x48xf32> to vector<16x1xf32>
    %775 = vector.shape_cast %774 : vector<16x1xf32> to vector<1x16x1xf32>
    %776 = vector.broadcast %775 : vector<1x16x1xf32> to vector<2x16x13xf32>
    %777 = vector.broadcast %773 : vector<2x1x13xf32> to vector<2x16x13xf32>
    %778 = arith.mulf %776, %777 : vector<2x16x13xf32>
    %779 = arith.addf %772, %778 : vector<2x16x13xf32>
    %780 = vector.extract_strided_slice %524 {offsets = [0, 12, 0], sizes = [2, 1, 13], strides = [1, 1, 1]} : vector<2x16x15xf32> to vector<2x1x13xf32>
    %781 = vector.extract_strided_slice %525 {offsets = [0, 36], sizes = [16, 1], strides = [1, 1]} : vector<16x48xf32> to vector<16x1xf32>
    %782 = vector.shape_cast %781 : vector<16x1xf32> to vector<1x16x1xf32>
    %783 = vector.broadcast %782 : vector<1x16x1xf32> to vector<2x16x13xf32>
    %784 = vector.broadcast %780 : vector<2x1x13xf32> to vector<2x16x13xf32>
    %785 = arith.mulf %783, %784 : vector<2x16x13xf32>
    %786 = arith.addf %779, %785 : vector<2x16x13xf32>
    %787 = vector.extract_strided_slice %524 {offsets = [0, 12, 1], sizes = [2, 1, 13], strides = [1, 1, 1]} : vector<2x16x15xf32> to vector<2x1x13xf32>
    %788 = vector.extract_strided_slice %525 {offsets = [0, 37], sizes = [16, 1], strides = [1, 1]} : vector<16x48xf32> to vector<16x1xf32>
    %789 = vector.shape_cast %788 : vector<16x1xf32> to vector<1x16x1xf32>
    %790 = vector.broadcast %789 : vector<1x16x1xf32> to vector<2x16x13xf32>
    %791 = vector.broadcast %787 : vector<2x1x13xf32> to vector<2x16x13xf32>
    %792 = arith.mulf %790, %791 : vector<2x16x13xf32>
    %793 = arith.addf %786, %792 : vector<2x16x13xf32>
    %794 = vector.extract_strided_slice %524 {offsets = [0, 12, 2], sizes = [2, 1, 13], strides = [1, 1, 1]} : vector<2x16x15xf32> to vector<2x1x13xf32>
    %795 = vector.extract_strided_slice %525 {offsets = [0, 38], sizes = [16, 1], strides = [1, 1]} : vector<16x48xf32> to vector<16x1xf32>
    %796 = vector.shape_cast %795 : vector<16x1xf32> to vector<1x16x1xf32>
    %797 = vector.broadcast %796 : vector<1x16x1xf32> to vector<2x16x13xf32>
    %798 = vector.broadcast %794 : vector<2x1x13xf32> to vector<2x16x13xf32>
    %799 = arith.mulf %797, %798 : vector<2x16x13xf32>
    %800 = arith.addf %793, %799 : vector<2x16x13xf32>
    %801 = vector.extract_strided_slice %524 {offsets = [0, 13, 0], sizes = [2, 1, 13], strides = [1, 1, 1]} : vector<2x16x15xf32> to vector<2x1x13xf32>
    %802 = vector.extract_strided_slice %525 {offsets = [0, 39], sizes = [16, 1], strides = [1, 1]} : vector<16x48xf32> to vector<16x1xf32>
    %803 = vector.shape_cast %802 : vector<16x1xf32> to vector<1x16x1xf32>
    %804 = vector.broadcast %803 : vector<1x16x1xf32> to vector<2x16x13xf32>
    %805 = vector.broadcast %801 : vector<2x1x13xf32> to vector<2x16x13xf32>
    %806 = arith.mulf %804, %805 : vector<2x16x13xf32>
    %807 = arith.addf %800, %806 : vector<2x16x13xf32>
    %808 = vector.extract_strided_slice %524 {offsets = [0, 13, 1], sizes = [2, 1, 13], strides = [1, 1, 1]} : vector<2x16x15xf32> to vector<2x1x13xf32>
    %809 = vector.extract_strided_slice %525 {offsets = [0, 40], sizes = [16, 1], strides = [1, 1]} : vector<16x48xf32> to vector<16x1xf32>
    %810 = vector.shape_cast %809 : vector<16x1xf32> to vector<1x16x1xf32>
    %811 = vector.broadcast %810 : vector<1x16x1xf32> to vector<2x16x13xf32>
    %812 = vector.broadcast %808 : vector<2x1x13xf32> to vector<2x16x13xf32>
    %813 = arith.mulf %811, %812 : vector<2x16x13xf32>
    %814 = arith.addf %807, %813 : vector<2x16x13xf32>
    %815 = vector.extract_strided_slice %524 {offsets = [0, 13, 2], sizes = [2, 1, 13], strides = [1, 1, 1]} : vector<2x16x15xf32> to vector<2x1x13xf32>
    %816 = vector.extract_strided_slice %525 {offsets = [0, 41], sizes = [16, 1], strides = [1, 1]} : vector<16x48xf32> to vector<16x1xf32>
    %817 = vector.shape_cast %816 : vector<16x1xf32> to vector<1x16x1xf32>
    %818 = vector.broadcast %817 : vector<1x16x1xf32> to vector<2x16x13xf32>
    %819 = vector.broadcast %815 : vector<2x1x13xf32> to vector<2x16x13xf32>
    %820 = arith.mulf %818, %819 : vector<2x16x13xf32>
    %821 = arith.addf %814, %820 : vector<2x16x13xf32>
    %822 = vector.extract_strided_slice %524 {offsets = [0, 14, 0], sizes = [2, 1, 13], strides = [1, 1, 1]} : vector<2x16x15xf32> to vector<2x1x13xf32>
    %823 = vector.extract_strided_slice %525 {offsets = [0, 42], sizes = [16, 1], strides = [1, 1]} : vector<16x48xf32> to vector<16x1xf32>
    %824 = vector.shape_cast %823 : vector<16x1xf32> to vector<1x16x1xf32>
    %825 = vector.broadcast %824 : vector<1x16x1xf32> to vector<2x16x13xf32>
    %826 = vector.broadcast %822 : vector<2x1x13xf32> to vector<2x16x13xf32>
    %827 = arith.mulf %825, %826 : vector<2x16x13xf32>
    %828 = arith.addf %821, %827 : vector<2x16x13xf32>
    %829 = vector.extract_strided_slice %524 {offsets = [0, 14, 1], sizes = [2, 1, 13], strides = [1, 1, 1]} : vector<2x16x15xf32> to vector<2x1x13xf32>
    %830 = vector.extract_strided_slice %525 {offsets = [0, 43], sizes = [16, 1], strides = [1, 1]} : vector<16x48xf32> to vector<16x1xf32>
    %831 = vector.shape_cast %830 : vector<16x1xf32> to vector<1x16x1xf32>
    %832 = vector.broadcast %831 : vector<1x16x1xf32> to vector<2x16x13xf32>
    %833 = vector.broadcast %829 : vector<2x1x13xf32> to vector<2x16x13xf32>
    %834 = arith.mulf %832, %833 : vector<2x16x13xf32>
    %835 = arith.addf %828, %834 : vector<2x16x13xf32>
    %836 = vector.extract_strided_slice %524 {offsets = [0, 14, 2], sizes = [2, 1, 13], strides = [1, 1, 1]} : vector<2x16x15xf32> to vector<2x1x13xf32>
    %837 = vector.extract_strided_slice %525 {offsets = [0, 44], sizes = [16, 1], strides = [1, 1]} : vector<16x48xf32> to vector<16x1xf32>
    %838 = vector.shape_cast %837 : vector<16x1xf32> to vector<1x16x1xf32>
    %839 = vector.broadcast %838 : vector<1x16x1xf32> to vector<2x16x13xf32>
    %840 = vector.broadcast %836 : vector<2x1x13xf32> to vector<2x16x13xf32>
    %841 = arith.mulf %839, %840 : vector<2x16x13xf32>
    %842 = arith.addf %835, %841 : vector<2x16x13xf32>
    %843 = vector.extract_strided_slice %524 {offsets = [0, 15, 0], sizes = [2, 1, 13], strides = [1, 1, 1]} : vector<2x16x15xf32> to vector<2x1x13xf32>
    %844 = vector.extract_strided_slice %525 {offsets = [0, 45], sizes = [16, 1], strides = [1, 1]} : vector<16x48xf32> to vector<16x1xf32>
    %845 = vector.shape_cast %844 : vector<16x1xf32> to vector<1x16x1xf32>
    %846 = vector.broadcast %845 : vector<1x16x1xf32> to vector<2x16x13xf32>
    %847 = vector.broadcast %843 : vector<2x1x13xf32> to vector<2x16x13xf32>
    %848 = arith.mulf %846, %847 : vector<2x16x13xf32>
    %849 = arith.addf %842, %848 : vector<2x16x13xf32>
    %850 = vector.extract_strided_slice %524 {offsets = [0, 15, 1], sizes = [2, 1, 13], strides = [1, 1, 1]} : vector<2x16x15xf32> to vector<2x1x13xf32>
    %851 = vector.extract_strided_slice %525 {offsets = [0, 46], sizes = [16, 1], strides = [1, 1]} : vector<16x48xf32> to vector<16x1xf32>
    %852 = vector.shape_cast %851 : vector<16x1xf32> to vector<1x16x1xf32>
    %853 = vector.broadcast %852 : vector<1x16x1xf32> to vector<2x16x13xf32>
    %854 = vector.broadcast %850 : vector<2x1x13xf32> to vector<2x16x13xf32>
    %855 = arith.mulf %853, %854 : vector<2x16x13xf32>
    %856 = arith.addf %849, %855 : vector<2x16x13xf32>
    %857 = vector.extract_strided_slice %524 {offsets = [0, 15, 2], sizes = [2, 1, 13], strides = [1, 1, 1]} : vector<2x16x15xf32> to vector<2x1x13xf32>
    %858 = vector.extract_strided_slice %525 {offsets = [0, 47], sizes = [16, 1], strides = [1, 1]} : vector<16x48xf32> to vector<16x1xf32>
    %859 = vector.shape_cast %858 : vector<16x1xf32> to vector<1x16x1xf32>
    %860 = vector.broadcast %859 : vector<1x16x1xf32> to vector<2x16x13xf32>
    %861 = vector.broadcast %857 : vector<2x1x13xf32> to vector<2x16x13xf32>
    %862 = arith.mulf %860, %861 : vector<2x16x13xf32>
    %863 = arith.addf %856, %862 : vector<2x16x13xf32>
    %cst_63 = arith.constant dense<0.000000e+00> : vector<2x16xf32>
    %864 = vector.multi_reduction <add>, %863, %cst_63 [2] : vector<2x16x13xf32> to vector<2x16xf32>
    %865 = vector.shape_cast %864 : vector<2x16xf32> to vector<2x16x1xf32>
    %cst_64 = arith.constant dense<0.000000e+00> : vector<16x1xf32>
    %866 = vector.multi_reduction <add>, %865, %cst_64 [0] : vector<2x16x1xf32> to vector<16x1xf32>
    %867 = vector.shape_cast %866 : vector<16x1xf32> to vector<1x16x1xf32>
    %868 = arith.mulf %863, %863 : vector<2x16x13xf32>
    %cst_65 = arith.constant dense<0.000000e+00> : vector<2x16xf32>
    %869 = vector.multi_reduction <add>, %868, %cst_65 [2] : vector<2x16x13xf32> to vector<2x16xf32>
    %870 = vector.shape_cast %869 : vector<2x16xf32> to vector<2x16x1xf32>
    %cst_66 = arith.constant dense<0.000000e+00> : vector<16x1xf32>
    %871 = vector.multi_reduction <add>, %870, %cst_66 [0] : vector<2x16x1xf32> to vector<16x1xf32>
    %872 = vector.shape_cast %871 : vector<16x1xf32> to vector<1x16x1xf32>
    %cst_67 = arith.constant 2.600000e+01 : f32
    %873 = vector.broadcast %cst_67 : f32 to vector<1x16x1xf32>
    %874 = arith.divf %867, %873 : vector<1x16x1xf32>
    %cst_68 = arith.constant 2.600000e+01 : f32
    %875 = vector.broadcast %cst_68 : f32 to vector<1x16x1xf32>
    %876 = arith.divf %872, %875 : vector<1x16x1xf32>
    %877 = arith.mulf %874, %874 : vector<1x16x1xf32>
    %878 = arith.subf %876, %877 : vector<1x16x1xf32>
    %cst_69 = arith.constant 0.000000e+00 : f32
    %879 = vector.broadcast %cst_69 : f32 to vector<1x16x1xf32>
    %880 = arith.maximumf %878, %879 : vector<1x16x1xf32>
    %cst_70 = arith.constant 9.99999974E-6 : f32
    %881 = vector.broadcast %cst_70 : f32 to vector<1x16x1xf32>
    %882 = arith.addf %880, %881 : vector<1x16x1xf32>
    %883 = math.rsqrt %882 : vector<1x16x1xf32>
    %884 = vector.shape_cast %526 : vector<16x1xf32> to vector<1x16x1xf32>
    %885 = arith.mulf %884, %883 : vector<1x16x1xf32>
    %886 = arith.mulf %874, %885 : vector<1x16x1xf32>
    %887 = vector.shape_cast %527 : vector<16x1xf32> to vector<1x16x1xf32>
    %888 = arith.subf %887, %886 : vector<1x16x1xf32>
    %889 = vector.broadcast %885 : vector<1x16x1xf32> to vector<2x16x13xf32>
    %890 = arith.mulf %863, %889 : vector<2x16x13xf32>
    %891 = vector.broadcast %888 : vector<1x16x1xf32> to vector<2x16x13xf32>
    %892 = arith.addf %890, %891 : vector<2x16x13xf32>
    %cst_71 = arith.constant 0.000000e+00 : f32
    %893 = vector.broadcast %cst_71 : f32 to vector<2x16x13xf32>
    %894 = arith.maximumf %892, %893 : vector<2x16x13xf32>
    %895 = vector.extract_strided_slice %894 {offsets = [0, 0, 0], sizes = [2, 16, 10], strides = [1, 1, 1]} : vector<2x16x13xf32> to vector<2x16x10xf32>
    %896 = vector.extract_strided_slice %894 {offsets = [0, 0, 1], sizes = [2, 16, 10], strides = [1, 1, 1]} : vector<2x16x13xf32> to vector<2x16x10xf32>
    %897 = arith.maximumf %895, %896 : vector<2x16x10xf32>
    %898 = vector.extract_strided_slice %894 {offsets = [0, 0, 2], sizes = [2, 16, 10], strides = [1, 1, 1]} : vector<2x16x13xf32> to vector<2x16x10xf32>
    %899 = arith.maximumf %897, %898 : vector<2x16x10xf32>
    %900 = vector.extract_strided_slice %894 {offsets = [0, 0, 3], sizes = [2, 16, 10], strides = [1, 1, 1]} : vector<2x16x13xf32> to vector<2x16x10xf32>
    %901 = arith.maximumf %899, %900 : vector<2x16x10xf32>
    %902 = vector.shape_cast %901 : vector<2x16x10xf32> to vector<32x10xf32>
    %cst_72 = arith.constant dense<0.000000e+00> : vector<32x3xf32>
    %903 = tpu.matmul %902, %528, %cst_72 {dimension_numbers = #tpu.dot_dimension_numbers<[1], [0], [0], [1], [0, 0, 1, 1], [], []>} : vector<32x10xf32>, vector<10x3xf32>, vector<32x3xf32> -> vector<32x3xf32>
    %904 = vector.shape_cast %903 : vector<32x3xf32> to vector<2x16x3xf32>
    %c0_73 = arith.constant 0 : index
    %c0_74 = arith.constant 0 : index
    %905 = vector.load %arg18[%c0_73, %c0_74] : memref<16x10xf32, #tpu.memory_space<vmem>>, vector<16x10xf32>
    %c0_75 = arith.constant 0 : index
    %c0_76 = arith.constant 0 : index
    %906 = vector.load %arg19[%c0_75, %c0_76] : memref<1x10xf32, #tpu.memory_space<vmem>>, vector<1x10xf32>
    %cst_77 = arith.constant dense<0.000000e+00> : vector<2x16xf32>
    %907 = vector.multi_reduction <add>, %904, %cst_77 [2] : vector<2x16x3xf32> to vector<2x16xf32>
    %cst_78 = arith.constant 3.000000e+00 : f32
    %908 = vector.broadcast %cst_78 : f32 to vector<2x16xf32>
    %909 = arith.divf %907, %908 : vector<2x16xf32>
    %cst_79 = arith.constant dense<0.000000e+00> : vector<2x10xf32>
    %910 = tpu.matmul %909, %905, %cst_79 {dimension_numbers = #tpu.dot_dimension_numbers<[1], [0], [0], [1], [0, 0, 1, 1], [], []>} : vector<2x16xf32>, vector<16x10xf32>, vector<2x10xf32> -> vector<2x10xf32>
    %911 = vector.broadcast %906 : vector<1x10xf32> to vector<2x10xf32>
    %912 = arith.addf %910, %911 : vector<2x10xf32>
    %cst_80 = arith.constant dense<0xFF800000> : vector<2xf32>
    %913 = vector.multi_reduction <maximumf>, %912, %cst_80 [1] : vector<2x10xf32> to vector<2xf32>
    %914 = vector.shape_cast %913 : vector<2xf32> to vector<2x1xf32>
    %915 = vector.broadcast %914 : vector<2x1xf32> to vector<2x10xf32>
    %916 = arith.subf %912, %915 : vector<2x10xf32>
    %917 = math.exp %916 : vector<2x10xf32>
    %cst_81 = arith.constant dense<0.000000e+00> : vector<2xf32>
    %918 = vector.multi_reduction <add>, %917, %cst_81 [1] : vector<2x10xf32> to vector<2xf32>
    %919 = vector.shape_cast %918 : vector<2xf32> to vector<2x1xf32>
    %920 = math.log %919 : vector<2x1xf32>
    %921 = vector.broadcast %920 : vector<2x1xf32> to vector<2x10xf32>
    %922 = arith.subf %916, %921 : vector<2x10xf32>
    %c0_82 = arith.constant 0 : index
    %c0_83 = arith.constant 0 : index
    %923 = vector.load %arg20[%c0_82, %c0_83] : memref<2x10xf32, #tpu.memory_space<vmem>>, vector<2x10xf32>
    tpu.vector_store %arg20[%c0_82, %c0_83], %922 {strides = array<i32>} : memref<2x10xf32, #tpu.memory_space<vmem>>, vector<2x10xf32>,
    return
  }
  func.func @transform_0(%arg0: i32) -> (i32, i32, i32) {
    %c0_i32 = arith.constant 0 : i32
    %c0_i32_0 = arith.constant 0 : i32
    %c0_i32_1 = arith.constant 0 : i32
    %c0_i32_2 = arith.constant 0 : i32
    return %c0_i32, %c0_i32_0, %c0_i32_1 : i32, i32, i32
  }
  func.func @transform_1(%arg0: i32) -> (i32, i32) {
    %c0_i32 = arith.constant 0 : i32
    %c0_i32_0 = arith.constant 0 : i32
    %c0_i32_1 = arith.constant 0 : i32
    return %c0_i32, %c0_i32_0 : i32, i32
  }
  func.func @transform_2(%arg0: i32) -> (i32, i32) {
    %c0_i32 = arith.constant 0 : i32
    %c0_i32_0 = arith.constant 0 : i32
    %c0_i32_1 = arith.constant 0 : i32
    return %c0_i32, %c0_i32_0 : i32, i32
  }
  func.func @transform_3(%arg0: i32) -> (i32, i32) {
    %c0_i32 = arith.constant 0 : i32
    %c0_i32_0 = arith.constant 0 : i32
    %c0_i32_1 = arith.constant 0 : i32
    return %c0_i32, %c0_i32_0 : i32, i32
  }
  func.func @transform_4(%arg0: i32) -> (i32, i32) {
    %c0_i32 = arith.constant 0 : i32
    %c0_i32_0 = arith.constant 0 : i32
    %c0_i32_1 = arith.constant 0 : i32
    return %c0_i32, %c0_i32_0 : i32, i32
  }
  func.func @transform_5(%arg0: i32) -> (i32, i32) {
    %c0_i32 = arith.constant 0 : i32
    %c0_i32_0 = arith.constant 0 : i32
    %c0_i32_1 = arith.constant 0 : i32
    return %c0_i32, %c0_i32_0 : i32, i32
  }
  func.func @transform_6(%arg0: i32) -> (i32, i32) {
    %c0_i32 = arith.constant 0 : i32
    %c0_i32_0 = arith.constant 0 : i32
    %c0_i32_1 = arith.constant 0 : i32
    return %c0_i32, %c0_i32_0 : i32, i32
  }
  func.func @transform_7(%arg0: i32) -> (i32, i32) {
    %c0_i32 = arith.constant 0 : i32
    %c0_i32_0 = arith.constant 0 : i32
    %c0_i32_1 = arith.constant 0 : i32
    return %c0_i32, %c0_i32_0 : i32, i32
  }
  func.func @transform_8(%arg0: i32) -> (i32, i32) {
    %c0_i32 = arith.constant 0 : i32
    %c0_i32_0 = arith.constant 0 : i32
    %c0_i32_1 = arith.constant 0 : i32
    return %c0_i32, %c0_i32_0 : i32, i32
  }
  func.func @transform_9(%arg0: i32) -> (i32, i32) {
    %c0_i32 = arith.constant 0 : i32
    %c0_i32_0 = arith.constant 0 : i32
    %c0_i32_1 = arith.constant 0 : i32
    return %c0_i32, %c0_i32_0 : i32, i32
  }
  func.func @transform_10(%arg0: i32) -> (i32, i32) {
    %c0_i32 = arith.constant 0 : i32
    %c0_i32_0 = arith.constant 0 : i32
    %c0_i32_1 = arith.constant 0 : i32
    return %c0_i32, %c0_i32_0 : i32, i32
  }
  func.func @transform_11(%arg0: i32) -> (i32, i32) {
    %c0_i32 = arith.constant 0 : i32
    %c0_i32_0 = arith.constant 0 : i32
    %c0_i32_1 = arith.constant 0 : i32
    return %c0_i32, %c0_i32_0 : i32, i32
  }
  func.func @transform_12(%arg0: i32) -> (i32, i32) {
    %c0_i32 = arith.constant 0 : i32
    %c0_i32_0 = arith.constant 0 : i32
    %c0_i32_1 = arith.constant 0 : i32
    return %c0_i32, %c0_i32_0 : i32, i32
  }
  func.func @transform_13(%arg0: i32) -> (i32, i32) {
    %c0_i32 = arith.constant 0 : i32
    %c0_i32_0 = arith.constant 0 : i32
    %c0_i32_1 = arith.constant 0 : i32
    return %c0_i32, %c0_i32_0 : i32, i32
  }
  func.func @transform_14(%arg0: i32) -> (i32, i32) {
    %c0_i32 = arith.constant 0 : i32
    %c0_i32_0 = arith.constant 0 : i32
    %c0_i32_1 = arith.constant 0 : i32
    return %c0_i32, %c0_i32_0 : i32, i32
  }
  func.func @transform_15(%arg0: i32) -> (i32, i32) {
    %c0_i32 = arith.constant 0 : i32
    %c0_i32_0 = arith.constant 0 : i32
    %c0_i32_1 = arith.constant 0 : i32
    return %c0_i32, %c0_i32_0 : i32, i32
  }
  func.func @transform_16(%arg0: i32) -> (i32, i32) {
    %c0_i32 = arith.constant 0 : i32
    %c0_i32_0 = arith.constant 0 : i32
    %c0_i32_1 = arith.constant 0 : i32
    return %c0_i32, %c0_i32_0 : i32, i32
  }
  func.func @transform_17(%arg0: i32) -> (i32, i32) {
    %c0_i32 = arith.constant 0 : i32
    %c0_i32_0 = arith.constant 0 : i32
    %c0_i32_1 = arith.constant 0 : i32
    return %c0_i32, %c0_i32_0 : i32, i32
  }
  func.func @transform_18(%arg0: i32) -> (i32, i32) {
    %c0_i32 = arith.constant 0 : i32
    %c0_i32_0 = arith.constant 0 : i32
    %c0_i32_1 = arith.constant 0 : i32
    return %c0_i32, %c0_i32_0 : i32, i32
  }
  func.func @transform_19(%arg0: i32) -> (i32, i32) {
    %c0_i32 = arith.constant 0 : i32
    %c0_i32_0 = arith.constant 0 : i32
    %c0_i32_1 = arith.constant 0 : i32
    return %c0_i32, %c0_i32_0 : i32, i32
  }
}

</mosaic_0001>

<llo_original>
// kernel: m5_forward.1
$region0: #{m5_forward.1}
  #allocation0 [shape = 'u32[]', space=smem, size = 0x4, offset = 0x4, fixed_abs, tag = 'smem constant byte address 0x4 - core index']
  #allocation1 [shape = 'u32[144,128]{1,0:T(1,128)}', space=vmem, size = 0x12000, scoped, tag = 'internal scratch']
  %s0 = inlined_call_operand.vmem [shape: f32[2,4,1024], index: 0, kind: input, shape index: {}]
  %s1 = inlined_call_operand.vmem [shape: f32[8,8], index: 1, kind: input, shape index: {}]
  %s2 = inlined_call_operand.vmem [shape: f32[8,1], index: 2, kind: input, shape index: {}]
  %s3 = inlined_call_operand.vmem [shape: f32[8,1], index: 3, kind: input, shape index: {}]
  %s4 = inlined_call_operand.vmem [shape: f32[1020,255], index: 4, kind: input, shape index: {}]
  %s5 = inlined_call_operand.vmem [shape: f32[8,24], index: 5, kind: input, shape index: {}]
  %s6 = inlined_call_operand.vmem [shape: f32[8,1], index: 6, kind: input, shape index: {}]
  %s7 = inlined_call_operand.vmem [shape: f32[8,1], index: 7, kind: input, shape index: {}]
  %s8 = inlined_call_operand.vmem [shape: f32[250,63], index: 8, kind: input, shape index: {}]
  %s9 = inlined_call_operand.vmem [shape: f32[16,24], index: 9, kind: input, shape index: {}]
  %s10 = inlined_call_operand.vmem [shape: f32[16,1], index: 10, kind: input, shape index: {}]
  %s11 = inlined_call_operand.vmem [shape: f32[16,1], index: 11, kind: input, shape index: {}]
  %s12 = inlined_call_operand.vmem [shape: f32[58,15], index: 12, kind: input, shape index: {}]
  %s13 = inlined_call_operand.vmem [shape: f32[16,48], index: 13, kind: input, shape index: {}]
  %s14 = inlined_call_operand.vmem [shape: f32[16,1], index: 14, kind: input, shape index: {}]
  %s15 = inlined_call_operand.vmem [shape: f32[16,1], index: 15, kind: input, shape index: {}]
  %s16 = inlined_call_operand.vmem [shape: f32[10,3], index: 16, kind: input, shape index: {}]
  %s17 = inlined_call_operand.vmem [shape: f32[16,10], index: 17, kind: input, shape index: {}]
  %s18 = inlined_call_operand.vmem [shape: f32[1,10], index: 18, kind: input, shape index: {}]
  %s19 = inlined_call_operand.hbm [shape: f32[2,10], index: 19, kind: output, shape index: {}]
  %s20 = sld [smem:[#allocation0]]
  $region86: #{m5_forward.1} parent=0
    _
  %s22 = ssub.s32 1, %s20
  %s23 = scalar_select 0, %s22, %s20
  $region1: #{m5_forward.1} parent=0
    #allocation2 [shape = 'u8[1024]{0}', space=vmem, size = 0x400, scoped, tag = 'output window, operand 0, single buffered']
    #allocation3 [shape = 's32[1]{0}', space=sflag, size = 0x4, scoped, tag = 'scoped memory for m5_forward.1']
    %24 = vsyncpa [#allocation3], 0
    // Predicated region
    $region2: #{m5_forward.1} parent=1 // pred_check
      _
    $region3: #{m5_forward.1} parent=1 // pred_check_branch
      %26 = sbr.rel (0) target = $region5
    $region4: #{m5_forward.1} parent=1 // pred_region
      _
    $region5: #{m5_forward.1} parent=1 // pred_fallthru
      _
    // Predicated region
    $region6: #{m5_forward.1} parent=1 // pred_check
      _
    $region7: #{m5_forward.1} parent=1 // pred_check_branch
      %28 = sbr.rel (0) target = $region9
    $region8: #{m5_forward.1} parent=1 // pred_region
      _
    $region9: #{m5_forward.1} parent=1 // pred_fallthru
      _
    // Predicated region
    $region10: #{m5_forward.1} parent=1 // pred_check
      _
    $region11: #{m5_forward.1} parent=1 // pred_check_branch
      %30 = sbr.rel (0) target = $region13
    $region12: #{m5_forward.1} parent=1 // pred_region
      _
    $region13: #{m5_forward.1} parent=1 // pred_fallthru
      _
    // Predicated region
    $region14: #{m5_forward.1} parent=1 // pred_check
      _
    $region15: #{m5_forward.1} parent=1 // pred_check_branch
      %32 = sbr.rel (0) target = $region17
    $region16: #{m5_forward.1} parent=1 // pred_region
      _
    $region17: #{m5_forward.1} parent=1 // pred_fallthru
      _
    // Predicated region
    $region18: #{m5_forward.1} parent=1 // pred_check
      _
    $region19: #{m5_forward.1} parent=1 // pred_check_branch
      %34 = sbr.rel (0) target = $region21
    $region20: #{m5_forward.1} parent=1 // pred_region
      _
    $region21: #{m5_forward.1} parent=1 // pred_fallthru
      _
    // Predicated region
    $region22: #{m5_forward.1} parent=1 // pred_check
      _
    $region23: #{m5_forward.1} parent=1 // pred_check_branch
      %36 = sbr.rel (0) target = $region25
    $region24: #{m5_forward.1} parent=1 // pred_region
      _
    $region25: #{m5_forward.1} parent=1 // pred_fallthru
      _
    // Predicated region
    $region26: #{m5_forward.1} parent=1 // pred_check
      _
    $region27: #{m5_forward.1} parent=1 // pred_check_branch
      %38 = sbr.rel (0) target = $region29
    $region28: #{m5_forward.1} parent=1 // pred_region
      _
    $region29: #{m5_forward.1} parent=1 // pred_fallthru
      _
    // Predicated region
    $region30: #{m5_forward.1} parent=1 // pred_check
      _
    $region31: #{m5_forward.1} parent=1 // pred_check_branch
      %40 = sbr.rel (0) target = $region33
    $region32: #{m5_forward.1} parent=1 // pred_region
      _
    $region33: #{m5_forward.1} parent=1 // pred_fallthru
      _
    // Predicated region
    $region34: #{m5_forward.1} parent=1 // pred_check
      _
    $region35: #{m5_forward.1} parent=1 // pred_check_branch
      %42 = sbr.rel (0) target = $region37
    $region36: #{m5_forward.1} parent=1 // pred_region
      _
    $region37: #{m5_forward.1} parent=1 // pred_fallthru
      _
    // Predicated region
    $region38: #{m5_forward.1} parent=1 // pred_check
      _
    $region39: #{m5_forward.1} parent=1 // pred_check_branch
      %44 = sbr.rel (0) target = $region41
    $region40: #{m5_forward.1} parent=1 // pred_region
      _
    $region41: #{m5_forward.1} parent=1 // pred_fallthru
      _
    // Predicated region
    $region42: #{m5_forward.1} parent=1 // pred_check
      _
    $region43: #{m5_forward.1} parent=1 // pred_check_branch
      %46 = sbr.rel (0) target = $region45
    $region44: #{m5_forward.1} parent=1 // pred_region
      _
    $region45: #{m5_forward.1} parent=1 // pred_fallthru
      _
    // Predicated region
    $region46: #{m5_forward.1} parent=1 // pred_check
      _
    $region47: #{m5_forward.1} parent=1 // pred_check_branch
      %48 = sbr.rel (0) target = $region49
    $region48: #{m5_forward.1} parent=1 // pred_region
      _
    $region49: #{m5_forward.1} parent=1 // pred_fallthru
      _
    // Predicated region
    $region50: #{m5_forward.1} parent=1 // pred_check
      _
    $region51: #{m5_forward.1} parent=1 // pred_check_branch
      %50 = sbr.rel (0) target = $region53
    $region52: #{m5_forward.1} parent=1 // pred_region
      _
    $region53: #{m5_forward.1} parent=1 // pred_fallthru
      _
    // Predicated region
    $region54: #{m5_forward.1} parent=1 // pred_check
      _
    $region55: #{m5_forward.1} parent=1 // pred_check_branch
      %52 = sbr.rel (0) target = $region57
    $region56: #{m5_forward.1} parent=1 // pred_region
      _
    $region57: #{m5_forward.1} parent=1 // pred_fallthru
      _
    // Predicated region
    $region58: #{m5_forward.1} parent=1 // pred_check
      _
    $region59: #{m5_forward.1} parent=1 // pred_check_branch
      %54 = sbr.rel (0) target = $region61
    $region60: #{m5_forward.1} parent=1 // pred_region
      _
    $region61: #{m5_forward.1} parent=1 // pred_fallthru
      _
    // Predicated region
    $region62: #{m5_forward.1} parent=1 // pred_check
      _
    $region63: #{m5_forward.1} parent=1 // pred_check_branch
      %56 = sbr.rel (0) target = $region65
    $region64: #{m5_forward.1} parent=1 // pred_region
      _
    $region65: #{m5_forward.1} parent=1 // pred_fallthru
      _
    // Predicated region
    $region66: #{m5_forward.1} parent=1 // pred_check
      _
    $region67: #{m5_forward.1} parent=1 // pred_check_branch
      %58 = sbr.rel (0) target = $region69
    $region68: #{m5_forward.1} parent=1 // pred_region
      _
    $region69: #{m5_forward.1} parent=1 // pred_fallthru
      _
    // Predicated region
    $region70: #{m5_forward.1} parent=1 // pred_check
      _
    $region71: #{m5_forward.1} parent=1 // pred_check_branch
      %60 = sbr.rel (0) target = $region73
    $region72: #{m5_forward.1} parent=1 // pred_region
      _
    $region73: #{m5_forward.1} parent=1 // pred_fallthru
      _
    // Predicated region
    $region74: #{m5_forward.1} parent=1 // pred_check
      _
    $region75: #{m5_forward.1} parent=1 // pred_check_branch
      %62 = sbr.rel (0) target = $region77
    $region76: #{m5_forward.1} parent=1 // pred_region
      _
    $region77: #{m5_forward.1} parent=1 // pred_fallthru
      _
    %v63 = vld [vmem:[%s0] sm:$0xff]
    %v64 = vld [vmem:[%s0 + $0x8] sm:$0xff]
    %v65 = vld [vmem:[%s0 + $0x10] sm:$0xff]
    %v66 = vld [vmem:[%s0 + $0x18] sm:$0xff]
    %v67 = vld [vmem:[%s0 + $0x20] sm:$0xff]
    %v68 = vld [vmem:[%s0 + $0x28] sm:$0xff]
    %v69 = vld [vmem:[%s0 + $0x30] sm:$0xff]
    %v70 = vld [vmem:[%s0 + $0x38] sm:$0xff]
    %v71 = vld [vmem:[%s1] sm:$0xff]
    %v72 = vld [vmem:[%s2] sm:$0xff]
    %v73 = vld [vmem:[%s3] sm:$0xff]
    %v74 = vld [vmem:[%s4] sm:$0xff]
    %v75 = vld [vmem:[%s4 + $0x8] sm:$0xff]
    %v76 = vld [vmem:[%s4 + $0x10] sm:$0xff]
    %v77 = vld [vmem:[%s4 + $0x18] sm:$0xff]
    %v78 = vld [vmem:[%s4 + $0x20] sm:$0xff]
    %v79 = vld [vmem:[%s4 + $0x28] sm:$0xff]
    %v80 = vld [vmem:[%s4 + $0x30] sm:$0xff]
    %v81 = vld [vmem:[%s4 + $0x38] sm:$0xff]
    %v82 = vld [vmem:[%s4 + $0x40] sm:$0xff]
    %v83 = vld [vmem:[%s4 + $0x48] sm:$0xff]
    %v84 = vld [vmem:[%s4 + $0x50] sm:$0xff]
    %v85 = vld [vmem:[%s4 + $0x58] sm:$0xff]
    %v86 = vld [vmem:[%s4 + $0x60] sm:$0xff]
    %v87 = vld [vmem:[%s4 + $0x68] sm:$0xff]
    %v88 = vld [vmem:[%s4 + $0x70] sm:$0xff]
    %v89 = vld [vmem:[%s4 + $0x78] sm:$0xff]
    %v90 = vld [vmem:[%s4 + $0x80] sm:$0xff]
    %v91 = vld [vmem:[%s4 + $0x88] sm:$0xff]
    %v92 = vld [vmem:[%s4 + $0x90] sm:$0xff]
    %v93 = vld [vmem:[%s4 + $0x98] sm:$0xff]
    %v94 = vld [vmem:[%s4 + $0xa0] sm:$0xff]
    %v95 = vld [vmem:[%s4 + $0xa8] sm:$0xff]
    %v96 = vld [vmem:[%s4 + $0xb0] sm:$0xff]
    %v97 = vld [vmem:[%s4 + $0xb8] sm:$0xff]
    %v98 = vld [vmem:[%s4 + $0xc0] sm:$0xff]
    %v99 = vld [vmem:[%s4 + $0xc8] sm:$0xff]
    %v100 = vld [vmem:[%s4 + $0xd0] sm:$0xff]
    %v101 = vld [vmem:[%s4 + $0xd8] sm:$0xff]
    %v102 = vld [vmem:[%s4 + $0xe0] sm:$0xff]
    %v103 = vld [vmem:[%s4 + $0xe8] sm:$0xff]
    %v104 = vld [vmem:[%s4 + $0xf0] sm:$0xff]
    %v105 = vld [vmem:[%s4 + $0xf8] sm:$0xff]
    %v106 = vld [vmem:[%s4 + $0x100] sm:$0xff]
    %v107 = vld [vmem:[%s4 + $0x108] sm:$0xff]
    %v108 = vld [vmem:[%s4 + $0x110] sm:$0xff]
    %v109 = vld [vmem:[%s4 + $0x118] sm:$0xff]
    %v110 = vld [vmem:[%s4 + $0x120] sm:$0xff]
    %v111 = vld [vmem:[%s4 + $0x128] sm:$0xff]
    %v112 = vld [vmem:[%s4 + $0x130] sm:$0xff]
    %v113 = vld [vmem:[%s4 + $0x138] sm:$0xff]
    %v114 = vld [vmem:[%s4 + $0x140] sm:$0xff]
    %v115 = vld [vmem:[%s4 + $0x148] sm:$0xff]
    %v116 = vld [vmem:[%s4 + $0x150] sm:$0xff]
    %v117 = vld [vmem:[%s4 + $0x158] sm:$0xff]
    %v118 = vld [vmem:[%s4 + $0x160] sm:$0xff]
    %v119 = vld [vmem:[%s4 + $0x168] sm:$0xff]
    %v120 = vld [vmem:[%s4 + $0x170] sm:$0xff]
    %v121 = vld [vmem:[%s4 + $0x178] sm:$0xff]
    %v122 = vld [vmem:[%s4 + $0x180] sm:$0xff]
    %v123 = vld [vmem:[%s4 + $0x188] sm:$0xff]
    %v124 = vld [vmem:[%s4 + $0x190] sm:$0xff]
    %v125 = vld [vmem:[%s4 + $0x198] sm:$0xff]
    %v126 = vld [vmem:[%s4 + $0x1a0] sm:$0xff]
    %v127 = vld [vmem:[%s4 + $0x1a8] sm:$0xff]
    %v128 = vld [vmem:[%s4 + $0x1b0] sm:$0xff]
    %v129 = vld [vmem:[%s4 + $0x1b8] sm:$0xff]
    %v130 = vld [vmem:[%s4 + $0x1c0] sm:$0xff]
    %v131 = vld [vmem:[%s4 + $0x1c8] sm:$0xff]
    %v132 = vld [vmem:[%s4 + $0x1d0] sm:$0xff]
    %v133 = vld [vmem:[%s4 + $0x1d8] sm:$0xff]
    %v134 = vld [vmem:[%s4 + $0x1e0] sm:$0xff]
    %v135 = vld [vmem:[%s4 + $0x1e8] sm:$0xff]
    %v136 = vld [vmem:[%s4 + $0x1f0] sm:$0xff]
    %v137 = vld [vmem:[%s4 + $0x1f8] sm:$0xff]
    %v138 = vld [vmem:[%s4 + $0x200] sm:$0xff]
    %v139 = vld [vmem:[%s4 + $0x208] sm:$0xff]
    %v140 = vld [vmem:[%s4 + $0x210] sm:$0xff]
    %v141 = vld [vmem:[%s4 + $0x218] sm:$0xff]
    %v142 = vld [vmem:[%s4 + $0x220] sm:$0xff]
    %v143 = vld [vmem:[%s4 + $0x228] sm:$0xff]
    %v144 = vld [vmem:[%s4 + $0x230] sm:$0xff]
    %v145 = vld [vmem:[%s4 + $0x238] sm:$0xff]
    %v146 = vld [vmem:[%s4 + $0x240] sm:$0xff]
    %v147 = vld [vmem:[%s4 + $0x248] sm:$0xff]
    %v148 = vld [vmem:[%s4 + $0x250] sm:$0xff]
    %v149 = vld [vmem:[%s4 + $0x258] sm:$0xff]
    %v150 = vld [vmem:[%s4 + $0x260] sm:$0xff]
    %v151 = vld [vmem:[%s4 + $0x268] sm:$0xff]
    %v152 = vld [vmem:[%s4 + $0x270] sm:$0xff]
    %v153 = vld [vmem:[%s4 + $0x278] sm:$0xff]
    %v154 = vld [vmem:[%s4 + $0x280] sm:$0xff]
    %v155 = vld [vmem:[%s4 + $0x288] sm:$0xff]
    %v156 = vld [vmem:[%s4 + $0x290] sm:$0xff]
    %v157 = vld [vmem:[%s4 + $0x298] sm:$0xff]
    %v158 = vld [vmem:[%s4 + $0x2a0] sm:$0xff]
    %v159 = vld [vmem:[%s4 + $0x2a8] sm:$0xff]
    %v160 = vld [vmem:[%s4 + $0x2b0] sm:$0xff]
    %v161 = vld [vmem:[%s4 + $0x2b8] sm:$0xff]
    %v162 = vld [vmem:[%s4 + $0x2c0] sm:$0xff]
    %v163 = vld [vmem:[%s4 + $0x2c8] sm:$0xff]
    %v164 = vld [vmem:[%s4 + $0x2d0] sm:$0xff]
    %v165 = vld [vmem:[%s4 + $0x2d8] sm:$0xff]
    %v166 = vld [vmem:[%s4 + $0x2e0] sm:$0xff]
    %v167 = vld [vmem:[%s4 + $0x2e8] sm:$0xff]
    %v168 = vld [vmem:[%s4 + $0x2f0] sm:$0xff]
    %v169 = vld [vmem:[%s4 + $0x2f8] sm:$0xff]
    %v170 = vld [vmem:[%s4 + $0x300] sm:$0xff]
    %v171 = vld [vmem:[%s4 + $0x308] sm:$0xff]
    %v172 = vld [vmem:[%s4 + $0x310] sm:$0xff]
    %v173 = vld [vmem:[%s4 + $0x318] sm:$0xff]
    %v174 = vld [vmem:[%s4 + $0x320] sm:$0xff]
    %v175 = vld [vmem:[%s4 + $0x328] sm:$0xff]
    %v176 = vld [vmem:[%s4 + $0x330] sm:$0xff]
    %v177 = vld [vmem:[%s4 + $0x338] sm:$0xff]
    %v178 = vld [vmem:[%s4 + $0x340] sm:$0xff]
    %v179 = vld [vmem:[%s4 + $0x348] sm:$0xff]
    %v180 = vld [vmem:[%s4 + $0x350] sm:$0xff]
    %v181 = vld [vmem:[%s4 + $0x358] sm:$0xff]
    %v182 = vld [vmem:[%s4 + $0x360] sm:$0xff]
    %v183 = vld [vmem:[%s4 + $0x368] sm:$0xff]
    %v184 = vld [vmem:[%s4 + $0x370] sm:$0xff]
    %v185 = vld [vmem:[%s4 + $0x378] sm:$0xff]
    %v186 = vld [vmem:[%s4 + $0x380] sm:$0xff]
    %v187 = vld [vmem:[%s4 + $0x388] sm:$0xff]
    %v188 = vld [vmem:[%s4 + $0x390] sm:$0xff]
    %v189 = vld [vmem:[%s4 + $0x398] sm:$0xff]
    %v190 = vld [vmem:[%s4 + $0x3a0] sm:$0xff]
    %v191 = vld [vmem:[%s4 + $0x3a8] sm:$0xff]
    %v192 = vld [vmem:[%s4 + $0x3b0] sm:$0xff]
    %v193 = vld [vmem:[%s4 + $0x3b8] sm:$0xff]
    %v194 = vld [vmem:[%s4 + $0x3c0] sm:$0xff]
    %v195 = vld [vmem:[%s4 + $0x3c8] sm:$0xff]
    %v196 = vld [vmem:[%s4 + $0x3d0] sm:$0xff]
    %v197 = vld [vmem:[%s4 + $0x3d8] sm:$0xff]
    %v198 = vld [vmem:[%s4 + $0x3e0] sm:$0xff]
    %v199 = vld [vmem:[%s4 + $0x3e8] sm:$0xff]
    %v200 = vld [vmem:[%s4 + $0x3f0] sm:$0xff]
    %v201 = vld [vmem:[%s4 + $0x3f8] sm:$0xff]
    %v202 = vld [vmem:[%s4 + $0x400] sm:$0xff]
    %v203 = vld [vmem:[%s4 + $0x408] sm:$0xff]
    %v204 = vld [vmem:[%s4 + $0x410] sm:$0xff]
    %v205 = vld [vmem:[%s4 + $0x418] sm:$0xff]
    %v206 = vld [vmem:[%s4 + $0x420] sm:$0xff]
    %v207 = vld [vmem:[%s4 + $0x428] sm:$0xff]
    %v208 = vld [vmem:[%s4 + $0x430] sm:$0xff]
    %v209 = vld [vmem:[%s4 + $0x438] sm:$0xff]
    %v210 = vld [vmem:[%s4 + $0x440] sm:$0xff]
    %v211 = vld [vmem:[%s4 + $0x448] sm:$0xff]
    %v212 = vld [vmem:[%s4 + $0x450] sm:$0xff]
    %v213 = vld [vmem:[%s4 + $0x458] sm:$0xff]
    %v214 = vld [vmem:[%s4 + $0x460] sm:$0xff]
    %v215 = vld [vmem:[%s4 + $0x468] sm:$0xff]
    %v216 = vld [vmem:[%s4 + $0x470] sm:$0xff]
    %v217 = vld [vmem:[%s4 + $0x478] sm:$0xff]
    %v218 = vld [vmem:[%s4 + $0x480] sm:$0xff]
    %v219 = vld [vmem:[%s4 + $0x488] sm:$0xff]
    %v220 = vld [vmem:[%s4 + $0x490] sm:$0xff]
    %v221 = vld [vmem:[%s4 + $0x498] sm:$0xff]
    %v222 = vld [vmem:[%s4 + $0x4a0] sm:$0xff]
    %v223 = vld [vmem:[%s4 + $0x4a8] sm:$0xff]
    %v224 = vld [vmem:[%s4 + $0x4b0] sm:$0xff]
    %v225 = vld [vmem:[%s4 + $0x4b8] sm:$0xff]
    %v226 = vld [vmem:[%s4 + $0x4c0] sm:$0xff]
    %v227 = vld [vmem:[%s4 + $0x4c8] sm:$0xff]
    %v228 = vld [vmem:[%s4 + $0x4d0] sm:$0xff]
    %v229 = vld [vmem:[%s4 + $0x4d8] sm:$0xff]
    %v230 = vld [vmem:[%s4 + $0x4e0] sm:$0xff]
    %v231 = vld [vmem:[%s4 + $0x4e8] sm:$0xff]
    %v232 = vld [vmem:[%s4 + $0x4f0] sm:$0xff]
    %v233 = vld [vmem:[%s4 + $0x4f8] sm:$0xff]
    %v234 = vld [vmem:[%s4 + $0x500] sm:$0xff]
    %v235 = vld [vmem:[%s4 + $0x508] sm:$0xff]
    %v236 = vld [vmem:[%s4 + $0x510] sm:$0xff]
    %v237 = vld [vmem:[%s4 + $0x518] sm:$0xff]
    %v238 = vld [vmem:[%s4 + $0x520] sm:$0xff]
    %v239 = vld [vmem:[%s4 + $0x528] sm:$0xff]
    %v240 = vld [vmem:[%s4 + $0x530] sm:$0xff]
    %v241 = vld [vmem:[%s4 + $0x538] sm:$0xff]
    %v242 = vld [vmem:[%s4 + $0x540] sm:$0xff]
    %v243 = vld [vmem:[%s4 + $0x548] sm:$0xff]
    %v244 = vld [vmem:[%s4 + $0x550] sm:$0xff]
    %v245 = vld [vmem:[%s4 + $0x558] sm:$0xff]
    %v246 = vld [vmem:[%s4 + $0x560] sm:$0xff]
    %v247 = vld [vmem:[%s4 + $0x568] sm:$0xff]
    %v248 = vld [vmem:[%s4 + $0x570] sm:$0xff]
    %v249 = vld [vmem:[%s4 + $0x578] sm:$0xff]
    %v250 = vld [vmem:[%s4 + $0x580] sm:$0xff]
    %v251 = vld [vmem:[%s4 + $0x588] sm:$0xff]
    %v252 = vld [vmem:[%s4 + $0x590] sm:$0xff]
    %v253 = vld [vmem:[%s4 + $0x598] sm:$0xff]
    %v254 = vld [vmem:[%s4 + $0x5a0] sm:$0xff]
    %v255 = vld [vmem:[%s4 + $0x5a8] sm:$0xff]
    %v256 = vld [vmem:[%s4 + $0x5b0] sm:$0xff]
    %v257 = vld [vmem:[%s4 + $0x5b8] sm:$0xff]
    %v258 = vld [vmem:[%s4 + $0x5c0] sm:$0xff]
    %v259 = vld [vmem:[%s4 + $0x5c8] sm:$0xff]
    %v260 = vld [vmem:[%s4 + $0x5d0] sm:$0xff]
    %v261 = vld [vmem:[%s4 + $0x5d8] sm:$0xff]
    %v262 = vld [vmem:[%s4 + $0x5e0] sm:$0xff]
    %v263 = vld [vmem:[%s4 + $0x5e8] sm:$0xff]
    %v264 = vld [vmem:[%s4 + $0x5f0] sm:$0xff]
    %v265 = vld [vmem:[%s4 + $0x5f8] sm:$0xff]
    %v266 = vld [vmem:[%s4 + $0x600] sm:$0xff]
    %v267 = vld [vmem:[%s4 + $0x608] sm:$0xff]
    %v268 = vld [vmem:[%s4 + $0x610] sm:$0xff]
    %v269 = vld [vmem:[%s4 + $0x618] sm:$0xff]
    %v270 = vld [vmem:[%s4 + $0x620] sm:$0xff]
    %v271 = vld [vmem:[%s4 + $0x628] sm:$0xff]
    %v272 = vld [vmem:[%s4 + $0x630] sm:$0xff]
    %v273 = vld [vmem:[%s4 + $0x638] sm:$0xff]
    %v274 = vld [vmem:[%s4 + $0x640] sm:$0xff]
    %v275 = vld [vmem:[%s4 + $0x648] sm:$0xff]
    %v276 = vld [vmem:[%s4 + $0x650] sm:$0xff]
    %v277 = vld [vmem:[%s4 + $0x658] sm:$0xff]
    %v278 = vld [vmem:[%s4 + $0x660] sm:$0xff]
    %v279 = vld [vmem:[%s4 + $0x668] sm:$0xff]
    %v280 = vld [vmem:[%s4 + $0x670] sm:$0xff]
    %v281 = vld [vmem:[%s4 + $0x678] sm:$0xff]
    %v282 = vld [vmem:[%s4 + $0x680] sm:$0xff]
    %v283 = vld [vmem:[%s4 + $0x688] sm:$0xff]
    %v284 = vld [vmem:[%s4 + $0x690] sm:$0xff]
    %v285 = vld [vmem:[%s4 + $0x698] sm:$0xff]
    %v286 = vld [vmem:[%s4 + $0x6a0] sm:$0xff]
    %v287 = vld [vmem:[%s4 + $0x6a8] sm:$0xff]
    %v288 = vld [vmem:[%s4 + $0x6b0] sm:$0xff]
    %v289 = vld [vmem:[%s4 + $0x6b8] sm:$0xff]
    %v290 = vld [vmem:[%s4 + $0x6c0] sm:$0xff]
    %v291 = vld [vmem:[%s4 + $0x6c8] sm:$0xff]
    %v292 = vld [vmem:[%s4 + $0x6d0] sm:$0xff]
    %v293 = vld [vmem:[%s4 + $0x6d8] sm:$0xff]
    %v294 = vld [vmem:[%s4 + $0x6e0] sm:$0xff]
    %v295 = vld [vmem:[%s4 + $0x6e8] sm:$0xff]
    %v296 = vld [vmem:[%s4 + $0x6f0] sm:$0xff]
    %v297 = vld [vmem:[%s4 + $0x6f8] sm:$0xff]
    %v298 = vld [vmem:[%s4 + $0x700] sm:$0xff]
    %v299 = vld [vmem:[%s4 + $0x708] sm:$0xff]
    %v300 = vld [vmem:[%s4 + $0x710] sm:$0xff]
    %v301 = vld [vmem:[%s4 + $0x718] sm:$0xff]
    %v302 = vld [vmem:[%s4 + $0x720] sm:$0xff]
    %v303 = vld [vmem:[%s4 + $0x728] sm:$0xff]
    %v304 = vld [vmem:[%s4 + $0x730] sm:$0xff]
    %v305 = vld [vmem:[%s4 + $0x738] sm:$0xff]
    %v306 = vld [vmem:[%s4 + $0x740] sm:$0xff]
    %v307 = vld [vmem:[%s4 + $0x748] sm:$0xff]
    %v308 = vld [vmem:[%s4 + $0x750] sm:$0xff]
    %v309 = vld [vmem:[%s4 + $0x758] sm:$0xff]
    %v310 = vld [vmem:[%s4 + $0x760] sm:$0xff]
    %v311 = vld [vmem:[%s4 + $0x768] sm:$0xff]
    %v312 = vld [vmem:[%s4 + $0x770] sm:$0xff]
    %v313 = vld [vmem:[%s4 + $0x778] sm:$0xff]
    %v314 = vld [vmem:[%s4 + $0x780] sm:$0xff]
    %v315 = vld [vmem:[%s4 + $0x788] sm:$0xff]
    %v316 = vld [vmem:[%s4 + $0x790] sm:$0xff]
    %v317 = vld [vmem:[%s4 + $0x798] sm:$0xff]
    %v318 = vld [vmem:[%s4 + $0x7a0] sm:$0xff]
    %v319 = vld [vmem:[%s4 + $0x7a8] sm:$0xff]
    %v320 = vld [vmem:[%s4 + $0x7b0] sm:$0xff]
    %v321 = vld [vmem:[%s4 + $0x7b8] sm:$0xff]
    %v322 = vld [vmem:[%s4 + $0x7c0] sm:$0xff]
    %v323 = vld [vmem:[%s4 + $0x7c8] sm:$0xff]
    %v324 = vld [vmem:[%s4 + $0x7d0] sm:$0xff]
    %v325 = vld [vmem:[%s4 + $0x7d8] sm:$0xff]
    %v326 = vld [vmem:[%s4 + $0x7e0] sm:$0xff]
    %v327 = vld [vmem:[%s4 + $0x7e8] sm:$0xff]
    %v328 = vld [vmem:[%s4 + $0x7f0] sm:$0xf]
    %v329 = vld [vmem:[%s4 + $0x7f8] sm:$0xf]
    %331 = vset.pattern.permute.xlu0 0
    %332 = vperm.xlu0 %331, %v71
    %v333 = vpop.permute.xlu0 %332
    %v343 = vlaneseq
    %v344 = vshrl.u32 %v343, 7
    %v345 = vsub.s32 0, %v344
    %v346 = vrot.slane %v63, %v345
    %v347 = vlaneseq
    %v348 = vshrl.u32 %v347, 7
    %v349 = vsub.s32 4, %v348
    %v350 = vrot.slane %v63, %v349
    %v351 = vlaneseq
    %v352 = vshrl.u32 %v351, 7
    %v353 = vsub.s32 0, %v352
    %v354 = vrot.slane %v64, %v353
    %v355 = vlaneseq
    %v356 = vshrl.u32 %v355, 7
    %v357 = vsub.s32 4, %v356
    %v358 = vrot.slane %v64, %v357
    %v359 = vlaneseq
    %v360 = vshrl.u32 %v359, 7
    %v361 = vsub.s32 0, %v360
    %v362 = vrot.slane %v65, %v361
    %v363 = vlaneseq
    %v364 = vshrl.u32 %v363, 7
    %v365 = vsub.s32 4, %v364
    %v366 = vrot.slane %v65, %v365
    %v367 = vlaneseq
    %v368 = vshrl.u32 %v367, 7
    %v369 = vsub.s32 0, %v368
    %v370 = vrot.slane %v66, %v369
    %v371 = vlaneseq
    %v372 = vshrl.u32 %v371, 7
    %v373 = vsub.s32 4, %v372
    %v374 = vrot.slane %v66, %v373
    %v375 = vlaneseq
    %v376 = vshrl.u32 %v375, 7
    %v377 = vsub.s32 0, %v376
    %v378 = vrot.slane %v67, %v377
    %v379 = vlaneseq
    %v380 = vshrl.u32 %v379, 7
    %v381 = vsub.s32 4, %v380
    %v382 = vrot.slane %v67, %v381
    %v383 = vlaneseq
    %v384 = vshrl.u32 %v383, 7
    %v385 = vsub.s32 0, %v384
    %v386 = vrot.slane %v68, %v385
    %v387 = vlaneseq
    %v388 = vshrl.u32 %v387, 7
    %v389 = vsub.s32 4, %v388
    %v390 = vrot.slane %v68, %v389
    %v391 = vlaneseq
    %v392 = vshrl.u32 %v391, 7
    %v393 = vsub.s32 0, %v392
    %v394 = vrot.slane %v69, %v393
    %v395 = vlaneseq
    %v396 = vshrl.u32 %v395, 7
    %v397 = vsub.s32 4, %v396
    %v398 = vrot.slane %v69, %v397
    %v399 = vlaneseq
    %v400 = vshrl.u32 %v399, 7
    %v401 = vsub.s32 0, %v400
    %v402 = vrot.slane %v70, %v401
    %v403 = vlaneseq
    %v404 = vshrl.u32 %v403, 7
    %v405 = vsub.s32 4, %v404
    %v406 = vrot.slane %v70, %v405
    %v423 = vlaneseq
    %v424 = vshrl.u32 %v423, 7
    %v425 = vsub.s32 0, %v424
    %v426 = vrot.slane %v346, %v425
    %v427 = vlaneseq
    %v428 = vshrl.u32 %v427, 7
    %v429 = vsub.s32 0, %v428
    %v430 = vrot.slane %v350, %v429
    %v431 = vlaneseq
    %v432 = vshrl.u32 %v431, 7
    %v433 = vsub.s32 0, %v432
    %v434 = vrot.slane %v354, %v433
    %v435 = vlaneseq
    %v436 = vshrl.u32 %v435, 7
    %v437 = vsub.s32 0, %v436
    %v438 = vrot.slane %v358, %v437
    %v439 = vlaneseq
    %v440 = vshrl.u32 %v439, 7
    %v441 = vsub.s32 0, %v440
    %v442 = vrot.slane %v362, %v441
    %v443 = vlaneseq
    %v444 = vshrl.u32 %v443, 7
    %v445 = vsub.s32 0, %v444
    %v446 = vrot.slane %v366, %v445
    %v447 = vlaneseq
    %v448 = vshrl.u32 %v447, 7
    %v449 = vsub.s32 0, %v448
    %v450 = vrot.slane %v370, %v449
    %v451 = vlaneseq
    %v452 = vshrl.u32 %v451, 7
    %v453 = vsub.s32 0, %v452
    %v454 = vrot.slane %v374, %v453
    %v455 = vlaneseq
    %v456 = vshrl.u32 %v455, 7
    %v457 = vsub.s32 0, %v456
    %v458 = vrot.slane %v378, %v457
    %v459 = vlaneseq
    %v460 = vshrl.u32 %v459, 7
    %v461 = vsub.s32 0, %v460
    %v462 = vrot.slane %v382, %v461
    %v463 = vlaneseq
    %v464 = vshrl.u32 %v463, 7
    %v465 = vsub.s32 0, %v464
    %v466 = vrot.slane %v386, %v465
    %v467 = vlaneseq
    %v468 = vshrl.u32 %v467, 7
    %v469 = vsub.s32 0, %v468
    %v470 = vrot.slane %v390, %v469
    %v471 = vlaneseq
    %v472 = vshrl.u32 %v471, 7
    %v473 = vsub.s32 0, %v472
    %v474 = vrot.slane %v394, %v473
    %v475 = vlaneseq
    %v476 = vshrl.u32 %v475, 7
    %v477 = vsub.s32 0, %v476
    %v478 = vrot.slane %v398, %v477
    %v479 = vlaneseq
    %v480 = vshrl.u32 %v479, 7
    %v481 = vsub.s32 0, %v480
    %v482 = vrot.slane %v402, %v481
    %v483 = vlaneseq
    %v484 = vshrl.u32 %v483, 7
    %v485 = vsub.s32 0, %v484
    %v486 = vrot.slane %v406, %v485
    %v487 = vmul.f32 %v333, %v426
    %v488 = vmul.f32 %v333, %v430
    %v489 = vmul.f32 %v333, %v434
    %v490 = vmul.f32 %v333, %v438
    %v491 = vmul.f32 %v333, %v442
    %v492 = vmul.f32 %v333, %v446
    %v493 = vmul.f32 %v333, %v450
    %v494 = vmul.f32 %v333, %v454
    %v495 = vmul.f32 %v333, %v458
    %v496 = vmul.f32 %v333, %v462
    %v497 = vmul.f32 %v333, %v466
    %v498 = vmul.f32 %v333, %v470
    %v499 = vmul.f32 %v333, %v474
    %v500 = vmul.f32 %v333, %v478
    %v501 = vmul.f32 %v333, %v482
    %v502 = vmul.f32 %v333, %v486
    %503 = vset.pattern.permute.xlu0 1
    %504 = vperm.xlu0 %503, %v71
    %v505 = vpop.permute.xlu0 %504
    %v507 = vlaneseq
    %v508 = vshrl.u32 %v507, 7
    %v509 = vsub.s32 1, %v508
    %v510 = vrot.slane %v63, %v509
    %v511 = vlaneseq
    %v512 = vshrl.u32 %v511, 7
    %v513 = vsub.s32 5, %v512
    %v514 = vrot.slane %v63, %v513
    %v515 = vlaneseq
    %v516 = vshrl.u32 %v515, 7
    %v517 = vsub.s32 1, %v516
    %v518 = vrot.slane %v64, %v517
    %v519 = vlaneseq
    %v520 = vshrl.u32 %v519, 7
    %v521 = vsub.s32 5, %v520
    %v522 = vrot.slane %v64, %v521
    %v523 = vlaneseq
    %v524 = vshrl.u32 %v523, 7
    %v525 = vsub.s32 1, %v524
    %v526 = vrot.slane %v65, %v525
    %v527 = vlaneseq
    %v528 = vshrl.u32 %v527, 7
    %v529 = vsub.s32 5, %v528
    %v530 = vrot.slane %v65, %v529
    %v531 = vlaneseq
    %v532 = vshrl.u32 %v531, 7
    %v533 = vsub.s32 1, %v532
    %v534 = vrot.slane %v66, %v533
    %v535 = vlaneseq
    %v536 = vshrl.u32 %v535, 7
    %v537 = vsub.s32 5, %v536
    %v538 = vrot.slane %v66, %v537
    %v539 = vlaneseq
    %v540 = vshrl.u32 %v539, 7
    %v541 = vsub.s32 1, %v540
    %v542 = vrot.slane %v67, %v541
    %v543 = vlaneseq
    %v544 = vshrl.u32 %v543, 7
    %v545 = vsub.s32 5, %v544
    %v546 = vrot.slane %v67, %v545
    %v547 = vlaneseq
    %v548 = vshrl.u32 %v547, 7
    %v549 = vsub.s32 1, %v548
    %v550 = vrot.slane %v68, %v549
    %v551 = vlaneseq
    %v552 = vshrl.u32 %v551, 7
    %v553 = vsub.s32 5, %v552
    %v554 = vrot.slane %v68, %v553
    %v555 = vlaneseq
    %v556 = vshrl.u32 %v555, 7
    %v557 = vsub.s32 1, %v556
    %v558 = vrot.slane %v69, %v557
    %v559 = vlaneseq
    %v560 = vshrl.u32 %v559, 7
    %v561 = vsub.s32 5, %v560
    %v562 = vrot.slane %v69, %v561
    %v563 = vlaneseq
    %v564 = vshrl.u32 %v563, 7
    %v565 = vsub.s32 1, %v564
    %v566 = vrot.slane %v70, %v565
    %v567 = vlaneseq
    %v568 = vshrl.u32 %v567, 7
    %v569 = vsub.s32 5, %v568
    %v570 = vrot.slane %v70, %v569
    %v587 = vlaneseq
    %v588 = vshrl.u32 %v587, 7
    %v589 = vsub.s32 1, %v588
    %v590 = vrot.slane %v510, %v589
    %v591 = vlaneseq
    %v592 = vshrl.u32 %v591, 7
    %v593 = vsub.s32 1, %v592
    %v594 = vrot.slane %v514, %v593
    %v595 = vlaneseq
    %v596 = vshrl.u32 %v595, 7
    %v597 = vsub.s32 1, %v596
    %v598 = vrot.slane %v518, %v597
    %v599 = vlaneseq
    %v600 = vshrl.u32 %v599, 7
    %v601 = vsub.s32 1, %v600
    %v602 = vrot.slane %v522, %v601
    %v603 = vlaneseq
    %v604 = vshrl.u32 %v603, 7
    %v605 = vsub.s32 1, %v604
    %v606 = vrot.slane %v526, %v605
    %v607 = vlaneseq
    %v608 = vshrl.u32 %v607, 7
    %v609 = vsub.s32 1, %v608
    %v610 = vrot.slane %v530, %v609
    %v611 = vlaneseq
    %v612 = vshrl.u32 %v611, 7
    %v613 = vsub.s32 1, %v612
    %v614 = vrot.slane %v534, %v613
    %v615 = vlaneseq
    %v616 = vshrl.u32 %v615, 7
    %v617 = vsub.s32 1, %v616
    %v618 = vrot.slane %v538, %v617
    %v619 = vlaneseq
    %v620 = vshrl.u32 %v619, 7
    %v621 = vsub.s32 1, %v620
    %v622 = vrot.slane %v542, %v621
    %v623 = vlaneseq
    %v624 = vshrl.u32 %v623, 7
    %v625 = vsub.s32 1, %v624
    %v626 = vrot.slane %v546, %v625
    %v627 = vlaneseq
    %v628 = vshrl.u32 %v627, 7
    %v629 = vsub.s32 1, %v628
    %v630 = vrot.slane %v550, %v629
    %v631 = vlaneseq
    %v632 = vshrl.u32 %v631, 7
    %v633 = vsub.s32 1, %v632
    %v634 = vrot.slane %v554, %v633
    %v635 = vlaneseq
    %v636 = vshrl.u32 %v635, 7
    %v637 = vsub.s32 1, %v636
    %v638 = vrot.slane %v558, %v637
    %v639 = vlaneseq
    %v640 = vshrl.u32 %v639, 7
    %v641 = vsub.s32 1, %v640
    %v642 = vrot.slane %v562, %v641
    %v643 = vlaneseq
    %v644 = vshrl.u32 %v643, 7
    %v645 = vsub.s32 1, %v644
    %v646 = vrot.slane %v566, %v645
    %v647 = vlaneseq
    %v648 = vshrl.u32 %v647, 7
    %v649 = vsub.s32 1, %v648
    %v650 = vrot.slane %v570, %v649
    %v651 = vmul.f32 %v505, %v590
    %v652 = vmul.f32 %v505, %v594
    %v653 = vmul.f32 %v505, %v598
    %v654 = vmul.f32 %v505, %v602
    %v655 = vmul.f32 %v505, %v606
    %v656 = vmul.f32 %v505, %v610
    %v657 = vmul.f32 %v505, %v614
    %v658 = vmul.f32 %v505, %v618
    %v659 = vmul.f32 %v505, %v622
    %v660 = vmul.f32 %v505, %v626
    %v661 = vmul.f32 %v505, %v630
    %v662 = vmul.f32 %v505, %v634
    %v663 = vmul.f32 %v505, %v638
    %v664 = vmul.f32 %v505, %v642
    %v665 = vmul.f32 %v505, %v646
    %v666 = vmul.f32 %v505, %v650
    %v667 = vadd.f32 %v487, %v651
    %v668 = vadd.f32 %v488, %v652
    %v669 = vadd.f32 %v489, %v653
    %v670 = vadd.f32 %v490, %v654
    %v671 = vadd.f32 %v491, %v655
    %v672 = vadd.f32 %v492, %v656
    %v673 = vadd.f32 %v493, %v657
    %v674 = vadd.f32 %v494, %v658
    %v675 = vadd.f32 %v495, %v659
    %v676 = vadd.f32 %v496, %v660
    %v677 = vadd.f32 %v497, %v661
    %v678 = vadd.f32 %v498, %v662
    %v679 = vadd.f32 %v499, %v663
    %v680 = vadd.f32 %v500, %v664
    %v681 = vadd.f32 %v501, %v665
    %v682 = vadd.f32 %v502, %v666
    %683 = vset.pattern.permute.xlu0 2
    %684 = vperm.xlu0 %683, %v71
    %v685 = vpop.permute.xlu0 %684
    %v687 = vlaneseq
    %v688 = vshrl.u32 %v687, 7
    %v689 = vsub.s32 2, %v688
    %v690 = vrot.slane %v63, %v689
    %v691 = vlaneseq
    %v692 = vshrl.u32 %v691, 7
    %v693 = vsub.s32 6, %v692
    %v694 = vrot.slane %v63, %v693
    %v695 = vlaneseq
    %v696 = vshrl.u32 %v695, 7
    %v697 = vsub.s32 2, %v696
    %v698 = vrot.slane %v64, %v697
    %v699 = vlaneseq
    %v700 = vshrl.u32 %v699, 7
    %v701 = vsub.s32 6, %v700
    %v702 = vrot.slane %v64, %v701
    %v703 = vlaneseq
    %v704 = vshrl.u32 %v703, 7
    %v705 = vsub.s32 2, %v704
    %v706 = vrot.slane %v65, %v705
    %v707 = vlaneseq
    %v708 = vshrl.u32 %v707, 7
    %v709 = vsub.s32 6, %v708
    %v710 = vrot.slane %v65, %v709
    %v711 = vlaneseq
    %v712 = vshrl.u32 %v711, 7
    %v713 = vsub.s32 2, %v712
    %v714 = vrot.slane %v66, %v713
    %v715 = vlaneseq
    %v716 = vshrl.u32 %v715, 7
    %v717 = vsub.s32 6, %v716
    %v718 = vrot.slane %v66, %v717
    %v719 = vlaneseq
    %v720 = vshrl.u32 %v719, 7
    %v721 = vsub.s32 2, %v720
    %v722 = vrot.slane %v67, %v721
    %v723 = vlaneseq
    %v724 = vshrl.u32 %v723, 7
    %v725 = vsub.s32 6, %v724
    %v726 = vrot.slane %v67, %v725
    %v727 = vlaneseq
    %v728 = vshrl.u32 %v727, 7
    %v729 = vsub.s32 2, %v728
    %v730 = vrot.slane %v68, %v729
    %v731 = vlaneseq
    %v732 = vshrl.u32 %v731, 7
    %v733 = vsub.s32 6, %v732
    %v734 = vrot.slane %v68, %v733
    %v735 = vlaneseq
    %v736 = vshrl.u32 %v735, 7
    %v737 = vsub.s32 2, %v736
    %v738 = vrot.slane %v69, %v737
    %v739 = vlaneseq
    %v740 = vshrl.u32 %v739, 7
    %v741 = vsub.s32 6, %v740
    %v742 = vrot.slane %v69, %v741
    %v743 = vlaneseq
    %v744 = vshrl.u32 %v743, 7
    %v745 = vsub.s32 2, %v744
    %v746 = vrot.slane %v70, %v745
    %v747 = vlaneseq
    %v748 = vshrl.u32 %v747, 7
    %v749 = vsub.s32 6, %v748
    %v750 = vrot.slane %v70, %v749
    %v767 = vlaneseq
    %v768 = vshrl.u32 %v767, 7
    %v769 = vsub.s32 2, %v768
    %v770 = vrot.slane %v690, %v769
    %v771 = vlaneseq
    %v772 = vshrl.u32 %v771, 7
    %v773 = vsub.s32 2, %v772
    %v774 = vrot.slane %v694, %v773
    %v775 = vlaneseq
    %v776 = vshrl.u32 %v775, 7
    %v777 = vsub.s32 2, %v776
    %v778 = vrot.slane %v698, %v777
    %v779 = vlaneseq
    %v780 = vshrl.u32 %v779, 7
    %v781 = vsub.s32 2, %v780
    %v782 = vrot.slane %v702, %v781
    %v783 = vlaneseq
    %v784 = vshrl.u32 %v783, 7
    %v785 = vsub.s32 2, %v784
    %v786 = vrot.slane %v706, %v785
    %v787 = vlaneseq
    %v788 = vshrl.u32 %v787, 7
    %v789 = vsub.s32 2, %v788
    %v790 = vrot.slane %v710, %v789
    %v791 = vlaneseq
    %v792 = vshrl.u32 %v791, 7
    %v793 = vsub.s32 2, %v792
    %v794 = vrot.slane %v714, %v793
    %v795 = vlaneseq
    %v796 = vshrl.u32 %v795, 7
    %v797 = vsub.s32 2, %v796
    %v798 = vrot.slane %v718, %v797
    %v799 = vlaneseq
    %v800 = vshrl.u32 %v799, 7
    %v801 = vsub.s32 2, %v800
    %v802 = vrot.slane %v722, %v801
    %v803 = vlaneseq
    %v804 = vshrl.u32 %v803, 7
    %v805 = vsub.s32 2, %v804
    %v806 = vrot.slane %v726, %v805
    %v807 = vlaneseq
    %v808 = vshrl.u32 %v807, 7
    %v809 = vsub.s32 2, %v808
    %v810 = vrot.slane %v730, %v809
    %v811 = vlaneseq
    %v812 = vshrl.u32 %v811, 7
    %v813 = vsub.s32 2, %v812
    %v814 = vrot.slane %v734, %v813
    %v815 = vlaneseq
    %v816 = vshrl.u32 %v815, 7
    %v817 = vsub.s32 2, %v816
    %v818 = vrot.slane %v738, %v817
    %v819 = vlaneseq
    %v820 = vshrl.u32 %v819, 7
    %v821 = vsub.s32 2, %v820
    %v822 = vrot.slane %v742, %v821
    %v823 = vlaneseq
    %v824 = vshrl.u32 %v823, 7
    %v825 = vsub.s32 2, %v824
    %v826 = vrot.slane %v746, %v825
    %v827 = vlaneseq
    %v828 = vshrl.u32 %v827, 7
    %v829 = vsub.s32 2, %v828
    %v830 = vrot.slane %v750, %v829
    %v831 = vmul.f32 %v685, %v770
    %v832 = vmul.f32 %v685, %v774
    %v833 = vmul.f32 %v685, %v778
    %v834 = vmul.f32 %v685, %v782
    %v835 = vmul.f32 %v685, %v786
    %v836 = vmul.f32 %v685, %v790
    %v837 = vmul.f32 %v685, %v794
    %v838 = vmul.f32 %v685, %v798
    %v839 = vmul.f32 %v685, %v802
    %v840 = vmul.f32 %v685, %v806
    %v841 = vmul.f32 %v685, %v810
    %v842 = vmul.f32 %v685, %v814
    %v843 = vmul.f32 %v685, %v818
    %v844 = vmul.f32 %v685, %v822
    %v845 = vmul.f32 %v685, %v826
    %v846 = vmul.f32 %v685, %v830
    %v847 = vadd.f32 %v667, %v831
    %v848 = vadd.f32 %v668, %v832
    %v849 = vadd.f32 %v669, %v833
    %v850 = vadd.f32 %v670, %v834
    %v851 = vadd.f32 %v671, %v835
    %v852 = vadd.f32 %v672, %v836
    %v853 = vadd.f32 %v673, %v837
    %v854 = vadd.f32 %v674, %v838
    %v855 = vadd.f32 %v675, %v839
    %v856 = vadd.f32 %v676, %v840
    %v857 = vadd.f32 %v677, %v841
    %v858 = vadd.f32 %v678, %v842
    %v859 = vadd.f32 %v679, %v843
    %v860 = vadd.f32 %v680, %v844
    %v861 = vadd.f32 %v681, %v845
    %v862 = vadd.f32 %v682, %v846
    %863 = vset.pattern.permute.xlu0 3
    %864 = vperm.xlu0 %863, %v71
    %v865 = vpop.permute.xlu0 %864
    %v867 = vlaneseq
    %v868 = vshrl.u32 %v867, 7
    %v869 = vsub.s32 3, %v868
    %v870 = vrot.slane %v63, %v869
    %v871 = vlaneseq
    %v872 = vshrl.u32 %v871, 7
    %v873 = vsub.s32 7, %v872
    %v874 = vrot.slane %v63, %v873
    %v875 = vlaneseq
    %v876 = vshrl.u32 %v875, 7
    %v877 = vsub.s32 3, %v876
    %v878 = vrot.slane %v64, %v877
    %v879 = vlaneseq
    %v880 = vshrl.u32 %v879, 7
    %v881 = vsub.s32 7, %v880
    %v882 = vrot.slane %v64, %v881
    %v883 = vlaneseq
    %v884 = vshrl.u32 %v883, 7
    %v885 = vsub.s32 3, %v884
    %v886 = vrot.slane %v65, %v885
    %v887 = vlaneseq
    %v888 = vshrl.u32 %v887, 7
    %v889 = vsub.s32 7, %v888
    %v890 = vrot.slane %v65, %v889
    %v891 = vlaneseq
    %v892 = vshrl.u32 %v891, 7
    %v893 = vsub.s32 3, %v892
    %v894 = vrot.slane %v66, %v893
    %v895 = vlaneseq
    %v896 = vshrl.u32 %v895, 7
    %v897 = vsub.s32 7, %v896
    %v898 = vrot.slane %v66, %v897
    %v899 = vlaneseq
    %v900 = vshrl.u32 %v899, 7
    %v901 = vsub.s32 3, %v900
    %v902 = vrot.slane %v67, %v901
    %v903 = vlaneseq
    %v904 = vshrl.u32 %v903, 7
    %v905 = vsub.s32 7, %v904
    %v906 = vrot.slane %v67, %v905
    %v907 = vlaneseq
    %v908 = vshrl.u32 %v907, 7
    %v909 = vsub.s32 3, %v908
    %v910 = vrot.slane %v68, %v909
    %v911 = vlaneseq
    %v912 = vshrl.u32 %v911, 7
    %v913 = vsub.s32 7, %v912
    %v914 = vrot.slane %v68, %v913
    %v915 = vlaneseq
    %v916 = vshrl.u32 %v915, 7
    %v917 = vsub.s32 3, %v916
    %v918 = vrot.slane %v69, %v917
    %v919 = vlaneseq
    %v920 = vshrl.u32 %v919, 7
    %v921 = vsub.s32 7, %v920
    %v922 = vrot.slane %v69, %v921
    %v923 = vlaneseq
    %v924 = vshrl.u32 %v923, 7
    %v925 = vsub.s32 3, %v924
    %v926 = vrot.slane %v70, %v925
    %v927 = vlaneseq
    %v928 = vshrl.u32 %v927, 7
    %v929 = vsub.s32 7, %v928
    %v930 = vrot.slane %v70, %v929
    %v947 = vlaneseq
    %v948 = vshrl.u32 %v947, 7
    %v949 = vsub.s32 3, %v948
    %v950 = vrot.slane %v870, %v949
    %v951 = vlaneseq
    %v952 = vshrl.u32 %v951, 7
    %v953 = vsub.s32 3, %v952
    %v954 = vrot.slane %v874, %v953
    %v955 = vlaneseq
    %v956 = vshrl.u32 %v955, 7
    %v957 = vsub.s32 3, %v956
    %v958 = vrot.slane %v878, %v957
    %v959 = vlaneseq
    %v960 = vshrl.u32 %v959, 7
    %v961 = vsub.s32 3, %v960
    %v962 = vrot.slane %v882, %v961
    %v963 = vlaneseq
    %v964 = vshrl.u32 %v963, 7
    %v965 = vsub.s32 3, %v964
    %v966 = vrot.slane %v886, %v965
    %v967 = vlaneseq
    %v968 = vshrl.u32 %v967, 7
    %v969 = vsub.s32 3, %v968
    %v970 = vrot.slane %v890, %v969
    %v971 = vlaneseq
    %v972 = vshrl.u32 %v971, 7
    %v973 = vsub.s32 3, %v972
    %v974 = vrot.slane %v894, %v973
    %v975 = vlaneseq
    %v976 = vshrl.u32 %v975, 7
    %v977 = vsub.s32 3, %v976
    %v978 = vrot.slane %v898, %v977
    %v979 = vlaneseq
    %v980 = vshrl.u32 %v979, 7
    %v981 = vsub.s32 3, %v980
    %v982 = vrot.slane %v902, %v981
    %v983 = vlaneseq
    %v984 = vshrl.u32 %v983, 7
    %v985 = vsub.s32 3, %v984
    %v986 = vrot.slane %v906, %v985
    %v987 = vlaneseq
    %v988 = vshrl.u32 %v987, 7
    %v989 = vsub.s32 3, %v988
    %v990 = vrot.slane %v910, %v989
    %v991 = vlaneseq
    %v992 = vshrl.u32 %v991, 7
    %v993 = vsub.s32 3, %v992
    %v994 = vrot.slane %v914, %v993
    %v995 = vlaneseq
    %v996 = vshrl.u32 %v995, 7
    %v997 = vsub.s32 3, %v996
    %v998 = vrot.slane %v918, %v997
    %v999 = vlaneseq
    %v1000 = vshrl.u32 %v999, 7
    %v1001 = vsub.s32 3, %v1000
    %v1002 = vrot.slane %v922, %v1001
    %v1003 = vlaneseq
    %v1004 = vshrl.u32 %v1003, 7
    %v1005 = vsub.s32 3, %v1004
    %v1006 = vrot.slane %v926, %v1005
    %v1007 = vlaneseq
    %v1008 = vshrl.u32 %v1007, 7
    %v1009 = vsub.s32 3, %v1008
    %v1010 = vrot.slane %v930, %v1009
    %v1011 = vmul.f32 %v865, %v950
    %v1012 = vmul.f32 %v865, %v954
    %v1013 = vmul.f32 %v865, %v958
    %v1014 = vmul.f32 %v865, %v962
    %v1015 = vmul.f32 %v865, %v966
    %v1016 = vmul.f32 %v865, %v970
    %v1017 = vmul.f32 %v865, %v974
    %v1018 = vmul.f32 %v865, %v978
    %v1019 = vmul.f32 %v865, %v982
    %v1020 = vmul.f32 %v865, %v986
    %v1021 = vmul.f32 %v865, %v990
    %v1022 = vmul.f32 %v865, %v994
    %v1023 = vmul.f32 %v865, %v998
    %v1024 = vmul.f32 %v865, %v1002
    %v1025 = vmul.f32 %v865, %v1006
    %v1026 = vmul.f32 %v865, %v1010
    %v1027 = vadd.f32 %v847, %v1011
    %v1028 = vadd.f32 %v848, %v1012
    %v1029 = vadd.f32 %v849, %v1013
    %v1030 = vadd.f32 %v850, %v1014
    %v1031 = vadd.f32 %v851, %v1015
    %v1032 = vadd.f32 %v852, %v1016
    %v1033 = vadd.f32 %v853, %v1017
    %v1034 = vadd.f32 %v854, %v1018
    %v1035 = vadd.f32 %v855, %v1019
    %v1036 = vadd.f32 %v856, %v1020
    %v1037 = vadd.f32 %v857, %v1021
    %v1038 = vadd.f32 %v858, %v1022
    %v1039 = vadd.f32 %v859, %v1023
    %v1040 = vadd.f32 %v860, %v1024
    %v1041 = vadd.f32 %v861, %v1025
    %v1042 = vadd.f32 %v862, %v1026
    %1043 = vset.pattern.permute.xlu0 4
    %1044 = vperm.xlu0 %1043, %v71
    %v1045 = vpop.permute.xlu0 %1044
    %v1047 = vmul.f32 %v1045, %v426
    %v1048 = vmul.f32 %v1045, %v430
    %v1049 = vmul.f32 %v1045, %v434
    %v1050 = vmul.f32 %v1045, %v438
    %v1051 = vmul.f32 %v1045, %v442
    %v1052 = vmul.f32 %v1045, %v446
    %v1053 = vmul.f32 %v1045, %v450
    %v1054 = vmul.f32 %v1045, %v454
    %v1055 = vmul.f32 %v1045, %v458
    %v1056 = vmul.f32 %v1045, %v462
    %v1057 = vmul.f32 %v1045, %v466
    %v1058 = vmul.f32 %v1045, %v470
    %v1059 = vmul.f32 %v1045, %v474
    %v1060 = vmul.f32 %v1045, %v478
    %v1061 = vmul.f32 %v1045, %v482
    %v1062 = vmul.f32 %v1045, %v486
    %1079 = vrot.lane.b32.xlu0 %v1047, 127
    %v1080 = vpop.permute.xlu0 %1079
    %1081 = vrot.lane.b32.xlu0 %v1048, 127
    %v1082 = vpop.permute.xlu0 %1081
    %1083 = vrot.lane.b32.xlu0 %v1049, 127
    %v1084 = vpop.permute.xlu0 %1083
    %1085 = vrot.lane.b32.xlu0 %v1050, 127
    %v1086 = vpop.permute.xlu0 %1085
    %1087 = vrot.lane.b32.xlu0 %v1051, 127
    %v1088 = vpop.permute.xlu0 %1087
    %1089 = vrot.lane.b32.xlu0 %v1052, 127
    %v1090 = vpop.permute.xlu0 %1089
    %1091 = vrot.lane.b32.xlu0 %v1053, 127
    %v1092 = vpop.permute.xlu0 %1091
    %1093 = vrot.lane.b32.xlu0 %v1054, 127
    %v1094 = vpop.permute.xlu0 %1093
    %1095 = vrot.lane.b32.xlu0 %v1055, 127
    %v1096 = vpop.permute.xlu0 %1095
    %1097 = vrot.lane.b32.xlu0 %v1056, 127
    %v1098 = vpop.permute.xlu0 %1097
    %1099 = vrot.lane.b32.xlu0 %v1057, 127
    %v1100 = vpop.permute.xlu0 %1099
    %1101 = vrot.lane.b32.xlu0 %v1058, 127
    %v1102 = vpop.permute.xlu0 %1101
    %1103 = vrot.lane.b32.xlu0 %v1059, 127
    %v1104 = vpop.permute.xlu0 %1103
    %1105 = vrot.lane.b32.xlu0 %v1060, 127
    %v1106 = vpop.permute.xlu0 %1105
    %1107 = vrot.lane.b32.xlu0 %v1061, 127
    %v1108 = vpop.permute.xlu0 %1107
    %1109 = vrot.lane.b32.xlu0 %v1062, 127
    %v1110 = vpop.permute.xlu0 %1109
    %vm1111 = vcmask 1039360
    %v1112 = vsel %vm1111, %v1080, %v1082
    %v1113 = vsel %vm1111, %v1082, %v1084
    %v1114 = vsel %vm1111, %v1084, %v1086
    %v1115 = vsel %vm1111, %v1086, %v1088
    %v1116 = vsel %vm1111, %v1088, %v1090
    %v1117 = vsel %vm1111, %v1090, %v1092
    %v1118 = vsel %vm1111, %v1092, %v1094
    %v1119 = vsel %vm1111, %v1096, %v1098
    %v1120 = vsel %vm1111, %v1098, %v1100
    %v1121 = vsel %vm1111, %v1100, %v1102
    %v1122 = vsel %vm1111, %v1102, %v1104
    %v1123 = vsel %vm1111, %v1104, %v1106
    %v1124 = vsel %vm1111, %v1106, %v1108
    %v1125 = vsel %vm1111, %v1108, %v1110
    %v1142 = vadd.f32 %v1027, %v1112
    %v1143 = vadd.f32 %v1028, %v1113
    %v1144 = vadd.f32 %v1029, %v1114
    %v1145 = vadd.f32 %v1030, %v1115
    %v1146 = vadd.f32 %v1031, %v1116
    %v1147 = vadd.f32 %v1032, %v1117
    %v1148 = vadd.f32 %v1033, %v1118
    %v1149 = vadd.f32 %v1034, %v1094
    %v1150 = vadd.f32 %v1035, %v1119
    %v1151 = vadd.f32 %v1036, %v1120
    %v1152 = vadd.f32 %v1037, %v1121
    %v1153 = vadd.f32 %v1038, %v1122
    %v1154 = vadd.f32 %v1039, %v1123
    %v1155 = vadd.f32 %v1040, %v1124
    %v1156 = vadd.f32 %v1041, %v1125
    %v1157 = vadd.f32 %v1042, %v1110
    %1158 = vset.pattern.permute.xlu0 5
    %1159 = vperm.xlu0 %1158, %v71
    %v1160 = vpop.permute.xlu0 %1159
    %v1162 = vmul.f32 %v1160, %v590
    %v1163 = vmul.f32 %v1160, %v594
    %v1164 = vmul.f32 %v1160, %v598
    %v1165 = vmul.f32 %v1160, %v602
    %v1166 = vmul.f32 %v1160, %v606
    %v1167 = vmul.f32 %v1160, %v610
    %v1168 = vmul.f32 %v1160, %v614
    %v1169 = vmul.f32 %v1160, %v618
    %v1170 = vmul.f32 %v1160, %v622
    %v1171 = vmul.f32 %v1160, %v626
    %v1172 = vmul.f32 %v1160, %v630
    %v1173 = vmul.f32 %v1160, %v634
    %v1174 = vmul.f32 %v1160, %v638
    %v1175 = vmul.f32 %v1160, %v642
    %v1176 = vmul.f32 %v1160, %v646
    %v1177 = vmul.f32 %v1160, %v650
    %1194 = vrot.lane.b32.xlu0 %v1162, 127
    %v1195 = vpop.permute.xlu0 %1194
    %1196 = vrot.lane.b32.xlu0 %v1163, 127
    %v1197 = vpop.permute.xlu0 %1196
    %1198 = vrot.lane.b32.xlu0 %v1164, 127
    %v1199 = vpop.permute.xlu0 %1198
    %1200 = vrot.lane.b32.xlu0 %v1165, 127
    %v1201 = vpop.permute.xlu0 %1200
    %1202 = vrot.lane.b32.xlu0 %v1166, 127
    %v1203 = vpop.permute.xlu0 %1202
    %1204 = vrot.lane.b32.xlu0 %v1167, 127
    %v1205 = vpop.permute.xlu0 %1204
    %1206 = vrot.lane.b32.xlu0 %v1168, 127
    %v1207 = vpop.permute.xlu0 %1206
    %1208 = vrot.lane.b32.xlu0 %v1169, 127
    %v1209 = vpop.permute.xlu0 %1208
    %1210 = vrot.lane.b32.xlu0 %v1170, 127
    %v1211 = vpop.permute.xlu0 %1210
    %1212 = vrot.lane.b32.xlu0 %v1171, 127
    %v1213 = vpop.permute.xlu0 %1212
    %1214 = vrot.lane.b32.xlu0 %v1172, 127
    %v1215 = vpop.permute.xlu0 %1214
    %1216 = vrot.lane.b32.xlu0 %v1173, 127
    %v1217 = vpop.permute.xlu0 %1216
    %1218 = vrot.lane.b32.xlu0 %v1174, 127
    %v1219 = vpop.permute.xlu0 %1218
    %1220 = vrot.lane.b32.xlu0 %v1175, 127
    %v1221 = vpop.permute.xlu0 %1220
    %1222 = vrot.lane.b32.xlu0 %v1176, 127
    %v1223 = vpop.permute.xlu0 %1222
    %1224 = vrot.lane.b32.xlu0 %v1177, 127
    %v1225 = vpop.permute.xlu0 %1224
    %v1226 = vsel %vm1111, %v1195, %v1197
    %v1227 = vsel %vm1111, %v1197, %v1199
    %v1228 = vsel %vm1111, %v1199, %v1201
    %v1229 = vsel %vm1111, %v1201, %v1203
    %v1230 = vsel %vm1111, %v1203, %v1205
    %v1231 = vsel %vm1111, %v1205, %v1207
    %v1232 = vsel %vm1111, %v1207, %v1209
    %v1233 = vsel %vm1111, %v1211, %v1213
    %v1234 = vsel %vm1111, %v1213, %v1215
    %v1235 = vsel %vm1111, %v1215, %v1217
    %v1236 = vsel %vm1111, %v1217, %v1219
    %v1237 = vsel %vm1111, %v1219, %v1221
    %v1238 = vsel %vm1111, %v1221, %v1223
    %v1239 = vsel %vm1111, %v1223, %v1225
    %v1256 = vadd.f32 %v1142, %v1226
    %v1257 = vadd.f32 %v1143, %v1227
    %v1258 = vadd.f32 %v1144, %v1228
    %v1259 = vadd.f32 %v1145, %v1229
    %v1260 = vadd.f32 %v1146, %v1230
    %v1261 = vadd.f32 %v1147, %v1231
    %v1262 = vadd.f32 %v1148, %v1232
    %v1263 = vadd.f32 %v1149, %v1209
    %v1264 = vadd.f32 %v1150, %v1233
    %v1265 = vadd.f32 %v1151, %v1234
    %v1266 = vadd.f32 %v1152, %v1235
    %v1267 = vadd.f32 %v1153, %v1236
    %v1268 = vadd.f32 %v1154, %v1237
    %v1269 = vadd.f32 %v1155, %v1238
    %v1270 = vadd.f32 %v1156, %v1239
    %v1271 = vadd.f32 %v1157, %v1225
    %1272 = vset.pattern.permute.xlu0 6
    %1273 = vperm.xlu0 %1272, %v71
    %v1274 = vpop.permute.xlu0 %1273
    %v1276 = vmul.f32 %v1274, %v770
    %v1277 = vmul.f32 %v1274, %v774
    %v1278 = vmul.f32 %v1274, %v778
    %v1279 = vmul.f32 %v1274, %v782
    %v1280 = vmul.f32 %v1274, %v786
    %v1281 = vmul.f32 %v1274, %v790
    %v1282 = vmul.f32 %v1274, %v794
    %v1283 = vmul.f32 %v1274, %v798
    %v1284 = vmul.f32 %v1274, %v802
    %v1285 = vmul.f32 %v1274, %v806
    %v1286 = vmul.f32 %v1274, %v810
    %v1287 = vmul.f32 %v1274, %v814
    %v1288 = vmul.f32 %v1274, %v818
    %v1289 = vmul.f32 %v1274, %v822
    %v1290 = vmul.f32 %v1274, %v826
    %v1291 = vmul.f32 %v1274, %v830
    %1308 = vrot.lane.b32.xlu0 %v1276, 127
    %v1309 = vpop.permute.xlu0 %1308
    %1310 = vrot.lane.b32.xlu0 %v1277, 127
    %v1311 = vpop.permute.xlu0 %1310
    %1312 = vrot.lane.b32.xlu0 %v1278, 127
    %v1313 = vpop.permute.xlu0 %1312
    %1314 = vrot.lane.b32.xlu0 %v1279, 127
    %v1315 = vpop.permute.xlu0 %1314
    %1316 = vrot.lane.b32.xlu0 %v1280, 127
    %v1317 = vpop.permute.xlu0 %1316
    %1318 = vrot.lane.b32.xlu0 %v1281, 127
    %v1319 = vpop.permute.xlu0 %1318
    %1320 = vrot.lane.b32.xlu0 %v1282, 127
    %v1321 = vpop.permute.xlu0 %1320
    %1322 = vrot.lane.b32.xlu0 %v1283, 127
    %v1323 = vpop.permute.xlu0 %1322
    %1324 = vrot.lane.b32.xlu0 %v1284, 127
    %v1325 = vpop.permute.xlu0 %1324
    %1326 = vrot.lane.b32.xlu0 %v1285, 127
    %v1327 = vpop.permute.xlu0 %1326
    %1328 = vrot.lane.b32.xlu0 %v1286, 127
    %v1329 = vpop.permute.xlu0 %1328
    %1330 = vrot.lane.b32.xlu0 %v1287, 127
    %v1331 = vpop.permute.xlu0 %1330
    %1332 = vrot.lane.b32.xlu0 %v1288, 127
    %v1333 = vpop.permute.xlu0 %1332
    %1334 = vrot.lane.b32.xlu0 %v1289, 127
    %v1335 = vpop.permute.xlu0 %1334
    %1336 = vrot.lane.b32.xlu0 %v1290, 127
    %v1337 = vpop.permute.xlu0 %1336
    %1338 = vrot.lane.b32.xlu0 %v1291, 127
    %v1339 = vpop.permute.xlu0 %1338
    %v1340 = vsel %vm1111, %v1309, %v1311
    %v1341 = vsel %vm1111, %v1311, %v1313
    %v1342 = vsel %vm1111, %v1313, %v1315
    %v1343 = vsel %vm1111, %v1315, %v1317
    %v1344 = vsel %vm1111, %v1317, %v1319
    %v1345 = vsel %vm1111, %v1319, %v1321
    %v1346 = vsel %vm1111, %v1321, %v1323
    %v1347 = vsel %vm1111, %v1325, %v1327
    %v1348 = vsel %vm1111, %v1327, %v1329
    %v1349 = vsel %vm1111, %v1329, %v1331
    %v1350 = vsel %vm1111, %v1331, %v1333
    %v1351 = vsel %vm1111, %v1333, %v1335
    %v1352 = vsel %vm1111, %v1335, %v1337
    %v1353 = vsel %vm1111, %v1337, %v1339
    %v1370 = vadd.f32 %v1256, %v1340
    %v1371 = vadd.f32 %v1257, %v1341
    %v1372 = vadd.f32 %v1258, %v1342
    %v1373 = vadd.f32 %v1259, %v1343
    %v1374 = vadd.f32 %v1260, %v1344
    %v1375 = vadd.f32 %v1261, %v1345
    %v1376 = vadd.f32 %v1262, %v1346
    %v1377 = vadd.f32 %v1263, %v1323
    %v1378 = vadd.f32 %v1264, %v1347
    %v1379 = vadd.f32 %v1265, %v1348
    %v1380 = vadd.f32 %v1266, %v1349
    %v1381 = vadd.f32 %v1267, %v1350
    %v1382 = vadd.f32 %v1268, %v1351
    %v1383 = vadd.f32 %v1269, %v1352
    %v1384 = vadd.f32 %v1270, %v1353
    %v1385 = vadd.f32 %v1271, %v1339
    %1386 = vset.pattern.permute.xlu0 7
    %1387 = vperm.xlu0 %1386, %v71
    %v1388 = vpop.permute.xlu0 %1387
    %v1390 = vmul.f32 %v1388, %v950
    %v1391 = vmul.f32 %v1388, %v954
    %v1392 = vmul.f32 %v1388, %v958
    %v1393 = vmul.f32 %v1388, %v962
    %v1394 = vmul.f32 %v1388, %v966
    %v1395 = vmul.f32 %v1388, %v970
    %v1396 = vmul.f32 %v1388, %v974
    %v1397 = vmul.f32 %v1388, %v978
    %v1398 = vmul.f32 %v1388, %v982
    %v1399 = vmul.f32 %v1388, %v986
    %v1400 = vmul.f32 %v1388, %v990
    %v1401 = vmul.f32 %v1388, %v994
    %v1402 = vmul.f32 %v1388, %v998
    %v1403 = vmul.f32 %v1388, %v1002
    %v1404 = vmul.f32 %v1388, %v1006
    %v1405 = vmul.f32 %v1388, %v1010
    %1422 = vrot.lane.b32.xlu0 %v1390, 127
    %v1423 = vpop.permute.xlu0 %1422
    %1424 = vrot.lane.b32.xlu0 %v1391, 127
    %v1425 = vpop.permute.xlu0 %1424
    %1426 = vrot.lane.b32.xlu0 %v1392, 127
    %v1427 = vpop.permute.xlu0 %1426
    %1428 = vrot.lane.b32.xlu0 %v1393, 127
    %v1429 = vpop.permute.xlu0 %1428
    %1430 = vrot.lane.b32.xlu0 %v1394, 127
    %v1431 = vpop.permute.xlu0 %1430
    %1432 = vrot.lane.b32.xlu0 %v1395, 127
    %v1433 = vpop.permute.xlu0 %1432
    %1434 = vrot.lane.b32.xlu0 %v1396, 127
    %v1435 = vpop.permute.xlu0 %1434
    %1436 = vrot.lane.b32.xlu0 %v1397, 127
    %v1437 = vpop.permute.xlu0 %1436
    %1438 = vrot.lane.b32.xlu0 %v1398, 127
    %v1439 = vpop.permute.xlu0 %1438
    %1440 = vrot.lane.b32.xlu0 %v1399, 127
    %v1441 = vpop.permute.xlu0 %1440
    %1442 = vrot.lane.b32.xlu0 %v1400, 127
    %v1443 = vpop.permute.xlu0 %1442
    %1444 = vrot.lane.b32.xlu0 %v1401, 127
    %v1445 = vpop.permute.xlu0 %1444
    %1446 = vrot.lane.b32.xlu0 %v1402, 127
    %v1447 = vpop.permute.xlu0 %1446
    %1448 = vrot.lane.b32.xlu0 %v1403, 127
    %v1449 = vpop.permute.xlu0 %1448
    %1450 = vrot.lane.b32.xlu0 %v1404, 127
    %v1451 = vpop.permute.xlu0 %1450
    %1452 = vrot.lane.b32.xlu0 %v1405, 127
    %v1453 = vpop.permute.xlu0 %1452
    %v1454 = vsel %vm1111, %v1423, %v1425
    %v1455 = vsel %vm1111, %v1425, %v1427
    %v1456 = vsel %vm1111, %v1427, %v1429
    %v1457 = vsel %vm1111, %v1429, %v1431
    %v1458 = vsel %vm1111, %v1431, %v1433
    %v1459 = vsel %vm1111, %v1433, %v1435
    %v1460 = vsel %vm1111, %v1435, %v1437
    %v1461 = vsel %vm1111, %v1439, %v1441
    %v1462 = vsel %vm1111, %v1441, %v1443
    %v1463 = vsel %vm1111, %v1443, %v1445
    %v1464 = vsel %vm1111, %v1445, %v1447
    %v1465 = vsel %vm1111, %v1447, %v1449
    %v1466 = vsel %vm1111, %v1449, %v1451
    %v1467 = vsel %vm1111, %v1451, %v1453
    %v1484 = vadd.f32 %v1370, %v1454
    %v1485 = vadd.f32 %v1371, %v1455
    %v1486 = vadd.f32 %v1372, %v1456
    %v1487 = vadd.f32 %v1373, %v1457
    %v1488 = vadd.f32 %v1374, %v1458
    %v1489 = vadd.f32 %v1375, %v1459
    %v1490 = vadd.f32 %v1376, %v1460
    %v1491 = vadd.f32 %v1377, %v1437
    %v1492 = vadd.f32 %v1378, %v1461
    %v1493 = vadd.f32 %v1379, %v1462
    %v1494 = vadd.f32 %v1380, %v1463
    %v1495 = vadd.f32 %v1381, %v1464
    %v1496 = vadd.f32 %v1382, %v1465
    %v1497 = vadd.f32 %v1383, %v1466
    %v1498 = vadd.f32 %v1384, %v1467
    %v1499 = vadd.f32 %v1385, %v1453
    %v1500 = vadd.f32 %v1484, %v1485
    %v1501 = vadd.f32 %v1500, %v1486
    %v1502 = vadd.f32 %v1501, %v1487
    %v1503 = vadd.f32 %v1502, %v1488
    %v1504 = vadd.f32 %v1503, %v1489
    %v1505 = vadd.f32 %v1504, %v1490
    %v1506 = vsel %vm1111, %v1491, 0.0
    %v1507 = vadd.f32 %v1505, %v1506
    %1508 = vadd.xlane.f32.xlu0 %v1507
    %v1509 = vpop.xlane.xlu0 %1508
    %v1510 = vadd.f32 %v1492, %v1493
    %v1511 = vadd.f32 %v1510, %v1494
    %v1512 = vadd.f32 %v1511, %v1495
    %v1513 = vadd.f32 %v1512, %v1496
    %v1514 = vadd.f32 %v1513, %v1497
    %v1515 = vadd.f32 %v1514, %v1498
    %v1516 = vsel %vm1111, %v1499, 0.0
    %v1517 = vadd.f32 %v1515, %v1516
    %1518 = vadd.xlane.f32.xlu0 %v1517
    %v1519 = vpop.xlane.xlu0 %1518
    %v1520 = vadd.f32 %v1509, %v1519
    %v1521 = vmul.f32 %v1484, %v1484
    %v1522 = vmul.f32 %v1485, %v1485
    %v1523 = vmul.f32 %v1486, %v1486
    %v1524 = vmul.f32 %v1487, %v1487
    %v1525 = vmul.f32 %v1488, %v1488
    %v1526 = vmul.f32 %v1489, %v1489
    %v1527 = vmul.f32 %v1490, %v1490
    %v1528 = vmul.f32 %v1491, %v1491
    %v1529 = vmul.f32 %v1492, %v1492
    %v1530 = vmul.f32 %v1493, %v1493
    %v1531 = vmul.f32 %v1494, %v1494
    %v1532 = vmul.f32 %v1495, %v1495
    %v1533 = vmul.f32 %v1496, %v1496
    %v1534 = vmul.f32 %v1497, %v1497
    %v1535 = vmul.f32 %v1498, %v1498
    %v1536 = vmul.f32 %v1499, %v1499
    %v1537 = vadd.f32 %v1521, %v1522
    %v1538 = vadd.f32 %v1537, %v1523
    %v1539 = vadd.f32 %v1538, %v1524
    %v1540 = vadd.f32 %v1539, %v1525
    %v1541 = vadd.f32 %v1540, %v1526
    %v1542 = vadd.f32 %v1541, %v1527
    %v1543 = vsel %vm1111, %v1528, 0.0
    %v1544 = vadd.f32 %v1542, %v1543
    %1545 = vadd.xlane.f32.xlu0 %v1544
    %v1546 = vpop.xlane.xlu0 %1545
    %v1547 = vadd.f32 %v1529, %v1530
    %v1548 = vadd.f32 %v1547, %v1531
    %v1549 = vadd.f32 %v1548, %v1532
    %v1550 = vadd.f32 %v1549, %v1533
    %v1551 = vadd.f32 %v1550, %v1534
    %v1552 = vadd.f32 %v1551, %v1535
    %v1553 = vsel %vm1111, %v1536, 0.0
    %v1554 = vadd.f32 %v1552, %v1553
    %1555 = vadd.xlane.f32.xlu0 %v1554
    %v1556 = vpop.xlane.xlu0 %1555
    %v1557 = vadd.f32 %v1546, %v1556
    %v1558 = vrcp.pop 2046.0
    %v1559 = vmul.f32 %v1520, %v1558
    %v1560 = vmul.f32 %v1557, %v1558
    %v1561 = vmul.f32 %v1559, %v1559
    %v1562 = vsub.f32 %v1560, %v1561
    %v1563 = vmax.f32 %v1562, 0.0
    %v1564 = vadd.f32 %v1563, 1e-05
    %v1565 = vrsqrt.pop %v1564
    %v1566 = vmul.f32 %v72, %v1565
    %v1567 = vmul.f32 %v1559, %v1566
    %v1568 = vsub.f32 %v73, %v1567
    %1570 = vset.pattern.permute.xlu0 0
    %1571 = vperm.xlu0 %1570, %v1566
    %v1572 = vpop.permute.xlu0 %1571
    %v1574 = vmul.f32 %v1484, %v1572
    %v1575 = vmul.f32 %v1485, %v1572
    %v1576 = vmul.f32 %v1486, %v1572
    %v1577 = vmul.f32 %v1487, %v1572
    %v1578 = vmul.f32 %v1488, %v1572
    %v1579 = vmul.f32 %v1489, %v1572
    %v1580 = vmul.f32 %v1490, %v1572
    %v1581 = vmul.f32 %v1491, %v1572
    %v1582 = vmul.f32 %v1492, %v1572
    %v1583 = vmul.f32 %v1493, %v1572
    %v1584 = vmul.f32 %v1494, %v1572
    %v1585 = vmul.f32 %v1495, %v1572
    %v1586 = vmul.f32 %v1496, %v1572
    %v1587 = vmul.f32 %v1497, %v1572
    %v1588 = vmul.f32 %v1498, %v1572
    %v1589 = vmul.f32 %v1499, %v1572
    %1591 = vset.pattern.permute.xlu0 0
    %1592 = vperm.xlu0 %1591, %v1568
    %v1593 = vpop.permute.xlu0 %1592
    %v1595 = vadd.f32 %v1574, %v1593
    %v1596 = vadd.f32 %v1575, %v1593
    %v1597 = vadd.f32 %v1576, %v1593
    %v1598 = vadd.f32 %v1577, %v1593
    %v1599 = vadd.f32 %v1578, %v1593
    %v1600 = vadd.f32 %v1579, %v1593
    %v1601 = vadd.f32 %v1580, %v1593
    %v1602 = vadd.f32 %v1581, %v1593
    %v1603 = vadd.f32 %v1582, %v1593
    %v1604 = vadd.f32 %v1583, %v1593
    %v1605 = vadd.f32 %v1584, %v1593
    %v1606 = vadd.f32 %v1585, %v1593
    %v1607 = vadd.f32 %v1586, %v1593
    %v1608 = vadd.f32 %v1587, %v1593
    %v1609 = vadd.f32 %v1588, %v1593
    %v1610 = vadd.f32 %v1589, %v1593
    %v1611 = vmax.f32 %v1595, 0.0
    %v1612 = vmax.f32 %v1596, 0.0
    %v1613 = vmax.f32 %v1597, 0.0
    %v1614 = vmax.f32 %v1598, 0.0
    %v1615 = vmax.f32 %v1599, 0.0
    %v1616 = vmax.f32 %v1600, 0.0
    %v1617 = vmax.f32 %v1601, 0.0
    %v1618 = vmax.f32 %v1602, 0.0
    %v1619 = vmax.f32 %v1603, 0.0
    %v1620 = vmax.f32 %v1604, 0.0
    %v1621 = vmax.f32 %v1605, 0.0
    %v1622 = vmax.f32 %v1606, 0.0
    %v1623 = vmax.f32 %v1607, 0.0
    %v1624 = vmax.f32 %v1608, 0.0
    %v1625 = vmax.f32 %v1609, 0.0
    %v1626 = vmax.f32 %v1610, 0.0
    %1643 = vrot.lane.b32.xlu0 %v1611, 127
    %v1644 = vpop.permute.xlu0 %1643
    %1645 = vrot.lane.b32.xlu0 %v1612, 127
    %v1646 = vpop.permute.xlu0 %1645
    %1647 = vrot.lane.b32.xlu0 %v1613, 127
    %v1648 = vpop.permute.xlu0 %1647
    %1649 = vrot.lane.b32.xlu0 %v1614, 127
    %v1650 = vpop.permute.xlu0 %1649
    %1651 = vrot.lane.b32.xlu0 %v1615, 127
    %v1652 = vpop.permute.xlu0 %1651
    %1653 = vrot.lane.b32.xlu0 %v1616, 127
    %v1654 = vpop.permute.xlu0 %1653
    %1655 = vrot.lane.b32.xlu0 %v1617, 127
    %v1656 = vpop.permute.xlu0 %1655
    %1657 = vrot.lane.b32.xlu0 %v1618, 127
    %v1658 = vpop.permute.xlu0 %1657
    %1659 = vrot.lane.b32.xlu0 %v1619, 127
    %v1660 = vpop.permute.xlu0 %1659
    %1661 = vrot.lane.b32.xlu0 %v1620, 127
    %v1662 = vpop.permute.xlu0 %1661
    %1663 = vrot.lane.b32.xlu0 %v1621, 127
    %v1664 = vpop.permute.xlu0 %1663
    %1665 = vrot.lane.b32.xlu0 %v1622, 127
    %v1666 = vpop.permute.xlu0 %1665
    %1667 = vrot.lane.b32.xlu0 %v1623, 127
    %v1668 = vpop.permute.xlu0 %1667
    %1669 = vrot.lane.b32.xlu0 %v1624, 127
    %v1670 = vpop.permute.xlu0 %1669
    %1671 = vrot.lane.b32.xlu0 %v1625, 127
    %v1672 = vpop.permute.xlu0 %1671
    %1673 = vrot.lane.b32.xlu0 %v1626, 127
    %v1674 = vpop.permute.xlu0 %1673
    %v1675 = vsel %vm1111, %v1644, %v1646
    %v1676 = vsel %vm1111, %v1646, %v1648
    %v1677 = vsel %vm1111, %v1648, %v1650
    %v1678 = vsel %vm1111, %v1650, %v1652
    %v1679 = vsel %vm1111, %v1652, %v1654
    %v1680 = vsel %vm1111, %v1654, %v1656
    %v1681 = vsel %vm1111, %v1656, %v1658
    %v1682 = vsel %vm1111, %v1660, %v1662
    %v1683 = vsel %vm1111, %v1662, %v1664
    %v1684 = vsel %vm1111, %v1664, %v1666
    %v1685 = vsel %vm1111, %v1666, %v1668
    %v1686 = vsel %vm1111, %v1668, %v1670
    %v1687 = vsel %vm1111, %v1670, %v1672
    %v1688 = vsel %vm1111, %v1672, %v1674
    %v1705 = vmax.f32 %v1611, %v1675
    %v1706 = vmax.f32 %v1612, %v1676
    %v1707 = vmax.f32 %v1613, %v1677
    %v1708 = vmax.f32 %v1614, %v1678
    %v1709 = vmax.f32 %v1615, %v1679
    %v1710 = vmax.f32 %v1616, %v1680
    %v1711 = vmax.f32 %v1617, %v1681
    %v1712 = vmax.f32 %v1618, %v1658
    %v1713 = vmax.f32 %v1619, %v1682
    %v1714 = vmax.f32 %v1620, %v1683
    %v1715 = vmax.f32 %v1621, %v1684
    %v1716 = vmax.f32 %v1622, %v1685
    %v1717 = vmax.f32 %v1623, %v1686
    %v1718 = vmax.f32 %v1624, %v1687
    %v1719 = vmax.f32 %v1625, %v1688
    %v1720 = vmax.f32 %v1626, %v1674
    %1721 = vrot.lane.b32.xlu0 %v1611, 126
    %v1722 = vpop.permute.xlu0 %1721
    %1723 = vrot.lane.b32.xlu0 %v1612, 126
    %v1724 = vpop.permute.xlu0 %1723
    %1725 = vrot.lane.b32.xlu0 %v1613, 126
    %v1726 = vpop.permute.xlu0 %1725
    %1727 = vrot.lane.b32.xlu0 %v1614, 126
    %v1728 = vpop.permute.xlu0 %1727
    %1729 = vrot.lane.b32.xlu0 %v1615, 126
    %v1730 = vpop.permute.xlu0 %1729
    %1731 = vrot.lane.b32.xlu0 %v1616, 126
    %v1732 = vpop.permute.xlu0 %1731
    %1733 = vrot.lane.b32.xlu0 %v1617, 126
    %v1734 = vpop.permute.xlu0 %1733
    %1735 = vrot.lane.b32.xlu0 %v1618, 126
    %v1736 = vpop.permute.xlu0 %1735
    %1737 = vrot.lane.b32.xlu0 %v1619, 126
    %v1738 = vpop.permute.xlu0 %1737
    %1739 = vrot.lane.b32.xlu0 %v1620, 126
    %v1740 = vpop.permute.xlu0 %1739
    %1741 = vrot.lane.b32.xlu0 %v1621, 126
    %v1742 = vpop.permute.xlu0 %1741
    %1743 = vrot.lane.b32.xlu0 %v1622, 126
    %v1744 = vpop.permute.xlu0 %1743
    %1745 = vrot.lane.b32.xlu0 %v1623, 126
    %v1746 = vpop.permute.xlu0 %1745
    %1747 = vrot.lane.b32.xlu0 %v1624, 126
    %v1748 = vpop.permute.xlu0 %1747
    %1749 = vrot.lane.b32.xlu0 %v1625, 126
    %v1750 = vpop.permute.xlu0 %1749
    %1751 = vrot.lane.b32.xlu0 %v1626, 126
    %v1752 = vpop.permute.xlu0 %1751
    %vm1753 = vcmask 1031168
    %v1754 = vsel %vm1753, %v1722, %v1724
    %v1755 = vsel %vm1753, %v1724, %v1726
    %v1756 = vsel %vm1753, %v1726, %v1728
    %v1757 = vsel %vm1753, %v1728, %v1730
    %v1758 = vsel %vm1753, %v1730, %v1732
    %v1759 = vsel %vm1753, %v1732, %v1734
    %v1760 = vsel %vm1753, %v1734, %v1736
    %v1761 = vsel %vm1753, %v1738, %v1740
    %v1762 = vsel %vm1753, %v1740, %v1742
    %v1763 = vsel %vm1753, %v1742, %v1744
    %v1764 = vsel %vm1753, %v1744, %v1746
    %v1765 = vsel %vm1753, %v1746, %v1748
    %v1766 = vsel %vm1753, %v1748, %v1750
    %v1767 = vsel %vm1753, %v1750, %v1752
    %v1784 = vmax.f32 %v1705, %v1754
    %v1785 = vmax.f32 %v1706, %v1755
    %v1786 = vmax.f32 %v1707, %v1756
    %v1787 = vmax.f32 %v1708, %v1757
    %v1788 = vmax.f32 %v1709, %v1758
    %v1789 = vmax.f32 %v1710, %v1759
    %v1790 = vmax.f32 %v1711, %v1760
    %v1791 = vmax.f32 %v1712, %v1736
    %v1792 = vmax.f32 %v1713, %v1761
    %v1793 = vmax.f32 %v1714, %v1762
    %v1794 = vmax.f32 %v1715, %v1763
    %v1795 = vmax.f32 %v1716, %v1764
    %v1796 = vmax.f32 %v1717, %v1765
    %v1797 = vmax.f32 %v1718, %v1766
    %v1798 = vmax.f32 %v1719, %v1767
    %v1799 = vmax.f32 %v1720, %v1752
    %1800 = vrot.lane.b32.xlu0 %v1611, 125
    %v1801 = vpop.permute.xlu0 %1800
    %1802 = vrot.lane.b32.xlu0 %v1612, 125
    %v1803 = vpop.permute.xlu0 %1802
    %1804 = vrot.lane.b32.xlu0 %v1613, 125
    %v1805 = vpop.permute.xlu0 %1804
    %1806 = vrot.lane.b32.xlu0 %v1614, 125
    %v1807 = vpop.permute.xlu0 %1806
    %1808 = vrot.lane.b32.xlu0 %v1615, 125
    %v1809 = vpop.permute.xlu0 %1808
    %1810 = vrot.lane.b32.xlu0 %v1616, 125
    %v1811 = vpop.permute.xlu0 %1810
    %1812 = vrot.lane.b32.xlu0 %v1617, 125
    %v1813 = vpop.permute.xlu0 %1812
    %1814 = vrot.lane.b32.xlu0 %v1618, 125
    %v1815 = vpop.permute.xlu0 %1814
    %1816 = vrot.lane.b32.xlu0 %v1619, 125
    %v1817 = vpop.permute.xlu0 %1816
    %1818 = vrot.lane.b32.xlu0 %v1620, 125
    %v1819 = vpop.permute.xlu0 %1818
    %1820 = vrot.lane.b32.xlu0 %v1621, 125
    %v1821 = vpop.permute.xlu0 %1820
    %1822 = vrot.lane.b32.xlu0 %v1622, 125
    %v1823 = vpop.permute.xlu0 %1822
    %1824 = vrot.lane.b32.xlu0 %v1623, 125
    %v1825 = vpop.permute.xlu0 %1824
    %1826 = vrot.lane.b32.xlu0 %v1624, 125
    %v1827 = vpop.permute.xlu0 %1826
    %1828 = vrot.lane.b32.xlu0 %v1625, 125
    %v1829 = vpop.permute.xlu0 %1828
    %1830 = vrot.lane.b32.xlu0 %v1626, 125
    %v1831 = vpop.permute.xlu0 %1830
    %vm1832 = vcmask 1022976
    %v1833 = vsel %vm1832, %v1801, %v1803
    %v1834 = vsel %vm1832, %v1803, %v1805
    %v1835 = vsel %vm1832, %v1805, %v1807
    %v1836 = vsel %vm1832, %v1807, %v1809
    %v1837 = vsel %vm1832, %v1809, %v1811
    %v1838 = vsel %vm1832, %v1811, %v1813
    %v1839 = vsel %vm1832, %v1813, %v1815
    %v1840 = vsel %vm1832, %v1817, %v1819
    %v1841 = vsel %vm1832, %v1819, %v1821
    %v1842 = vsel %vm1832, %v1821, %v1823
    %v1843 = vsel %vm1832, %v1823, %v1825
    %v1844 = vsel %vm1832, %v1825, %v1827
    %v1845 = vsel %vm1832, %v1827, %v1829
    %v1846 = vsel %vm1832, %v1829, %v1831
    %v1863 = vmax.f32 %v1784, %v1833
    %v1864 = vmax.f32 %v1785, %v1834
    %v1865 = vmax.f32 %v1786, %v1835
    %v1866 = vmax.f32 %v1787, %v1836
    %v1867 = vmax.f32 %v1788, %v1837
    %v1868 = vmax.f32 %v1789, %v1838
    %v1869 = vmax.f32 %v1790, %v1839
    %v1870 = vmax.f32 %v1791, %v1815
    %v1871 = vmax.f32 %v1792, %v1840
    %v1872 = vmax.f32 %v1793, %v1841
    %v1873 = vmax.f32 %v1794, %v1842
    %v1874 = vmax.f32 %v1795, %v1843
    %v1875 = vmax.f32 %v1796, %v1844
    %v1876 = vmax.f32 %v1797, %v1845
    %v1877 = vmax.f32 %v1798, %v1846
    %v1878 = vmax.f32 %v1799, %v1831
    %vm1879 = vcmask 1014784
    %v1881 = vsel %vm1879, %v1870, 0
    %v1884 = vsel %vm1879, %v1878, 0
    %vm1886 = vcmask 1043456
    %v1888 = vsel %vm1886, %v328, 0
    %v1891 = vsel %vm1886, %v329, 0
    %1893 = vmatprep.subr.mxu0 %v75
    %1894 = vmatpush1.msra.mxu0 %v74
    %1895 = vmatprep.subr.mxu0 %v77
    %1896 = vmatpush1.msra.mxu0 %v76
    %1897 = vmatprep.subr.mxu0 %v79
    %1898 = vmatpush1.msra.mxu0 %v78
    %1899 = vmatprep.subr.mxu0 %v81
    %1900 = vmatpush1.msra.mxu0 %v80
    %1901 = vmatprep.subr.mxu0 %v83
    %1902 = vmatpush1.msra.mxu0 %v82
    %1903 = vmatprep.subr.mxu0 %v85
    %1904 = vmatpush1.msra.mxu0 %v84
    %1905 = vmatprep.subr.mxu0 %v87
    %1906 = vmatpush1.msra.mxu0 %v86
    %1907 = vmatprep.subr.mxu0 %v89
    %1908 = vmatpush1.msra.mxu0 %v88
    %1909 = vmatprep.subr.mxu0 %v91
    %1910 = vmatpush1.msra.mxu0 %v90
    %1911 = vmatprep.subr.mxu0 %v93
    %1912 = vmatpush1.msra.mxu0 %v92
    %1913 = vmatprep.subr.mxu0 %v95
    %1914 = vmatpush1.msra.mxu0 %v94
    %1915 = vmatprep.subr.mxu0 %v97
    %1916 = vmatpush1.msra.mxu0 %v96
    %1917 = vmatprep.subr.mxu0 %v99
    %1918 = vmatpush1.msra.mxu0 %v98
    %1919 = vmatprep.subr.mxu0 %v101
    %1920 = vmatpush1.msra.mxu0 %v100
    %1921 = vmatprep.subr.mxu0 %v103
    %1922 = vmatpush1.msra.mxu0 %v102
    %1923 = vmatprep.subr.mxu0 %v105
    %1924 = vmatpush1.msra.mxu0 %v104
    %1925 = vmatprep.subr.mxu0 %v107
    %1926 = vmatpush1.msra.mxu0 %v106
    %1927 = vmatprep.subr.mxu0 %v109
    %1928 = vmatpush1.msra.mxu0 %v108
    %1929 = vmatprep.subr.mxu0 %v111
    %1930 = vmatpush1.msra.mxu0 %v110
    %1931 = vmatprep.subr.mxu0 %v113
    %1932 = vmatpush1.msra.mxu0 %v112
    %1933 = vmatprep.subr.mxu0 %v115
    %1934 = vmatpush1.msra.mxu0 %v114
    %1935 = vmatprep.subr.mxu0 %v117
    %1936 = vmatpush1.msra.mxu0 %v116
    %1937 = vmatprep.subr.mxu0 %v119
    %1938 = vmatpush1.msra.mxu0 %v118
    %1939 = vmatprep.subr.mxu0 %v121
    %1940 = vmatpush1.msra.mxu0 %v120
    %1941 = vmatprep.subr.mxu0 %v123
    %1942 = vmatpush1.msra.mxu0 %v122
    %1943 = vmatprep.subr.mxu0 %v125
    %1944 = vmatpush1.msra.mxu0 %v124
    %1945 = vmatprep.subr.mxu0 %v127
    %1946 = vmatpush1.msra.mxu0 %v126
    %1947 = vmatprep.subr.mxu0 %v129
    %1948 = vmatpush1.msra.mxu0 %v128
    %1949 = vmatprep.subr.mxu0 %v131
    %1950 = vmatpush1.msra.mxu0 %v130
    %1951 = vmatprep.subr.mxu0 %v133
    %1952 = vmatpush1.msra.mxu0 %v132
    %1953 = vmatprep.subr.mxu0 %v135
    %1954 = vmatpush1.msra.mxu0 %v134
    %1955 = vmatprep.subr.mxu0 %v137
    %1956 = vmatpush1.msra.mxu0 %v136
    %1957 = vmatprep.mubr.f32.mxu0 %v1864
    %1958 = vmatmul.mubr.f32.gmra.mrb[0].mxu0 %v1863
    %v1959 = vpop.f32.mrb[0].mxu0
    %v1960 = vadd.f32 0.0, %v1959
    %v1961 = vpop.f32.mrb[0].mxu0
    %v1962 = vadd.f32 0.0, %v1961
    %1963 = vmatprep.mubr.f32.mxu0 %v1872
    %1964 = vmatmul.mubr.f32.gmra.mrb[0].mxu0 %v1871
    %v1965 = vpop.f32.mrb[0].mxu0
    %v1966 = vadd.f32 0.0, %v1965
    %v1967 = vpop.f32.mrb[0].mxu0
    %v1968 = vadd.f32 0.0, %v1967
    %1969 = vdwg.mxu0
    %1970 = vmatprep.subr.mxu0 %v139
    %1971 = vmatpush1.msra.mxu0 %v138
    %1972 = vmatprep.subr.mxu0 %v141
    %1973 = vmatpush1.msra.mxu0 %v140
    %1974 = vmatprep.subr.mxu0 %v143
    %1975 = vmatpush1.msra.mxu0 %v142
    %1976 = vmatprep.subr.mxu0 %v145
    %1977 = vmatpush1.msra.mxu0 %v144
    %1978 = vmatprep.subr.mxu0 %v147
    %1979 = vmatpush1.msra.mxu0 %v146
    %1980 = vmatprep.subr.mxu0 %v149
    %1981 = vmatpush1.msra.mxu0 %v148
    %1982 = vmatprep.subr.mxu0 %v151
    %1983 = vmatpush1.msra.mxu0 %v150
    %1984 = vmatprep.subr.mxu0 %v153
    %1985 = vmatpush1.msra.mxu0 %v152
    %1986 = vmatprep.subr.mxu0 %v155
    %1987 = vmatpush1.msra.mxu0 %v154
    %1988 = vmatprep.subr.mxu0 %v157
    %1989 = vmatpush1.msra.mxu0 %v156
    %1990 = vmatprep.subr.mxu0 %v159
    %1991 = vmatpush1.msra.mxu0 %v158
    %1992 = vmatprep.subr.mxu0 %v161
    %1993 = vmatpush1.msra.mxu0 %v160
    %1994 = vmatprep.subr.mxu0 %v163
    %1995 = vmatpush1.msra.mxu0 %v162
    %1996 = vmatprep.subr.mxu0 %v165
    %1997 = vmatpush1.msra.mxu0 %v164
    %1998 = vmatprep.subr.mxu0 %v167
    %1999 = vmatpush1.msra.mxu0 %v166
    %2000 = vmatprep.subr.mxu0 %v169
    %2001 = vmatpush1.msra.mxu0 %v168
    %2002 = vmatprep.subr.mxu0 %v171
    %2003 = vmatpush1.msra.mxu0 %v170
    %2004 = vmatprep.subr.mxu0 %v173
    %2005 = vmatpush1.msra.mxu0 %v172
    %2006 = vmatprep.subr.mxu0 %v175
    %2007 = vmatpush1.msra.mxu0 %v174
    %2008 = vmatprep.subr.mxu0 %v177
    %2009 = vmatpush1.msra.mxu0 %v176
    %2010 = vmatprep.subr.mxu0 %v179
    %2011 = vmatpush1.msra.mxu0 %v178
    %2012 = vmatprep.subr.mxu0 %v181
    %2013 = vmatpush1.msra.mxu0 %v180
    %2014 = vmatprep.subr.mxu0 %v183
    %2015 = vmatpush1.msra.mxu0 %v182
    %2016 = vmatprep.subr.mxu0 %v185
    %2017 = vmatpush1.msra.mxu0 %v184
    %2018 = vmatprep.subr.mxu0 %v187
    %2019 = vmatpush1.msra.mxu0 %v186
    %2020 = vmatprep.subr.mxu0 %v189
    %2021 = vmatpush1.msra.mxu0 %v188
    %2022 = vmatprep.subr.mxu0 %v191
    %2023 = vmatpush1.msra.mxu0 %v190
    %2024 = vmatprep.subr.mxu0 %v193
    %2025 = vmatpush1.msra.mxu0 %v192
    %2026 = vmatprep.subr.mxu0 %v195
    %2027 = vmatpush1.msra.mxu0 %v194
    %2028 = vmatprep.subr.mxu0 %v197
    %2029 = vmatpush1.msra.mxu0 %v196
    %2030 = vmatprep.subr.mxu0 %v199
    %2031 = vmatpush1.msra.mxu0 %v198
    %2032 = vmatprep.subr.mxu0 %v201
    %2033 = vmatpush1.msra.mxu0 %v200
    %2034 = vmatprep.mubr.f32.mxu0 %v1866
    %2035 = vmatmul.mubr.f32.gmra.mrb[0].mxu0 %v1865
    %v2036 = vpop.f32.mrb[0].mxu0
    %v2037 = vadd.f32 %v1960, %v2036
    %v2038 = vpop.f32.mrb[0].mxu0
    %v2039 = vadd.f32 %v1962, %v2038
    %2040 = vmatprep.mubr.f32.mxu0 %v1874
    %2041 = vmatmul.mubr.f32.gmra.mrb[0].mxu0 %v1873
    %v2042 = vpop.f32.mrb[0].mxu0
    %v2043 = vadd.f32 %v1966, %v2042
    %v2044 = vpop.f32.mrb[0].mxu0
    %v2045 = vadd.f32 %v1968, %v2044
    %2046 = vdwg.mxu0
    %2047 = vmatprep.subr.mxu0 %v203
    %2048 = vmatpush1.msra.mxu0 %v202
    %2049 = vmatprep.subr.mxu0 %v205
    %2050 = vmatpush1.msra.mxu0 %v204
    %2051 = vmatprep.subr.mxu0 %v207
    %2052 = vmatpush1.msra.mxu0 %v206
    %2053 = vmatprep.subr.mxu0 %v209
    %2054 = vmatpush1.msra.mxu0 %v208
    %2055 = vmatprep.subr.mxu0 %v211
    %2056 = vmatpush1.msra.mxu0 %v210
    %2057 = vmatprep.subr.mxu0 %v213
    %2058 = vmatpush1.msra.mxu0 %v212
    %2059 = vmatprep.subr.mxu0 %v215
    %2060 = vmatpush1.msra.mxu0 %v214
    %2061 = vmatprep.subr.mxu0 %v217
    %2062 = vmatpush1.msra.mxu0 %v216
    %2063 = vmatprep.subr.mxu0 %v219
    %2064 = vmatpush1.msra.mxu0 %v218
    %2065 = vmatprep.subr.mxu0 %v221
    %2066 = vmatpush1.msra.mxu0 %v220
    %2067 = vmatprep.subr.mxu0 %v223
    %2068 = vmatpush1.msra.mxu0 %v222
    %2069 = vmatprep.subr.mxu0 %v225
    %2070 = vmatpush1.msra.mxu0 %v224
    %2071 = vmatprep.subr.mxu0 %v227
    %2072 = vmatpush1.msra.mxu0 %v226
    %2073 = vmatprep.subr.mxu0 %v229
    %2074 = vmatpush1.msra.mxu0 %v228
    %2075 = vmatprep.subr.mxu0 %v231
    %2076 = vmatpush1.msra.mxu0 %v230
    %2077 = vmatprep.subr.mxu0 %v233
    %2078 = vmatpush1.msra.mxu0 %v232
    %2079 = vmatprep.subr.mxu0 %v235
    %2080 = vmatpush1.msra.mxu0 %v234
    %2081 = vmatprep.subr.mxu0 %v237
    %2082 = vmatpush1.msra.mxu0 %v236
    %2083 = vmatprep.subr.mxu0 %v239
    %2084 = vmatpush1.msra.mxu0 %v238
    %2085 = vmatprep.subr.mxu0 %v241
    %2086 = vmatpush1.msra.mxu0 %v240
    %2087 = vmatprep.subr.mxu0 %v243
    %2088 = vmatpush1.msra.mxu0 %v242
    %2089 = vmatprep.subr.mxu0 %v245
    %2090 = vmatpush1.msra.mxu0 %v244
    %2091 = vmatprep.subr.mxu0 %v247
    %2092 = vmatpush1.msra.mxu0 %v246
    %2093 = vmatprep.subr.mxu0 %v249
    %2094 = vmatpush1.msra.mxu0 %v248
    %2095 = vmatprep.subr.mxu0 %v251
    %2096 = vmatpush1.msra.mxu0 %v250
    %2097 = vmatprep.subr.mxu0 %v253
    %2098 = vmatpush1.msra.mxu0 %v252
    %2099 = vmatprep.subr.mxu0 %v255
    %2100 = vmatpush1.msra.mxu0 %v254
    %2101 = vmatprep.subr.mxu0 %v257
    %2102 = vmatpush1.msra.mxu0 %v256
    %2103 = vmatprep.subr.mxu0 %v259
    %2104 = vmatpush1.msra.mxu0 %v258
    %2105 = vmatprep.subr.mxu0 %v261
    %2106 = vmatpush1.msra.mxu0 %v260
    %2107 = vmatprep.subr.mxu0 %v263
    %2108 = vmatpush1.msra.mxu0 %v262
    %2109 = vmatprep.subr.mxu0 %v265
    %2110 = vmatpush1.msra.mxu0 %v264
    %2111 = vmatprep.mubr.f32.mxu0 %v1868
    %2112 = vmatmul.mubr.f32.gmra.mrb[0].mxu0 %v1867
    %v2113 = vpop.f32.mrb[0].mxu0
    %v2114 = vadd.f32 %v2037, %v2113
    %v2115 = vpop.f32.mrb[0].mxu0
    %v2116 = vadd.f32 %v2039, %v2115
    %2117 = vmatprep.mubr.f32.mxu0 %v1876
    %2118 = vmatmul.mubr.f32.gmra.mrb[0].mxu0 %v1875
    %v2119 = vpop.f32.mrb[0].mxu0
    %v2120 = vadd.f32 %v2043, %v2119
    %v2121 = vpop.f32.mrb[0].mxu0
    %v2122 = vadd.f32 %v2045, %v2121
    %2123 = vdwg.mxu0
    %2124 = vmatprep.subr.mxu0 %v267
    %2125 = vmatpush1.msra.mxu0 %v266
    %2126 = vmatprep.subr.mxu0 %v269
    %2127 = vmatpush1.msra.mxu0 %v268
    %2128 = vmatprep.subr.mxu0 %v271
    %2129 = vmatpush1.msra.mxu0 %v270
    %2130 = vmatprep.subr.mxu0 %v273
    %2131 = vmatpush1.msra.mxu0 %v272
    %2132 = vmatprep.subr.mxu0 %v275
    %2133 = vmatpush1.msra.mxu0 %v274
    %2134 = vmatprep.subr.mxu0 %v277
    %2135 = vmatpush1.msra.mxu0 %v276
    %2136 = vmatprep.subr.mxu0 %v279
    %2137 = vmatpush1.msra.mxu0 %v278
    %2138 = vmatprep.subr.mxu0 %v281
    %2139 = vmatpush1.msra.mxu0 %v280
    %2140 = vmatprep.subr.mxu0 %v283
    %2141 = vmatpush1.msra.mxu0 %v282
    %2142 = vmatprep.subr.mxu0 %v285
    %2143 = vmatpush1.msra.mxu0 %v284
    %2144 = vmatprep.subr.mxu0 %v287
    %2145 = vmatpush1.msra.mxu0 %v286
    %2146 = vmatprep.subr.mxu0 %v289
    %2147 = vmatpush1.msra.mxu0 %v288
    %2148 = vmatprep.subr.mxu0 %v291
    %2149 = vmatpush1.msra.mxu0 %v290
    %2150 = vmatprep.subr.mxu0 %v293
    %2151 = vmatpush1.msra.mxu0 %v292
    %2152 = vmatprep.subr.mxu0 %v295
    %2153 = vmatpush1.msra.mxu0 %v294
    %2154 = vmatprep.subr.mxu0 %v297
    %2155 = vmatpush1.msra.mxu0 %v296
    %2156 = vmatprep.subr.mxu0 %v299
    %2157 = vmatpush1.msra.mxu0 %v298
    %2158 = vmatprep.subr.mxu0 %v301
    %2159 = vmatpush1.msra.mxu0 %v300
    %2160 = vmatprep.subr.mxu0 %v303
    %2161 = vmatpush1.msra.mxu0 %v302
    %2162 = vmatprep.subr.mxu0 %v305
    %2163 = vmatpush1.msra.mxu0 %v304
    %2164 = vmatprep.subr.mxu0 %v307
    %2165 = vmatpush1.msra.mxu0 %v306
    %2166 = vmatprep.subr.mxu0 %v309
    %2167 = vmatpush1.msra.mxu0 %v308
    %2168 = vmatprep.subr.mxu0 %v311
    %2169 = vmatpush1.msra.mxu0 %v310
    %2170 = vmatprep.subr.mxu0 %v313
    %2171 = vmatpush1.msra.mxu0 %v312
    %2172 = vmatprep.subr.mxu0 %v315
    %2173 = vmatpush1.msra.mxu0 %v314
    %2174 = vmatprep.subr.mxu0 %v317
    %2175 = vmatpush1.msra.mxu0 %v316
    %2176 = vmatprep.subr.mxu0 %v319
    %2177 = vmatpush1.msra.mxu0 %v318
    %2178 = vmatprep.subr.mxu0 %v321
    %2179 = vmatpush1.msra.mxu0 %v320
    %2180 = vmatprep.subr.mxu0 %v323
    %2181 = vmatpush1.msra.mxu0 %v322
    %2182 = vmatprep.subr.mxu0 %v325
    %2183 = vmatpush1.msra.mxu0 %v324
    %2184 = vmatprep.subr.mxu0 %v327
    %2185 = vmatpush1.msra.mxu0 %v326
    %2186 = vmatprep.subr.mxu0 %v1891
    %2187 = vmatpush1.msra.mxu0 %v1888
    %2188 = vmatprep.mubr.f32.mxu0 %v1881
    %2189 = vmatmul.mubr.f32.gmra.mrb[0].mxu0 %v1869
    %v2190 = vpop.f32.mrb[0].mxu0
    %v2191 = vadd.f32 %v2114, %v2190
    %v2192 = vpop.f32.mrb[0].mxu0
    %v2193 = vadd.f32 %v2116, %v2192
    %2194 = vmatprep.mubr.f32.mxu0 %v1884
    %2195 = vmatmul.mubr.f32.gmra.mrb[0].mxu0 %v1877
    %v2196 = vpop.f32.mrb[0].mxu0
    %v2197 = vadd.f32 %v2120, %v2196
    %v2198 = vpop.f32.mrb[0].mxu0
    %v2199 = vadd.f32 %v2122, %v2198
    %2200 = vdwg.mxu0
    %v2201 = vld [vmem:[%s5] sm:$0xff]
    %v2202 = vld [vmem:[%s6] sm:$0xff]
    %v2203 = vld [vmem:[%s7] sm:$0xff]
    %v2204 = vld [vmem:[%s8] sm:$0xff]
    %v2205 = vld [vmem:[%s8 + $0x8] sm:$0xff]
    %v2206 = vld [vmem:[%s8 + $0x10] sm:$0xff]
    %v2207 = vld [vmem:[%s8 + $0x18] sm:$0xff]
    %v2208 = vld [vmem:[%s8 + $0x20] sm:$0xff]
    %v2209 = vld [vmem:[%s8 + $0x28] sm:$0xff]
    %v2210 = vld [vmem:[%s8 + $0x30] sm:$0xff]
    %v2211 = vld [vmem:[%s8 + $0x38] sm:$0xff]
    %v2212 = vld [vmem:[%s8 + $0x40] sm:$0xff]
    %v2213 = vld [vmem:[%s8 + $0x48] sm:$0xff]
    %v2214 = vld [vmem:[%s8 + $0x50] sm:$0xff]
    %v2215 = vld [vmem:[%s8 + $0x58] sm:$0xff]
    %v2216 = vld [vmem:[%s8 + $0x60] sm:$0xff]
    %v2217 = vld [vmem:[%s8 + $0x68] sm:$0xff]
    %v2218 = vld [vmem:[%s8 + $0x70] sm:$0xff]
    %v2219 = vld [vmem:[%s8 + $0x78] sm:$0xff]
    %v2220 = vld [vmem:[%s8 + $0x80] sm:$0xff]
    %v2221 = vld [vmem:[%s8 + $0x88] sm:$0xff]
    %v2222 = vld [vmem:[%s8 + $0x90] sm:$0xff]
    %v2223 = vld [vmem:[%s8 + $0x98] sm:$0xff]
    %v2224 = vld [vmem:[%s8 + $0xa0] sm:$0xff]
    %v2225 = vld [vmem:[%s8 + $0xa8] sm:$0xff]
    %v2226 = vld [vmem:[%s8 + $0xb0] sm:$0xff]
    %v2227 = vld [vmem:[%s8 + $0xb8] sm:$0xff]
    %v2228 = vld [vmem:[%s8 + $0xc0] sm:$0xff]
    %v2229 = vld [vmem:[%s8 + $0xc8] sm:$0xff]
    %v2230 = vld [vmem:[%s8 + $0xd0] sm:$0xff]
    %v2231 = vld [vmem:[%s8 + $0xd8] sm:$0xff]
    %v2232 = vld [vmem:[%s8 + $0xe0] sm:$0xff]
    %v2233 = vld [vmem:[%s8 + $0xe8] sm:$0xff]
    %v2234 = vld [vmem:[%s8 + $0xf0] sm:$0xff]
    %v2235 = vld [vmem:[%s8 + $0xf8] sm:$0x3]
    %2237 = vset.pattern.permute.xlu0 0
    %2238 = vperm.xlu0 %2237, %v2201
    %v2239 = vpop.permute.xlu0 %2238
    %v2241 = vlaneseq
    %v2242 = vshrl.u32 %v2241, 7
    %v2243 = vsub.s32 0, %v2242
    %v2244 = vrot.slane %v2191, %v2243
    %v2245 = vlaneseq
    %v2246 = vshrl.u32 %v2245, 7
    %v2247 = vsub.s32 0, %v2246
    %v2248 = vrot.slane %v2193, %v2247
    %v2249 = vlaneseq
    %v2250 = vshrl.u32 %v2249, 7
    %v2251 = vsub.s32 0, %v2250
    %v2252 = vrot.slane %v2197, %v2251
    %v2253 = vlaneseq
    %v2254 = vshrl.u32 %v2253, 7
    %v2255 = vsub.s32 0, %v2254
    %v2256 = vrot.slane %v2199, %v2255
    %v2257 = vmul.f32 %v2239, %v2244
    %v2258 = vmul.f32 %v2239, %v2248
    %v2259 = vmul.f32 %v2239, %v2252
    %v2260 = vmul.f32 %v2239, %v2256
    %2261 = vset.pattern.permute.xlu0 1
    %2262 = vperm.xlu0 %2261, %v2201
    %v2263 = vpop.permute.xlu0 %2262
    %v2265 = vmul.f32 %v2263, %v2244
    %v2266 = vmul.f32 %v2263, %v2248
    %v2267 = vmul.f32 %v2263, %v2252
    %v2268 = vmul.f32 %v2263, %v2256
    %2273 = vrot.lane.b32.xlu0 %v2265, 127
    %v2274 = vpop.permute.xlu0 %2273
    %2275 = vrot.lane.b32.xlu0 %v2266, 127
    %v2276 = vpop.permute.xlu0 %2275
    %2277 = vrot.lane.b32.xlu0 %v2267, 127
    %v2278 = vpop.permute.xlu0 %2277
    %2279 = vrot.lane.b32.xlu0 %v2268, 127
    %v2280 = vpop.permute.xlu0 %2279
    %v2281 = vsel %vm1111, %v2274, %v2276
    %v2282 = vsel %vm1111, %v2278, %v2280
    %v2287 = vadd.f32 %v2257, %v2281
    %v2288 = vadd.f32 %v2258, %v2276
    %v2289 = vadd.f32 %v2259, %v2282
    %v2290 = vadd.f32 %v2260, %v2280
    %2291 = vset.pattern.permute.xlu0 2
    %2292 = vperm.xlu0 %2291, %v2201
    %v2293 = vpop.permute.xlu0 %2292
    %v2295 = vmul.f32 %v2293, %v2244
    %v2296 = vmul.f32 %v2293, %v2248
    %v2297 = vmul.f32 %v2293, %v2252
    %v2298 = vmul.f32 %v2293, %v2256
    %2303 = vrot.lane.b32.xlu0 %v2295, 126
    %v2304 = vpop.permute.xlu0 %2303
    %2305 = vrot.lane.b32.xlu0 %v2296, 126
    %v2306 = vpop.permute.xlu0 %2305
    %2307 = vrot.lane.b32.xlu0 %v2297, 126
    %v2308 = vpop.permute.xlu0 %2307
    %2309 = vrot.lane.b32.xlu0 %v2298, 126
    %v2310 = vpop.permute.xlu0 %2309
    %v2311 = vsel %vm1753, %v2304, %v2306
    %v2312 = vsel %vm1753, %v2308, %v2310
    %v2317 = vadd.f32 %v2287, %v2311
    %v2318 = vadd.f32 %v2288, %v2306
    %v2319 = vadd.f32 %v2289, %v2312
    %v2320 = vadd.f32 %v2290, %v2310
    %2321 = vset.pattern.permute.xlu0 3
    %2322 = vperm.xlu0 %2321, %v2201
    %v2323 = vpop.permute.xlu0 %2322
    %v2325 = vlaneseq
    %v2326 = vshrl.u32 %v2325, 7
    %v2327 = vsub.s32 1, %v2326
    %v2328 = vrot.slane %v2191, %v2327
    %v2329 = vlaneseq
    %v2330 = vshrl.u32 %v2329, 7
    %v2331 = vsub.s32 1, %v2330
    %v2332 = vrot.slane %v2193, %v2331
    %v2333 = vlaneseq
    %v2334 = vshrl.u32 %v2333, 7
    %v2335 = vsub.s32 1, %v2334
    %v2336 = vrot.slane %v2197, %v2335
    %v2337 = vlaneseq
    %v2338 = vshrl.u32 %v2337, 7
    %v2339 = vsub.s32 1, %v2338
    %v2340 = vrot.slane %v2199, %v2339
    %v2341 = vmul.f32 %v2323, %v2328
    %v2342 = vmul.f32 %v2323, %v2332
    %v2343 = vmul.f32 %v2323, %v2336
    %v2344 = vmul.f32 %v2323, %v2340
    %v2345 = vadd.f32 %v2317, %v2341
    %v2346 = vadd.f32 %v2318, %v2342
    %v2347 = vadd.f32 %v2319, %v2343
    %v2348 = vadd.f32 %v2320, %v2344
    %2349 = vset.pattern.permute.xlu0 4
    %2350 = vperm.xlu0 %2349, %v2201
    %v2351 = vpop.permute.xlu0 %2350
    %v2353 = vmul.f32 %v2351, %v2328
    %v2354 = vmul.f32 %v2351, %v2332
    %v2355 = vmul.f32 %v2351, %v2336
    %v2356 = vmul.f32 %v2351, %v2340
    %2361 = vrot.lane.b32.xlu0 %v2353, 127
    %v2362 = vpop.permute.xlu0 %2361
    %2363 = vrot.lane.b32.xlu0 %v2354, 127
    %v2364 = vpop.permute.xlu0 %2363
    %2365 = vrot.lane.b32.xlu0 %v2355, 127
    %v2366 = vpop.permute.xlu0 %2365
    %2367 = vrot.lane.b32.xlu0 %v2356, 127
    %v2368 = vpop.permute.xlu0 %2367
    %v2369 = vsel %vm1111, %v2362, %v2364
    %v2370 = vsel %vm1111, %v2366, %v2368
    %v2375 = vadd.f32 %v2345, %v2369
    %v2376 = vadd.f32 %v2346, %v2364
    %v2377 = vadd.f32 %v2347, %v2370
    %v2378 = vadd.f32 %v2348, %v2368
    %2379 = vset.pattern.permute.xlu0 5
    %2380 = vperm.xlu0 %2379, %v2201
    %v2381 = vpop.permute.xlu0 %2380
    %v2383 = vmul.f32 %v2381, %v2328
    %v2384 = vmul.f32 %v2381, %v2332
    %v2385 = vmul.f32 %v2381, %v2336
    %v2386 = vmul.f32 %v2381, %v2340
    %2391 = vrot.lane.b32.xlu0 %v2383, 126
    %v2392 = vpop.permute.xlu0 %2391
    %2393 = vrot.lane.b32.xlu0 %v2384, 126
    %v2394 = vpop.permute.xlu0 %2393
    %2395 = vrot.lane.b32.xlu0 %v2385, 126
    %v2396 = vpop.permute.xlu0 %2395
    %2397 = vrot.lane.b32.xlu0 %v2386, 126
    %v2398 = vpop.permute.xlu0 %2397
    %v2399 = vsel %vm1753, %v2392, %v2394
    %v2400 = vsel %vm1753, %v2396, %v2398
    %v2405 = vadd.f32 %v2375, %v2399
    %v2406 = vadd.f32 %v2376, %v2394
    %v2407 = vadd.f32 %v2377, %v2400
    %v2408 = vadd.f32 %v2378, %v2398
    %2409 = vset.pattern.permute.xlu0 6
    %2410 = vperm.xlu0 %2409, %v2201
    %v2411 = vpop.permute.xlu0 %2410
    %v2413 = vlaneseq
    %v2414 = vshrl.u32 %v2413, 7
    %v2415 = vsub.s32 2, %v2414
    %v2416 = vrot.slane %v2191, %v2415
    %v2417 = vlaneseq
    %v2418 = vshrl.u32 %v2417, 7
    %v2419 = vsub.s32 2, %v2418
    %v2420 = vrot.slane %v2193, %v2419
    %v2421 = vlaneseq
    %v2422 = vshrl.u32 %v2421, 7
    %v2423 = vsub.s32 2, %v2422
    %v2424 = vrot.slane %v2197, %v2423
    %v2425 = vlaneseq
    %v2426 = vshrl.u32 %v2425, 7
    %v2427 = vsub.s32 2, %v2426
    %v2428 = vrot.slane %v2199, %v2427
    %v2429 = vmul.f32 %v2411, %v2416
    %v2430 = vmul.f32 %v2411, %v2420
    %v2431 = vmul.f32 %v2411, %v2424
    %v2432 = vmul.f32 %v2411, %v2428
    %v2433 = vadd.f32 %v2405, %v2429
    %v2434 = vadd.f32 %v2406, %v2430
    %v2435 = vadd.f32 %v2407, %v2431
    %v2436 = vadd.f32 %v2408, %v2432
    %2437 = vset.pattern.permute.xlu0 7
    %2438 = vperm.xlu0 %2437, %v2201
    %v2439 = vpop.permute.xlu0 %2438
    %v2441 = vmul.f32 %v2439, %v2416
    %v2442 = vmul.f32 %v2439, %v2420
    %v2443 = vmul.f32 %v2439, %v2424
    %v2444 = vmul.f32 %v2439, %v2428
    %2449 = vrot.lane.b32.xlu0 %v2441, 127
    %v2450 = vpop.permute.xlu0 %2449
    %2451 = vrot.lane.b32.xlu0 %v2442, 127
    %v2452 = vpop.permute.xlu0 %2451
    %2453 = vrot.lane.b32.xlu0 %v2443, 127
    %v2454 = vpop.permute.xlu0 %2453
    %2455 = vrot.lane.b32.xlu0 %v2444, 127
    %v2456 = vpop.permute.xlu0 %2455
    %v2457 = vsel %vm1111, %v2450, %v2452
    %v2458 = vsel %vm1111, %v2454, %v2456
    %v2463 = vadd.f32 %v2433, %v2457
    %v2464 = vadd.f32 %v2434, %v2452
    %v2465 = vadd.f32 %v2435, %v2458
    %v2466 = vadd.f32 %v2436, %v2456
    %2467 = vset.pattern.permute.xlu0 8
    %2468 = vperm.xlu0 %2467, %v2201
    %v2469 = vpop.permute.xlu0 %2468
    %v2471 = vmul.f32 %v2469, %v2416
    %v2472 = vmul.f32 %v2469, %v2420
    %v2473 = vmul.f32 %v2469, %v2424
    %v2474 = vmul.f32 %v2469, %v2428
    %2479 = vrot.lane.b32.xlu0 %v2471, 126
    %v2480 = vpop.permute.xlu0 %2479
    %2481 = vrot.lane.b32.xlu0 %v2472, 126
    %v2482 = vpop.permute.xlu0 %2481
    %2483 = vrot.lane.b32.xlu0 %v2473, 126
    %v2484 = vpop.permute.xlu0 %2483
    %2485 = vrot.lane.b32.xlu0 %v2474, 126
    %v2486 = vpop.permute.xlu0 %2485
    %v2487 = vsel %vm1753, %v2480, %v2482
    %v2488 = vsel %vm1753, %v2484, %v2486
    %v2493 = vadd.f32 %v2463, %v2487
    %v2494 = vadd.f32 %v2464, %v2482
    %v2495 = vadd.f32 %v2465, %v2488
    %v2496 = vadd.f32 %v2466, %v2486
    %2497 = vset.pattern.permute.xlu0 9
    %2498 = vperm.xlu0 %2497, %v2201
    %v2499 = vpop.permute.xlu0 %2498
    %v2501 = vlaneseq
    %v2502 = vshrl.u32 %v2501, 7
    %v2503 = vsub.s32 3, %v2502
    %v2504 = vrot.slane %v2191, %v2503
    %v2505 = vlaneseq
    %v2506 = vshrl.u32 %v2505, 7
    %v2507 = vsub.s32 3, %v2506
    %v2508 = vrot.slane %v2193, %v2507
    %v2509 = vlaneseq
    %v2510 = vshrl.u32 %v2509, 7
    %v2511 = vsub.s32 3, %v2510
    %v2512 = vrot.slane %v2197, %v2511
    %v2513 = vlaneseq
    %v2514 = vshrl.u32 %v2513, 7
    %v2515 = vsub.s32 3, %v2514
    %v2516 = vrot.slane %v2199, %v2515
    %v2517 = vmul.f32 %v2499, %v2504
    %v2518 = vmul.f32 %v2499, %v2508
    %v2519 = vmul.f32 %v2499, %v2512
    %v2520 = vmul.f32 %v2499, %v2516
    %v2521 = vadd.f32 %v2493, %v2517
    %v2522 = vadd.f32 %v2494, %v2518
    %v2523 = vadd.f32 %v2495, %v2519
    %v2524 = vadd.f32 %v2496, %v2520
    %2525 = vset.pattern.permute.xlu0 10
    %2526 = vperm.xlu0 %2525, %v2201
    %v2527 = vpop.permute.xlu0 %2526
    %v2529 = vmul.f32 %v2527, %v2504
    %v2530 = vmul.f32 %v2527, %v2508
    %v2531 = vmul.f32 %v2527, %v2512
    %v2532 = vmul.f32 %v2527, %v2516
    %2537 = vrot.lane.b32.xlu0 %v2529, 127
    %v2538 = vpop.permute.xlu0 %2537
    %2539 = vrot.lane.b32.xlu0 %v2530, 127
    %v2540 = vpop.permute.xlu0 %2539
    %2541 = vrot.lane.b32.xlu0 %v2531, 127
    %v2542 = vpop.permute.xlu0 %2541
    %2543 = vrot.lane.b32.xlu0 %v2532, 127
    %v2544 = vpop.permute.xlu0 %2543
    %v2545 = vsel %vm1111, %v2538, %v2540
    %v2546 = vsel %vm1111, %v2542, %v2544
    %v2551 = vadd.f32 %v2521, %v2545
    %v2552 = vadd.f32 %v2522, %v2540
    %v2553 = vadd.f32 %v2523, %v2546
    %v2554 = vadd.f32 %v2524, %v2544
    %2555 = vset.pattern.permute.xlu0 11
    %2556 = vperm.xlu0 %2555, %v2201
    %v2557 = vpop.permute.xlu0 %2556
    %v2559 = vmul.f32 %v2557, %v2504
    %v2560 = vmul.f32 %v2557, %v2508
    %v2561 = vmul.f32 %v2557, %v2512
    %v2562 = vmul.f32 %v2557, %v2516
    %2567 = vrot.lane.b32.xlu0 %v2559, 126
    %v2568 = vpop.permute.xlu0 %2567
    %2569 = vrot.lane.b32.xlu0 %v2560, 126
    %v2570 = vpop.permute.xlu0 %2569
    %2571 = vrot.lane.b32.xlu0 %v2561, 126
    %v2572 = vpop.permute.xlu0 %2571
    %2573 = vrot.lane.b32.xlu0 %v2562, 126
    %v2574 = vpop.permute.xlu0 %2573
    %v2575 = vsel %vm1753, %v2568, %v2570
    %v2576 = vsel %vm1753, %v2572, %v2574
    %v2581 = vadd.f32 %v2551, %v2575
    %v2582 = vadd.f32 %v2552, %v2570
    %v2583 = vadd.f32 %v2553, %v2576
    %v2584 = vadd.f32 %v2554, %v2574
    %2585 = vset.pattern.permute.xlu0 12
    %2586 = vperm.xlu0 %2585, %v2201
    %v2587 = vpop.permute.xlu0 %2586
    %v2589 = vlaneseq
    %v2590 = vshrl.u32 %v2589, 7
    %v2591 = vsub.s32 4, %v2590
    %v2592 = vrot.slane %v2191, %v2591
    %v2593 = vlaneseq
    %v2594 = vshrl.u32 %v2593, 7
    %v2595 = vsub.s32 4, %v2594
    %v2596 = vrot.slane %v2193, %v2595
    %v2597 = vlaneseq
    %v2598 = vshrl.u32 %v2597, 7
    %v2599 = vsub.s32 4, %v2598
    %v2600 = vrot.slane %v2197, %v2599
    %v2601 = vlaneseq
    %v2602 = vshrl.u32 %v2601, 7
    %v2603 = vsub.s32 4, %v2602
    %v2604 = vrot.slane %v2199, %v2603
    %v2605 = vmul.f32 %v2587, %v2592
    %v2606 = vmul.f32 %v2587, %v2596
    %v2607 = vmul.f32 %v2587, %v2600
    %v2608 = vmul.f32 %v2587, %v2604
    %v2609 = vadd.f32 %v2581, %v2605
    %v2610 = vadd.f32 %v2582, %v2606
    %v2611 = vadd.f32 %v2583, %v2607
    %v2612 = vadd.f32 %v2584, %v2608
    %2613 = vset.pattern.permute.xlu0 13
    %2614 = vperm.xlu0 %2613, %v2201
    %v2615 = vpop.permute.xlu0 %2614
    %v2617 = vmul.f32 %v2615, %v2592
    %v2618 = vmul.f32 %v2615, %v2596
    %v2619 = vmul.f32 %v2615, %v2600
    %v2620 = vmul.f32 %v2615, %v2604
    %2625 = vrot.lane.b32.xlu0 %v2617, 127
    %v2626 = vpop.permute.xlu0 %2625
    %2627 = vrot.lane.b32.xlu0 %v2618, 127
    %v2628 = vpop.permute.xlu0 %2627
    %2629 = vrot.lane.b32.xlu0 %v2619, 127
    %v2630 = vpop.permute.xlu0 %2629
    %2631 = vrot.lane.b32.xlu0 %v2620, 127
    %v2632 = vpop.permute.xlu0 %2631
    %v2633 = vsel %vm1111, %v2626, %v2628
    %v2634 = vsel %vm1111, %v2630, %v2632
    %v2639 = vadd.f32 %v2609, %v2633
    %v2640 = vadd.f32 %v2610, %v2628
    %v2641 = vadd.f32 %v2611, %v2634
    %v2642 = vadd.f32 %v2612, %v2632
    %2643 = vset.pattern.permute.xlu0 14
    %2644 = vperm.xlu0 %2643, %v2201
    %v2645 = vpop.permute.xlu0 %2644
    %v2647 = vmul.f32 %v2645, %v2592
    %v2648 = vmul.f32 %v2645, %v2596
    %v2649 = vmul.f32 %v2645, %v2600
    %v2650 = vmul.f32 %v2645, %v2604
    %2655 = vrot.lane.b32.xlu0 %v2647, 126
    %v2656 = vpop.permute.xlu0 %2655
    %2657 = vrot.lane.b32.xlu0 %v2648, 126
    %v2658 = vpop.permute.xlu0 %2657
    %2659 = vrot.lane.b32.xlu0 %v2649, 126
    %v2660 = vpop.permute.xlu0 %2659
    %2661 = vrot.lane.b32.xlu0 %v2650, 126
    %v2662 = vpop.permute.xlu0 %2661
    %v2663 = vsel %vm1753, %v2656, %v2658
    %v2664 = vsel %vm1753, %v2660, %v2662
    %v2669 = vadd.f32 %v2639, %v2663
    %v2670 = vadd.f32 %v2640, %v2658
    %v2671 = vadd.f32 %v2641, %v2664
    %v2672 = vadd.f32 %v2642, %v2662
    %2673 = vset.pattern.permute.xlu0 15
    %2674 = vperm.xlu0 %2673, %v2201
    %v2675 = vpop.permute.xlu0 %2674
    %v2677 = vlaneseq
    %v2678 = vshrl.u32 %v2677, 7
    %v2679 = vsub.s32 5, %v2678
    %v2680 = vrot.slane %v2191, %v2679
    %v2681 = vlaneseq
    %v2682 = vshrl.u32 %v2681, 7
    %v2683 = vsub.s32 5, %v2682
    %v2684 = vrot.slane %v2193, %v2683
    %v2685 = vlaneseq
    %v2686 = vshrl.u32 %v2685, 7
    %v2687 = vsub.s32 5, %v2686
    %v2688 = vrot.slane %v2197, %v2687
    %v2689 = vlaneseq
    %v2690 = vshrl.u32 %v2689, 7
    %v2691 = vsub.s32 5, %v2690
    %v2692 = vrot.slane %v2199, %v2691
    %v2693 = vmul.f32 %v2675, %v2680
    %v2694 = vmul.f32 %v2675, %v2684
    %v2695 = vmul.f32 %v2675, %v2688
    %v2696 = vmul.f32 %v2675, %v2692
    %v2697 = vadd.f32 %v2669, %v2693
    %v2698 = vadd.f32 %v2670, %v2694
    %v2699 = vadd.f32 %v2671, %v2695
    %v2700 = vadd.f32 %v2672, %v2696
    %2701 = vset.pattern.permute.xlu0 16
    %2702 = vperm.xlu0 %2701, %v2201
    %v2703 = vpop.permute.xlu0 %2702
    %v2705 = vmul.f32 %v2703, %v2680
    %v2706 = vmul.f32 %v2703, %v2684
    %v2707 = vmul.f32 %v2703, %v2688
    %v2708 = vmul.f32 %v2703, %v2692
    %2713 = vrot.lane.b32.xlu0 %v2705, 127
    %v2714 = vpop.permute.xlu0 %2713
    %2715 = vrot.lane.b32.xlu0 %v2706, 127
    %v2716 = vpop.permute.xlu0 %2715
    %2717 = vrot.lane.b32.xlu0 %v2707, 127
    %v2718 = vpop.permute.xlu0 %2717
    %2719 = vrot.lane.b32.xlu0 %v2708, 127
    %v2720 = vpop.permute.xlu0 %2719
    %v2721 = vsel %vm1111, %v2714, %v2716
    %v2722 = vsel %vm1111, %v2718, %v2720
    %v2727 = vadd.f32 %v2697, %v2721
    %v2728 = vadd.f32 %v2698, %v2716
    %v2729 = vadd.f32 %v2699, %v2722
    %v2730 = vadd.f32 %v2700, %v2720
    %2731 = vset.pattern.permute.xlu0 17
    %2732 = vperm.xlu0 %2731, %v2201
    %v2733 = vpop.permute.xlu0 %2732
    %v2735 = vmul.f32 %v2733, %v2680
    %v2736 = vmul.f32 %v2733, %v2684
    %v2737 = vmul.f32 %v2733, %v2688
    %v2738 = vmul.f32 %v2733, %v2692
    %2743 = vrot.lane.b32.xlu0 %v2735, 126
    %v2744 = vpop.permute.xlu0 %2743
    %2745 = vrot.lane.b32.xlu0 %v2736, 126
    %v2746 = vpop.permute.xlu0 %2745
    %2747 = vrot.lane.b32.xlu0 %v2737, 126
    %v2748 = vpop.permute.xlu0 %2747
    %2749 = vrot.lane.b32.xlu0 %v2738, 126
    %v2750 = vpop.permute.xlu0 %2749
    %v2751 = vsel %vm1753, %v2744, %v2746
    %v2752 = vsel %vm1753, %v2748, %v2750
    %v2757 = vadd.f32 %v2727, %v2751
    %v2758 = vadd.f32 %v2728, %v2746
    %v2759 = vadd.f32 %v2729, %v2752
    %v2760 = vadd.f32 %v2730, %v2750
    %2761 = vset.pattern.permute.xlu0 18
    %2762 = vperm.xlu0 %2761, %v2201
    %v2763 = vpop.permute.xlu0 %2762
    %v2765 = vlaneseq
    %v2766 = vshrl.u32 %v2765, 7
    %v2767 = vsub.s32 6, %v2766
    %v2768 = vrot.slane %v2191, %v2767
    %v2769 = vlaneseq
    %v2770 = vshrl.u32 %v2769, 7
    %v2771 = vsub.s32 6, %v2770
    %v2772 = vrot.slane %v2193, %v2771
    %v2773 = vlaneseq
    %v2774 = vshrl.u32 %v2773, 7
    %v2775 = vsub.s32 6, %v2774
    %v2776 = vrot.slane %v2197, %v2775
    %v2777 = vlaneseq
    %v2778 = vshrl.u32 %v2777, 7
    %v2779 = vsub.s32 6, %v2778
    %v2780 = vrot.slane %v2199, %v2779
    %v2781 = vmul.f32 %v2763, %v2768
    %v2782 = vmul.f32 %v2763, %v2772
    %v2783 = vmul.f32 %v2763, %v2776
    %v2784 = vmul.f32 %v2763, %v2780
    %v2785 = vadd.f32 %v2757, %v2781
    %v2786 = vadd.f32 %v2758, %v2782
    %v2787 = vadd.f32 %v2759, %v2783
    %v2788 = vadd.f32 %v2760, %v2784
    %2789 = vset.pattern.permute.xlu0 19
    %2790 = vperm.xlu0 %2789, %v2201
    %v2791 = vpop.permute.xlu0 %2790
    %v2793 = vmul.f32 %v2791, %v2768
    %v2794 = vmul.f32 %v2791, %v2772
    %v2795 = vmul.f32 %v2791, %v2776
    %v2796 = vmul.f32 %v2791, %v2780
    %2801 = vrot.lane.b32.xlu0 %v2793, 127
    %v2802 = vpop.permute.xlu0 %2801
    %2803 = vrot.lane.b32.xlu0 %v2794, 127
    %v2804 = vpop.permute.xlu0 %2803
    %2805 = vrot.lane.b32.xlu0 %v2795, 127
    %v2806 = vpop.permute.xlu0 %2805
    %2807 = vrot.lane.b32.xlu0 %v2796, 127
    %v2808 = vpop.permute.xlu0 %2807
    %v2809 = vsel %vm1111, %v2802, %v2804
    %v2810 = vsel %vm1111, %v2806, %v2808
    %v2815 = vadd.f32 %v2785, %v2809
    %v2816 = vadd.f32 %v2786, %v2804
    %v2817 = vadd.f32 %v2787, %v2810
    %v2818 = vadd.f32 %v2788, %v2808
    %2819 = vset.pattern.permute.xlu0 20
    %2820 = vperm.xlu0 %2819, %v2201
    %v2821 = vpop.permute.xlu0 %2820
    %v2823 = vmul.f32 %v2821, %v2768
    %v2824 = vmul.f32 %v2821, %v2772
    %v2825 = vmul.f32 %v2821, %v2776
    %v2826 = vmul.f32 %v2821, %v2780
    %2831 = vrot.lane.b32.xlu0 %v2823, 126
    %v2832 = vpop.permute.xlu0 %2831
    %2833 = vrot.lane.b32.xlu0 %v2824, 126
    %v2834 = vpop.permute.xlu0 %2833
    %2835 = vrot.lane.b32.xlu0 %v2825, 126
    %v2836 = vpop.permute.xlu0 %2835
    %2837 = vrot.lane.b32.xlu0 %v2826, 126
    %v2838 = vpop.permute.xlu0 %2837
    %v2839 = vsel %vm1753, %v2832, %v2834
    %v2840 = vsel %vm1753, %v2836, %v2838
    %v2845 = vadd.f32 %v2815, %v2839
    %v2846 = vadd.f32 %v2816, %v2834
    %v2847 = vadd.f32 %v2817, %v2840
    %v2848 = vadd.f32 %v2818, %v2838
    %2849 = vset.pattern.permute.xlu0 21
    %2850 = vperm.xlu0 %2849, %v2201
    %v2851 = vpop.permute.xlu0 %2850
    %v2853 = vlaneseq
    %v2854 = vshrl.u32 %v2853, 7
    %v2855 = vsub.s32 7, %v2854
    %v2856 = vrot.slane %v2191, %v2855
    %v2857 = vlaneseq
    %v2858 = vshrl.u32 %v2857, 7
    %v2859 = vsub.s32 7, %v2858
    %v2860 = vrot.slane %v2193, %v2859
    %v2861 = vlaneseq
    %v2862 = vshrl.u32 %v2861, 7
    %v2863 = vsub.s32 7, %v2862
    %v2864 = vrot.slane %v2197, %v2863
    %v2865 = vlaneseq
    %v2866 = vshrl.u32 %v2865, 7
    %v2867 = vsub.s32 7, %v2866
    %v2868 = vrot.slane %v2199, %v2867
    %v2869 = vmul.f32 %v2851, %v2856
    %v2870 = vmul.f32 %v2851, %v2860
    %v2871 = vmul.f32 %v2851, %v2864
    %v2872 = vmul.f32 %v2851, %v2868
    %v2873 = vadd.f32 %v2845, %v2869
    %v2874 = vadd.f32 %v2846, %v2870
    %v2875 = vadd.f32 %v2847, %v2871
    %v2876 = vadd.f32 %v2848, %v2872
    %2877 = vset.pattern.permute.xlu0 22
    %2878 = vperm.xlu0 %2877, %v2201
    %v2879 = vpop.permute.xlu0 %2878
    %v2881 = vmul.f32 %v2879, %v2856
    %v2882 = vmul.f32 %v2879, %v2860
    %v2883 = vmul.f32 %v2879, %v2864
    %v2884 = vmul.f32 %v2879, %v2868
    %2889 = vrot.lane.b32.xlu0 %v2881, 127
    %v2890 = vpop.permute.xlu0 %2889
    %2891 = vrot.lane.b32.xlu0 %v2882, 127
    %v2892 = vpop.permute.xlu0 %2891
    %2893 = vrot.lane.b32.xlu0 %v2883, 127
    %v2894 = vpop.permute.xlu0 %2893
    %2895 = vrot.lane.b32.xlu0 %v2884, 127
    %v2896 = vpop.permute.xlu0 %2895
    %v2897 = vsel %vm1111, %v2890, %v2892
    %v2898 = vsel %vm1111, %v2894, %v2896
    %v2903 = vadd.f32 %v2873, %v2897
    %v2904 = vadd.f32 %v2874, %v2892
    %v2905 = vadd.f32 %v2875, %v2898
    %v2906 = vadd.f32 %v2876, %v2896
    %2907 = vset.pattern.permute.xlu0 23
    %2908 = vperm.xlu0 %2907, %v2201
    %v2909 = vpop.permute.xlu0 %2908
    %v2911 = vmul.f32 %v2909, %v2856
    %v2912 = vmul.f32 %v2909, %v2860
    %v2913 = vmul.f32 %v2909, %v2864
    %v2914 = vmul.f32 %v2909, %v2868
    %2919 = vrot.lane.b32.xlu0 %v2911, 126
    %v2920 = vpop.permute.xlu0 %2919
    %2921 = vrot.lane.b32.xlu0 %v2912, 126
    %v2922 = vpop.permute.xlu0 %2921
    %2923 = vrot.lane.b32.xlu0 %v2913, 126
    %v2924 = vpop.permute.xlu0 %2923
    %2925 = vrot.lane.b32.xlu0 %v2914, 126
    %v2926 = vpop.permute.xlu0 %2925
    %v2927 = vsel %vm1753, %v2920, %v2922
    %v2928 = vsel %vm1753, %v2924, %v2926
    %v2933 = vadd.f32 %v2903, %v2927
    %v2934 = vadd.f32 %v2904, %v2922
    %v2935 = vadd.f32 %v2905, %v2928
    %v2936 = vadd.f32 %v2906, %v2926
    %v2937 = vsel %vm1832, %v2934, 0.0
    %v2938 = vadd.f32 %v2933, %v2937
    %2939 = vadd.xlane.f32.xlu0 %v2938
    %v2940 = vpop.xlane.xlu0 %2939
    %v2941 = vsel %vm1832, %v2936, 0.0
    %v2942 = vadd.f32 %v2935, %v2941
    %2943 = vadd.xlane.f32.xlu0 %v2942
    %v2944 = vpop.xlane.xlu0 %2943
    %v2945 = vadd.f32 %v2940, %v2944
    %v2946 = vmul.f32 %v2933, %v2933
    %v2947 = vmul.f32 %v2934, %v2934
    %v2948 = vmul.f32 %v2935, %v2935
    %v2949 = vmul.f32 %v2936, %v2936
    %v2950 = vsel %vm1832, %v2947, 0.0
    %v2951 = vadd.f32 %v2946, %v2950
    %2952 = vadd.xlane.f32.xlu0 %v2951
    %v2953 = vpop.xlane.xlu0 %2952
    %v2954 = vsel %vm1832, %v2949, 0.0
    %v2955 = vadd.f32 %v2948, %v2954
    %2956 = vadd.xlane.f32.xlu0 %v2955
    %v2957 = vpop.xlane.xlu0 %2956
    %v2958 = vadd.f32 %v2953, %v2957
    %v2959 = vrcp.pop 506.0
    %v2960 = vmul.f32 %v2945, %v2959
    %v2961 = vmul.f32 %v2958, %v2959
    %v2962 = vmul.f32 %v2960, %v2960
    %v2963 = vsub.f32 %v2961, %v2962
    %v2964 = vmax.f32 %v2963, 0.0
    %v2965 = vadd.f32 %v2964, 1e-05
    %v2966 = vrsqrt.pop %v2965
    %v2967 = vmul.f32 %v2202, %v2966
    %v2968 = vmul.f32 %v2960, %v2967
    %v2969 = vsub.f32 %v2203, %v2968
    %2971 = vset.pattern.permute.xlu0 0
    %2972 = vperm.xlu0 %2971, %v2967
    %v2973 = vpop.permute.xlu0 %2972
    %v2975 = vmul.f32 %v2933, %v2973
    %v2976 = vmul.f32 %v2934, %v2973
    %v2977 = vmul.f32 %v2935, %v2973
    %v2978 = vmul.f32 %v2936, %v2973
    %2980 = vset.pattern.permute.xlu0 0
    %2981 = vperm.xlu0 %2980, %v2969
    %v2982 = vpop.permute.xlu0 %2981
    %v2984 = vadd.f32 %v2975, %v2982
    %v2985 = vadd.f32 %v2976, %v2982
    %v2986 = vadd.f32 %v2977, %v2982
    %v2987 = vadd.f32 %v2978, %v2982
    %v2988 = vmax.f32 %v2984, 0.0
    %v2989 = vmax.f32 %v2985, 0.0
    %v2990 = vmax.f32 %v2986, 0.0
    %v2991 = vmax.f32 %v2987, 0.0
    %2996 = vrot.lane.b32.xlu0 %v2988, 127
    %v2997 = vpop.permute.xlu0 %2996
    %2998 = vrot.lane.b32.xlu0 %v2989, 127
    %v2999 = vpop.permute.xlu0 %2998
    %3000 = vrot.lane.b32.xlu0 %v2990, 127
    %v3001 = vpop.permute.xlu0 %3000
    %3002 = vrot.lane.b32.xlu0 %v2991, 127
    %v3003 = vpop.permute.xlu0 %3002
    %v3004 = vsel %vm1111, %v2997, %v2999
    %v3005 = vsel %vm1111, %v3001, %v3003
    %v3010 = vmax.f32 %v2988, %v3004
    %v3011 = vmax.f32 %v2989, %v2999
    %v3012 = vmax.f32 %v2990, %v3005
    %v3013 = vmax.f32 %v2991, %v3003
    %3014 = vrot.lane.b32.xlu0 %v2988, 126
    %v3015 = vpop.permute.xlu0 %3014
    %3016 = vrot.lane.b32.xlu0 %v2989, 126
    %v3017 = vpop.permute.xlu0 %3016
    %3018 = vrot.lane.b32.xlu0 %v2990, 126
    %v3019 = vpop.permute.xlu0 %3018
    %3020 = vrot.lane.b32.xlu0 %v2991, 126
    %v3021 = vpop.permute.xlu0 %3020
    %v3022 = vsel %vm1753, %v3015, %v3017
    %v3023 = vsel %vm1753, %v3019, %v3021
    %v3028 = vmax.f32 %v3010, %v3022
    %v3029 = vmax.f32 %v3011, %v3017
    %v3030 = vmax.f32 %v3012, %v3023
    %v3031 = vmax.f32 %v3013, %v3021
    %3032 = vrot.lane.b32.xlu0 %v2988, 125
    %v3033 = vpop.permute.xlu0 %3032
    %3034 = vrot.lane.b32.xlu0 %v2989, 125
    %v3035 = vpop.permute.xlu0 %3034
    %3036 = vrot.lane.b32.xlu0 %v2990, 125
    %v3037 = vpop.permute.xlu0 %3036
    %3038 = vrot.lane.b32.xlu0 %v2991, 125
    %v3039 = vpop.permute.xlu0 %3038
    %v3040 = vsel %vm1832, %v3033, %v3035
    %v3041 = vsel %vm1832, %v3037, %v3039
    %v3046 = vmax.f32 %v3028, %v3040
    %v3047 = vmax.f32 %v3029, %v3035
    %v3048 = vmax.f32 %v3030, %v3041
    %v3049 = vmax.f32 %v3031, %v3039
    %vm3050 = vcmask 998400
    %v3052 = vsel %vm3050, %v3047, 0
    %v3055 = vsel %vm3050, %v3049, 0
    %vm3057 = vcmask 1041408
    %v3059 = vsel %vm3057, %v2235, 0
    %3061 = vmatprep.subr.mxu0 0.0
    %3062 = vmatpush1.msra.mxu0 %v2204
    %3063 = vmatprep.subr.mxu0 0.0
    %3064 = vmatpush1.msra.mxu0 %v2205
    %3065 = vmatprep.subr.mxu0 0.0
    %3066 = vmatpush1.msra.mxu0 %v2206
    %3067 = vmatprep.subr.mxu0 0.0
    %3068 = vmatpush1.msra.mxu0 %v2207
    %3069 = vmatprep.subr.mxu0 0.0
    %3070 = vmatpush1.msra.mxu0 %v2208
    %3071 = vmatprep.subr.mxu0 0.0
    %3072 = vmatpush1.msra.mxu0 %v2209
    %3073 = vmatprep.subr.mxu0 0.0
    %3074 = vmatpush1.msra.mxu0 %v2210
    %3075 = vmatprep.subr.mxu0 0.0
    %3076 = vmatpush1.msra.mxu0 %v2211
    %3077 = vmatprep.subr.mxu0 0.0
    %3078 = vmatpush1.msra.mxu0 %v2212
    %3079 = vmatprep.subr.mxu0 0.0
    %3080 = vmatpush1.msra.mxu0 %v2213
    %3081 = vmatprep.subr.mxu0 0.0
    %3082 = vmatpush1.msra.mxu0 %v2214
    %3083 = vmatprep.subr.mxu0 0.0
    %3084 = vmatpush1.msra.mxu0 %v2215
    %3085 = vmatprep.subr.mxu0 0.0
    %3086 = vmatpush1.msra.mxu0 %v2216
    %3087 = vmatprep.subr.mxu0 0.0
    %3088 = vmatpush1.msra.mxu0 %v2217
    %3089 = vmatprep.subr.mxu0 0.0
    %3090 = vmatpush1.msra.mxu0 %v2218
    %3091 = vmatprep.subr.mxu0 0.0
    %3092 = vmatpush1.msra.mxu0 %v2219
    %3093 = vmatprep.subr.mxu0 0.0
    %3094 = vmatpush1.msra.mxu0 %v2220
    %3095 = vmatprep.subr.mxu0 0.0
    %3096 = vmatpush1.msra.mxu0 %v2221
    %3097 = vmatprep.subr.mxu0 0.0
    %3098 = vmatpush1.msra.mxu0 %v2222
    %3099 = vmatprep.subr.mxu0 0.0
    %3100 = vmatpush1.msra.mxu0 %v2223
    %3101 = vmatprep.subr.mxu0 0.0
    %3102 = vmatpush1.msra.mxu0 %v2224
    %3103 = vmatprep.subr.mxu0 0.0
    %3104 = vmatpush1.msra.mxu0 %v2225
    %3105 = vmatprep.subr.mxu0 0.0
    %3106 = vmatpush1.msra.mxu0 %v2226
    %3107 = vmatprep.subr.mxu0 0.0
    %3108 = vmatpush1.msra.mxu0 %v2227
    %3109 = vmatprep.subr.mxu0 0.0
    %3110 = vmatpush1.msra.mxu0 %v2228
    %3111 = vmatprep.subr.mxu0 0.0
    %3112 = vmatpush1.msra.mxu0 %v2229
    %3113 = vmatprep.subr.mxu0 0.0
    %3114 = vmatpush1.msra.mxu0 %v2230
    %3115 = vmatprep.subr.mxu0 0.0
    %3116 = vmatpush1.msra.mxu0 %v2231
    %3117 = vmatprep.subr.mxu0 0.0
    %3118 = vmatpush1.msra.mxu0 %v2232
    %3119 = vmatprep.subr.mxu0 0.0
    %3120 = vmatpush1.msra.mxu0 %v2233
    %3121 = vmatprep.subr.mxu0 0.0
    %3122 = vmatpush1.msra.mxu0 %v2234
    %3123 = vmatprep.subr.mxu0 0.0
    %3124 = vmatpush1.msra.mxu0 %v3059
    %3125 = vmatprep.mubr.f32.mxu0 %v3052
    %3126 = vmatmul.mubr.f32.gmra.mrb[0].mxu0 %v3046
    %v3127 = vpop.f32.mrb[0].mxu0
    %v3128 = vadd.f32 0.0, %v3127
    %v3129 = vpop.f32.mrb[0].mxu0
    %3130 = vmatprep.mubr.f32.mxu0 %v3055
    %3131 = vmatmul.mubr.f32.gmra.mrb[0].mxu0 %v3048
    %v3132 = vpop.f32.mrb[0].mxu0
    %v3133 = vadd.f32 0.0, %v3132
    %v3134 = vpop.f32.mrb[0].mxu0
    %3135 = vdwg.mxu0
    %v3136 = vld [vmem:[%s9] sm:$0xff]
    %v3137 = vld [vmem:[%s9 + $0x8] sm:$0xff]
    %v3138 = vld [vmem:[%s10] sm:$0xff]
    %v3139 = vld [vmem:[%s10 + $0x8] sm:$0xff]
    %v3140 = vld [vmem:[%s11] sm:$0xff]
    %v3141 = vld [vmem:[%s11 + $0x8] sm:$0xff]
    %v3142 = vld [vmem:[%s12] sm:$0xff]
    %v3143 = vld [vmem:[%s12 + $0x8] sm:$0xff]
    %v3144 = vld [vmem:[%s12 + $0x10] sm:$0xff]
    %v3145 = vld [vmem:[%s12 + $0x18] sm:$0xff]
    %v3146 = vld [vmem:[%s12 + $0x20] sm:$0xff]
    %v3147 = vld [vmem:[%s12 + $0x28] sm:$0xff]
    %v3148 = vld [vmem:[%s12 + $0x30] sm:$0xff]
    %v3149 = vld [vmem:[%s12 + $0x38] sm:$0x3]
    %3151 = vset.pattern.permute.xlu0 0
    %3152 = vperm.xlu0 %3151, %v3136
    %v3153 = vpop.permute.xlu0 %3152
    %3156 = vset.pattern.permute.xlu0 0
    %3157 = vperm.xlu0 %3156, %v3137
    %v3158 = vpop.permute.xlu0 %3157
    %v3160 = vlaneseq
    %v3161 = vshrl.u32 %v3160, 7
    %v3162 = vsub.s32 0, %v3161
    %v3163 = vrot.slane %v3128, %v3162
    %v3164 = vlaneseq
    %v3165 = vshrl.u32 %v3164, 7
    %v3166 = vsub.s32 0, %v3165
    %v3167 = vrot.slane %v3133, %v3166
    %v3168 = vmul.f32 %v3153, %v3163
    %v3169 = vmul.f32 %v3158, %v3163
    %v3170 = vmul.f32 %v3153, %v3167
    %v3171 = vmul.f32 %v3158, %v3167
    %3172 = vset.pattern.permute.xlu0 1
    %3173 = vperm.xlu0 %3172, %v3136
    %v3174 = vpop.permute.xlu0 %3173
    %3176 = vset.pattern.permute.xlu0 1
    %3177 = vperm.xlu0 %3176, %v3137
    %v3178 = vpop.permute.xlu0 %3177
    %v3180 = vmul.f32 %v3174, %v3163
    %v3181 = vmul.f32 %v3178, %v3163
    %v3182 = vmul.f32 %v3174, %v3167
    %v3183 = vmul.f32 %v3178, %v3167
    %3188 = vrot.lane.b32.xlu0 %v3180, 127
    %v3189 = vpop.permute.xlu0 %3188
    %3190 = vrot.lane.b32.xlu0 %v3181, 127
    %v3191 = vpop.permute.xlu0 %3190
    %3192 = vrot.lane.b32.xlu0 %v3182, 127
    %v3193 = vpop.permute.xlu0 %3192
    %3194 = vrot.lane.b32.xlu0 %v3183, 127
    %v3195 = vpop.permute.xlu0 %3194
    %v3200 = vadd.f32 %v3168, %v3189
    %v3201 = vadd.f32 %v3169, %v3191
    %v3202 = vadd.f32 %v3170, %v3193
    %v3203 = vadd.f32 %v3171, %v3195
    %3204 = vset.pattern.permute.xlu0 2
    %3205 = vperm.xlu0 %3204, %v3136
    %v3206 = vpop.permute.xlu0 %3205
    %3208 = vset.pattern.permute.xlu0 2
    %3209 = vperm.xlu0 %3208, %v3137
    %v3210 = vpop.permute.xlu0 %3209
    %v3212 = vmul.f32 %v3206, %v3163
    %v3213 = vmul.f32 %v3210, %v3163
    %v3214 = vmul.f32 %v3206, %v3167
    %v3215 = vmul.f32 %v3210, %v3167
    %3220 = vrot.lane.b32.xlu0 %v3212, 126
    %v3221 = vpop.permute.xlu0 %3220
    %3222 = vrot.lane.b32.xlu0 %v3213, 126
    %v3223 = vpop.permute.xlu0 %3222
    %3224 = vrot.lane.b32.xlu0 %v3214, 126
    %v3225 = vpop.permute.xlu0 %3224
    %3226 = vrot.lane.b32.xlu0 %v3215, 126
    %v3227 = vpop.permute.xlu0 %3226
    %v3232 = vadd.f32 %v3200, %v3221
    %v3233 = vadd.f32 %v3201, %v3223
    %v3234 = vadd.f32 %v3202, %v3225
    %v3235 = vadd.f32 %v3203, %v3227
    %3236 = vset.pattern.permute.xlu0 3
    %3237 = vperm.xlu0 %3236, %v3136
    %v3238 = vpop.permute.xlu0 %3237
    %3240 = vset.pattern.permute.xlu0 3
    %3241 = vperm.xlu0 %3240, %v3137
    %v3242 = vpop.permute.xlu0 %3241
    %v3244 = vlaneseq
    %v3245 = vshrl.u32 %v3244, 7
    %v3246 = vsub.s32 1, %v3245
    %v3247 = vrot.slane %v3128, %v3246
    %v3248 = vlaneseq
    %v3249 = vshrl.u32 %v3248, 7
    %v3250 = vsub.s32 1, %v3249
    %v3251 = vrot.slane %v3133, %v3250
    %v3252 = vmul.f32 %v3238, %v3247
    %v3253 = vmul.f32 %v3242, %v3247
    %v3254 = vmul.f32 %v3238, %v3251
    %v3255 = vmul.f32 %v3242, %v3251
    %v3256 = vadd.f32 %v3232, %v3252
    %v3257 = vadd.f32 %v3233, %v3253
    %v3258 = vadd.f32 %v3234, %v3254
    %v3259 = vadd.f32 %v3235, %v3255
    %3260 = vset.pattern.permute.xlu0 4
    %3261 = vperm.xlu0 %3260, %v3136
    %v3262 = vpop.permute.xlu0 %3261
    %3264 = vset.pattern.permute.xlu0 4
    %3265 = vperm.xlu0 %3264, %v3137
    %v3266 = vpop.permute.xlu0 %3265
    %v3268 = vmul.f32 %v3262, %v3247
    %v3269 = vmul.f32 %v3266, %v3247
    %v3270 = vmul.f32 %v3262, %v3251
    %v3271 = vmul.f32 %v3266, %v3251
    %3276 = vrot.lane.b32.xlu0 %v3268, 127
    %v3277 = vpop.permute.xlu0 %3276
    %3278 = vrot.lane.b32.xlu0 %v3269, 127
    %v3279 = vpop.permute.xlu0 %3278
    %3280 = vrot.lane.b32.xlu0 %v3270, 127
    %v3281 = vpop.permute.xlu0 %3280
    %3282 = vrot.lane.b32.xlu0 %v3271, 127
    %v3283 = vpop.permute.xlu0 %3282
    %v3288 = vadd.f32 %v3256, %v3277
    %v3289 = vadd.f32 %v3257, %v3279
    %v3290 = vadd.f32 %v3258, %v3281
    %v3291 = vadd.f32 %v3259, %v3283
    %3292 = vset.pattern.permute.xlu0 5
    %3293 = vperm.xlu0 %3292, %v3136
    %v3294 = vpop.permute.xlu0 %3293
    %3296 = vset.pattern.permute.xlu0 5
    %3297 = vperm.xlu0 %3296, %v3137
    %v3298 = vpop.permute.xlu0 %3297
    %v3300 = vmul.f32 %v3294, %v3247
    %v3301 = vmul.f32 %v3298, %v3247
    %v3302 = vmul.f32 %v3294, %v3251
    %v3303 = vmul.f32 %v3298, %v3251
    %3308 = vrot.lane.b32.xlu0 %v3300, 126
    %v3309 = vpop.permute.xlu0 %3308
    %3310 = vrot.lane.b32.xlu0 %v3301, 126
    %v3311 = vpop.permute.xlu0 %3310
    %3312 = vrot.lane.b32.xlu0 %v3302, 126
    %v3313 = vpop.permute.xlu0 %3312
    %3314 = vrot.lane.b32.xlu0 %v3303, 126
    %v3315 = vpop.permute.xlu0 %3314
    %v3320 = vadd.f32 %v3288, %v3309
    %v3321 = vadd.f32 %v3289, %v3311
    %v3322 = vadd.f32 %v3290, %v3313
    %v3323 = vadd.f32 %v3291, %v3315
    %3324 = vset.pattern.permute.xlu0 6
    %3325 = vperm.xlu0 %3324, %v3136
    %v3326 = vpop.permute.xlu0 %3325
    %3328 = vset.pattern.permute.xlu0 6
    %3329 = vperm.xlu0 %3328, %v3137
    %v3330 = vpop.permute.xlu0 %3329
    %v3332 = vlaneseq
    %v3333 = vshrl.u32 %v3332, 7
    %v3334 = vsub.s32 2, %v3333
    %v3335 = vrot.slane %v3128, %v3334
    %v3336 = vlaneseq
    %v3337 = vshrl.u32 %v3336, 7
    %v3338 = vsub.s32 2, %v3337
    %v3339 = vrot.slane %v3133, %v3338
    %v3340 = vmul.f32 %v3326, %v3335
    %v3341 = vmul.f32 %v3330, %v3335
    %v3342 = vmul.f32 %v3326, %v3339
    %v3343 = vmul.f32 %v3330, %v3339
    %v3344 = vadd.f32 %v3320, %v3340
    %v3345 = vadd.f32 %v3321, %v3341
    %v3346 = vadd.f32 %v3322, %v3342
    %v3347 = vadd.f32 %v3323, %v3343
    %3348 = vset.pattern.permute.xlu0 7
    %3349 = vperm.xlu0 %3348, %v3136
    %v3350 = vpop.permute.xlu0 %3349
    %3352 = vset.pattern.permute.xlu0 7
    %3353 = vperm.xlu0 %3352, %v3137
    %v3354 = vpop.permute.xlu0 %3353
    %v3356 = vmul.f32 %v3350, %v3335
    %v3357 = vmul.f32 %v3354, %v3335
    %v3358 = vmul.f32 %v3350, %v3339
    %v3359 = vmul.f32 %v3354, %v3339
    %3364 = vrot.lane.b32.xlu0 %v3356, 127
    %v3365 = vpop.permute.xlu0 %3364
    %3366 = vrot.lane.b32.xlu0 %v3357, 127
    %v3367 = vpop.permute.xlu0 %3366
    %3368 = vrot.lane.b32.xlu0 %v3358, 127
    %v3369 = vpop.permute.xlu0 %3368
    %3370 = vrot.lane.b32.xlu0 %v3359, 127
    %v3371 = vpop.permute.xlu0 %3370
    %v3376 = vadd.f32 %v3344, %v3365
    %v3377 = vadd.f32 %v3345, %v3367
    %v3378 = vadd.f32 %v3346, %v3369
    %v3379 = vadd.f32 %v3347, %v3371
    %3380 = vset.pattern.permute.xlu0 8
    %3381 = vperm.xlu0 %3380, %v3136
    %v3382 = vpop.permute.xlu0 %3381
    %3384 = vset.pattern.permute.xlu0 8
    %3385 = vperm.xlu0 %3384, %v3137
    %v3386 = vpop.permute.xlu0 %3385
    %v3388 = vmul.f32 %v3382, %v3335
    %v3389 = vmul.f32 %v3386, %v3335
    %v3390 = vmul.f32 %v3382, %v3339
    %v3391 = vmul.f32 %v3386, %v3339
    %3396 = vrot.lane.b32.xlu0 %v3388, 126
    %v3397 = vpop.permute.xlu0 %3396
    %3398 = vrot.lane.b32.xlu0 %v3389, 126
    %v3399 = vpop.permute.xlu0 %3398
    %3400 = vrot.lane.b32.xlu0 %v3390, 126
    %v3401 = vpop.permute.xlu0 %3400
    %3402 = vrot.lane.b32.xlu0 %v3391, 126
    %v3403 = vpop.permute.xlu0 %3402
    %v3408 = vadd.f32 %v3376, %v3397
    %v3409 = vadd.f32 %v3377, %v3399
    %v3410 = vadd.f32 %v3378, %v3401
    %v3411 = vadd.f32 %v3379, %v3403
    %3412 = vset.pattern.permute.xlu0 9
    %3413 = vperm.xlu0 %3412, %v3136
    %v3414 = vpop.permute.xlu0 %3413
    %3416 = vset.pattern.permute.xlu0 9
    %3417 = vperm.xlu0 %3416, %v3137
    %v3418 = vpop.permute.xlu0 %3417
    %v3420 = vlaneseq
    %v3421 = vshrl.u32 %v3420, 7
    %v3422 = vsub.s32 3, %v3421
    %v3423 = vrot.slane %v3128, %v3422
    %v3424 = vlaneseq
    %v3425 = vshrl.u32 %v3424, 7
    %v3426 = vsub.s32 3, %v3425
    %v3427 = vrot.slane %v3133, %v3426
    %v3428 = vmul.f32 %v3414, %v3423
    %v3429 = vmul.f32 %v3418, %v3423
    %v3430 = vmul.f32 %v3414, %v3427
    %v3431 = vmul.f32 %v3418, %v3427
    %v3432 = vadd.f32 %v3408, %v3428
    %v3433 = vadd.f32 %v3409, %v3429
    %v3434 = vadd.f32 %v3410, %v3430
    %v3435 = vadd.f32 %v3411, %v3431
    %3436 = vset.pattern.permute.xlu0 10
    %3437 = vperm.xlu0 %3436, %v3136
    %v3438 = vpop.permute.xlu0 %3437
    %3440 = vset.pattern.permute.xlu0 10
    %3441 = vperm.xlu0 %3440, %v3137
    %v3442 = vpop.permute.xlu0 %3441
    %v3444 = vmul.f32 %v3438, %v3423
    %v3445 = vmul.f32 %v3442, %v3423
    %v3446 = vmul.f32 %v3438, %v3427
    %v3447 = vmul.f32 %v3442, %v3427
    %3452 = vrot.lane.b32.xlu0 %v3444, 127
    %v3453 = vpop.permute.xlu0 %3452
    %3454 = vrot.lane.b32.xlu0 %v3445, 127
    %v3455 = vpop.permute.xlu0 %3454
    %3456 = vrot.lane.b32.xlu0 %v3446, 127
    %v3457 = vpop.permute.xlu0 %3456
    %3458 = vrot.lane.b32.xlu0 %v3447, 127
    %v3459 = vpop.permute.xlu0 %3458
    %v3464 = vadd.f32 %v3432, %v3453
    %v3465 = vadd.f32 %v3433, %v3455
    %v3466 = vadd.f32 %v3434, %v3457
    %v3467 = vadd.f32 %v3435, %v3459
    %3468 = vset.pattern.permute.xlu0 11
    %3469 = vperm.xlu0 %3468, %v3136
    %v3470 = vpop.permute.xlu0 %3469
    %3472 = vset.pattern.permute.xlu0 11
    %3473 = vperm.xlu0 %3472, %v3137
    %v3474 = vpop.permute.xlu0 %3473
    %v3476 = vmul.f32 %v3470, %v3423
    %v3477 = vmul.f32 %v3474, %v3423
    %v3478 = vmul.f32 %v3470, %v3427
    %v3479 = vmul.f32 %v3474, %v3427
    %3484 = vrot.lane.b32.xlu0 %v3476, 126
    %v3485 = vpop.permute.xlu0 %3484
    %3486 = vrot.lane.b32.xlu0 %v3477, 126
    %v3487 = vpop.permute.xlu0 %3486
    %3488 = vrot.lane.b32.xlu0 %v3478, 126
    %v3489 = vpop.permute.xlu0 %3488
    %3490 = vrot.lane.b32.xlu0 %v3479, 126
    %v3491 = vpop.permute.xlu0 %3490
    %v3496 = vadd.f32 %v3464, %v3485
    %v3497 = vadd.f32 %v3465, %v3487
    %v3498 = vadd.f32 %v3466, %v3489
    %v3499 = vadd.f32 %v3467, %v3491
    %3500 = vset.pattern.permute.xlu0 12
    %3501 = vperm.xlu0 %3500, %v3136
    %v3502 = vpop.permute.xlu0 %3501
    %3504 = vset.pattern.permute.xlu0 12
    %3505 = vperm.xlu0 %3504, %v3137
    %v3506 = vpop.permute.xlu0 %3505
    %v3508 = vlaneseq
    %v3509 = vshrl.u32 %v3508, 7
    %v3510 = vsub.s32 4, %v3509
    %v3511 = vrot.slane %v3128, %v3510
    %v3512 = vlaneseq
    %v3513 = vshrl.u32 %v3512, 7
    %v3514 = vsub.s32 4, %v3513
    %v3515 = vrot.slane %v3133, %v3514
    %v3516 = vmul.f32 %v3502, %v3511
    %v3517 = vmul.f32 %v3506, %v3511
    %v3518 = vmul.f32 %v3502, %v3515
    %v3519 = vmul.f32 %v3506, %v3515
    %v3520 = vadd.f32 %v3496, %v3516
    %v3521 = vadd.f32 %v3497, %v3517
    %v3522 = vadd.f32 %v3498, %v3518
    %v3523 = vadd.f32 %v3499, %v3519
    %3524 = vset.pattern.permute.xlu0 13
    %3525 = vperm.xlu0 %3524, %v3136
    %v3526 = vpop.permute.xlu0 %3525
    %3528 = vset.pattern.permute.xlu0 13
    %3529 = vperm.xlu0 %3528, %v3137
    %v3530 = vpop.permute.xlu0 %3529
    %v3532 = vmul.f32 %v3526, %v3511
    %v3533 = vmul.f32 %v3530, %v3511
    %v3534 = vmul.f32 %v3526, %v3515
    %v3535 = vmul.f32 %v3530, %v3515
    %3540 = vrot.lane.b32.xlu0 %v3532, 127
    %v3541 = vpop.permute.xlu0 %3540
    %3542 = vrot.lane.b32.xlu0 %v3533, 127
    %v3543 = vpop.permute.xlu0 %3542
    %3544 = vrot.lane.b32.xlu0 %v3534, 127
    %v3545 = vpop.permute.xlu0 %3544
    %3546 = vrot.lane.b32.xlu0 %v3535, 127
    %v3547 = vpop.permute.xlu0 %3546
    %v3552 = vadd.f32 %v3520, %v3541
    %v3553 = vadd.f32 %v3521, %v3543
    %v3554 = vadd.f32 %v3522, %v3545
    %v3555 = vadd.f32 %v3523, %v3547
    %3556 = vset.pattern.permute.xlu0 14
    %3557 = vperm.xlu0 %3556, %v3136
    %v3558 = vpop.permute.xlu0 %3557
    %3560 = vset.pattern.permute.xlu0 14
    %3561 = vperm.xlu0 %3560, %v3137
    %v3562 = vpop.permute.xlu0 %3561
    %v3564 = vmul.f32 %v3558, %v3511
    %v3565 = vmul.f32 %v3562, %v3511
    %v3566 = vmul.f32 %v3558, %v3515
    %v3567 = vmul.f32 %v3562, %v3515
    %3572 = vrot.lane.b32.xlu0 %v3564, 126
    %v3573 = vpop.permute.xlu0 %3572
    %3574 = vrot.lane.b32.xlu0 %v3565, 126
    %v3575 = vpop.permute.xlu0 %3574
    %3576 = vrot.lane.b32.xlu0 %v3566, 126
    %v3577 = vpop.permute.xlu0 %3576
    %3578 = vrot.lane.b32.xlu0 %v3567, 126
    %v3579 = vpop.permute.xlu0 %3578
    %v3584 = vadd.f32 %v3552, %v3573
    %v3585 = vadd.f32 %v3553, %v3575
    %v3586 = vadd.f32 %v3554, %v3577
    %v3587 = vadd.f32 %v3555, %v3579
    %3588 = vset.pattern.permute.xlu0 15
    %3589 = vperm.xlu0 %3588, %v3136
    %v3590 = vpop.permute.xlu0 %3589
    %3592 = vset.pattern.permute.xlu0 15
    %3593 = vperm.xlu0 %3592, %v3137
    %v3594 = vpop.permute.xlu0 %3593
    %v3596 = vlaneseq
    %v3597 = vshrl.u32 %v3596, 7
    %v3598 = vsub.s32 5, %v3597
    %v3599 = vrot.slane %v3128, %v3598
    %v3600 = vlaneseq
    %v3601 = vshrl.u32 %v3600, 7
    %v3602 = vsub.s32 5, %v3601
    %v3603 = vrot.slane %v3133, %v3602
    %v3604 = vmul.f32 %v3590, %v3599
    %v3605 = vmul.f32 %v3594, %v3599
    %v3606 = vmul.f32 %v3590, %v3603
    %v3607 = vmul.f32 %v3594, %v3603
    %v3608 = vadd.f32 %v3584, %v3604
    %v3609 = vadd.f32 %v3585, %v3605
    %v3610 = vadd.f32 %v3586, %v3606
    %v3611 = vadd.f32 %v3587, %v3607
    %3612 = vset.pattern.permute.xlu0 16
    %3613 = vperm.xlu0 %3612, %v3136
    %v3614 = vpop.permute.xlu0 %3613
    %3616 = vset.pattern.permute.xlu0 16
    %3617 = vperm.xlu0 %3616, %v3137
    %v3618 = vpop.permute.xlu0 %3617
    %v3620 = vmul.f32 %v3614, %v3599
    %v3621 = vmul.f32 %v3618, %v3599
    %v3622 = vmul.f32 %v3614, %v3603
    %v3623 = vmul.f32 %v3618, %v3603
    %3628 = vrot.lane.b32.xlu0 %v3620, 127
    %v3629 = vpop.permute.xlu0 %3628
    %3630 = vrot.lane.b32.xlu0 %v3621, 127
    %v3631 = vpop.permute.xlu0 %3630
    %3632 = vrot.lane.b32.xlu0 %v3622, 127
    %v3633 = vpop.permute.xlu0 %3632
    %3634 = vrot.lane.b32.xlu0 %v3623, 127
    %v3635 = vpop.permute.xlu0 %3634
    %v3640 = vadd.f32 %v3608, %v3629
    %v3641 = vadd.f32 %v3609, %v3631
    %v3642 = vadd.f32 %v3610, %v3633
    %v3643 = vadd.f32 %v3611, %v3635
    %3644 = vset.pattern.permute.xlu0 17
    %3645 = vperm.xlu0 %3644, %v3136
    %v3646 = vpop.permute.xlu0 %3645
    %3648 = vset.pattern.permute.xlu0 17
    %3649 = vperm.xlu0 %3648, %v3137
    %v3650 = vpop.permute.xlu0 %3649
    %v3652 = vmul.f32 %v3646, %v3599
    %v3653 = vmul.f32 %v3650, %v3599
    %v3654 = vmul.f32 %v3646, %v3603
    %v3655 = vmul.f32 %v3650, %v3603
    %3660 = vrot.lane.b32.xlu0 %v3652, 126
    %v3661 = vpop.permute.xlu0 %3660
    %3662 = vrot.lane.b32.xlu0 %v3653, 126
    %v3663 = vpop.permute.xlu0 %3662
    %3664 = vrot.lane.b32.xlu0 %v3654, 126
    %v3665 = vpop.permute.xlu0 %3664
    %3666 = vrot.lane.b32.xlu0 %v3655, 126
    %v3667 = vpop.permute.xlu0 %3666
    %v3672 = vadd.f32 %v3640, %v3661
    %v3673 = vadd.f32 %v3641, %v3663
    %v3674 = vadd.f32 %v3642, %v3665
    %v3675 = vadd.f32 %v3643, %v3667
    %3676 = vset.pattern.permute.xlu0 18
    %3677 = vperm.xlu0 %3676, %v3136
    %v3678 = vpop.permute.xlu0 %3677
    %3680 = vset.pattern.permute.xlu0 18
    %3681 = vperm.xlu0 %3680, %v3137
    %v3682 = vpop.permute.xlu0 %3681
    %v3684 = vlaneseq
    %v3685 = vshrl.u32 %v3684, 7
    %v3686 = vsub.s32 6, %v3685
    %v3687 = vrot.slane %v3128, %v3686
    %v3688 = vlaneseq
    %v3689 = vshrl.u32 %v3688, 7
    %v3690 = vsub.s32 6, %v3689
    %v3691 = vrot.slane %v3133, %v3690
    %v3692 = vmul.f32 %v3678, %v3687
    %v3693 = vmul.f32 %v3682, %v3687
    %v3694 = vmul.f32 %v3678, %v3691
    %v3695 = vmul.f32 %v3682, %v3691
    %v3696 = vadd.f32 %v3672, %v3692
    %v3697 = vadd.f32 %v3673, %v3693
    %v3698 = vadd.f32 %v3674, %v3694
    %v3699 = vadd.f32 %v3675, %v3695
    %3700 = vset.pattern.permute.xlu0 19
    %3701 = vperm.xlu0 %3700, %v3136
    %v3702 = vpop.permute.xlu0 %3701
    %3704 = vset.pattern.permute.xlu0 19
    %3705 = vperm.xlu0 %3704, %v3137
    %v3706 = vpop.permute.xlu0 %3705
    %v3708 = vmul.f32 %v3702, %v3687
    %v3709 = vmul.f32 %v3706, %v3687
    %v3710 = vmul.f32 %v3702, %v3691
    %v3711 = vmul.f32 %v3706, %v3691
    %3716 = vrot.lane.b32.xlu0 %v3708, 127
    %v3717 = vpop.permute.xlu0 %3716
    %3718 = vrot.lane.b32.xlu0 %v3709, 127
    %v3719 = vpop.permute.xlu0 %3718
    %3720 = vrot.lane.b32.xlu0 %v3710, 127
    %v3721 = vpop.permute.xlu0 %3720
    %3722 = vrot.lane.b32.xlu0 %v3711, 127
    %v3723 = vpop.permute.xlu0 %3722
    %v3728 = vadd.f32 %v3696, %v3717
    %v3729 = vadd.f32 %v3697, %v3719
    %v3730 = vadd.f32 %v3698, %v3721
    %v3731 = vadd.f32 %v3699, %v3723
    %3732 = vset.pattern.permute.xlu0 20
    %3733 = vperm.xlu0 %3732, %v3136
    %v3734 = vpop.permute.xlu0 %3733
    %3736 = vset.pattern.permute.xlu0 20
    %3737 = vperm.xlu0 %3736, %v3137
    %v3738 = vpop.permute.xlu0 %3737
    %v3740 = vmul.f32 %v3734, %v3687
    %v3741 = vmul.f32 %v3738, %v3687
    %v3742 = vmul.f32 %v3734, %v3691
    %v3743 = vmul.f32 %v3738, %v3691
    %3748 = vrot.lane.b32.xlu0 %v3740, 126
    %v3749 = vpop.permute.xlu0 %3748
    %3750 = vrot.lane.b32.xlu0 %v3741, 126
    %v3751 = vpop.permute.xlu0 %3750
    %3752 = vrot.lane.b32.xlu0 %v3742, 126
    %v3753 = vpop.permute.xlu0 %3752
    %3754 = vrot.lane.b32.xlu0 %v3743, 126
    %v3755 = vpop.permute.xlu0 %3754
    %v3760 = vadd.f32 %v3728, %v3749
    %v3761 = vadd.f32 %v3729, %v3751
    %v3762 = vadd.f32 %v3730, %v3753
    %v3763 = vadd.f32 %v3731, %v3755
    %3764 = vset.pattern.permute.xlu0 21
    %3765 = vperm.xlu0 %3764, %v3136
    %v3766 = vpop.permute.xlu0 %3765
    %3768 = vset.pattern.permute.xlu0 21
    %3769 = vperm.xlu0 %3768, %v3137
    %v3770 = vpop.permute.xlu0 %3769
    %v3772 = vlaneseq
    %v3773 = vshrl.u32 %v3772, 7
    %v3774 = vsub.s32 7, %v3773
    %v3775 = vrot.slane %v3128, %v3774
    %v3776 = vlaneseq
    %v3777 = vshrl.u32 %v3776, 7
    %v3778 = vsub.s32 7, %v3777
    %v3779 = vrot.slane %v3133, %v3778
    %v3780 = vmul.f32 %v3766, %v3775
    %v3781 = vmul.f32 %v3770, %v3775
    %v3782 = vmul.f32 %v3766, %v3779
    %v3783 = vmul.f32 %v3770, %v3779
    %v3784 = vadd.f32 %v3760, %v3780
    %v3785 = vadd.f32 %v3761, %v3781
    %v3786 = vadd.f32 %v3762, %v3782
    %v3787 = vadd.f32 %v3763, %v3783
    %3788 = vset.pattern.permute.xlu0 22
    %3789 = vperm.xlu0 %3788, %v3136
    %v3790 = vpop.permute.xlu0 %3789
    %3792 = vset.pattern.permute.xlu0 22
    %3793 = vperm.xlu0 %3792, %v3137
    %v3794 = vpop.permute.xlu0 %3793
    %v3796 = vmul.f32 %v3790, %v3775
    %v3797 = vmul.f32 %v3794, %v3775
    %v3798 = vmul.f32 %v3790, %v3779
    %v3799 = vmul.f32 %v3794, %v3779
    %3804 = vrot.lane.b32.xlu0 %v3796, 127
    %v3805 = vpop.permute.xlu0 %3804
    %3806 = vrot.lane.b32.xlu0 %v3797, 127
    %v3807 = vpop.permute.xlu0 %3806
    %3808 = vrot.lane.b32.xlu0 %v3798, 127
    %v3809 = vpop.permute.xlu0 %3808
    %3810 = vrot.lane.b32.xlu0 %v3799, 127
    %v3811 = vpop.permute.xlu0 %3810
    %v3816 = vadd.f32 %v3784, %v3805
    %v3817 = vadd.f32 %v3785, %v3807
    %v3818 = vadd.f32 %v3786, %v3809
    %v3819 = vadd.f32 %v3787, %v3811
    %3820 = vset.pattern.permute.xlu0 23
    %3821 = vperm.xlu0 %3820, %v3136
    %v3822 = vpop.permute.xlu0 %3821
    %3824 = vset.pattern.permute.xlu0 23
    %3825 = vperm.xlu0 %3824, %v3137
    %v3826 = vpop.permute.xlu0 %3825
    %v3828 = vmul.f32 %v3822, %v3775
    %v3829 = vmul.f32 %v3826, %v3775
    %v3830 = vmul.f32 %v3822, %v3779
    %v3831 = vmul.f32 %v3826, %v3779
    %3836 = vrot.lane.b32.xlu0 %v3828, 126
    %v3837 = vpop.permute.xlu0 %3836
    %3838 = vrot.lane.b32.xlu0 %v3829, 126
    %v3839 = vpop.permute.xlu0 %3838
    %3840 = vrot.lane.b32.xlu0 %v3830, 126
    %v3841 = vpop.permute.xlu0 %3840
    %3842 = vrot.lane.b32.xlu0 %v3831, 126
    %v3843 = vpop.permute.xlu0 %3842
    %v3848 = vadd.f32 %v3816, %v3837
    %v3849 = vadd.f32 %v3817, %v3839
    %v3850 = vadd.f32 %v3818, %v3841
    %v3851 = vadd.f32 %v3819, %v3843
    %vm3852 = vcmask 498688
    %v3853 = vsel %vm3852, %v3848, 0.0
    %3854 = vadd.xlane.f32.xlu0 %v3853
    %v3855 = vpop.xlane.xlu0 %3854
    %v3856 = vsel %vm3852, %v3849, 0.0
    %3857 = vadd.xlane.f32.xlu0 %v3856
    %v3858 = vpop.xlane.xlu0 %3857
    %v3859 = vsel %vm3852, %v3850, 0.0
    %3860 = vadd.xlane.f32.xlu0 %v3859
    %v3861 = vpop.xlane.xlu0 %3860
    %v3862 = vsel %vm3852, %v3851, 0.0
    %3863 = vadd.xlane.f32.xlu0 %v3862
    %v3864 = vpop.xlane.xlu0 %3863
    %v3865 = vadd.f32 %v3855, %v3861
    %v3866 = vadd.f32 %v3858, %v3864
    %v3867 = vmul.f32 %v3848, %v3848
    %v3868 = vmul.f32 %v3849, %v3849
    %v3869 = vmul.f32 %v3850, %v3850
    %v3870 = vmul.f32 %v3851, %v3851
    %v3871 = vsel %vm3852, %v3867, 0.0
    %3872 = vadd.xlane.f32.xlu0 %v3871
    %v3873 = vpop.xlane.xlu0 %3872
    %v3874 = vsel %vm3852, %v3868, 0.0
    %3875 = vadd.xlane.f32.xlu0 %v3874
    %v3876 = vpop.xlane.xlu0 %3875
    %v3877 = vsel %vm3852, %v3869, 0.0
    %3878 = vadd.xlane.f32.xlu0 %v3877
    %v3879 = vpop.xlane.xlu0 %3878
    %v3880 = vsel %vm3852, %v3870, 0.0
    %3881 = vadd.xlane.f32.xlu0 %v3880
    %v3882 = vpop.xlane.xlu0 %3881
    %v3883 = vadd.f32 %v3873, %v3879
    %v3884 = vadd.f32 %v3876, %v3882
    %v3885 = vrcp.pop 122.0
    %v3886 = vmul.f32 %v3865, %v3885
    %v3887 = vmul.f32 %v3866, %v3885
    %v3888 = vmul.f32 %v3883, %v3885
    %v3889 = vmul.f32 %v3884, %v3885
    %v3890 = vmul.f32 %v3886, %v3886
    %v3891 = vmul.f32 %v3887, %v3887
    %v3892 = vsub.f32 %v3888, %v3890
    %v3893 = vsub.f32 %v3889, %v3891
    %v3894 = vmax.f32 %v3892, 0.0
    %v3895 = vmax.f32 %v3893, 0.0
    %v3896 = vadd.f32 %v3894, 1e-05
    %v3897 = vadd.f32 %v3895, 1e-05
    %v3898 = vrsqrt.pop %v3896
    %v3899 = vrsqrt.pop %v3897
    %v3900 = vmul.f32 %v3138, %v3898
    %v3901 = vmul.f32 %v3139, %v3899
    %v3902 = vmul.f32 %v3886, %v3900
    %v3903 = vmul.f32 %v3887, %v3901
    %v3904 = vsub.f32 %v3140, %v3902
    %v3905 = vsub.f32 %v3141, %v3903
    %3907 = vset.pattern.permute.xlu0 0
    %3908 = vperm.xlu0 %3907, %v3900
    %v3909 = vpop.permute.xlu0 %3908
    %3912 = vset.pattern.permute.xlu0 0
    %3913 = vperm.xlu0 %3912, %v3901
    %v3914 = vpop.permute.xlu0 %3913
    %v3916 = vmul.f32 %v3848, %v3909
    %v3917 = vmul.f32 %v3849, %v3914
    %v3918 = vmul.f32 %v3850, %v3909
    %v3919 = vmul.f32 %v3851, %v3914
    %3921 = vset.pattern.permute.xlu0 0
    %3922 = vperm.xlu0 %3921, %v3904
    %v3923 = vpop.permute.xlu0 %3922
    %3926 = vset.pattern.permute.xlu0 0
    %3927 = vperm.xlu0 %3926, %v3905
    %v3928 = vpop.permute.xlu0 %3927
    %v3930 = vadd.f32 %v3916, %v3923
    %v3931 = vadd.f32 %v3917, %v3928
    %v3932 = vadd.f32 %v3918, %v3923
    %v3933 = vadd.f32 %v3919, %v3928
    %v3934 = vmax.f32 %v3930, 0.0
    %v3935 = vmax.f32 %v3931, 0.0
    %v3936 = vmax.f32 %v3932, 0.0
    %v3937 = vmax.f32 %v3933, 0.0
    %3942 = vrot.lane.b32.xlu0 %v3934, 127
    %v3943 = vpop.permute.xlu0 %3942
    %3944 = vrot.lane.b32.xlu0 %v3935, 127
    %v3945 = vpop.permute.xlu0 %3944
    %3946 = vrot.lane.b32.xlu0 %v3936, 127
    %v3947 = vpop.permute.xlu0 %3946
    %3948 = vrot.lane.b32.xlu0 %v3937, 127
    %v3949 = vpop.permute.xlu0 %3948
    %v3954 = vmax.f32 %v3934, %v3943
    %v3955 = vmax.f32 %v3935, %v3945
    %v3956 = vmax.f32 %v3936, %v3947
    %v3957 = vmax.f32 %v3937, %v3949
    %3958 = vrot.lane.b32.xlu0 %v3934, 126
    %v3959 = vpop.permute.xlu0 %3958
    %3960 = vrot.lane.b32.xlu0 %v3935, 126
    %v3961 = vpop.permute.xlu0 %3960
    %3962 = vrot.lane.b32.xlu0 %v3936, 126
    %v3963 = vpop.permute.xlu0 %3962
    %3964 = vrot.lane.b32.xlu0 %v3937, 126
    %v3965 = vpop.permute.xlu0 %3964
    %v3970 = vmax.f32 %v3954, %v3959
    %v3971 = vmax.f32 %v3955, %v3961
    %v3972 = vmax.f32 %v3956, %v3963
    %v3973 = vmax.f32 %v3957, %v3965
    %3974 = vrot.lane.b32.xlu0 %v3934, 125
    %v3975 = vpop.permute.xlu0 %3974
    %3976 = vrot.lane.b32.xlu0 %v3935, 125
    %v3977 = vpop.permute.xlu0 %3976
    %3978 = vrot.lane.b32.xlu0 %v3936, 125
    %v3979 = vpop.permute.xlu0 %3978
    %3980 = vrot.lane.b32.xlu0 %v3937, 125
    %v3981 = vpop.permute.xlu0 %3980
    %v3986 = vmax.f32 %v3970, %v3975
    %v3987 = vmax.f32 %v3971, %v3977
    %v3988 = vmax.f32 %v3972, %v3979
    %v3989 = vmax.f32 %v3973, %v3981
    %vm3990 = vcmask 474112
    %v3992 = vsel %vm3990, %v3986, 0
    %v3995 = vsel %vm3990, %v3987, 0
    %v3998 = vsel %vm3990, %v3988, 0
    %v4001 = vsel %vm3990, %v3989, 0
    %v4004 = vsel %vm3057, %v3149, 0
    %4006 = vmatprep.subr.mxu0 0.0
    %4007 = vmatpush1.msra.mxu0 %v3142
    %4008 = vmatprep.subr.mxu0 0.0
    %4009 = vmatpush1.msra.mxu0 %v3143
    %4010 = vmatprep.subr.mxu0 0.0
    %4011 = vmatpush1.msra.mxu0 %v3144
    %4012 = vmatprep.subr.mxu0 0.0
    %4013 = vmatpush1.msra.mxu0 %v3145
    %4014 = vmatprep.subr.mxu0 0.0
    %4015 = vmatpush1.msra.mxu0 %v3146
    %4016 = vmatprep.subr.mxu0 0.0
    %4017 = vmatpush1.msra.mxu0 %v3147
    %4018 = vmatprep.subr.mxu0 0.0
    %4019 = vmatpush1.msra.mxu0 %v3148
    %4020 = vmatprep.subr.mxu0 0.0
    %4021 = vmatpush1.msra.mxu0 %v4004
    %4022 = vmatprep.subr.mxu0 0.0
    %4023 = vmatpush1.msra.mxu0 0.0
    %4024 = vmatprep.subr.mxu0 0.0
    %4025 = vmatpush1.msra.mxu0 0.0
    %4026 = vmatprep.subr.mxu0 0.0
    %4027 = vmatpush1.msra.mxu0 0.0
    %4028 = vmatprep.subr.mxu0 0.0
    %4029 = vmatpush1.msra.mxu0 0.0
    %4030 = vmatprep.subr.mxu0 0.0
    %4031 = vmatpush1.msra.mxu0 0.0
    %4032 = vmatprep.subr.mxu0 0.0
    %4033 = vmatpush1.msra.mxu0 0.0
    %4034 = vmatprep.subr.mxu0 0.0
    %4035 = vmatpush1.msra.mxu0 0.0
    %4036 = vmatprep.subr.mxu0 0.0
    %4037 = vmatpush1.msra.mxu0 0.0
    %4038 = vmatprep.subr.mxu0 0.0
    %4039 = vmatpush1.msra.mxu0 0.0
    %4040 = vmatprep.subr.mxu0 0.0
    %4041 = vmatpush1.msra.mxu0 0.0
    %4042 = vmatprep.subr.mxu0 0.0
    %4043 = vmatpush1.msra.mxu0 0.0
    %4044 = vmatprep.subr.mxu0 0.0
    %4045 = vmatpush1.msra.mxu0 0.0
    %4046 = vmatprep.subr.mxu0 0.0
    %4047 = vmatpush1.msra.mxu0 0.0
    %4048 = vmatprep.subr.mxu0 0.0
    %4049 = vmatpush1.msra.mxu0 0.0
    %4050 = vmatprep.subr.mxu0 0.0
    %4051 = vmatpush1.msra.mxu0 0.0
    %4052 = vmatprep.subr.mxu0 0.0
    %4053 = vmatpush1.msra.mxu0 0.0
    %4054 = vmatprep.subr.mxu0 0.0
    %4055 = vmatpush1.msra.mxu0 0.0
    %4056 = vmatprep.subr.mxu0 0.0
    %4057 = vmatpush1.msra.mxu0 0.0
    %4058 = vmatprep.subr.mxu0 0.0
    %4059 = vmatpush1.msra.mxu0 0.0
    %4060 = vmatprep.subr.mxu0 0.0
    %4061 = vmatpush1.msra.mxu0 0.0
    %4062 = vmatprep.subr.mxu0 0.0
    %4063 = vmatpush1.msra.mxu0 0.0
    %4064 = vmatprep.subr.mxu0 0.0
    %4065 = vmatpush1.msra.mxu0 0.0
    %4066 = vmatprep.subr.mxu0 0.0
    %4067 = vmatpush1.msra.mxu0 0.0
    %4068 = vmatprep.subr.mxu0 0.0
    %4069 = vmatpush1.msra.mxu0 0.0
    %4070 = vmatprep.mubr.f32.mxu0 0.0
    %4071 = vmatmul.mubr.f32.gmra.mrb[0].mxu0 %v3992
    %v4072 = vpop.f32.mrb[0].mxu0
    %v4073 = vadd.f32 0.0, %v4072
    %v4074 = vpop.f32.mrb[0].mxu0
    %4075 = vmatprep.mubr.f32.mxu0 0.0
    %4076 = vmatmul.mubr.f32.gmra.mrb[0].mxu0 %v3995
    %v4077 = vpop.f32.mrb[0].mxu0
    %v4078 = vadd.f32 0.0, %v4077
    %v4079 = vpop.f32.mrb[0].mxu0
    %4080 = vmatprep.mubr.f32.mxu0 0.0
    %4081 = vmatmul.mubr.f32.gmra.mrb[0].mxu0 %v3998
    %v4082 = vpop.f32.mrb[0].mxu0
    %v4083 = vadd.f32 0.0, %v4082
    %v4084 = vpop.f32.mrb[0].mxu0
    %4085 = vmatprep.mubr.f32.mxu0 0.0
    %4086 = vmatmul.mubr.f32.gmra.mrb[0].mxu0 %v4001
    %v4087 = vpop.f32.mrb[0].mxu0
    %v4088 = vadd.f32 0.0, %v4087
    %v4089 = vpop.f32.mrb[0].mxu0
    %4090 = vdwg.mxu0
    %v4091 = vld [vmem:[%s13] sm:$0xff]
    %v4092 = vld [vmem:[%s13 + $0x8] sm:$0xff]
    %v4093 = vld [vmem:[%s14] sm:$0xff]
    %v4094 = vld [vmem:[%s14 + $0x8] sm:$0xff]
    %v4095 = vld [vmem:[%s15] sm:$0xff]
    %v4096 = vld [vmem:[%s15 + $0x8] sm:$0xff]
    %v4097 = vld [vmem:[%s16] sm:$0xff]
    %v4098 = vld [vmem:[%s16 + $0x8] sm:$0x3]
    %4100 = vset.pattern.permute.xlu0 0
    %4101 = vperm.xlu0 %4100, %v4091
    %v4102 = vpop.permute.xlu0 %4101
    %4105 = vset.pattern.permute.xlu0 0
    %4106 = vperm.xlu0 %4105, %v4092
    %v4107 = vpop.permute.xlu0 %4106
    %v4109 = vlaneseq
    %v4110 = vshrl.u32 %v4109, 7
    %v4111 = vsub.s32 0, %v4110
    %v4112 = vrot.slane %v4073, %v4111
    %v4113 = vlaneseq
    %v4114 = vshrl.u32 %v4113, 7
    %v4115 = vsub.s32 0, %v4114
    %v4116 = vrot.slane %v4083, %v4115
    %v4117 = vmul.f32 %v4102, %v4112
    %v4118 = vmul.f32 %v4107, %v4112
    %v4119 = vmul.f32 %v4102, %v4116
    %v4120 = vmul.f32 %v4107, %v4116
    %4121 = vset.pattern.permute.xlu0 1
    %4122 = vperm.xlu0 %4121, %v4091
    %v4123 = vpop.permute.xlu0 %4122
    %4125 = vset.pattern.permute.xlu0 1
    %4126 = vperm.xlu0 %4125, %v4092
    %v4127 = vpop.permute.xlu0 %4126
    %v4129 = vmul.f32 %v4123, %v4112
    %v4130 = vmul.f32 %v4127, %v4112
    %v4131 = vmul.f32 %v4123, %v4116
    %v4132 = vmul.f32 %v4127, %v4116
    %4137 = vrot.lane.b32.xlu0 %v4129, 127
    %v4138 = vpop.permute.xlu0 %4137
    %4139 = vrot.lane.b32.xlu0 %v4130, 127
    %v4140 = vpop.permute.xlu0 %4139
    %4141 = vrot.lane.b32.xlu0 %v4131, 127
    %v4142 = vpop.permute.xlu0 %4141
    %4143 = vrot.lane.b32.xlu0 %v4132, 127
    %v4144 = vpop.permute.xlu0 %4143
    %v4149 = vadd.f32 %v4117, %v4138
    %v4150 = vadd.f32 %v4118, %v4140
    %v4151 = vadd.f32 %v4119, %v4142
    %v4152 = vadd.f32 %v4120, %v4144
    %4153 = vset.pattern.permute.xlu0 2
    %4154 = vperm.xlu0 %4153, %v4091
    %v4155 = vpop.permute.xlu0 %4154
    %4157 = vset.pattern.permute.xlu0 2
    %4158 = vperm.xlu0 %4157, %v4092
    %v4159 = vpop.permute.xlu0 %4158
    %v4161 = vmul.f32 %v4155, %v4112
    %v4162 = vmul.f32 %v4159, %v4112
    %v4163 = vmul.f32 %v4155, %v4116
    %v4164 = vmul.f32 %v4159, %v4116
    %4169 = vrot.lane.b32.xlu0 %v4161, 126
    %v4170 = vpop.permute.xlu0 %4169
    %4171 = vrot.lane.b32.xlu0 %v4162, 126
    %v4172 = vpop.permute.xlu0 %4171
    %4173 = vrot.lane.b32.xlu0 %v4163, 126
    %v4174 = vpop.permute.xlu0 %4173
    %4175 = vrot.lane.b32.xlu0 %v4164, 126
    %v4176 = vpop.permute.xlu0 %4175
    %v4181 = vadd.f32 %v4149, %v4170
    %v4182 = vadd.f32 %v4150, %v4172
    %v4183 = vadd.f32 %v4151, %v4174
    %v4184 = vadd.f32 %v4152, %v4176
    %4185 = vset.pattern.permute.xlu0 3
    %4186 = vperm.xlu0 %4185, %v4091
    %v4187 = vpop.permute.xlu0 %4186
    %4189 = vset.pattern.permute.xlu0 3
    %4190 = vperm.xlu0 %4189, %v4092
    %v4191 = vpop.permute.xlu0 %4190
    %v4193 = vlaneseq
    %v4194 = vshrl.u32 %v4193, 7
    %v4195 = vsub.s32 1, %v4194
    %v4196 = vrot.slane %v4073, %v4195
    %v4197 = vlaneseq
    %v4198 = vshrl.u32 %v4197, 7
    %v4199 = vsub.s32 1, %v4198
    %v4200 = vrot.slane %v4083, %v4199
    %v4201 = vmul.f32 %v4187, %v4196
    %v4202 = vmul.f32 %v4191, %v4196
    %v4203 = vmul.f32 %v4187, %v4200
    %v4204 = vmul.f32 %v4191, %v4200
    %v4205 = vadd.f32 %v4181, %v4201
    %v4206 = vadd.f32 %v4182, %v4202
    %v4207 = vadd.f32 %v4183, %v4203
    %v4208 = vadd.f32 %v4184, %v4204
    %4209 = vset.pattern.permute.xlu0 4
    %4210 = vperm.xlu0 %4209, %v4091
    %v4211 = vpop.permute.xlu0 %4210
    %4213 = vset.pattern.permute.xlu0 4
    %4214 = vperm.xlu0 %4213, %v4092
    %v4215 = vpop.permute.xlu0 %4214
    %v4217 = vmul.f32 %v4211, %v4196
    %v4218 = vmul.f32 %v4215, %v4196
    %v4219 = vmul.f32 %v4211, %v4200
    %v4220 = vmul.f32 %v4215, %v4200
    %4225 = vrot.lane.b32.xlu0 %v4217, 127
    %v4226 = vpop.permute.xlu0 %4225
    %4227 = vrot.lane.b32.xlu0 %v4218, 127
    %v4228 = vpop.permute.xlu0 %4227
    %4229 = vrot.lane.b32.xlu0 %v4219, 127
    %v4230 = vpop.permute.xlu0 %4229
    %4231 = vrot.lane.b32.xlu0 %v4220, 127
    %v4232 = vpop.permute.xlu0 %4231
    %v4237 = vadd.f32 %v4205, %v4226
    %v4238 = vadd.f32 %v4206, %v4228
    %v4239 = vadd.f32 %v4207, %v4230
    %v4240 = vadd.f32 %v4208, %v4232
    %4241 = vset.pattern.permute.xlu0 5
    %4242 = vperm.xlu0 %4241, %v4091
    %v4243 = vpop.permute.xlu0 %4242
    %4245 = vset.pattern.permute.xlu0 5
    %4246 = vperm.xlu0 %4245, %v4092
    %v4247 = vpop.permute.xlu0 %4246
    %v4249 = vmul.f32 %v4243, %v4196
    %v4250 = vmul.f32 %v4247, %v4196
    %v4251 = vmul.f32 %v4243, %v4200
    %v4252 = vmul.f32 %v4247, %v4200
    %4257 = vrot.lane.b32.xlu0 %v4249, 126
    %v4258 = vpop.permute.xlu0 %4257
    %4259 = vrot.lane.b32.xlu0 %v4250, 126
    %v4260 = vpop.permute.xlu0 %4259
    %4261 = vrot.lane.b32.xlu0 %v4251, 126
    %v4262 = vpop.permute.xlu0 %4261
    %4263 = vrot.lane.b32.xlu0 %v4252, 126
    %v4264 = vpop.permute.xlu0 %4263
    %v4269 = vadd.f32 %v4237, %v4258
    %v4270 = vadd.f32 %v4238, %v4260
    %v4271 = vadd.f32 %v4239, %v4262
    %v4272 = vadd.f32 %v4240, %v4264
    %4273 = vset.pattern.permute.xlu0 6
    %4274 = vperm.xlu0 %4273, %v4091
    %v4275 = vpop.permute.xlu0 %4274
    %4277 = vset.pattern.permute.xlu0 6
    %4278 = vperm.xlu0 %4277, %v4092
    %v4279 = vpop.permute.xlu0 %4278
    %v4281 = vlaneseq
    %v4282 = vshrl.u32 %v4281, 7
    %v4283 = vsub.s32 2, %v4282
    %v4284 = vrot.slane %v4073, %v4283
    %v4285 = vlaneseq
    %v4286 = vshrl.u32 %v4285, 7
    %v4287 = vsub.s32 2, %v4286
    %v4288 = vrot.slane %v4083, %v4287
    %v4289 = vmul.f32 %v4275, %v4284
    %v4290 = vmul.f32 %v4279, %v4284
    %v4291 = vmul.f32 %v4275, %v4288
    %v4292 = vmul.f32 %v4279, %v4288
    %v4293 = vadd.f32 %v4269, %v4289
    %v4294 = vadd.f32 %v4270, %v4290
    %v4295 = vadd.f32 %v4271, %v4291
    %v4296 = vadd.f32 %v4272, %v4292
    %4297 = vset.pattern.permute.xlu0 7
    %4298 = vperm.xlu0 %4297, %v4091
    %v4299 = vpop.permute.xlu0 %4298
    %4301 = vset.pattern.permute.xlu0 7
    %4302 = vperm.xlu0 %4301, %v4092
    %v4303 = vpop.permute.xlu0 %4302
    %v4305 = vmul.f32 %v4299, %v4284
    %v4306 = vmul.f32 %v4303, %v4284
    %v4307 = vmul.f32 %v4299, %v4288
    %v4308 = vmul.f32 %v4303, %v4288
    %4313 = vrot.lane.b32.xlu0 %v4305, 127
    %v4314 = vpop.permute.xlu0 %4313
    %4315 = vrot.lane.b32.xlu0 %v4306, 127
    %v4316 = vpop.permute.xlu0 %4315
    %4317 = vrot.lane.b32.xlu0 %v4307, 127
    %v4318 = vpop.permute.xlu0 %4317
    %4319 = vrot.lane.b32.xlu0 %v4308, 127
    %v4320 = vpop.permute.xlu0 %4319
    %v4325 = vadd.f32 %v4293, %v4314
    %v4326 = vadd.f32 %v4294, %v4316
    %v4327 = vadd.f32 %v4295, %v4318
    %v4328 = vadd.f32 %v4296, %v4320
    %4329 = vset.pattern.permute.xlu0 8
    %4330 = vperm.xlu0 %4329, %v4091
    %v4331 = vpop.permute.xlu0 %4330
    %4333 = vset.pattern.permute.xlu0 8
    %4334 = vperm.xlu0 %4333, %v4092
    %v4335 = vpop.permute.xlu0 %4334
    %v4337 = vmul.f32 %v4331, %v4284
    %v4338 = vmul.f32 %v4335, %v4284
    %v4339 = vmul.f32 %v4331, %v4288
    %v4340 = vmul.f32 %v4335, %v4288
    %4345 = vrot.lane.b32.xlu0 %v4337, 126
    %v4346 = vpop.permute.xlu0 %4345
    %4347 = vrot.lane.b32.xlu0 %v4338, 126
    %v4348 = vpop.permute.xlu0 %4347
    %4349 = vrot.lane.b32.xlu0 %v4339, 126
    %v4350 = vpop.permute.xlu0 %4349
    %4351 = vrot.lane.b32.xlu0 %v4340, 126
    %v4352 = vpop.permute.xlu0 %4351
    %v4357 = vadd.f32 %v4325, %v4346
    %v4358 = vadd.f32 %v4326, %v4348
    %v4359 = vadd.f32 %v4327, %v4350
    %v4360 = vadd.f32 %v4328, %v4352
    %4361 = vset.pattern.permute.xlu0 9
    %4362 = vperm.xlu0 %4361, %v4091
    %v4363 = vpop.permute.xlu0 %4362
    %4365 = vset.pattern.permute.xlu0 9
    %4366 = vperm.xlu0 %4365, %v4092
    %v4367 = vpop.permute.xlu0 %4366
    %v4369 = vlaneseq
    %v4370 = vshrl.u32 %v4369, 7
    %v4371 = vsub.s32 3, %v4370
    %v4372 = vrot.slane %v4073, %v4371
    %v4373 = vlaneseq
    %v4374 = vshrl.u32 %v4373, 7
    %v4375 = vsub.s32 3, %v4374
    %v4376 = vrot.slane %v4083, %v4375
    %v4377 = vmul.f32 %v4363, %v4372
    %v4378 = vmul.f32 %v4367, %v4372
    %v4379 = vmul.f32 %v4363, %v4376
    %v4380 = vmul.f32 %v4367, %v4376
    %v4381 = vadd.f32 %v4357, %v4377
    %v4382 = vadd.f32 %v4358, %v4378
    %v4383 = vadd.f32 %v4359, %v4379
    %v4384 = vadd.f32 %v4360, %v4380
    %4385 = vset.pattern.permute.xlu0 10
    %4386 = vperm.xlu0 %4385, %v4091
    %v4387 = vpop.permute.xlu0 %4386
    %4389 = vset.pattern.permute.xlu0 10
    %4390 = vperm.xlu0 %4389, %v4092
    %v4391 = vpop.permute.xlu0 %4390
    %v4393 = vmul.f32 %v4387, %v4372
    %v4394 = vmul.f32 %v4391, %v4372
    %v4395 = vmul.f32 %v4387, %v4376
    %v4396 = vmul.f32 %v4391, %v4376
    %4401 = vrot.lane.b32.xlu0 %v4393, 127
    %v4402 = vpop.permute.xlu0 %4401
    %4403 = vrot.lane.b32.xlu0 %v4394, 127
    %v4404 = vpop.permute.xlu0 %4403
    %4405 = vrot.lane.b32.xlu0 %v4395, 127
    %v4406 = vpop.permute.xlu0 %4405
    %4407 = vrot.lane.b32.xlu0 %v4396, 127
    %v4408 = vpop.permute.xlu0 %4407
    %v4413 = vadd.f32 %v4381, %v4402
    %v4414 = vadd.f32 %v4382, %v4404
    %v4415 = vadd.f32 %v4383, %v4406
    %v4416 = vadd.f32 %v4384, %v4408
    %4417 = vset.pattern.permute.xlu0 11
    %4418 = vperm.xlu0 %4417, %v4091
    %v4419 = vpop.permute.xlu0 %4418
    %4421 = vset.pattern.permute.xlu0 11
    %4422 = vperm.xlu0 %4421, %v4092
    %v4423 = vpop.permute.xlu0 %4422
    %v4425 = vmul.f32 %v4419, %v4372
    %v4426 = vmul.f32 %v4423, %v4372
    %v4427 = vmul.f32 %v4419, %v4376
    %v4428 = vmul.f32 %v4423, %v4376
    %4433 = vrot.lane.b32.xlu0 %v4425, 126
    %v4434 = vpop.permute.xlu0 %4433
    %4435 = vrot.lane.b32.xlu0 %v4426, 126
    %v4436 = vpop.permute.xlu0 %4435
    %4437 = vrot.lane.b32.xlu0 %v4427, 126
    %v4438 = vpop.permute.xlu0 %4437
    %4439 = vrot.lane.b32.xlu0 %v4428, 126
    %v4440 = vpop.permute.xlu0 %4439
    %v4445 = vadd.f32 %v4413, %v4434
    %v4446 = vadd.f32 %v4414, %v4436
    %v4447 = vadd.f32 %v4415, %v4438
    %v4448 = vadd.f32 %v4416, %v4440
    %4449 = vset.pattern.permute.xlu0 12
    %4450 = vperm.xlu0 %4449, %v4091
    %v4451 = vpop.permute.xlu0 %4450
    %4453 = vset.pattern.permute.xlu0 12
    %4454 = vperm.xlu0 %4453, %v4092
    %v4455 = vpop.permute.xlu0 %4454
    %v4457 = vlaneseq
    %v4458 = vshrl.u32 %v4457, 7
    %v4459 = vsub.s32 4, %v4458
    %v4460 = vrot.slane %v4073, %v4459
    %v4461 = vlaneseq
    %v4462 = vshrl.u32 %v4461, 7
    %v4463 = vsub.s32 4, %v4462
    %v4464 = vrot.slane %v4083, %v4463
    %v4465 = vmul.f32 %v4451, %v4460
    %v4466 = vmul.f32 %v4455, %v4460
    %v4467 = vmul.f32 %v4451, %v4464
    %v4468 = vmul.f32 %v4455, %v4464
    %v4469 = vadd.f32 %v4445, %v4465
    %v4470 = vadd.f32 %v4446, %v4466
    %v4471 = vadd.f32 %v4447, %v4467
    %v4472 = vadd.f32 %v4448, %v4468
    %4473 = vset.pattern.permute.xlu0 13
    %4474 = vperm.xlu0 %4473, %v4091
    %v4475 = vpop.permute.xlu0 %4474
    %4477 = vset.pattern.permute.xlu0 13
    %4478 = vperm.xlu0 %4477, %v4092
    %v4479 = vpop.permute.xlu0 %4478
    %v4481 = vmul.f32 %v4475, %v4460
    %v4482 = vmul.f32 %v4479, %v4460
    %v4483 = vmul.f32 %v4475, %v4464
    %v4484 = vmul.f32 %v4479, %v4464
    %4489 = vrot.lane.b32.xlu0 %v4481, 127
    %v4490 = vpop.permute.xlu0 %4489
    %4491 = vrot.lane.b32.xlu0 %v4482, 127
    %v4492 = vpop.permute.xlu0 %4491
    %4493 = vrot.lane.b32.xlu0 %v4483, 127
    %v4494 = vpop.permute.xlu0 %4493
    %4495 = vrot.lane.b32.xlu0 %v4484, 127
    %v4496 = vpop.permute.xlu0 %4495
    %v4501 = vadd.f32 %v4469, %v4490
    %v4502 = vadd.f32 %v4470, %v4492
    %v4503 = vadd.f32 %v4471, %v4494
    %v4504 = vadd.f32 %v4472, %v4496
    %4505 = vset.pattern.permute.xlu0 14
    %4506 = vperm.xlu0 %4505, %v4091
    %v4507 = vpop.permute.xlu0 %4506
    %4509 = vset.pattern.permute.xlu0 14
    %4510 = vperm.xlu0 %4509, %v4092
    %v4511 = vpop.permute.xlu0 %4510
    %v4513 = vmul.f32 %v4507, %v4460
    %v4514 = vmul.f32 %v4511, %v4460
    %v4515 = vmul.f32 %v4507, %v4464
    %v4516 = vmul.f32 %v4511, %v4464
    %4521 = vrot.lane.b32.xlu0 %v4513, 126
    %v4522 = vpop.permute.xlu0 %4521
    %4523 = vrot.lane.b32.xlu0 %v4514, 126
    %v4524 = vpop.permute.xlu0 %4523
    %4525 = vrot.lane.b32.xlu0 %v4515, 126
    %v4526 = vpop.permute.xlu0 %4525
    %4527 = vrot.lane.b32.xlu0 %v4516, 126
    %v4528 = vpop.permute.xlu0 %4527
    %v4533 = vadd.f32 %v4501, %v4522
    %v4534 = vadd.f32 %v4502, %v4524
    %v4535 = vadd.f32 %v4503, %v4526
    %v4536 = vadd.f32 %v4504, %v4528
    %4537 = vset.pattern.permute.xlu0 15
    %4538 = vperm.xlu0 %4537, %v4091
    %v4539 = vpop.permute.xlu0 %4538
    %4541 = vset.pattern.permute.xlu0 15
    %4542 = vperm.xlu0 %4541, %v4092
    %v4543 = vpop.permute.xlu0 %4542
    %v4545 = vlaneseq
    %v4546 = vshrl.u32 %v4545, 7
    %v4547 = vsub.s32 5, %v4546
    %v4548 = vrot.slane %v4073, %v4547
    %v4549 = vlaneseq
    %v4550 = vshrl.u32 %v4549, 7
    %v4551 = vsub.s32 5, %v4550
    %v4552 = vrot.slane %v4083, %v4551
    %v4553 = vmul.f32 %v4539, %v4548
    %v4554 = vmul.f32 %v4543, %v4548
    %v4555 = vmul.f32 %v4539, %v4552
    %v4556 = vmul.f32 %v4543, %v4552
    %v4557 = vadd.f32 %v4533, %v4553
    %v4558 = vadd.f32 %v4534, %v4554
    %v4559 = vadd.f32 %v4535, %v4555
    %v4560 = vadd.f32 %v4536, %v4556
    %4561 = vset.pattern.permute.xlu0 16
    %4562 = vperm.xlu0 %4561, %v4091
    %v4563 = vpop.permute.xlu0 %4562
    %4565 = vset.pattern.permute.xlu0 16
    %4566 = vperm.xlu0 %4565, %v4092
    %v4567 = vpop.permute.xlu0 %4566
    %v4569 = vmul.f32 %v4563, %v4548
    %v4570 = vmul.f32 %v4567, %v4548
    %v4571 = vmul.f32 %v4563, %v4552
    %v4572 = vmul.f32 %v4567, %v4552
    %4577 = vrot.lane.b32.xlu0 %v4569, 127
    %v4578 = vpop.permute.xlu0 %4577
    %4579 = vrot.lane.b32.xlu0 %v4570, 127
    %v4580 = vpop.permute.xlu0 %4579
    %4581 = vrot.lane.b32.xlu0 %v4571, 127
    %v4582 = vpop.permute.xlu0 %4581
    %4583 = vrot.lane.b32.xlu0 %v4572, 127
    %v4584 = vpop.permute.xlu0 %4583
    %v4589 = vadd.f32 %v4557, %v4578
    %v4590 = vadd.f32 %v4558, %v4580
    %v4591 = vadd.f32 %v4559, %v4582
    %v4592 = vadd.f32 %v4560, %v4584
    %4593 = vset.pattern.permute.xlu0 17
    %4594 = vperm.xlu0 %4593, %v4091
    %v4595 = vpop.permute.xlu0 %4594
    %4597 = vset.pattern.permute.xlu0 17
    %4598 = vperm.xlu0 %4597, %v4092
    %v4599 = vpop.permute.xlu0 %4598
    %v4601 = vmul.f32 %v4595, %v4548
    %v4602 = vmul.f32 %v4599, %v4548
    %v4603 = vmul.f32 %v4595, %v4552
    %v4604 = vmul.f32 %v4599, %v4552
    %4609 = vrot.lane.b32.xlu0 %v4601, 126
    %v4610 = vpop.permute.xlu0 %4609
    %4611 = vrot.lane.b32.xlu0 %v4602, 126
    %v4612 = vpop.permute.xlu0 %4611
    %4613 = vrot.lane.b32.xlu0 %v4603, 126
    %v4614 = vpop.permute.xlu0 %4613
    %4615 = vrot.lane.b32.xlu0 %v4604, 126
    %v4616 = vpop.permute.xlu0 %4615
    %v4621 = vadd.f32 %v4589, %v4610
    %v4622 = vadd.f32 %v4590, %v4612
    %v4623 = vadd.f32 %v4591, %v4614
    %v4624 = vadd.f32 %v4592, %v4616
    %4625 = vset.pattern.permute.xlu0 18
    %4626 = vperm.xlu0 %4625, %v4091
    %v4627 = vpop.permute.xlu0 %4626
    %4629 = vset.pattern.permute.xlu0 18
    %4630 = vperm.xlu0 %4629, %v4092
    %v4631 = vpop.permute.xlu0 %4630
    %v4633 = vlaneseq
    %v4634 = vshrl.u32 %v4633, 7
    %v4635 = vsub.s32 6, %v4634
    %v4636 = vrot.slane %v4073, %v4635
    %v4637 = vlaneseq
    %v4638 = vshrl.u32 %v4637, 7
    %v4639 = vsub.s32 6, %v4638
    %v4640 = vrot.slane %v4083, %v4639
    %v4641 = vmul.f32 %v4627, %v4636
    %v4642 = vmul.f32 %v4631, %v4636
    %v4643 = vmul.f32 %v4627, %v4640
    %v4644 = vmul.f32 %v4631, %v4640
    %v4645 = vadd.f32 %v4621, %v4641
    %v4646 = vadd.f32 %v4622, %v4642
    %v4647 = vadd.f32 %v4623, %v4643
    %v4648 = vadd.f32 %v4624, %v4644
    %4649 = vset.pattern.permute.xlu0 19
    %4650 = vperm.xlu0 %4649, %v4091
    %v4651 = vpop.permute.xlu0 %4650
    %4653 = vset.pattern.permute.xlu0 19
    %4654 = vperm.xlu0 %4653, %v4092
    %v4655 = vpop.permute.xlu0 %4654
    %v4657 = vmul.f32 %v4651, %v4636
    %v4658 = vmul.f32 %v4655, %v4636
    %v4659 = vmul.f32 %v4651, %v4640
    %v4660 = vmul.f32 %v4655, %v4640
    %4665 = vrot.lane.b32.xlu0 %v4657, 127
    %v4666 = vpop.permute.xlu0 %4665
    %4667 = vrot.lane.b32.xlu0 %v4658, 127
    %v4668 = vpop.permute.xlu0 %4667
    %4669 = vrot.lane.b32.xlu0 %v4659, 127
    %v4670 = vpop.permute.xlu0 %4669
    %4671 = vrot.lane.b32.xlu0 %v4660, 127
    %v4672 = vpop.permute.xlu0 %4671
    %v4677 = vadd.f32 %v4645, %v4666
    %v4678 = vadd.f32 %v4646, %v4668
    %v4679 = vadd.f32 %v4647, %v4670
    %v4680 = vadd.f32 %v4648, %v4672
    %4681 = vset.pattern.permute.xlu0 20
    %4682 = vperm.xlu0 %4681, %v4091
    %v4683 = vpop.permute.xlu0 %4682
    %4685 = vset.pattern.permute.xlu0 20
    %4686 = vperm.xlu0 %4685, %v4092
    %v4687 = vpop.permute.xlu0 %4686
    %v4689 = vmul.f32 %v4683, %v4636
    %v4690 = vmul.f32 %v4687, %v4636
    %v4691 = vmul.f32 %v4683, %v4640
    %v4692 = vmul.f32 %v4687, %v4640
    %4697 = vrot.lane.b32.xlu0 %v4689, 126
    %v4698 = vpop.permute.xlu0 %4697
    %4699 = vrot.lane.b32.xlu0 %v4690, 126
    %v4700 = vpop.permute.xlu0 %4699
    %4701 = vrot.lane.b32.xlu0 %v4691, 126
    %v4702 = vpop.permute.xlu0 %4701
    %4703 = vrot.lane.b32.xlu0 %v4692, 126
    %v4704 = vpop.permute.xlu0 %4703
    %v4709 = vadd.f32 %v4677, %v4698
    %v4710 = vadd.f32 %v4678, %v4700
    %v4711 = vadd.f32 %v4679, %v4702
    %v4712 = vadd.f32 %v4680, %v4704
    %4713 = vset.pattern.permute.xlu0 21
    %4714 = vperm.xlu0 %4713, %v4091
    %v4715 = vpop.permute.xlu0 %4714
    %4717 = vset.pattern.permute.xlu0 21
    %4718 = vperm.xlu0 %4717, %v4092
    %v4719 = vpop.permute.xlu0 %4718
    %v4721 = vlaneseq
    %v4722 = vshrl.u32 %v4721, 7
    %v4723 = vsub.s32 7, %v4722
    %v4724 = vrot.slane %v4073, %v4723
    %v4725 = vlaneseq
    %v4726 = vshrl.u32 %v4725, 7
    %v4727 = vsub.s32 7, %v4726
    %v4728 = vrot.slane %v4083, %v4727
    %v4729 = vmul.f32 %v4715, %v4724
    %v4730 = vmul.f32 %v4719, %v4724
    %v4731 = vmul.f32 %v4715, %v4728
    %v4732 = vmul.f32 %v4719, %v4728
    %v4733 = vadd.f32 %v4709, %v4729
    %v4734 = vadd.f32 %v4710, %v4730
    %v4735 = vadd.f32 %v4711, %v4731
    %v4736 = vadd.f32 %v4712, %v4732
    %4737 = vset.pattern.permute.xlu0 22
    %4738 = vperm.xlu0 %4737, %v4091
    %v4739 = vpop.permute.xlu0 %4738
    %4741 = vset.pattern.permute.xlu0 22
    %4742 = vperm.xlu0 %4741, %v4092
    %v4743 = vpop.permute.xlu0 %4742
    %v4745 = vmul.f32 %v4739, %v4724
    %v4746 = vmul.f32 %v4743, %v4724
    %v4747 = vmul.f32 %v4739, %v4728
    %v4748 = vmul.f32 %v4743, %v4728
    %4753 = vrot.lane.b32.xlu0 %v4745, 127
    %v4754 = vpop.permute.xlu0 %4753
    %4755 = vrot.lane.b32.xlu0 %v4746, 127
    %v4756 = vpop.permute.xlu0 %4755
    %4757 = vrot.lane.b32.xlu0 %v4747, 127
    %v4758 = vpop.permute.xlu0 %4757
    %4759 = vrot.lane.b32.xlu0 %v4748, 127
    %v4760 = vpop.permute.xlu0 %4759
    %v4765 = vadd.f32 %v4733, %v4754
    %v4766 = vadd.f32 %v4734, %v4756
    %v4767 = vadd.f32 %v4735, %v4758
    %v4768 = vadd.f32 %v4736, %v4760
    %4769 = vset.pattern.permute.xlu0 23
    %4770 = vperm.xlu0 %4769, %v4091
    %v4771 = vpop.permute.xlu0 %4770
    %4773 = vset.pattern.permute.xlu0 23
    %4774 = vperm.xlu0 %4773, %v4092
    %v4775 = vpop.permute.xlu0 %4774
    %v4777 = vmul.f32 %v4771, %v4724
    %v4778 = vmul.f32 %v4775, %v4724
    %v4779 = vmul.f32 %v4771, %v4728
    %v4780 = vmul.f32 %v4775, %v4728
    %4785 = vrot.lane.b32.xlu0 %v4777, 126
    %v4786 = vpop.permute.xlu0 %4785
    %4787 = vrot.lane.b32.xlu0 %v4778, 126
    %v4788 = vpop.permute.xlu0 %4787
    %4789 = vrot.lane.b32.xlu0 %v4779, 126
    %v4790 = vpop.permute.xlu0 %4789
    %4791 = vrot.lane.b32.xlu0 %v4780, 126
    %v4792 = vpop.permute.xlu0 %4791
    %v4797 = vadd.f32 %v4765, %v4786
    %v4798 = vadd.f32 %v4766, %v4788
    %v4799 = vadd.f32 %v4767, %v4790
    %v4800 = vadd.f32 %v4768, %v4792
    %4801 = vset.pattern.permute.xlu0 24
    %4802 = vperm.xlu0 %4801, %v4091
    %v4803 = vpop.permute.xlu0 %4802
    %4805 = vset.pattern.permute.xlu0 24
    %4806 = vperm.xlu0 %4805, %v4092
    %v4807 = vpop.permute.xlu0 %4806
    %v4809 = vlaneseq
    %v4810 = vshrl.u32 %v4809, 7
    %v4811 = vsub.s32 0, %v4810
    %v4812 = vrot.slane %v4078, %v4811
    %v4813 = vlaneseq
    %v4814 = vshrl.u32 %v4813, 7
    %v4815 = vsub.s32 0, %v4814
    %v4816 = vrot.slane %v4088, %v4815
    %v4817 = vmul.f32 %v4803, %v4812
    %v4818 = vmul.f32 %v4807, %v4812
    %v4819 = vmul.f32 %v4803, %v4816
    %v4820 = vmul.f32 %v4807, %v4816
    %v4821 = vadd.f32 %v4797, %v4817
    %v4822 = vadd.f32 %v4798, %v4818
    %v4823 = vadd.f32 %v4799, %v4819
    %v4824 = vadd.f32 %v4800, %v4820
    %4825 = vset.pattern.permute.xlu0 25
    %4826 = vperm.xlu0 %4825, %v4091
    %v4827 = vpop.permute.xlu0 %4826
    %4829 = vset.pattern.permute.xlu0 25
    %4830 = vperm.xlu0 %4829, %v4092
    %v4831 = vpop.permute.xlu0 %4830
    %v4833 = vmul.f32 %v4827, %v4812
    %v4834 = vmul.f32 %v4831, %v4812
    %v4835 = vmul.f32 %v4827, %v4816
    %v4836 = vmul.f32 %v4831, %v4816
    %4841 = vrot.lane.b32.xlu0 %v4833, 127
    %v4842 = vpop.permute.xlu0 %4841
    %4843 = vrot.lane.b32.xlu0 %v4834, 127
    %v4844 = vpop.permute.xlu0 %4843
    %4845 = vrot.lane.b32.xlu0 %v4835, 127
    %v4846 = vpop.permute.xlu0 %4845
    %4847 = vrot.lane.b32.xlu0 %v4836, 127
    %v4848 = vpop.permute.xlu0 %4847
    %v4853 = vadd.f32 %v4821, %v4842
    %v4854 = vadd.f32 %v4822, %v4844
    %v4855 = vadd.f32 %v4823, %v4846
    %v4856 = vadd.f32 %v4824, %v4848
    %4857 = vset.pattern.permute.xlu0 26
    %4858 = vperm.xlu0 %4857, %v4091
    %v4859 = vpop.permute.xlu0 %4858
    %4861 = vset.pattern.permute.xlu0 26
    %4862 = vperm.xlu0 %4861, %v4092
    %v4863 = vpop.permute.xlu0 %4862
    %v4865 = vmul.f32 %v4859, %v4812
    %v4866 = vmul.f32 %v4863, %v4812
    %v4867 = vmul.f32 %v4859, %v4816
    %v4868 = vmul.f32 %v4863, %v4816
    %4873 = vrot.lane.b32.xlu0 %v4865, 126
    %v4874 = vpop.permute.xlu0 %4873
    %4875 = vrot.lane.b32.xlu0 %v4866, 126
    %v4876 = vpop.permute.xlu0 %4875
    %4877 = vrot.lane.b32.xlu0 %v4867, 126
    %v4878 = vpop.permute.xlu0 %4877
    %4879 = vrot.lane.b32.xlu0 %v4868, 126
    %v4880 = vpop.permute.xlu0 %4879
    %v4885 = vadd.f32 %v4853, %v4874
    %v4886 = vadd.f32 %v4854, %v4876
    %v4887 = vadd.f32 %v4855, %v4878
    %v4888 = vadd.f32 %v4856, %v4880
    %4889 = vset.pattern.permute.xlu0 27
    %4890 = vperm.xlu0 %4889, %v4091
    %v4891 = vpop.permute.xlu0 %4890
    %4893 = vset.pattern.permute.xlu0 27
    %4894 = vperm.xlu0 %4893, %v4092
    %v4895 = vpop.permute.xlu0 %4894
    %v4897 = vlaneseq
    %v4898 = vshrl.u32 %v4897, 7
    %v4899 = vsub.s32 1, %v4898
    %v4900 = vrot.slane %v4078, %v4899
    %v4901 = vlaneseq
    %v4902 = vshrl.u32 %v4901, 7
    %v4903 = vsub.s32 1, %v4902
    %v4904 = vrot.slane %v4088, %v4903
    %v4905 = vmul.f32 %v4891, %v4900
    %v4906 = vmul.f32 %v4895, %v4900
    %v4907 = vmul.f32 %v4891, %v4904
    %v4908 = vmul.f32 %v4895, %v4904
    %v4909 = vadd.f32 %v4885, %v4905
    %v4910 = vadd.f32 %v4886, %v4906
    %v4911 = vadd.f32 %v4887, %v4907
    %v4912 = vadd.f32 %v4888, %v4908
    %4913 = vset.pattern.permute.xlu0 28
    %4914 = vperm.xlu0 %4913, %v4091
    %v4915 = vpop.permute.xlu0 %4914
    %4917 = vset.pattern.permute.xlu0 28
    %4918 = vperm.xlu0 %4917, %v4092
    %v4919 = vpop.permute.xlu0 %4918
    %v4921 = vmul.f32 %v4915, %v4900
    %v4922 = vmul.f32 %v4919, %v4900
    %v4923 = vmul.f32 %v4915, %v4904
    %v4924 = vmul.f32 %v4919, %v4904
    %4929 = vrot.lane.b32.xlu0 %v4921, 127
    %v4930 = vpop.permute.xlu0 %4929
    %4931 = vrot.lane.b32.xlu0 %v4922, 127
    %v4932 = vpop.permute.xlu0 %4931
    %4933 = vrot.lane.b32.xlu0 %v4923, 127
    %v4934 = vpop.permute.xlu0 %4933
    %4935 = vrot.lane.b32.xlu0 %v4924, 127
    %v4936 = vpop.permute.xlu0 %4935
    %v4941 = vadd.f32 %v4909, %v4930
    %v4942 = vadd.f32 %v4910, %v4932
    %v4943 = vadd.f32 %v4911, %v4934
    %v4944 = vadd.f32 %v4912, %v4936
    %4945 = vset.pattern.permute.xlu0 29
    %4946 = vperm.xlu0 %4945, %v4091
    %v4947 = vpop.permute.xlu0 %4946
    %4949 = vset.pattern.permute.xlu0 29
    %4950 = vperm.xlu0 %4949, %v4092
    %v4951 = vpop.permute.xlu0 %4950
    %v4953 = vmul.f32 %v4947, %v4900
    %v4954 = vmul.f32 %v4951, %v4900
    %v4955 = vmul.f32 %v4947, %v4904
    %v4956 = vmul.f32 %v4951, %v4904
    %4961 = vrot.lane.b32.xlu0 %v4953, 126
    %v4962 = vpop.permute.xlu0 %4961
    %4963 = vrot.lane.b32.xlu0 %v4954, 126
    %v4964 = vpop.permute.xlu0 %4963
    %4965 = vrot.lane.b32.xlu0 %v4955, 126
    %v4966 = vpop.permute.xlu0 %4965
    %4967 = vrot.lane.b32.xlu0 %v4956, 126
    %v4968 = vpop.permute.xlu0 %4967
    %v4973 = vadd.f32 %v4941, %v4962
    %v4974 = vadd.f32 %v4942, %v4964
    %v4975 = vadd.f32 %v4943, %v4966
    %v4976 = vadd.f32 %v4944, %v4968
    %4977 = vset.pattern.permute.xlu0 30
    %4978 = vperm.xlu0 %4977, %v4091
    %v4979 = vpop.permute.xlu0 %4978
    %4981 = vset.pattern.permute.xlu0 30
    %4982 = vperm.xlu0 %4981, %v4092
    %v4983 = vpop.permute.xlu0 %4982
    %v4985 = vlaneseq
    %v4986 = vshrl.u32 %v4985, 7
    %v4987 = vsub.s32 2, %v4986
    %v4988 = vrot.slane %v4078, %v4987
    %v4989 = vlaneseq
    %v4990 = vshrl.u32 %v4989, 7
    %v4991 = vsub.s32 2, %v4990
    %v4992 = vrot.slane %v4088, %v4991
    %v4993 = vmul.f32 %v4979, %v4988
    %v4994 = vmul.f32 %v4983, %v4988
    %v4995 = vmul.f32 %v4979, %v4992
    %v4996 = vmul.f32 %v4983, %v4992
    %v4997 = vadd.f32 %v4973, %v4993
    %v4998 = vadd.f32 %v4974, %v4994
    %v4999 = vadd.f32 %v4975, %v4995
    %v5000 = vadd.f32 %v4976, %v4996
    %5001 = vset.pattern.permute.xlu0 31
    %5002 = vperm.xlu0 %5001, %v4091
    %v5003 = vpop.permute.xlu0 %5002
    %5005 = vset.pattern.permute.xlu0 31
    %5006 = vperm.xlu0 %5005, %v4092
    %v5007 = vpop.permute.xlu0 %5006
    %v5009 = vmul.f32 %v5003, %v4988
    %v5010 = vmul.f32 %v5007, %v4988
    %v5011 = vmul.f32 %v5003, %v4992
    %v5012 = vmul.f32 %v5007, %v4992
    %5017 = vrot.lane.b32.xlu0 %v5009, 127
    %v5018 = vpop.permute.xlu0 %5017
    %5019 = vrot.lane.b32.xlu0 %v5010, 127
    %v5020 = vpop.permute.xlu0 %5019
    %5021 = vrot.lane.b32.xlu0 %v5011, 127
    %v5022 = vpop.permute.xlu0 %5021
    %5023 = vrot.lane.b32.xlu0 %v5012, 127
    %v5024 = vpop.permute.xlu0 %5023
    %v5029 = vadd.f32 %v4997, %v5018
    %v5030 = vadd.f32 %v4998, %v5020
    %v5031 = vadd.f32 %v4999, %v5022
    %v5032 = vadd.f32 %v5000, %v5024
    %5033 = vset.pattern.permute.xlu0 32
    %5034 = vperm.xlu0 %5033, %v4091
    %v5035 = vpop.permute.xlu0 %5034
    %5037 = vset.pattern.permute.xlu0 32
    %5038 = vperm.xlu0 %5037, %v4092
    %v5039 = vpop.permute.xlu0 %5038
    %v5041 = vmul.f32 %v5035, %v4988
    %v5042 = vmul.f32 %v5039, %v4988
    %v5043 = vmul.f32 %v5035, %v4992
    %v5044 = vmul.f32 %v5039, %v4992
    %5049 = vrot.lane.b32.xlu0 %v5041, 126
    %v5050 = vpop.permute.xlu0 %5049
    %5051 = vrot.lane.b32.xlu0 %v5042, 126
    %v5052 = vpop.permute.xlu0 %5051
    %5053 = vrot.lane.b32.xlu0 %v5043, 126
    %v5054 = vpop.permute.xlu0 %5053
    %5055 = vrot.lane.b32.xlu0 %v5044, 126
    %v5056 = vpop.permute.xlu0 %5055
    %v5061 = vadd.f32 %v5029, %v5050
    %v5062 = vadd.f32 %v5030, %v5052
    %v5063 = vadd.f32 %v5031, %v5054
    %v5064 = vadd.f32 %v5032, %v5056
    %5065 = vset.pattern.permute.xlu0 33
    %5066 = vperm.xlu0 %5065, %v4091
    %v5067 = vpop.permute.xlu0 %5066
    %5069 = vset.pattern.permute.xlu0 33
    %5070 = vperm.xlu0 %5069, %v4092
    %v5071 = vpop.permute.xlu0 %5070
    %v5073 = vlaneseq
    %v5074 = vshrl.u32 %v5073, 7
    %v5075 = vsub.s32 3, %v5074
    %v5076 = vrot.slane %v4078, %v5075
    %v5077 = vlaneseq
    %v5078 = vshrl.u32 %v5077, 7
    %v5079 = vsub.s32 3, %v5078
    %v5080 = vrot.slane %v4088, %v5079
    %v5081 = vmul.f32 %v5067, %v5076
    %v5082 = vmul.f32 %v5071, %v5076
    %v5083 = vmul.f32 %v5067, %v5080
    %v5084 = vmul.f32 %v5071, %v5080
    %v5085 = vadd.f32 %v5061, %v5081
    %v5086 = vadd.f32 %v5062, %v5082
    %v5087 = vadd.f32 %v5063, %v5083
    %v5088 = vadd.f32 %v5064, %v5084
    %5089 = vset.pattern.permute.xlu0 34
    %5090 = vperm.xlu0 %5089, %v4091
    %v5091 = vpop.permute.xlu0 %5090
    %5093 = vset.pattern.permute.xlu0 34
    %5094 = vperm.xlu0 %5093, %v4092
    %v5095 = vpop.permute.xlu0 %5094
    %v5097 = vmul.f32 %v5091, %v5076
    %v5098 = vmul.f32 %v5095, %v5076
    %v5099 = vmul.f32 %v5091, %v5080
    %v5100 = vmul.f32 %v5095, %v5080
    %5105 = vrot.lane.b32.xlu0 %v5097, 127
    %v5106 = vpop.permute.xlu0 %5105
    %5107 = vrot.lane.b32.xlu0 %v5098, 127
    %v5108 = vpop.permute.xlu0 %5107
    %5109 = vrot.lane.b32.xlu0 %v5099, 127
    %v5110 = vpop.permute.xlu0 %5109
    %5111 = vrot.lane.b32.xlu0 %v5100, 127
    %v5112 = vpop.permute.xlu0 %5111
    %v5117 = vadd.f32 %v5085, %v5106
    %v5118 = vadd.f32 %v5086, %v5108
    %v5119 = vadd.f32 %v5087, %v5110
    %v5120 = vadd.f32 %v5088, %v5112
    %5121 = vset.pattern.permute.xlu0 35
    %5122 = vperm.xlu0 %5121, %v4091
    %v5123 = vpop.permute.xlu0 %5122
    %5125 = vset.pattern.permute.xlu0 35
    %5126 = vperm.xlu0 %5125, %v4092
    %v5127 = vpop.permute.xlu0 %5126
    %v5129 = vmul.f32 %v5123, %v5076
    %v5130 = vmul.f32 %v5127, %v5076
    %v5131 = vmul.f32 %v5123, %v5080
    %v5132 = vmul.f32 %v5127, %v5080
    %5137 = vrot.lane.b32.xlu0 %v5129, 126
    %v5138 = vpop.permute.xlu0 %5137
    %5139 = vrot.lane.b32.xlu0 %v5130, 126
    %v5140 = vpop.permute.xlu0 %5139
    %5141 = vrot.lane.b32.xlu0 %v5131, 126
    %v5142 = vpop.permute.xlu0 %5141
    %5143 = vrot.lane.b32.xlu0 %v5132, 126
    %v5144 = vpop.permute.xlu0 %5143
    %v5149 = vadd.f32 %v5117, %v5138
    %v5150 = vadd.f32 %v5118, %v5140
    %v5151 = vadd.f32 %v5119, %v5142
    %v5152 = vadd.f32 %v5120, %v5144
    %5153 = vset.pattern.permute.xlu0 36
    %5154 = vperm.xlu0 %5153, %v4091
    %v5155 = vpop.permute.xlu0 %5154
    %5157 = vset.pattern.permute.xlu0 36
    %5158 = vperm.xlu0 %5157, %v4092
    %v5159 = vpop.permute.xlu0 %5158
    %v5161 = vlaneseq
    %v5162 = vshrl.u32 %v5161, 7
    %v5163 = vsub.s32 4, %v5162
    %v5164 = vrot.slane %v4078, %v5163
    %v5165 = vlaneseq
    %v5166 = vshrl.u32 %v5165, 7
    %v5167 = vsub.s32 4, %v5166
    %v5168 = vrot.slane %v4088, %v5167
    %v5169 = vmul.f32 %v5155, %v5164
    %v5170 = vmul.f32 %v5159, %v5164
    %v5171 = vmul.f32 %v5155, %v5168
    %v5172 = vmul.f32 %v5159, %v5168
    %v5173 = vadd.f32 %v5149, %v5169
    %v5174 = vadd.f32 %v5150, %v5170
    %v5175 = vadd.f32 %v5151, %v5171
    %v5176 = vadd.f32 %v5152, %v5172
    %5177 = vset.pattern.permute.xlu0 37
    %5178 = vperm.xlu0 %5177, %v4091
    %v5179 = vpop.permute.xlu0 %5178
    %5181 = vset.pattern.permute.xlu0 37
    %5182 = vperm.xlu0 %5181, %v4092
    %v5183 = vpop.permute.xlu0 %5182
    %v5185 = vmul.f32 %v5179, %v5164
    %v5186 = vmul.f32 %v5183, %v5164
    %v5187 = vmul.f32 %v5179, %v5168
    %v5188 = vmul.f32 %v5183, %v5168
    %5193 = vrot.lane.b32.xlu0 %v5185, 127
    %v5194 = vpop.permute.xlu0 %5193
    %5195 = vrot.lane.b32.xlu0 %v5186, 127
    %v5196 = vpop.permute.xlu0 %5195
    %5197 = vrot.lane.b32.xlu0 %v5187, 127
    %v5198 = vpop.permute.xlu0 %5197
    %5199 = vrot.lane.b32.xlu0 %v5188, 127
    %v5200 = vpop.permute.xlu0 %5199
    %v5205 = vadd.f32 %v5173, %v5194
    %v5206 = vadd.f32 %v5174, %v5196
    %v5207 = vadd.f32 %v5175, %v5198
    %v5208 = vadd.f32 %v5176, %v5200
    %5209 = vset.pattern.permute.xlu0 38
    %5210 = vperm.xlu0 %5209, %v4091
    %v5211 = vpop.permute.xlu0 %5210
    %5213 = vset.pattern.permute.xlu0 38
    %5214 = vperm.xlu0 %5213, %v4092
    %v5215 = vpop.permute.xlu0 %5214
    %v5217 = vmul.f32 %v5211, %v5164
    %v5218 = vmul.f32 %v5215, %v5164
    %v5219 = vmul.f32 %v5211, %v5168
    %v5220 = vmul.f32 %v5215, %v5168
    %5225 = vrot.lane.b32.xlu0 %v5217, 126
    %v5226 = vpop.permute.xlu0 %5225
    %5227 = vrot.lane.b32.xlu0 %v5218, 126
    %v5228 = vpop.permute.xlu0 %5227
    %5229 = vrot.lane.b32.xlu0 %v5219, 126
    %v5230 = vpop.permute.xlu0 %5229
    %5231 = vrot.lane.b32.xlu0 %v5220, 126
    %v5232 = vpop.permute.xlu0 %5231
    %v5237 = vadd.f32 %v5205, %v5226
    %v5238 = vadd.f32 %v5206, %v5228
    %v5239 = vadd.f32 %v5207, %v5230
    %v5240 = vadd.f32 %v5208, %v5232
    %5241 = vset.pattern.permute.xlu0 39
    %5242 = vperm.xlu0 %5241, %v4091
    %v5243 = vpop.permute.xlu0 %5242
    %5245 = vset.pattern.permute.xlu0 39
    %5246 = vperm.xlu0 %5245, %v4092
    %v5247 = vpop.permute.xlu0 %5246
    %v5249 = vlaneseq
    %v5250 = vshrl.u32 %v5249, 7
    %v5251 = vsub.s32 5, %v5250
    %v5252 = vrot.slane %v4078, %v5251
    %v5253 = vlaneseq
    %v5254 = vshrl.u32 %v5253, 7
    %v5255 = vsub.s32 5, %v5254
    %v5256 = vrot.slane %v4088, %v5255
    %v5257 = vmul.f32 %v5243, %v5252
    %v5258 = vmul.f32 %v5247, %v5252
    %v5259 = vmul.f32 %v5243, %v5256
    %v5260 = vmul.f32 %v5247, %v5256
    %v5261 = vadd.f32 %v5237, %v5257
    %v5262 = vadd.f32 %v5238, %v5258
    %v5263 = vadd.f32 %v5239, %v5259
    %v5264 = vadd.f32 %v5240, %v5260
    %5265 = vset.pattern.permute.xlu0 40
    %5266 = vperm.xlu0 %5265, %v4091
    %v5267 = vpop.permute.xlu0 %5266
    %5269 = vset.pattern.permute.xlu0 40
    %5270 = vperm.xlu0 %5269, %v4092
    %v5271 = vpop.permute.xlu0 %5270
    %v5273 = vmul.f32 %v5267, %v5252
    %v5274 = vmul.f32 %v5271, %v5252
    %v5275 = vmul.f32 %v5267, %v5256
    %v5276 = vmul.f32 %v5271, %v5256
    %5281 = vrot.lane.b32.xlu0 %v5273, 127
    %v5282 = vpop.permute.xlu0 %5281
    %5283 = vrot.lane.b32.xlu0 %v5274, 127
    %v5284 = vpop.permute.xlu0 %5283
    %5285 = vrot.lane.b32.xlu0 %v5275, 127
    %v5286 = vpop.permute.xlu0 %5285
    %5287 = vrot.lane.b32.xlu0 %v5276, 127
    %v5288 = vpop.permute.xlu0 %5287
    %v5293 = vadd.f32 %v5261, %v5282
    %v5294 = vadd.f32 %v5262, %v5284
    %v5295 = vadd.f32 %v5263, %v5286
    %v5296 = vadd.f32 %v5264, %v5288
    %5297 = vset.pattern.permute.xlu0 41
    %5298 = vperm.xlu0 %5297, %v4091
    %v5299 = vpop.permute.xlu0 %5298
    %5301 = vset.pattern.permute.xlu0 41
    %5302 = vperm.xlu0 %5301, %v4092
    %v5303 = vpop.permute.xlu0 %5302
    %v5305 = vmul.f32 %v5299, %v5252
    %v5306 = vmul.f32 %v5303, %v5252
    %v5307 = vmul.f32 %v5299, %v5256
    %v5308 = vmul.f32 %v5303, %v5256
    %5313 = vrot.lane.b32.xlu0 %v5305, 126
    %v5314 = vpop.permute.xlu0 %5313
    %5315 = vrot.lane.b32.xlu0 %v5306, 126
    %v5316 = vpop.permute.xlu0 %5315
    %5317 = vrot.lane.b32.xlu0 %v5307, 126
    %v5318 = vpop.permute.xlu0 %5317
    %5319 = vrot.lane.b32.xlu0 %v5308, 126
    %v5320 = vpop.permute.xlu0 %5319
    %v5325 = vadd.f32 %v5293, %v5314
    %v5326 = vadd.f32 %v5294, %v5316
    %v5327 = vadd.f32 %v5295, %v5318
    %v5328 = vadd.f32 %v5296, %v5320
    %5329 = vset.pattern.permute.xlu0 42
    %5330 = vperm.xlu0 %5329, %v4091
    %v5331 = vpop.permute.xlu0 %5330
    %5333 = vset.pattern.permute.xlu0 42
    %5334 = vperm.xlu0 %5333, %v4092
    %v5335 = vpop.permute.xlu0 %5334
    %v5337 = vlaneseq
    %v5338 = vshrl.u32 %v5337, 7
    %v5339 = vsub.s32 6, %v5338
    %v5340 = vrot.slane %v4078, %v5339
    %v5341 = vlaneseq
    %v5342 = vshrl.u32 %v5341, 7
    %v5343 = vsub.s32 6, %v5342
    %v5344 = vrot.slane %v4088, %v5343
    %v5345 = vmul.f32 %v5331, %v5340
    %v5346 = vmul.f32 %v5335, %v5340
    %v5347 = vmul.f32 %v5331, %v5344
    %v5348 = vmul.f32 %v5335, %v5344
    %v5349 = vadd.f32 %v5325, %v5345
    %v5350 = vadd.f32 %v5326, %v5346
    %v5351 = vadd.f32 %v5327, %v5347
    %v5352 = vadd.f32 %v5328, %v5348
    %5353 = vset.pattern.permute.xlu0 43
    %5354 = vperm.xlu0 %5353, %v4091
    %v5355 = vpop.permute.xlu0 %5354
    %5357 = vset.pattern.permute.xlu0 43
    %5358 = vperm.xlu0 %5357, %v4092
    %v5359 = vpop.permute.xlu0 %5358
    %v5361 = vmul.f32 %v5355, %v5340
    %v5362 = vmul.f32 %v5359, %v5340
    %v5363 = vmul.f32 %v5355, %v5344
    %v5364 = vmul.f32 %v5359, %v5344
    %5369 = vrot.lane.b32.xlu0 %v5361, 127
    %v5370 = vpop.permute.xlu0 %5369
    %5371 = vrot.lane.b32.xlu0 %v5362, 127
    %v5372 = vpop.permute.xlu0 %5371
    %5373 = vrot.lane.b32.xlu0 %v5363, 127
    %v5374 = vpop.permute.xlu0 %5373
    %5375 = vrot.lane.b32.xlu0 %v5364, 127
    %v5376 = vpop.permute.xlu0 %5375
    %v5381 = vadd.f32 %v5349, %v5370
    %v5382 = vadd.f32 %v5350, %v5372
    %v5383 = vadd.f32 %v5351, %v5374
    %v5384 = vadd.f32 %v5352, %v5376
    %5385 = vset.pattern.permute.xlu0 44
    %5386 = vperm.xlu0 %5385, %v4091
    %v5387 = vpop.permute.xlu0 %5386
    %5389 = vset.pattern.permute.xlu0 44
    %5390 = vperm.xlu0 %5389, %v4092
    %v5391 = vpop.permute.xlu0 %5390
    %v5393 = vmul.f32 %v5387, %v5340
    %v5394 = vmul.f32 %v5391, %v5340
    %v5395 = vmul.f32 %v5387, %v5344
    %v5396 = vmul.f32 %v5391, %v5344
    %5401 = vrot.lane.b32.xlu0 %v5393, 126
    %v5402 = vpop.permute.xlu0 %5401
    %5403 = vrot.lane.b32.xlu0 %v5394, 126
    %v5404 = vpop.permute.xlu0 %5403
    %5405 = vrot.lane.b32.xlu0 %v5395, 126
    %v5406 = vpop.permute.xlu0 %5405
    %5407 = vrot.lane.b32.xlu0 %v5396, 126
    %v5408 = vpop.permute.xlu0 %5407
    %v5413 = vadd.f32 %v5381, %v5402
    %v5414 = vadd.f32 %v5382, %v5404
    %v5415 = vadd.f32 %v5383, %v5406
    %v5416 = vadd.f32 %v5384, %v5408
    %5417 = vset.pattern.permute.xlu0 45
    %5418 = vperm.xlu0 %5417, %v4091
    %v5419 = vpop.permute.xlu0 %5418
    %5421 = vset.pattern.permute.xlu0 45
    %5422 = vperm.xlu0 %5421, %v4092
    %v5423 = vpop.permute.xlu0 %5422
    %v5425 = vlaneseq
    %v5426 = vshrl.u32 %v5425, 7
    %v5427 = vsub.s32 7, %v5426
    %v5428 = vrot.slane %v4078, %v5427
    %v5429 = vlaneseq
    %v5430 = vshrl.u32 %v5429, 7
    %v5431 = vsub.s32 7, %v5430
    %v5432 = vrot.slane %v4088, %v5431
    %v5433 = vmul.f32 %v5419, %v5428
    %v5434 = vmul.f32 %v5423, %v5428
    %v5435 = vmul.f32 %v5419, %v5432
    %v5436 = vmul.f32 %v5423, %v5432
    %v5437 = vadd.f32 %v5413, %v5433
    %v5438 = vadd.f32 %v5414, %v5434
    %v5439 = vadd.f32 %v5415, %v5435
    %v5440 = vadd.f32 %v5416, %v5436
    %5441 = vset.pattern.permute.xlu0 46
    %5442 = vperm.xlu0 %5441, %v4091
    %v5443 = vpop.permute.xlu0 %5442
    %5445 = vset.pattern.permute.xlu0 46
    %5446 = vperm.xlu0 %5445, %v4092
    %v5447 = vpop.permute.xlu0 %5446
    %v5449 = vmul.f32 %v5443, %v5428
    %v5450 = vmul.f32 %v5447, %v5428
    %v5451 = vmul.f32 %v5443, %v5432
    %v5452 = vmul.f32 %v5447, %v5432
    %5457 = vrot.lane.b32.xlu0 %v5449, 127
    %v5458 = vpop.permute.xlu0 %5457
    %5459 = vrot.lane.b32.xlu0 %v5450, 127
    %v5460 = vpop.permute.xlu0 %5459
    %5461 = vrot.lane.b32.xlu0 %v5451, 127
    %v5462 = vpop.permute.xlu0 %5461
    %5463 = vrot.lane.b32.xlu0 %v5452, 127
    %v5464 = vpop.permute.xlu0 %5463
    %v5469 = vadd.f32 %v5437, %v5458
    %v5470 = vadd.f32 %v5438, %v5460
    %v5471 = vadd.f32 %v5439, %v5462
    %v5472 = vadd.f32 %v5440, %v5464
    %5473 = vset.pattern.permute.xlu0 47
    %5474 = vperm.xlu0 %5473, %v4091
    %v5475 = vpop.permute.xlu0 %5474
    %5477 = vset.pattern.permute.xlu0 47
    %5478 = vperm.xlu0 %5477, %v4092
    %v5479 = vpop.permute.xlu0 %5478
    %v5481 = vmul.f32 %v5475, %v5428
    %v5482 = vmul.f32 %v5479, %v5428
    %v5483 = vmul.f32 %v5475, %v5432
    %v5484 = vmul.f32 %v5479, %v5432
    %5489 = vrot.lane.b32.xlu0 %v5481, 126
    %v5490 = vpop.permute.xlu0 %5489
    %5491 = vrot.lane.b32.xlu0 %v5482, 126
    %v5492 = vpop.permute.xlu0 %5491
    %5493 = vrot.lane.b32.xlu0 %v5483, 126
    %v5494 = vpop.permute.xlu0 %5493
    %5495 = vrot.lane.b32.xlu0 %v5484, 126
    %v5496 = vpop.permute.xlu0 %5495
    %v5501 = vadd.f32 %v5469, %v5490
    %v5502 = vadd.f32 %v5470, %v5492
    %v5503 = vadd.f32 %v5471, %v5494
    %v5504 = vadd.f32 %v5472, %v5496
    %vm5505 = vcmask 105472
    %v5506 = vsel %vm5505, %v5501, 0.0
    %5507 = vadd.xlane.f32.xlu0 %v5506
    %v5508 = vpop.xlane.xlu0 %5507
    %v5509 = vsel %vm5505, %v5502, 0.0
    %5510 = vadd.xlane.f32.xlu0 %v5509
    %v5511 = vpop.xlane.xlu0 %5510
    %v5512 = vsel %vm5505, %v5503, 0.0
    %5513 = vadd.xlane.f32.xlu0 %v5512
    %v5514 = vpop.xlane.xlu0 %5513
    %v5515 = vsel %vm5505, %v5504, 0.0
    %5516 = vadd.xlane.f32.xlu0 %v5515
    %v5517 = vpop.xlane.xlu0 %5516
    %v5518 = vadd.f32 %v5508, %v5514
    %v5519 = vadd.f32 %v5511, %v5517
    %v5520 = vmul.f32 %v5501, %v5501
    %v5521 = vmul.f32 %v5502, %v5502
    %v5522 = vmul.f32 %v5503, %v5503
    %v5523 = vmul.f32 %v5504, %v5504
    %v5524 = vsel %vm5505, %v5520, 0.0
    %5525 = vadd.xlane.f32.xlu0 %v5524
    %v5526 = vpop.xlane.xlu0 %5525
    %v5527 = vsel %vm5505, %v5521, 0.0
    %5528 = vadd.xlane.f32.xlu0 %v5527
    %v5529 = vpop.xlane.xlu0 %5528
    %v5530 = vsel %vm5505, %v5522, 0.0
    %5531 = vadd.xlane.f32.xlu0 %v5530
    %v5532 = vpop.xlane.xlu0 %5531
    %v5533 = vsel %vm5505, %v5523, 0.0
    %5534 = vadd.xlane.f32.xlu0 %v5533
    %v5535 = vpop.xlane.xlu0 %5534
    %v5536 = vadd.f32 %v5526, %v5532
    %v5537 = vadd.f32 %v5529, %v5535
    %v5538 = vrcp.pop 26.0
    %v5539 = vmul.f32 %v5518, %v5538
    %v5540 = vmul.f32 %v5519, %v5538
    %v5541 = vmul.f32 %v5536, %v5538
    %v5542 = vmul.f32 %v5537, %v5538
    %v5543 = vmul.f32 %v5539, %v5539
    %v5544 = vmul.f32 %v5540, %v5540
    %v5545 = vsub.f32 %v5541, %v5543
    %v5546 = vsub.f32 %v5542, %v5544
    %v5547 = vmax.f32 %v5545, 0.0
    %v5548 = vmax.f32 %v5546, 0.0
    %v5549 = vadd.f32 %v5547, 1e-05
    %v5550 = vadd.f32 %v5548, 1e-05
    %v5551 = vrsqrt.pop %v5549
    %v5552 = vrsqrt.pop %v5550
    %v5553 = vmul.f32 %v4093, %v5551
    %v5554 = vmul.f32 %v4094, %v5552
    %v5555 = vmul.f32 %v5539, %v5553
    %v5556 = vmul.f32 %v5540, %v5554
    %v5557 = vsub.f32 %v4095, %v5555
    %v5558 = vsub.f32 %v4096, %v5556
    %5560 = vset.pattern.permute.xlu0 0
    %5561 = vperm.xlu0 %5560, %v5553
    %v5562 = vpop.permute.xlu0 %5561
    %5565 = vset.pattern.permute.xlu0 0
    %5566 = vperm.xlu0 %5565, %v5554
    %v5567 = vpop.permute.xlu0 %5566
    %v5569 = vmul.f32 %v5501, %v5562
    %v5570 = vmul.f32 %v5502, %v5567
    %v5571 = vmul.f32 %v5503, %v5562
    %v5572 = vmul.f32 %v5504, %v5567
    %5574 = vset.pattern.permute.xlu0 0
    %5575 = vperm.xlu0 %5574, %v5557
    %v5576 = vpop.permute.xlu0 %5575
    %5579 = vset.pattern.permute.xlu0 0
    %5580 = vperm.xlu0 %5579, %v5558
    %v5581 = vpop.permute.xlu0 %5580
    %v5583 = vadd.f32 %v5569, %v5576
    %v5584 = vadd.f32 %v5570, %v5581
    %v5585 = vadd.f32 %v5571, %v5576
    %v5586 = vadd.f32 %v5572, %v5581
    %v5587 = vmax.f32 %v5583, 0.0
    %v5588 = vmax.f32 %v5584, 0.0
    %v5589 = vmax.f32 %v5585, 0.0
    %v5590 = vmax.f32 %v5586, 0.0
    %5595 = vrot.lane.b32.xlu0 %v5587, 127
    %v5596 = vpop.permute.xlu0 %5595
    %5597 = vrot.lane.b32.xlu0 %v5588, 127
    %v5598 = vpop.permute.xlu0 %5597
    %5599 = vrot.lane.b32.xlu0 %v5589, 127
    %v5600 = vpop.permute.xlu0 %5599
    %5601 = vrot.lane.b32.xlu0 %v5590, 127
    %v5602 = vpop.permute.xlu0 %5601
    %v5607 = vmax.f32 %v5587, %v5596
    %v5608 = vmax.f32 %v5588, %v5598
    %v5609 = vmax.f32 %v5589, %v5600
    %v5610 = vmax.f32 %v5590, %v5602
    %5611 = vrot.lane.b32.xlu0 %v5587, 126
    %v5612 = vpop.permute.xlu0 %5611
    %5613 = vrot.lane.b32.xlu0 %v5588, 126
    %v5614 = vpop.permute.xlu0 %5613
    %5615 = vrot.lane.b32.xlu0 %v5589, 126
    %v5616 = vpop.permute.xlu0 %5615
    %5617 = vrot.lane.b32.xlu0 %v5590, 126
    %v5618 = vpop.permute.xlu0 %5617
    %v5623 = vmax.f32 %v5607, %v5612
    %v5624 = vmax.f32 %v5608, %v5614
    %v5625 = vmax.f32 %v5609, %v5616
    %v5626 = vmax.f32 %v5610, %v5618
    %5627 = vrot.lane.b32.xlu0 %v5587, 125
    %v5628 = vpop.permute.xlu0 %5627
    %5629 = vrot.lane.b32.xlu0 %v5588, 125
    %v5630 = vpop.permute.xlu0 %5629
    %5631 = vrot.lane.b32.xlu0 %v5589, 125
    %v5632 = vpop.permute.xlu0 %5631
    %5633 = vrot.lane.b32.xlu0 %v5590, 125
    %v5634 = vpop.permute.xlu0 %5633
    %v5639 = vmax.f32 %v5623, %v5628
    %v5640 = vmax.f32 %v5624, %v5630
    %v5641 = vmax.f32 %v5625, %v5632
    %v5642 = vmax.f32 %v5626, %v5634
    %vm5643 = vcmask 80896
    %v5645 = vsel %vm5643, %v5639, 0
    %v5648 = vsel %vm5643, %v5640, 0
    %v5651 = vsel %vm5643, %v5641, 0
    %v5654 = vsel %vm5643, %v5642, 0
    %v5657 = vsel %vm3057, %v4098, 0
    %5659 = vmatprep.subr.mxu0 0.0
    %5660 = vmatpush1.msra.mxu0 %v4097
    %5661 = vmatprep.subr.mxu0 0.0
    %5662 = vmatpush1.msra.mxu0 %v5657
    %5663 = vmatprep.subr.mxu0 0.0
    %5664 = vmatpush1.msra.mxu0 0.0
    %5665 = vmatprep.subr.mxu0 0.0
    %5666 = vmatpush1.msra.mxu0 0.0
    %5667 = vmatprep.subr.mxu0 0.0
    %5668 = vmatpush1.msra.mxu0 0.0
    %5669 = vmatprep.subr.mxu0 0.0
    %5670 = vmatpush1.msra.mxu0 0.0
    %5671 = vmatprep.subr.mxu0 0.0
    %5672 = vmatpush1.msra.mxu0 0.0
    %5673 = vmatprep.subr.mxu0 0.0
    %5674 = vmatpush1.msra.mxu0 0.0
    %5675 = vmatprep.subr.mxu0 0.0
    %5676 = vmatpush1.msra.mxu0 0.0
    %5677 = vmatprep.subr.mxu0 0.0
    %5678 = vmatpush1.msra.mxu0 0.0
    %5679 = vmatprep.subr.mxu0 0.0
    %5680 = vmatpush1.msra.mxu0 0.0
    %5681 = vmatprep.subr.mxu0 0.0
    %5682 = vmatpush1.msra.mxu0 0.0
    %5683 = vmatprep.subr.mxu0 0.0
    %5684 = vmatpush1.msra.mxu0 0.0
    %5685 = vmatprep.subr.mxu0 0.0
    %5686 = vmatpush1.msra.mxu0 0.0
    %5687 = vmatprep.subr.mxu0 0.0
    %5688 = vmatpush1.msra.mxu0 0.0
    %5689 = vmatprep.subr.mxu0 0.0
    %5690 = vmatpush1.msra.mxu0 0.0
    %5691 = vmatprep.subr.mxu0 0.0
    %5692 = vmatpush1.msra.mxu0 0.0
    %5693 = vmatprep.subr.mxu0 0.0
    %5694 = vmatpush1.msra.mxu0 0.0
    %5695 = vmatprep.subr.mxu0 0.0
    %5696 = vmatpush1.msra.mxu0 0.0
    %5697 = vmatprep.subr.mxu0 0.0
    %5698 = vmatpush1.msra.mxu0 0.0
    %5699 = vmatprep.subr.mxu0 0.0
    %5700 = vmatpush1.msra.mxu0 0.0
    %5701 = vmatprep.subr.mxu0 0.0
    %5702 = vmatpush1.msra.mxu0 0.0
    %5703 = vmatprep.subr.mxu0 0.0
    %5704 = vmatpush1.msra.mxu0 0.0
    %5705 = vmatprep.subr.mxu0 0.0
    %5706 = vmatpush1.msra.mxu0 0.0
    %5707 = vmatprep.subr.mxu0 0.0
    %5708 = vmatpush1.msra.mxu0 0.0
    %5709 = vmatprep.subr.mxu0 0.0
    %5710 = vmatpush1.msra.mxu0 0.0
    %5711 = vmatprep.subr.mxu0 0.0
    %5712 = vmatpush1.msra.mxu0 0.0
    %5713 = vmatprep.subr.mxu0 0.0
    %5714 = vmatpush1.msra.mxu0 0.0
    %5715 = vmatprep.subr.mxu0 0.0
    %5716 = vmatpush1.msra.mxu0 0.0
    %5717 = vmatprep.subr.mxu0 0.0
    %5718 = vmatpush1.msra.mxu0 0.0
    %5719 = vmatprep.subr.mxu0 0.0
    %5720 = vmatpush1.msra.mxu0 0.0
    %5721 = vmatprep.subr.mxu0 0.0
    %5722 = vmatpush1.msra.mxu0 0.0
    %5723 = vmatprep.mubr.f32.mxu0 0.0
    %5724 = vmatmul.mubr.f32.gmra.mrb[0].mxu0 %v5645
    %v5725 = vpop.f32.mrb[0].mxu0
    %v5726 = vadd.f32 0.0, %v5725
    %v5727 = vpop.f32.mrb[0].mxu0
    %5728 = vmatprep.mubr.f32.mxu0 0.0
    %5729 = vmatmul.mubr.f32.gmra.mrb[0].mxu0 %v5648
    %v5730 = vpop.f32.mrb[0].mxu0
    %v5731 = vadd.f32 0.0, %v5730
    %v5732 = vpop.f32.mrb[0].mxu0
    %5733 = vmatprep.mubr.f32.mxu0 0.0
    %5734 = vmatmul.mubr.f32.gmra.mrb[0].mxu0 %v5651
    %v5735 = vpop.f32.mrb[0].mxu0
    %v5736 = vadd.f32 0.0, %v5735
    %v5737 = vpop.f32.mrb[0].mxu0
    %5738 = vmatprep.mubr.f32.mxu0 0.0
    %5739 = vmatmul.mubr.f32.gmra.mrb[0].mxu0 %v5654
    %v5740 = vpop.f32.mrb[0].mxu0
    %v5741 = vadd.f32 0.0, %v5740
    %v5742 = vpop.f32.mrb[0].mxu0
    %5743 = vdwg.mxu0
    %v5744 = vld [vmem:[%s17] sm:$0xff]
    %v5745 = vld [vmem:[%s17 + $0x8] sm:$0xff]
    %v5746 = vld [vmem:[%s18] sm:$0x1]
    %vm5747 = vcmask 23552
    %v5748 = vsel %vm5747, %v5726, 0.0
    %5749 = vadd.xlane.f32.xlu0 %v5748
    %v5750 = vpop.xlane.xlu0 %5749
    %v5751 = vsel %vm5747, %v5731, 0.0
    %5752 = vadd.xlane.f32.xlu0 %v5751
    %v5753 = vpop.xlane.xlu0 %5752
    %v5754 = vsel %vm5747, %v5736, 0.0
    %5755 = vadd.xlane.f32.xlu0 %v5754
    %v5756 = vpop.xlane.xlu0 %5755
    %v5757 = vsel %vm5747, %v5741, 0.0
    %5758 = vadd.xlane.f32.xlu0 %v5757
    %v5759 = vpop.xlane.xlu0 %5758
    %v5760 = vrcp.pop 3.0
    %v5761 = vmul.f32 %v5750, %v5760
    %v5762 = vmul.f32 %v5753, %v5760
    %v5763 = vmul.f32 %v5756, %v5760
    %v5764 = vmul.f32 %v5759, %v5760
    %v5766 = vlaneseq
    %v5767 = vshrl.u32 %v5766, 7
    %v5768 = vsub.s32 0, %v5767
    %v5769 = vrot.slane %v5746, %v5768
    %v5775 = vlaneseq
    %v5776 = vand.u32 %v5775, 127
    %v5777 = vlaneseq
    %v5778 = vshrl.u32 %v5777, 7
    %v5779 = vsub.s32 %v5776, %v5778
    %v5780 = vrot.slane %v5761, %v5779
    %v5781 = vadd.s32 %v5776, 4294967288
    %v5782 = vlaneseq
    %v5783 = vshrl.u32 %v5782, 7
    %v5784 = vsub.s32 %v5781, %v5783
    %v5785 = vrot.slane %v5762, %v5784
    %vm5786 = vcmask 130112
    %v5787 = vsel %vm5786, %v5785, %v5780
    %v5788 = vlaneseq
    %v5789 = vshrl.u32 %v5788, 7
    %v5790 = vsub.s32 %v5776, %v5789
    %v5791 = vrot.slane %v5763, %v5790
    %v5792 = vlaneseq
    %v5793 = vshrl.u32 %v5792, 7
    %v5794 = vsub.s32 %v5781, %v5793
    %v5795 = vrot.slane %v5764, %v5794
    %v5796 = vsel %vm5786, %v5795, %v5791
    %vm5797 = vcmask 1041409
    %v5798 = vsel %vm5797, %v5796, %v5787
    %vm5799 = vcmask 130048
    %v5800 = vsel %vm5799, %v5798, 0
    %5802 = vmatprep.subr.mxu0 0.0
    %5803 = vmatpush1.msra.mxu0 %v5744
    %5804 = vmatprep.subr.mxu0 0.0
    %5805 = vmatpush1.msra.mxu0 %v5745
    %5806 = vmatprep.subr.mxu0 0.0
    %5807 = vmatpush1.msra.mxu0 0.0
    %5808 = vmatprep.subr.mxu0 0.0
    %5809 = vmatpush1.msra.mxu0 0.0
    %5810 = vmatprep.subr.mxu0 0.0
    %5811 = vmatpush1.msra.mxu0 0.0
    %5812 = vmatprep.subr.mxu0 0.0
    %5813 = vmatpush1.msra.mxu0 0.0
    %5814 = vmatprep.subr.mxu0 0.0
    %5815 = vmatpush1.msra.mxu0 0.0
    %5816 = vmatprep.subr.mxu0 0.0
    %5817 = vmatpush1.msra.mxu0 0.0
    %5818 = vmatprep.subr.mxu0 0.0
    %5819 = vmatpush1.msra.mxu0 0.0
    %5820 = vmatprep.subr.mxu0 0.0
    %5821 = vmatpush1.msra.mxu0 0.0
    %5822 = vmatprep.subr.mxu0 0.0
    %5823 = vmatpush1.msra.mxu0 0.0
    %5824 = vmatprep.subr.mxu0 0.0
    %5825 = vmatpush1.msra.mxu0 0.0
    %5826 = vmatprep.subr.mxu0 0.0
    %5827 = vmatpush1.msra.mxu0 0.0
    %5828 = vmatprep.subr.mxu0 0.0
    %5829 = vmatpush1.msra.mxu0 0.0
    %5830 = vmatprep.subr.mxu0 0.0
    %5831 = vmatpush1.msra.mxu0 0.0
    %5832 = vmatprep.subr.mxu0 0.0
    %5833 = vmatpush1.msra.mxu0 0.0
    %5834 = vmatprep.subr.mxu0 0.0
    %5835 = vmatpush1.msra.mxu0 0.0
    %5836 = vmatprep.subr.mxu0 0.0
    %5837 = vmatpush1.msra.mxu0 0.0
    %5838 = vmatprep.subr.mxu0 0.0
    %5839 = vmatpush1.msra.mxu0 0.0
    %5840 = vmatprep.subr.mxu0 0.0
    %5841 = vmatpush1.msra.mxu0 0.0
    %5842 = vmatprep.subr.mxu0 0.0
    %5843 = vmatpush1.msra.mxu0 0.0
    %5844 = vmatprep.subr.mxu0 0.0
    %5845 = vmatpush1.msra.mxu0 0.0
    %5846 = vmatprep.subr.mxu0 0.0
    %5847 = vmatpush1.msra.mxu0 0.0
    %5848 = vmatprep.subr.mxu0 0.0
    %5849 = vmatpush1.msra.mxu0 0.0
    %5850 = vmatprep.subr.mxu0 0.0
    %5851 = vmatpush1.msra.mxu0 0.0
    %5852 = vmatprep.subr.mxu0 0.0
    %5853 = vmatpush1.msra.mxu0 0.0
    %5854 = vmatprep.subr.mxu0 0.0
    %5855 = vmatpush1.msra.mxu0 0.0
    %5856 = vmatprep.subr.mxu0 0.0
    %5857 = vmatpush1.msra.mxu0 0.0
    %5858 = vmatprep.subr.mxu0 0.0
    %5859 = vmatpush1.msra.mxu0 0.0
    %5860 = vmatprep.subr.mxu0 0.0
    %5861 = vmatpush1.msra.mxu0 0.0
    %5862 = vmatprep.subr.mxu0 0.0
    %5863 = vmatpush1.msra.mxu0 0.0
    %5864 = vmatprep.subr.mxu0 0.0
    %5865 = vmatpush1.msra.mxu0 0.0
    %5866 = vmatprep.mubr.f32.mxu0 0.0
    %5867 = vmatmul.mubr.f32.gmra.mrb[0].mxu0 %v5800
    %v5868 = vpop.f32.mrb[0].mxu0
    %v5869 = vadd.f32 %v5769, %v5868
    %v5870 = vpop.f32.mrb[0].mxu0
    %5871 = vdwg.mxu0
    %vm5872 = vcmask 74752
    %v5873 = vsel %vm5872, %v5869, -inf
    %5874 = vmax.xlane.f32.xlu0 %v5873
    %v5875 = vpop.xlane.xlu0 %5874
    %v5876 = vsub.f32 %v5869, %v5875
    %v5877 = vmul.f32 %v5876, 1.442695
    %v5878 = vpow.pop %v5877
    %v5879 = vsel %vm5872, %v5878, 0.0
    %5880 = vadd.xlane.f32.xlu0 %v5879
    %v5881 = vpop.xlane.xlu0 %5880
    %v5882 = vlog2.pop %v5881
    %v5883 = vmul.f32 %v5882, 0.6931472
    %v5884 = vsub.f32 %v5876, %v5883
    %5885 = vst.msk [vmem:[#allocation2] sm:$0x3] %vm5872, %v5884
    // Predicated region
    $region78: #{m5_forward.1} parent=1 // pred_check
      _
    $region79: #{m5_forward.1} parent=1 // pred_check_branch
      %5887 = sbr.rel (0) target = $region81
    $region80: #{m5_forward.1} parent=1 // pred_region
      %s5889 = ssub.s32 32, 32
      %5890 = vsyncadd [#allocation3], %s5889
      %s5892 = sshll.u32 [#allocation2], 4
      %s5893 = int_to_ptr.vmem [resolvable:$true] %s5892
      %5895 = dma.vmem_to_hbm [thread:$0]  %s5893, 32, %s19, [#allocation3]
    $region81: #{m5_forward.1} parent=1 // pred_fallthru
      _
    // Predicated region
    $region82: #{m5_forward.1} parent=1 // pred_check
      _
    $region83: #{m5_forward.1} parent=1 // pred_check_branch
      %5897 = sbr.rel (0) target = $region85
    $region84: #{m5_forward.1} parent=1 // pred_region
      %5898 = dma.done [#allocation3], 32
    $region85: #{m5_forward.1} parent=1 // pred_fallthru
      _
    %5899 = vsyncpa [#allocation3], 1

</llo_original>
